<compile_context>
chip_gen: v6e
topology: v6e:2x2x1
jax: 0.10.0
libtpu: 0.0.40
codegen_flags: <defaults>
</compile_context>

<pallas_src>
import functools

import jax
import jax.numpy as jnp
from jax import lax
from jax.experimental import pallas as pl
from jax.experimental.pallas import tpu as pltpu


def _bilstm_kernel(xf_ref, xb_ref, len_ref,
                   wxf_ref, whf_ref, bf_ref,
                   wxb_ref, whb_ref, bb_ref,
                   out_ref,
                   hf_s, cf_s, hb_s, cb_s,
                   *, hidden_pad, block_t, seq_len_pad, n_time_blocks,
                   chunk_rows, unroll):
    """One (chunk, time-block) grid step of the fused BiLSTM recurrence."""
    Hp = hidden_pad
    T = block_t
    BC = chunk_rows
    t_blk = pl.program_id(1)

    @pl.when(t_blk == 0)
    def _init():
        hf_s[...] = jnp.zeros_like(hf_s)
        cf_s[...] = jnp.zeros_like(cf_s)
        hb_s[...] = jnp.zeros_like(hb_s)
        cb_s[...] = jnp.zeros_like(cb_s)

    lens = len_ref[...]                     # (BC, 1) int32
    wxf = wxf_ref[...]                      # (E, 4Hp) f32
    whf = whf_ref[...]                      # (Hp, 4Hp) f32
    bfv = bf_ref[...]                       # (1, 4Hp) f32
    wxb = wxb_ref[...]
    whb = whb_ref[...]
    bbv = bb_ref[...]

    def sig(z):
        # sigmoid(z) == 0.5*tanh(0.5*z) + 0.5 : single EUP op per element.
        return 0.5 * jnp.tanh(0.5 * z) + 0.5

    def cell(x_t, h, c, wx, wh, b, valid):
        # PyTorch LSTM gate order: i, f, g, o.  Fused input projection: the
        # x_t @ wx dot does not depend on h, so with partial unroll the LLO
        # scheduler can overlap it with the previous step's activations.
        gates = (jnp.dot(x_t, wx, preferred_element_type=jnp.float32)
                 + jnp.dot(h, wh, preferred_element_type=jnp.float32)
                 + b)
        i = sig(gates[:, 0 * Hp:1 * Hp])
        f = sig(gates[:, 1 * Hp:2 * Hp])
        g = jnp.tanh(gates[:, 2 * Hp:3 * Hp])
        o = sig(gates[:, 3 * Hp:4 * Hp])
        c_new = f * c + i * g
        h_new = o * jnp.tanh(c_new)
        # Freeze state on padded steps (pack_padded_sequence semantics).
        return jnp.where(valid, h_new, h), jnp.where(valid, c_new, c)

    def step(s, carry):
        hf, cf, hb, cb = carry
        gt_f = t_blk * T + s                       # global forward timestep
        gt_b = (seq_len_pad - 1) - gt_f            # global backward timestep
        # Hoist the (BC, Hp) mask broadcasts: once per direction per step.
        valid_f = jnp.broadcast_to(gt_f < lens, (BC, Hp))
        valid_b = jnp.broadcast_to(gt_b < lens, (BC, Hp))
        hf, cf = cell(xf_ref[s], hf, cf, wxf, whf, bfv, valid_f)
        hb, cb = cell(xb_ref[T - 1 - s], hb, cb, wxb, whb, bbv, valid_b)
        return hf, cf, hb, cb

    carry0 = (hf_s[...], cf_s[...], hb_s[...], cb_s[...])
    hf, cf, hb, cb = lax.fori_loop(0, T, step, carry0, unroll=unroll)

    hf_s[...] = hf
    cf_s[...] = cf
    hb_s[...] = hb
    cb_s[...] = cb

    @pl.when(t_blk == n_time_blocks - 1)
    def _finalize():
        # Lane-concatenated output: [fwd final hidden | bwd final hidden].
        out_ref[:, :Hp] = hf
        out_ref[:, Hp:] = hb


def _default_num_chunks():
    """2 chunks (one per TensorCore) on v7x, 1 on single-TC v5e/v6e/others."""
    try:
        kind = jax.devices()[0].device_kind.lower()
    except Exception:
        return 1
    return 2 if ("v7" in kind or "7x" in kind) else 1


def feature_extraction(x, lengths, params, hidden, *, num_chunks=None,
                       block_t=None):
    """x: (B, N, L, E) float32, lengths: (B, N) int -> (B, N, 2*hidden)."""
    B, N, L, E = x.shape
    H = hidden
    wxf, whf, bf, wxb, whb, bb = params

    if num_chunks is None:
        num_chunks = _default_num_chunks()

    # Pad hidden dim to a lane-aligned multiple of 128.  Padded gate lanes get
    # zero weights/bias -> i=f=o=0.5, g=0, so padded h/c lanes stay exactly 0.
    Hp = -(-H // 128) * 128

    def pad_gate_cols(w, lead):
        w4 = w.reshape(lead, 4, H)
        w4 = jnp.pad(w4, ((0, 0), (0, 0), (0, Hp - H)))
        return w4.reshape(lead, 4 * Hp).astype(jnp.float32)

    wxf_p = pad_gate_cols(wxf, E)
    wxb_p = pad_gate_cols(wxb, E)
    bf_p = pad_gate_cols(bf, 1)
    bb_p = pad_gate_cols(bb, 1)
    whf_p = jnp.pad(pad_gate_cols(whf, H), ((0, Hp - H), (0, 0)))
    whb_p = jnp.pad(pad_gate_cols(whb, H), ((0, Hp - H), (0, 0)))

    # Flatten and pad the batch so each parallel chunk is sublane-aligned.
    BN = B * N
    row_align = 8 * num_chunks
    BN_pad = -(-BN // row_align) * row_align
    BC = BN_pad // num_chunks

    # Time-block size: stream x in T-step slabs (VMEM = O(T*BC*E), not O(L)).
    T = block_t if block_t is not None else min(L, 32)
    ntb = -(-L // T)
    L_pad = ntb * T

    x2 = x.reshape(BN, L, E).astype(jnp.float32)
    x2 = jnp.pad(x2, ((0, BN_pad - BN), (0, L_pad - L), (0, 0)))
    xt = jnp.transpose(x2, (1, 0, 2))                 # (L_pad, BN_pad, E)

    lens = lengths.reshape(BN).astype(jnp.int32)
    lens = jnp.pad(lens, ((0, BN_pad - BN),)).reshape(BN_pad, 1)

    kernel = functools.partial(
        _bilstm_kernel, hidden_pad=Hp, block_t=T, seq_len_pad=L_pad,
        n_time_blocks=ntb, chunk_rows=BC, unroll=min(T, 8))

    out = pl.pallas_call(
        kernel,
        out_shape=jax.ShapeDtypeStruct((BN_pad, 2 * Hp), jnp.float32),
        grid_spec=pltpu.PrefetchScalarGridSpec(
            num_scalar_prefetch=0,
            grid=(num_chunks, ntb),
            in_specs=[
                # x slab for the forward direction (time block t)
                pl.BlockSpec((T, BC, E), lambda c, t: (t, c, 0)),
                # x slab for the backward direction (time block ntb-1-t)
                pl.BlockSpec((T, BC, E), lambda c, t: (ntb - 1 - t, c, 0)),
                pl.BlockSpec((BC, 1), lambda c, t: (c, 0)),        # lengths
                pl.BlockSpec((E, 4 * Hp), lambda c, t: (0, 0)),    # Wx fwd
                pl.BlockSpec((Hp, 4 * Hp), lambda c, t: (0, 0)),   # Wh fwd
                pl.BlockSpec((1, 4 * Hp), lambda c, t: (0, 0)),    # b fwd
                pl.BlockSpec((E, 4 * Hp), lambda c, t: (0, 0)),    # Wx bwd
                pl.BlockSpec((Hp, 4 * Hp), lambda c, t: (0, 0)),   # Wh bwd
                pl.BlockSpec((1, 4 * Hp), lambda c, t: (0, 0)),    # b bwd
            ],
            out_specs=pl.BlockSpec((BC, 2 * Hp), lambda c, t: (c, 0)),
            scratch_shapes=[pltpu.VMEM((BC, Hp), jnp.float32)] * 4,
        ),
        compiler_params=pltpu.CompilerParams(
            # chunk axis parallel (both v7x TCs), time axis is a carried
            # recurrence -> arbitrary.
            dimension_semantics=("parallel", "arbitrary"),
            # <= v7x's 64 MiB per-TC VMEM, with headroom for double-buffering.
            vmem_limit_bytes=48 * 1024 * 1024),
    )(xt, xt, lens, wxf_p, whf_p, bf_p, wxb_p, whb_p, bb_p)

    if Hp == H:
        feat = out[:BN]
    else:
        feat = jnp.concatenate([out[:BN, :H], out[:BN, Hp:Hp + H]], axis=-1)
    return feat.reshape(B, N, 2 * H)


def ref_feature_extraction(x, lengths, params, hidden):
    """Pure-JAX (f32) reference mirroring the PyTorch forward semantics."""
    wxf, whf, bf, wxb, whb, bb = params
    B, N, L, E = x.shape
    H = hidden

    def cell(xt, h, c, wx, wh, b):
        gates = xt @ wx + h @ wh + b[0]
        i = jax.nn.sigmoid(gates[0 * H:1 * H])
        f = jax.nn.sigmoid(gates[1 * H:2 * H])
        g = jnp.tanh(gates[2 * H:3 * H])
        o = jax.nn.sigmoid(gates[3 * H:4 * H])
        c = f * c + i * g
        h = o * jnp.tanh(c)
        return h, c

    out = []
    for b_i in range(B):
        rows = []
        for n_i in range(N):
            Lc = int(lengths[b_i, n_i])
            h = jnp.zeros((H,), jnp.float32)
            c = jnp.zeros((H,), jnp.float32)
            for t in range(Lc):
                h, c = cell(x[b_i, n_i, t], h, c, wxf, whf, bf)
            hf = h
            h = jnp.zeros((H,), jnp.float32)
            c = jnp.zeros((H,), jnp.float32)
            for t in range(Lc - 1, -1, -1):
                h, c = cell(x[b_i, n_i, t], h, c, wxb, whb, bb)
            rows.append(jnp.concatenate([hf, h]))
        out.append(jnp.stack(rows))
    return jnp.stack(out)


if __name__ == "__main__":
    B, N, L, E, H = 2, 4, 8, 32, 32   # batch of B "documents", N seqs each

    key = jax.random.PRNGKey(0)
    ks = jax.random.split(key, 8)
    bound = float(1.0 / (H ** 0.5))

    def u(k_, shape):
        return jax.random.uniform(k_, shape, jnp.float32, -bound, bound)

    # (W_ih.T, W_hh.T, b_ih + b_hh) for forward and backward directions
    params = (u(ks[0], (E, 4 * H)), u(ks[1], (H, 4 * H)), u(ks[2], (1, 4 * H)),
              u(ks[3], (E, 4 * H)), u(ks[4], (H, 4 * H)), u(ks[5], (1, 4 * H)))

    x = jax.random.normal(ks[6], (B, N, L, E), jnp.float32)
    lengths = jax.random.randint(ks[7], (B, N), 1, L + 1).astype(jnp.int32)

    out = feature_extraction(x, lengths, params, H)
    out = jax.block_until_ready(out)

    ref = ref_feature_extraction(x, lengths, params, H)
    assert out.shape == (B, N, 2 * H), out.shape
    # All state/elementwise math is f32; matmuls are f32 with f32 accumulation
    # (default TPU matmul precision may truncate mantissas -> allow ~1e-2).
    max_err = float(jnp.max(jnp.abs(out - ref)))
    assert jnp.allclose(out, ref, atol=2e-2, rtol=2e-2), max_err

    print("KERNEL_OK")
</pallas_src>

<mosaic_0001>
module attributes {stable_mosaic.version = 11 : i64} {
  func.func @_bilstm_kernel(%arg0: i32, %arg1: i32, %arg2: memref<8x8x32xf32, #tpu.memory_space<vmem>>, %arg3: memref<8x8x32xf32, #tpu.memory_space<vmem>>, %arg4: memref<8x1xi32, #tpu.memory_space<vmem>>, %arg5: memref<32x512xf32, #tpu.memory_space<vmem>>, %arg6: memref<128x512xf32, #tpu.memory_space<vmem>>, %arg7: memref<1x512xf32, #tpu.memory_space<vmem>>, %arg8: memref<32x512xf32, #tpu.memory_space<vmem>>, %arg9: memref<128x512xf32, #tpu.memory_space<vmem>>, %arg10: memref<1x512xf32, #tpu.memory_space<vmem>>, %arg11: memref<8x256xf32, #tpu.memory_space<vmem>>, %arg12: memref<8x128xf32, #tpu.memory_space<vmem>>, %arg13: memref<8x128xf32, #tpu.memory_space<vmem>>, %arg14: memref<8x128xf32, #tpu.memory_space<vmem>>, %arg15: memref<8x128xf32, #tpu.memory_space<vmem>>) attributes {dimension_semantics = [#tpu.dimension_semantics<parallel>, #tpu.dimension_semantics<arbitrary>], iteration_bounds = array<i64: 1, 1>, scalar_prefetch = 0 : i64, scratch_operands = 4 : i64, tpu.core_type = #tpu.core_type<tc>, window_params = [{transform_indices = @transform_0, window_bounds = array<i64: 8, 8, 32>}, {transform_indices = @transform_1, window_bounds = array<i64: 8, 8, 32>}, {transform_indices = @transform_2, window_bounds = array<i64: 8, 1>}, {pipeline_mode = #tpu.pipeline_mode<synchronous>, transform_indices = @transform_3, window_bounds = array<i64: 32, 512>}, {pipeline_mode = #tpu.pipeline_mode<synchronous>, transform_indices = @transform_4, window_bounds = array<i64: 128, 512>}, {pipeline_mode = #tpu.pipeline_mode<synchronous>, transform_indices = @transform_5, window_bounds = array<i64: 1, 512>}, {pipeline_mode = #tpu.pipeline_mode<synchronous>, transform_indices = @transform_6, window_bounds = array<i64: 32, 512>}, {pipeline_mode = #tpu.pipeline_mode<synchronous>, transform_indices = @transform_7, window_bounds = array<i64: 128, 512>}, {pipeline_mode = #tpu.pipeline_mode<synchronous>, transform_indices = @transform_8, window_bounds = array<i64: 1, 512>}, {transform_indices = @transform_9, window_bounds = array<i64: 8, 256>}]} {
    %c0_i32 = arith.constant 0 : i32
    %0 = arith.cmpi eq, %arg1, %c0_i32 : i32
    %1 = arith.extui %0 : i1 to i32
    %c0_i32_0 = arith.constant 0 : i32
    %2 = arith.cmpi ne, %1, %c0_i32_0 : i32
    scf.if %2 {
      %cst_264 = arith.constant 0.000000e+00 : f32
      %773 = vector.broadcast %cst_264 : f32 to vector<8x128xf32>
      %c0_265 = arith.constant 0 : index
      %c0_266 = arith.constant 0 : index
      %774 = vector.load %arg12[%c0_265, %c0_266] : memref<8x128xf32, #tpu.memory_space<vmem>>, vector<8x128xf32>
      tpu.vector_store %arg12[%c0_265, %c0_266], %773 {strides = array<i32>} : memref<8x128xf32, #tpu.memory_space<vmem>>, vector<8x128xf32>,
      %cst_267 = arith.constant 0.000000e+00 : f32
      %775 = vector.broadcast %cst_267 : f32 to vector<8x128xf32>
      %c0_268 = arith.constant 0 : index
      %c0_269 = arith.constant 0 : index
      %776 = vector.load %arg13[%c0_268, %c0_269] : memref<8x128xf32, #tpu.memory_space<vmem>>, vector<8x128xf32>
      tpu.vector_store %arg13[%c0_268, %c0_269], %775 {strides = array<i32>} : memref<8x128xf32, #tpu.memory_space<vmem>>, vector<8x128xf32>,
      %cst_270 = arith.constant 0.000000e+00 : f32
      %777 = vector.broadcast %cst_270 : f32 to vector<8x128xf32>
      %c0_271 = arith.constant 0 : index
      %c0_272 = arith.constant 0 : index
      %778 = vector.load %arg14[%c0_271, %c0_272] : memref<8x128xf32, #tpu.memory_space<vmem>>, vector<8x128xf32>
      tpu.vector_store %arg14[%c0_271, %c0_272], %777 {strides = array<i32>} : memref<8x128xf32, #tpu.memory_space<vmem>>, vector<8x128xf32>,
      %cst_273 = arith.constant 0.000000e+00 : f32
      %779 = vector.broadcast %cst_273 : f32 to vector<8x128xf32>
      %c0_274 = arith.constant 0 : index
      %c0_275 = arith.constant 0 : index
      %780 = vector.load %arg15[%c0_274, %c0_275] : memref<8x128xf32, #tpu.memory_space<vmem>>, vector<8x128xf32>
      tpu.vector_store %arg15[%c0_274, %c0_275], %779 {strides = array<i32>} : memref<8x128xf32, #tpu.memory_space<vmem>>, vector<8x128xf32>,
    } else {
    }
    %c0 = arith.constant 0 : index
    %c0_1 = arith.constant 0 : index
    %3 = vector.load %arg4[%c0, %c0_1] : memref<8x1xi32, #tpu.memory_space<vmem>>, vector<8x1xi32>
    %c0_2 = arith.constant 0 : index
    %c0_3 = arith.constant 0 : index
    %4 = vector.load %arg5[%c0_2, %c0_3] : memref<32x512xf32, #tpu.memory_space<vmem>>, vector<32x512xf32>
    %c0_4 = arith.constant 0 : index
    %c0_5 = arith.constant 0 : index
    %5 = vector.load %arg6[%c0_4, %c0_5] : memref<128x512xf32, #tpu.memory_space<vmem>>, vector<128x512xf32>
    %c0_6 = arith.constant 0 : index
    %c0_7 = arith.constant 0 : index
    %6 = vector.load %arg7[%c0_6, %c0_7] : memref<1x512xf32, #tpu.memory_space<vmem>>, vector<1x512xf32>
    %c0_8 = arith.constant 0 : index
    %c0_9 = arith.constant 0 : index
    %7 = vector.load %arg8[%c0_8, %c0_9] : memref<32x512xf32, #tpu.memory_space<vmem>>, vector<32x512xf32>
    %c0_10 = arith.constant 0 : index
    %c0_11 = arith.constant 0 : index
    %8 = vector.load %arg9[%c0_10, %c0_11] : memref<128x512xf32, #tpu.memory_space<vmem>>, vector<128x512xf32>
    %c0_12 = arith.constant 0 : index
    %c0_13 = arith.constant 0 : index
    %9 = vector.load %arg10[%c0_12, %c0_13] : memref<1x512xf32, #tpu.memory_space<vmem>>, vector<1x512xf32>
    %c0_14 = arith.constant 0 : index
    %c0_15 = arith.constant 0 : index
    %10 = vector.load %arg12[%c0_14, %c0_15] : memref<8x128xf32, #tpu.memory_space<vmem>>, vector<8x128xf32>
    %c0_16 = arith.constant 0 : index
    %c0_17 = arith.constant 0 : index
    %11 = vector.load %arg13[%c0_16, %c0_17] : memref<8x128xf32, #tpu.memory_space<vmem>>, vector<8x128xf32>
    %c0_18 = arith.constant 0 : index
    %c0_19 = arith.constant 0 : index
    %12 = vector.load %arg14[%c0_18, %c0_19] : memref<8x128xf32, #tpu.memory_space<vmem>>, vector<8x128xf32>
    %c0_20 = arith.constant 0 : index
    %c0_21 = arith.constant 0 : index
    %13 = vector.load %arg15[%c0_20, %c0_21] : memref<8x128xf32, #tpu.memory_space<vmem>>, vector<8x128xf32>
    %c0_i32_22 = arith.constant 0 : i32
    %c8_i32 = arith.constant 8 : i32
    %14 = arith.muli %arg1, %c8_i32 : i32
    %15 = arith.addi %14, %c0_i32_22 : i32
    %c7_i32 = arith.constant 7 : i32
    %16 = arith.subi %c7_i32, %15 : i32
    %17 = vector.broadcast %15 : i32 to vector<8x1xi32>
    %18 = arith.cmpi slt, %17, %3 : vector<8x1xi32>
    %19 = vector.shape_cast %18 : vector<8x1xi1> to vector<8x1xi1>
    %20 = vector.broadcast %19 : vector<8x1xi1> to vector<8x128xi1>
    %21 = vector.broadcast %16 : i32 to vector<8x1xi32>
    %22 = arith.cmpi slt, %21, %3 : vector<8x1xi32>
    %23 = vector.shape_cast %22 : vector<8x1xi1> to vector<8x1xi1>
    %24 = vector.broadcast %23 : vector<8x1xi1> to vector<8x128xi1>
    %25 = arith.index_cast %c0_i32_22 : i32 to index
    %c0_23 = arith.constant 0 : index
    %c0_24 = arith.constant 0 : index
    %26 = vector.load %arg2[%25, %c0_23, %c0_24] : memref<8x8x32xf32, #tpu.memory_space<vmem>>, vector<1x8x32xf32>
    %27 = vector.shape_cast %26 : vector<1x8x32xf32> to vector<8x32xf32>
    %cst = arith.constant dense<0.000000e+00> : vector<8x512xf32>
    %28 = tpu.matmul %27, %4, %cst {dimension_numbers = #tpu.dot_dimension_numbers<[1], [0], [0], [1], [0, 0, 1, 1], [], []>} : vector<8x32xf32>, vector<32x512xf32>, vector<8x512xf32> -> vector<8x512xf32>
    %cst_25 = arith.constant dense<0.000000e+00> : vector<8x512xf32>
    %29 = tpu.matmul %10, %5, %cst_25 {dimension_numbers = #tpu.dot_dimension_numbers<[1], [0], [0], [1], [0, 0, 1, 1], [], []>} : vector<8x128xf32>, vector<128x512xf32>, vector<8x512xf32> -> vector<8x512xf32>
    %30 = arith.addf %28, %29 : vector<8x512xf32>
    %31 = vector.broadcast %6 : vector<1x512xf32> to vector<8x512xf32>
    %32 = arith.addf %30, %31 : vector<8x512xf32>
    %33 = vector.extract_strided_slice %32 {offsets = [0, 0], sizes = [8, 128], strides = [1, 1]} : vector<8x512xf32> to vector<8x128xf32>
    %cst_26 = arith.constant 5.000000e-01 : f32
    %34 = vector.broadcast %cst_26 : f32 to vector<8x128xf32>
    %35 = arith.mulf %34, %33 : vector<8x128xf32>
    %36 = math.tanh %35 : vector<8x128xf32>
    %cst_27 = arith.constant 5.000000e-01 : f32
    %37 = vector.broadcast %cst_27 : f32 to vector<8x128xf32>
    %38 = arith.mulf %37, %36 : vector<8x128xf32>
    %cst_28 = arith.constant 5.000000e-01 : f32
    %39 = vector.broadcast %cst_28 : f32 to vector<8x128xf32>
    %40 = arith.addf %38, %39 : vector<8x128xf32>
    %41 = vector.extract_strided_slice %32 {offsets = [0, 128], sizes = [8, 128], strides = [1, 1]} : vector<8x512xf32> to vector<8x128xf32>
    %cst_29 = arith.constant 5.000000e-01 : f32
    %42 = vector.broadcast %cst_29 : f32 to vector<8x128xf32>
    %43 = arith.mulf %42, %41 : vector<8x128xf32>
    %44 = math.tanh %43 : vector<8x128xf32>
    %cst_30 = arith.constant 5.000000e-01 : f32
    %45 = vector.broadcast %cst_30 : f32 to vector<8x128xf32>
    %46 = arith.mulf %45, %44 : vector<8x128xf32>
    %cst_31 = arith.constant 5.000000e-01 : f32
    %47 = vector.broadcast %cst_31 : f32 to vector<8x128xf32>
    %48 = arith.addf %46, %47 : vector<8x128xf32>
    %49 = vector.extract_strided_slice %32 {offsets = [0, 256], sizes = [8, 128], strides = [1, 1]} : vector<8x512xf32> to vector<8x128xf32>
    %50 = math.tanh %49 : vector<8x128xf32>
    %51 = vector.extract_strided_slice %32 {offsets = [0, 384], sizes = [8, 128], strides = [1, 1]} : vector<8x512xf32> to vector<8x128xf32>
    %cst_32 = arith.constant 5.000000e-01 : f32
    %52 = vector.broadcast %cst_32 : f32 to vector<8x128xf32>
    %53 = arith.mulf %52, %51 : vector<8x128xf32>
    %54 = math.tanh %53 : vector<8x128xf32>
    %cst_33 = arith.constant 5.000000e-01 : f32
    %55 = vector.broadcast %cst_33 : f32 to vector<8x128xf32>
    %56 = arith.mulf %55, %54 : vector<8x128xf32>
    %cst_34 = arith.constant 5.000000e-01 : f32
    %57 = vector.broadcast %cst_34 : f32 to vector<8x128xf32>
    %58 = arith.addf %56, %57 : vector<8x128xf32>
    %59 = arith.mulf %48, %11 : vector<8x128xf32>
    %60 = arith.mulf %40, %50 : vector<8x128xf32>
    %61 = arith.addf %59, %60 : vector<8x128xf32>
    %62 = math.tanh %61 : vector<8x128xf32>
    %63 = arith.mulf %58, %62 : vector<8x128xf32>
    %64 = arith.select %20, %63, %10 : vector<8x128xi1>, vector<8x128xf32>
    %65 = arith.select %20, %61, %11 : vector<8x128xi1>, vector<8x128xf32>
    %c7_i32_35 = arith.constant 7 : i32
    %66 = arith.subi %c7_i32_35, %c0_i32_22 : i32
    %67 = arith.index_cast %66 : i32 to index
    %c0_36 = arith.constant 0 : index
    %c0_37 = arith.constant 0 : index
    %68 = vector.load %arg3[%67, %c0_36, %c0_37] : memref<8x8x32xf32, #tpu.memory_space<vmem>>, vector<1x8x32xf32>
    %69 = vector.shape_cast %68 : vector<1x8x32xf32> to vector<8x32xf32>
    %cst_38 = arith.constant dense<0.000000e+00> : vector<8x512xf32>
    %70 = tpu.matmul %69, %7, %cst_38 {dimension_numbers = #tpu.dot_dimension_numbers<[1], [0], [0], [1], [0, 0, 1, 1], [], []>} : vector<8x32xf32>, vector<32x512xf32>, vector<8x512xf32> -> vector<8x512xf32>
    %cst_39 = arith.constant dense<0.000000e+00> : vector<8x512xf32>
    %71 = tpu.matmul %12, %8, %cst_39 {dimension_numbers = #tpu.dot_dimension_numbers<[1], [0], [0], [1], [0, 0, 1, 1], [], []>} : vector<8x128xf32>, vector<128x512xf32>, vector<8x512xf32> -> vector<8x512xf32>
    %72 = arith.addf %70, %71 : vector<8x512xf32>
    %73 = vector.broadcast %9 : vector<1x512xf32> to vector<8x512xf32>
    %74 = arith.addf %72, %73 : vector<8x512xf32>
    %75 = vector.extract_strided_slice %74 {offsets = [0, 0], sizes = [8, 128], strides = [1, 1]} : vector<8x512xf32> to vector<8x128xf32>
    %cst_40 = arith.constant 5.000000e-01 : f32
    %76 = vector.broadcast %cst_40 : f32 to vector<8x128xf32>
    %77 = arith.mulf %76, %75 : vector<8x128xf32>
    %78 = math.tanh %77 : vector<8x128xf32>
    %cst_41 = arith.constant 5.000000e-01 : f32
    %79 = vector.broadcast %cst_41 : f32 to vector<8x128xf32>
    %80 = arith.mulf %79, %78 : vector<8x128xf32>
    %cst_42 = arith.constant 5.000000e-01 : f32
    %81 = vector.broadcast %cst_42 : f32 to vector<8x128xf32>
    %82 = arith.addf %80, %81 : vector<8x128xf32>
    %83 = vector.extract_strided_slice %74 {offsets = [0, 128], sizes = [8, 128], strides = [1, 1]} : vector<8x512xf32> to vector<8x128xf32>
    %cst_43 = arith.constant 5.000000e-01 : f32
    %84 = vector.broadcast %cst_43 : f32 to vector<8x128xf32>
    %85 = arith.mulf %84, %83 : vector<8x128xf32>
    %86 = math.tanh %85 : vector<8x128xf32>
    %cst_44 = arith.constant 5.000000e-01 : f32
    %87 = vector.broadcast %cst_44 : f32 to vector<8x128xf32>
    %88 = arith.mulf %87, %86 : vector<8x128xf32>
    %cst_45 = arith.constant 5.000000e-01 : f32
    %89 = vector.broadcast %cst_45 : f32 to vector<8x128xf32>
    %90 = arith.addf %88, %89 : vector<8x128xf32>
    %91 = vector.extract_strided_slice %74 {offsets = [0, 256], sizes = [8, 128], strides = [1, 1]} : vector<8x512xf32> to vector<8x128xf32>
    %92 = math.tanh %91 : vector<8x128xf32>
    %93 = vector.extract_strided_slice %74 {offsets = [0, 384], sizes = [8, 128], strides = [1, 1]} : vector<8x512xf32> to vector<8x128xf32>
    %cst_46 = arith.constant 5.000000e-01 : f32
    %94 = vector.broadcast %cst_46 : f32 to vector<8x128xf32>
    %95 = arith.mulf %94, %93 : vector<8x128xf32>
    %96 = math.tanh %95 : vector<8x128xf32>
    %cst_47 = arith.constant 5.000000e-01 : f32
    %97 = vector.broadcast %cst_47 : f32 to vector<8x128xf32>
    %98 = arith.mulf %97, %96 : vector<8x128xf32>
    %cst_48 = arith.constant 5.000000e-01 : f32
    %99 = vector.broadcast %cst_48 : f32 to vector<8x128xf32>
    %100 = arith.addf %98, %99 : vector<8x128xf32>
    %101 = arith.mulf %90, %13 : vector<8x128xf32>
    %102 = arith.mulf %82, %92 : vector<8x128xf32>
    %103 = arith.addf %101, %102 : vector<8x128xf32>
    %104 = math.tanh %103 : vector<8x128xf32>
    %105 = arith.mulf %100, %104 : vector<8x128xf32>
    %106 = arith.select %24, %105, %12 : vector<8x128xi1>, vector<8x128xf32>
    %107 = arith.select %24, %103, %13 : vector<8x128xi1>, vector<8x128xf32>
    %c1_i32 = arith.constant 1 : i32
    %c8_i32_49 = arith.constant 8 : i32
    %108 = arith.muli %arg1, %c8_i32_49 : i32
    %109 = arith.addi %108, %c1_i32 : i32
    %c7_i32_50 = arith.constant 7 : i32
    %110 = arith.subi %c7_i32_50, %109 : i32
    %111 = vector.broadcast %109 : i32 to vector<8x1xi32>
    %112 = arith.cmpi slt, %111, %3 : vector<8x1xi32>
    %113 = vector.shape_cast %112 : vector<8x1xi1> to vector<8x1xi1>
    %114 = vector.broadcast %113 : vector<8x1xi1> to vector<8x128xi1>
    %115 = vector.broadcast %110 : i32 to vector<8x1xi32>
    %116 = arith.cmpi slt, %115, %3 : vector<8x1xi32>
    %117 = vector.shape_cast %116 : vector<8x1xi1> to vector<8x1xi1>
    %118 = vector.broadcast %117 : vector<8x1xi1> to vector<8x128xi1>
    %119 = arith.index_cast %c1_i32 : i32 to index
    %c0_51 = arith.constant 0 : index
    %c0_52 = arith.constant 0 : index
    %120 = vector.load %arg2[%119, %c0_51, %c0_52] : memref<8x8x32xf32, #tpu.memory_space<vmem>>, vector<1x8x32xf32>
    %121 = vector.shape_cast %120 : vector<1x8x32xf32> to vector<8x32xf32>
    %cst_53 = arith.constant dense<0.000000e+00> : vector<8x512xf32>
    %122 = tpu.matmul %121, %4, %cst_53 {dimension_numbers = #tpu.dot_dimension_numbers<[1], [0], [0], [1], [0, 0, 1, 1], [], []>} : vector<8x32xf32>, vector<32x512xf32>, vector<8x512xf32> -> vector<8x512xf32>
    %cst_54 = arith.constant dense<0.000000e+00> : vector<8x512xf32>
    %123 = tpu.matmul %64, %5, %cst_54 {dimension_numbers = #tpu.dot_dimension_numbers<[1], [0], [0], [1], [0, 0, 1, 1], [], []>} : vector<8x128xf32>, vector<128x512xf32>, vector<8x512xf32> -> vector<8x512xf32>
    %124 = arith.addf %122, %123 : vector<8x512xf32>
    %125 = vector.broadcast %6 : vector<1x512xf32> to vector<8x512xf32>
    %126 = arith.addf %124, %125 : vector<8x512xf32>
    %127 = vector.extract_strided_slice %126 {offsets = [0, 0], sizes = [8, 128], strides = [1, 1]} : vector<8x512xf32> to vector<8x128xf32>
    %cst_55 = arith.constant 5.000000e-01 : f32
    %128 = vector.broadcast %cst_55 : f32 to vector<8x128xf32>
    %129 = arith.mulf %128, %127 : vector<8x128xf32>
    %130 = math.tanh %129 : vector<8x128xf32>
    %cst_56 = arith.constant 5.000000e-01 : f32
    %131 = vector.broadcast %cst_56 : f32 to vector<8x128xf32>
    %132 = arith.mulf %131, %130 : vector<8x128xf32>
    %cst_57 = arith.constant 5.000000e-01 : f32
    %133 = vector.broadcast %cst_57 : f32 to vector<8x128xf32>
    %134 = arith.addf %132, %133 : vector<8x128xf32>
    %135 = vector.extract_strided_slice %126 {offsets = [0, 128], sizes = [8, 128], strides = [1, 1]} : vector<8x512xf32> to vector<8x128xf32>
    %cst_58 = arith.constant 5.000000e-01 : f32
    %136 = vector.broadcast %cst_58 : f32 to vector<8x128xf32>
    %137 = arith.mulf %136, %135 : vector<8x128xf32>
    %138 = math.tanh %137 : vector<8x128xf32>
    %cst_59 = arith.constant 5.000000e-01 : f32
    %139 = vector.broadcast %cst_59 : f32 to vector<8x128xf32>
    %140 = arith.mulf %139, %138 : vector<8x128xf32>
    %cst_60 = arith.constant 5.000000e-01 : f32
    %141 = vector.broadcast %cst_60 : f32 to vector<8x128xf32>
    %142 = arith.addf %140, %141 : vector<8x128xf32>
    %143 = vector.extract_strided_slice %126 {offsets = [0, 256], sizes = [8, 128], strides = [1, 1]} : vector<8x512xf32> to vector<8x128xf32>
    %144 = math.tanh %143 : vector<8x128xf32>
    %145 = vector.extract_strided_slice %126 {offsets = [0, 384], sizes = [8, 128], strides = [1, 1]} : vector<8x512xf32> to vector<8x128xf32>
    %cst_61 = arith.constant 5.000000e-01 : f32
    %146 = vector.broadcast %cst_61 : f32 to vector<8x128xf32>
    %147 = arith.mulf %146, %145 : vector<8x128xf32>
    %148 = math.tanh %147 : vector<8x128xf32>
    %cst_62 = arith.constant 5.000000e-01 : f32
    %149 = vector.broadcast %cst_62 : f32 to vector<8x128xf32>
    %150 = arith.mulf %149, %148 : vector<8x128xf32>
    %cst_63 = arith.constant 5.000000e-01 : f32
    %151 = vector.broadcast %cst_63 : f32 to vector<8x128xf32>
    %152 = arith.addf %150, %151 : vector<8x128xf32>
    %153 = arith.mulf %142, %65 : vector<8x128xf32>
    %154 = arith.mulf %134, %144 : vector<8x128xf32>
    %155 = arith.addf %153, %154 : vector<8x128xf32>
    %156 = math.tanh %155 : vector<8x128xf32>
    %157 = arith.mulf %152, %156 : vector<8x128xf32>
    %158 = arith.select %114, %157, %64 : vector<8x128xi1>, vector<8x128xf32>
    %159 = arith.select %114, %155, %65 : vector<8x128xi1>, vector<8x128xf32>
    %c7_i32_64 = arith.constant 7 : i32
    %160 = arith.subi %c7_i32_64, %c1_i32 : i32
    %161 = arith.index_cast %160 : i32 to index
    %c0_65 = arith.constant 0 : index
    %c0_66 = arith.constant 0 : index
    %162 = vector.load %arg3[%161, %c0_65, %c0_66] : memref<8x8x32xf32, #tpu.memory_space<vmem>>, vector<1x8x32xf32>
    %163 = vector.shape_cast %162 : vector<1x8x32xf32> to vector<8x32xf32>
    %cst_67 = arith.constant dense<0.000000e+00> : vector<8x512xf32>
    %164 = tpu.matmul %163, %7, %cst_67 {dimension_numbers = #tpu.dot_dimension_numbers<[1], [0], [0], [1], [0, 0, 1, 1], [], []>} : vector<8x32xf32>, vector<32x512xf32>, vector<8x512xf32> -> vector<8x512xf32>
    %cst_68 = arith.constant dense<0.000000e+00> : vector<8x512xf32>
    %165 = tpu.matmul %106, %8, %cst_68 {dimension_numbers = #tpu.dot_dimension_numbers<[1], [0], [0], [1], [0, 0, 1, 1], [], []>} : vector<8x128xf32>, vector<128x512xf32>, vector<8x512xf32> -> vector<8x512xf32>
    %166 = arith.addf %164, %165 : vector<8x512xf32>
    %167 = vector.broadcast %9 : vector<1x512xf32> to vector<8x512xf32>
    %168 = arith.addf %166, %167 : vector<8x512xf32>
    %169 = vector.extract_strided_slice %168 {offsets = [0, 0], sizes = [8, 128], strides = [1, 1]} : vector<8x512xf32> to vector<8x128xf32>
    %cst_69 = arith.constant 5.000000e-01 : f32
    %170 = vector.broadcast %cst_69 : f32 to vector<8x128xf32>
    %171 = arith.mulf %170, %169 : vector<8x128xf32>
    %172 = math.tanh %171 : vector<8x128xf32>
    %cst_70 = arith.constant 5.000000e-01 : f32
    %173 = vector.broadcast %cst_70 : f32 to vector<8x128xf32>
    %174 = arith.mulf %173, %172 : vector<8x128xf32>
    %cst_71 = arith.constant 5.000000e-01 : f32
    %175 = vector.broadcast %cst_71 : f32 to vector<8x128xf32>
    %176 = arith.addf %174, %175 : vector<8x128xf32>
    %177 = vector.extract_strided_slice %168 {offsets = [0, 128], sizes = [8, 128], strides = [1, 1]} : vector<8x512xf32> to vector<8x128xf32>
    %cst_72 = arith.constant 5.000000e-01 : f32
    %178 = vector.broadcast %cst_72 : f32 to vector<8x128xf32>
    %179 = arith.mulf %178, %177 : vector<8x128xf32>
    %180 = math.tanh %179 : vector<8x128xf32>
    %cst_73 = arith.constant 5.000000e-01 : f32
    %181 = vector.broadcast %cst_73 : f32 to vector<8x128xf32>
    %182 = arith.mulf %181, %180 : vector<8x128xf32>
    %cst_74 = arith.constant 5.000000e-01 : f32
    %183 = vector.broadcast %cst_74 : f32 to vector<8x128xf32>
    %184 = arith.addf %182, %183 : vector<8x128xf32>
    %185 = vector.extract_strided_slice %168 {offsets = [0, 256], sizes = [8, 128], strides = [1, 1]} : vector<8x512xf32> to vector<8x128xf32>
    %186 = math.tanh %185 : vector<8x128xf32>
    %187 = vector.extract_strided_slice %168 {offsets = [0, 384], sizes = [8, 128], strides = [1, 1]} : vector<8x512xf32> to vector<8x128xf32>
    %cst_75 = arith.constant 5.000000e-01 : f32
    %188 = vector.broadcast %cst_75 : f32 to vector<8x128xf32>
    %189 = arith.mulf %188, %187 : vector<8x128xf32>
    %190 = math.tanh %189 : vector<8x128xf32>
    %cst_76 = arith.constant 5.000000e-01 : f32
    %191 = vector.broadcast %cst_76 : f32 to vector<8x128xf32>
    %192 = arith.mulf %191, %190 : vector<8x128xf32>
    %cst_77 = arith.constant 5.000000e-01 : f32
    %193 = vector.broadcast %cst_77 : f32 to vector<8x128xf32>
    %194 = arith.addf %192, %193 : vector<8x128xf32>
    %195 = arith.mulf %184, %107 : vector<8x128xf32>
    %196 = arith.mulf %176, %186 : vector<8x128xf32>
    %197 = arith.addf %195, %196 : vector<8x128xf32>
    %198 = math.tanh %197 : vector<8x128xf32>
    %199 = arith.mulf %194, %198 : vector<8x128xf32>
    %200 = arith.select %118, %199, %106 : vector<8x128xi1>, vector<8x128xf32>
    %201 = arith.select %118, %197, %107 : vector<8x128xi1>, vector<8x128xf32>
    %c2_i32 = arith.constant 2 : i32
    %c8_i32_78 = arith.constant 8 : i32
    %202 = arith.muli %arg1, %c8_i32_78 : i32
    %203 = arith.addi %202, %c2_i32 : i32
    %c7_i32_79 = arith.constant 7 : i32
    %204 = arith.subi %c7_i32_79, %203 : i32
    %205 = vector.broadcast %203 : i32 to vector<8x1xi32>
    %206 = arith.cmpi slt, %205, %3 : vector<8x1xi32>
    %207 = vector.shape_cast %206 : vector<8x1xi1> to vector<8x1xi1>
    %208 = vector.broadcast %207 : vector<8x1xi1> to vector<8x128xi1>
    %209 = vector.broadcast %204 : i32 to vector<8x1xi32>
    %210 = arith.cmpi slt, %209, %3 : vector<8x1xi32>
    %211 = vector.shape_cast %210 : vector<8x1xi1> to vector<8x1xi1>
    %212 = vector.broadcast %211 : vector<8x1xi1> to vector<8x128xi1>
    %213 = arith.index_cast %c2_i32 : i32 to index
    %c0_80 = arith.constant 0 : index
    %c0_81 = arith.constant 0 : index
    %214 = vector.load %arg2[%213, %c0_80, %c0_81] : memref<8x8x32xf32, #tpu.memory_space<vmem>>, vector<1x8x32xf32>
    %215 = vector.shape_cast %214 : vector<1x8x32xf32> to vector<8x32xf32>
    %cst_82 = arith.constant dense<0.000000e+00> : vector<8x512xf32>
    %216 = tpu.matmul %215, %4, %cst_82 {dimension_numbers = #tpu.dot_dimension_numbers<[1], [0], [0], [1], [0, 0, 1, 1], [], []>} : vector<8x32xf32>, vector<32x512xf32>, vector<8x512xf32> -> vector<8x512xf32>
    %cst_83 = arith.constant dense<0.000000e+00> : vector<8x512xf32>
    %217 = tpu.matmul %158, %5, %cst_83 {dimension_numbers = #tpu.dot_dimension_numbers<[1], [0], [0], [1], [0, 0, 1, 1], [], []>} : vector<8x128xf32>, vector<128x512xf32>, vector<8x512xf32> -> vector<8x512xf32>
    %218 = arith.addf %216, %217 : vector<8x512xf32>
    %219 = vector.broadcast %6 : vector<1x512xf32> to vector<8x512xf32>
    %220 = arith.addf %218, %219 : vector<8x512xf32>
    %221 = vector.extract_strided_slice %220 {offsets = [0, 0], sizes = [8, 128], strides = [1, 1]} : vector<8x512xf32> to vector<8x128xf32>
    %cst_84 = arith.constant 5.000000e-01 : f32
    %222 = vector.broadcast %cst_84 : f32 to vector<8x128xf32>
    %223 = arith.mulf %222, %221 : vector<8x128xf32>
    %224 = math.tanh %223 : vector<8x128xf32>
    %cst_85 = arith.constant 5.000000e-01 : f32
    %225 = vector.broadcast %cst_85 : f32 to vector<8x128xf32>
    %226 = arith.mulf %225, %224 : vector<8x128xf32>
    %cst_86 = arith.constant 5.000000e-01 : f32
    %227 = vector.broadcast %cst_86 : f32 to vector<8x128xf32>
    %228 = arith.addf %226, %227 : vector<8x128xf32>
    %229 = vector.extract_strided_slice %220 {offsets = [0, 128], sizes = [8, 128], strides = [1, 1]} : vector<8x512xf32> to vector<8x128xf32>
    %cst_87 = arith.constant 5.000000e-01 : f32
    %230 = vector.broadcast %cst_87 : f32 to vector<8x128xf32>
    %231 = arith.mulf %230, %229 : vector<8x128xf32>
    %232 = math.tanh %231 : vector<8x128xf32>
    %cst_88 = arith.constant 5.000000e-01 : f32
    %233 = vector.broadcast %cst_88 : f32 to vector<8x128xf32>
    %234 = arith.mulf %233, %232 : vector<8x128xf32>
    %cst_89 = arith.constant 5.000000e-01 : f32
    %235 = vector.broadcast %cst_89 : f32 to vector<8x128xf32>
    %236 = arith.addf %234, %235 : vector<8x128xf32>
    %237 = vector.extract_strided_slice %220 {offsets = [0, 256], sizes = [8, 128], strides = [1, 1]} : vector<8x512xf32> to vector<8x128xf32>
    %238 = math.tanh %237 : vector<8x128xf32>
    %239 = vector.extract_strided_slice %220 {offsets = [0, 384], sizes = [8, 128], strides = [1, 1]} : vector<8x512xf32> to vector<8x128xf32>
    %cst_90 = arith.constant 5.000000e-01 : f32
    %240 = vector.broadcast %cst_90 : f32 to vector<8x128xf32>
    %241 = arith.mulf %240, %239 : vector<8x128xf32>
    %242 = math.tanh %241 : vector<8x128xf32>
    %cst_91 = arith.constant 5.000000e-01 : f32
    %243 = vector.broadcast %cst_91 : f32 to vector<8x128xf32>
    %244 = arith.mulf %243, %242 : vector<8x128xf32>
    %cst_92 = arith.constant 5.000000e-01 : f32
    %245 = vector.broadcast %cst_92 : f32 to vector<8x128xf32>
    %246 = arith.addf %244, %245 : vector<8x128xf32>
    %247 = arith.mulf %236, %159 : vector<8x128xf32>
    %248 = arith.mulf %228, %238 : vector<8x128xf32>
    %249 = arith.addf %247, %248 : vector<8x128xf32>
    %250 = math.tanh %249 : vector<8x128xf32>
    %251 = arith.mulf %246, %250 : vector<8x128xf32>
    %252 = arith.select %208, %251, %158 : vector<8x128xi1>, vector<8x128xf32>
    %253 = arith.select %208, %249, %159 : vector<8x128xi1>, vector<8x128xf32>
    %c7_i32_93 = arith.constant 7 : i32
    %254 = arith.subi %c7_i32_93, %c2_i32 : i32
    %255 = arith.index_cast %254 : i32 to index
    %c0_94 = arith.constant 0 : index
    %c0_95 = arith.constant 0 : index
    %256 = vector.load %arg3[%255, %c0_94, %c0_95] : memref<8x8x32xf32, #tpu.memory_space<vmem>>, vector<1x8x32xf32>
    %257 = vector.shape_cast %256 : vector<1x8x32xf32> to vector<8x32xf32>
    %cst_96 = arith.constant dense<0.000000e+00> : vector<8x512xf32>
    %258 = tpu.matmul %257, %7, %cst_96 {dimension_numbers = #tpu.dot_dimension_numbers<[1], [0], [0], [1], [0, 0, 1, 1], [], []>} : vector<8x32xf32>, vector<32x512xf32>, vector<8x512xf32> -> vector<8x512xf32>
    %cst_97 = arith.constant dense<0.000000e+00> : vector<8x512xf32>
    %259 = tpu.matmul %200, %8, %cst_97 {dimension_numbers = #tpu.dot_dimension_numbers<[1], [0], [0], [1], [0, 0, 1, 1], [], []>} : vector<8x128xf32>, vector<128x512xf32>, vector<8x512xf32> -> vector<8x512xf32>
    %260 = arith.addf %258, %259 : vector<8x512xf32>
    %261 = vector.broadcast %9 : vector<1x512xf32> to vector<8x512xf32>
    %262 = arith.addf %260, %261 : vector<8x512xf32>
    %263 = vector.extract_strided_slice %262 {offsets = [0, 0], sizes = [8, 128], strides = [1, 1]} : vector<8x512xf32> to vector<8x128xf32>
    %cst_98 = arith.constant 5.000000e-01 : f32
    %264 = vector.broadcast %cst_98 : f32 to vector<8x128xf32>
    %265 = arith.mulf %264, %263 : vector<8x128xf32>
    %266 = math.tanh %265 : vector<8x128xf32>
    %cst_99 = arith.constant 5.000000e-01 : f32
    %267 = vector.broadcast %cst_99 : f32 to vector<8x128xf32>
    %268 = arith.mulf %267, %266 : vector<8x128xf32>
    %cst_100 = arith.constant 5.000000e-01 : f32
    %269 = vector.broadcast %cst_100 : f32 to vector<8x128xf32>
    %270 = arith.addf %268, %269 : vector<8x128xf32>
    %271 = vector.extract_strided_slice %262 {offsets = [0, 128], sizes = [8, 128], strides = [1, 1]} : vector<8x512xf32> to vector<8x128xf32>
    %cst_101 = arith.constant 5.000000e-01 : f32
    %272 = vector.broadcast %cst_101 : f32 to vector<8x128xf32>
    %273 = arith.mulf %272, %271 : vector<8x128xf32>
    %274 = math.tanh %273 : vector<8x128xf32>
    %cst_102 = arith.constant 5.000000e-01 : f32
    %275 = vector.broadcast %cst_102 : f32 to vector<8x128xf32>
    %276 = arith.mulf %275, %274 : vector<8x128xf32>
    %cst_103 = arith.constant 5.000000e-01 : f32
    %277 = vector.broadcast %cst_103 : f32 to vector<8x128xf32>
    %278 = arith.addf %276, %277 : vector<8x128xf32>
    %279 = vector.extract_strided_slice %262 {offsets = [0, 256], sizes = [8, 128], strides = [1, 1]} : vector<8x512xf32> to vector<8x128xf32>
    %280 = math.tanh %279 : vector<8x128xf32>
    %281 = vector.extract_strided_slice %262 {offsets = [0, 384], sizes = [8, 128], strides = [1, 1]} : vector<8x512xf32> to vector<8x128xf32>
    %cst_104 = arith.constant 5.000000e-01 : f32
    %282 = vector.broadcast %cst_104 : f32 to vector<8x128xf32>
    %283 = arith.mulf %282, %281 : vector<8x128xf32>
    %284 = math.tanh %283 : vector<8x128xf32>
    %cst_105 = arith.constant 5.000000e-01 : f32
    %285 = vector.broadcast %cst_105 : f32 to vector<8x128xf32>
    %286 = arith.mulf %285, %284 : vector<8x128xf32>
    %cst_106 = arith.constant 5.000000e-01 : f32
    %287 = vector.broadcast %cst_106 : f32 to vector<8x128xf32>
    %288 = arith.addf %286, %287 : vector<8x128xf32>
    %289 = arith.mulf %278, %201 : vector<8x128xf32>
    %290 = arith.mulf %270, %280 : vector<8x128xf32>
    %291 = arith.addf %289, %290 : vector<8x128xf32>
    %292 = math.tanh %291 : vector<8x128xf32>
    %293 = arith.mulf %288, %292 : vector<8x128xf32>
    %294 = arith.select %212, %293, %200 : vector<8x128xi1>, vector<8x128xf32>
    %295 = arith.select %212, %291, %201 : vector<8x128xi1>, vector<8x128xf32>
    %c3_i32 = arith.constant 3 : i32
    %c8_i32_107 = arith.constant 8 : i32
    %296 = arith.muli %arg1, %c8_i32_107 : i32
    %297 = arith.addi %296, %c3_i32 : i32
    %c7_i32_108 = arith.constant 7 : i32
    %298 = arith.subi %c7_i32_108, %297 : i32
    %299 = vector.broadcast %297 : i32 to vector<8x1xi32>
    %300 = arith.cmpi slt, %299, %3 : vector<8x1xi32>
    %301 = vector.shape_cast %300 : vector<8x1xi1> to vector<8x1xi1>
    %302 = vector.broadcast %301 : vector<8x1xi1> to vector<8x128xi1>
    %303 = vector.broadcast %298 : i32 to vector<8x1xi32>
    %304 = arith.cmpi slt, %303, %3 : vector<8x1xi32>
    %305 = vector.shape_cast %304 : vector<8x1xi1> to vector<8x1xi1>
    %306 = vector.broadcast %305 : vector<8x1xi1> to vector<8x128xi1>
    %307 = arith.index_cast %c3_i32 : i32 to index
    %c0_109 = arith.constant 0 : index
    %c0_110 = arith.constant 0 : index
    %308 = vector.load %arg2[%307, %c0_109, %c0_110] : memref<8x8x32xf32, #tpu.memory_space<vmem>>, vector<1x8x32xf32>
    %309 = vector.shape_cast %308 : vector<1x8x32xf32> to vector<8x32xf32>
    %cst_111 = arith.constant dense<0.000000e+00> : vector<8x512xf32>
    %310 = tpu.matmul %309, %4, %cst_111 {dimension_numbers = #tpu.dot_dimension_numbers<[1], [0], [0], [1], [0, 0, 1, 1], [], []>} : vector<8x32xf32>, vector<32x512xf32>, vector<8x512xf32> -> vector<8x512xf32>
    %cst_112 = arith.constant dense<0.000000e+00> : vector<8x512xf32>
    %311 = tpu.matmul %252, %5, %cst_112 {dimension_numbers = #tpu.dot_dimension_numbers<[1], [0], [0], [1], [0, 0, 1, 1], [], []>} : vector<8x128xf32>, vector<128x512xf32>, vector<8x512xf32> -> vector<8x512xf32>
    %312 = arith.addf %310, %311 : vector<8x512xf32>
    %313 = vector.broadcast %6 : vector<1x512xf32> to vector<8x512xf32>
    %314 = arith.addf %312, %313 : vector<8x512xf32>
    %315 = vector.extract_strided_slice %314 {offsets = [0, 0], sizes = [8, 128], strides = [1, 1]} : vector<8x512xf32> to vector<8x128xf32>
    %cst_113 = arith.constant 5.000000e-01 : f32
    %316 = vector.broadcast %cst_113 : f32 to vector<8x128xf32>
    %317 = arith.mulf %316, %315 : vector<8x128xf32>
    %318 = math.tanh %317 : vector<8x128xf32>
    %cst_114 = arith.constant 5.000000e-01 : f32
    %319 = vector.broadcast %cst_114 : f32 to vector<8x128xf32>
    %320 = arith.mulf %319, %318 : vector<8x128xf32>
    %cst_115 = arith.constant 5.000000e-01 : f32
    %321 = vector.broadcast %cst_115 : f32 to vector<8x128xf32>
    %322 = arith.addf %320, %321 : vector<8x128xf32>
    %323 = vector.extract_strided_slice %314 {offsets = [0, 128], sizes = [8, 128], strides = [1, 1]} : vector<8x512xf32> to vector<8x128xf32>
    %cst_116 = arith.constant 5.000000e-01 : f32
    %324 = vector.broadcast %cst_116 : f32 to vector<8x128xf32>
    %325 = arith.mulf %324, %323 : vector<8x128xf32>
    %326 = math.tanh %325 : vector<8x128xf32>
    %cst_117 = arith.constant 5.000000e-01 : f32
    %327 = vector.broadcast %cst_117 : f32 to vector<8x128xf32>
    %328 = arith.mulf %327, %326 : vector<8x128xf32>
    %cst_118 = arith.constant 5.000000e-01 : f32
    %329 = vector.broadcast %cst_118 : f32 to vector<8x128xf32>
    %330 = arith.addf %328, %329 : vector<8x128xf32>
    %331 = vector.extract_strided_slice %314 {offsets = [0, 256], sizes = [8, 128], strides = [1, 1]} : vector<8x512xf32> to vector<8x128xf32>
    %332 = math.tanh %331 : vector<8x128xf32>
    %333 = vector.extract_strided_slice %314 {offsets = [0, 384], sizes = [8, 128], strides = [1, 1]} : vector<8x512xf32> to vector<8x128xf32>
    %cst_119 = arith.constant 5.000000e-01 : f32
    %334 = vector.broadcast %cst_119 : f32 to vector<8x128xf32>
    %335 = arith.mulf %334, %333 : vector<8x128xf32>
    %336 = math.tanh %335 : vector<8x128xf32>
    %cst_120 = arith.constant 5.000000e-01 : f32
    %337 = vector.broadcast %cst_120 : f32 to vector<8x128xf32>
    %338 = arith.mulf %337, %336 : vector<8x128xf32>
    %cst_121 = arith.constant 5.000000e-01 : f32
    %339 = vector.broadcast %cst_121 : f32 to vector<8x128xf32>
    %340 = arith.addf %338, %339 : vector<8x128xf32>
    %341 = arith.mulf %330, %253 : vector<8x128xf32>
    %342 = arith.mulf %322, %332 : vector<8x128xf32>
    %343 = arith.addf %341, %342 : vector<8x128xf32>
    %344 = math.tanh %343 : vector<8x128xf32>
    %345 = arith.mulf %340, %344 : vector<8x128xf32>
    %346 = arith.select %302, %345, %252 : vector<8x128xi1>, vector<8x128xf32>
    %347 = arith.select %302, %343, %253 : vector<8x128xi1>, vector<8x128xf32>
    %c7_i32_122 = arith.constant 7 : i32
    %348 = arith.subi %c7_i32_122, %c3_i32 : i32
    %349 = arith.index_cast %348 : i32 to index
    %c0_123 = arith.constant 0 : index
    %c0_124 = arith.constant 0 : index
    %350 = vector.load %arg3[%349, %c0_123, %c0_124] : memref<8x8x32xf32, #tpu.memory_space<vmem>>, vector<1x8x32xf32>
    %351 = vector.shape_cast %350 : vector<1x8x32xf32> to vector<8x32xf32>
    %cst_125 = arith.constant dense<0.000000e+00> : vector<8x512xf32>
    %352 = tpu.matmul %351, %7, %cst_125 {dimension_numbers = #tpu.dot_dimension_numbers<[1], [0], [0], [1], [0, 0, 1, 1], [], []>} : vector<8x32xf32>, vector<32x512xf32>, vector<8x512xf32> -> vector<8x512xf32>
    %cst_126 = arith.constant dense<0.000000e+00> : vector<8x512xf32>
    %353 = tpu.matmul %294, %8, %cst_126 {dimension_numbers = #tpu.dot_dimension_numbers<[1], [0], [0], [1], [0, 0, 1, 1], [], []>} : vector<8x128xf32>, vector<128x512xf32>, vector<8x512xf32> -> vector<8x512xf32>
    %354 = arith.addf %352, %353 : vector<8x512xf32>
    %355 = vector.broadcast %9 : vector<1x512xf32> to vector<8x512xf32>
    %356 = arith.addf %354, %355 : vector<8x512xf32>
    %357 = vector.extract_strided_slice %356 {offsets = [0, 0], sizes = [8, 128], strides = [1, 1]} : vector<8x512xf32> to vector<8x128xf32>
    %cst_127 = arith.constant 5.000000e-01 : f32
    %358 = vector.broadcast %cst_127 : f32 to vector<8x128xf32>
    %359 = arith.mulf %358, %357 : vector<8x128xf32>
    %360 = math.tanh %359 : vector<8x128xf32>
    %cst_128 = arith.constant 5.000000e-01 : f32
    %361 = vector.broadcast %cst_128 : f32 to vector<8x128xf32>
    %362 = arith.mulf %361, %360 : vector<8x128xf32>
    %cst_129 = arith.constant 5.000000e-01 : f32
    %363 = vector.broadcast %cst_129 : f32 to vector<8x128xf32>
    %364 = arith.addf %362, %363 : vector<8x128xf32>
    %365 = vector.extract_strided_slice %356 {offsets = [0, 128], sizes = [8, 128], strides = [1, 1]} : vector<8x512xf32> to vector<8x128xf32>
    %cst_130 = arith.constant 5.000000e-01 : f32
    %366 = vector.broadcast %cst_130 : f32 to vector<8x128xf32>
    %367 = arith.mulf %366, %365 : vector<8x128xf32>
    %368 = math.tanh %367 : vector<8x128xf32>
    %cst_131 = arith.constant 5.000000e-01 : f32
    %369 = vector.broadcast %cst_131 : f32 to vector<8x128xf32>
    %370 = arith.mulf %369, %368 : vector<8x128xf32>
    %cst_132 = arith.constant 5.000000e-01 : f32
    %371 = vector.broadcast %cst_132 : f32 to vector<8x128xf32>
    %372 = arith.addf %370, %371 : vector<8x128xf32>
    %373 = vector.extract_strided_slice %356 {offsets = [0, 256], sizes = [8, 128], strides = [1, 1]} : vector<8x512xf32> to vector<8x128xf32>
    %374 = math.tanh %373 : vector<8x128xf32>
    %375 = vector.extract_strided_slice %356 {offsets = [0, 384], sizes = [8, 128], strides = [1, 1]} : vector<8x512xf32> to vector<8x128xf32>
    %cst_133 = arith.constant 5.000000e-01 : f32
    %376 = vector.broadcast %cst_133 : f32 to vector<8x128xf32>
    %377 = arith.mulf %376, %375 : vector<8x128xf32>
    %378 = math.tanh %377 : vector<8x128xf32>
    %cst_134 = arith.constant 5.000000e-01 : f32
    %379 = vector.broadcast %cst_134 : f32 to vector<8x128xf32>
    %380 = arith.mulf %379, %378 : vector<8x128xf32>
    %cst_135 = arith.constant 5.000000e-01 : f32
    %381 = vector.broadcast %cst_135 : f32 to vector<8x128xf32>
    %382 = arith.addf %380, %381 : vector<8x128xf32>
    %383 = arith.mulf %372, %295 : vector<8x128xf32>
    %384 = arith.mulf %364, %374 : vector<8x128xf32>
    %385 = arith.addf %383, %384 : vector<8x128xf32>
    %386 = math.tanh %385 : vector<8x128xf32>
    %387 = arith.mulf %382, %386 : vector<8x128xf32>
    %388 = arith.select %306, %387, %294 : vector<8x128xi1>, vector<8x128xf32>
    %389 = arith.select %306, %385, %295 : vector<8x128xi1>, vector<8x128xf32>
    %c4_i32 = arith.constant 4 : i32
    %c8_i32_136 = arith.constant 8 : i32
    %390 = arith.muli %arg1, %c8_i32_136 : i32
    %391 = arith.addi %390, %c4_i32 : i32
    %c7_i32_137 = arith.constant 7 : i32
    %392 = arith.subi %c7_i32_137, %391 : i32
    %393 = vector.broadcast %391 : i32 to vector<8x1xi32>
    %394 = arith.cmpi slt, %393, %3 : vector<8x1xi32>
    %395 = vector.shape_cast %394 : vector<8x1xi1> to vector<8x1xi1>
    %396 = vector.broadcast %395 : vector<8x1xi1> to vector<8x128xi1>
    %397 = vector.broadcast %392 : i32 to vector<8x1xi32>
    %398 = arith.cmpi slt, %397, %3 : vector<8x1xi32>
    %399 = vector.shape_cast %398 : vector<8x1xi1> to vector<8x1xi1>
    %400 = vector.broadcast %399 : vector<8x1xi1> to vector<8x128xi1>
    %401 = arith.index_cast %c4_i32 : i32 to index
    %c0_138 = arith.constant 0 : index
    %c0_139 = arith.constant 0 : index
    %402 = vector.load %arg2[%401, %c0_138, %c0_139] : memref<8x8x32xf32, #tpu.memory_space<vmem>>, vector<1x8x32xf32>
    %403 = vector.shape_cast %402 : vector<1x8x32xf32> to vector<8x32xf32>
    %cst_140 = arith.constant dense<0.000000e+00> : vector<8x512xf32>
    %404 = tpu.matmul %403, %4, %cst_140 {dimension_numbers = #tpu.dot_dimension_numbers<[1], [0], [0], [1], [0, 0, 1, 1], [], []>} : vector<8x32xf32>, vector<32x512xf32>, vector<8x512xf32> -> vector<8x512xf32>
    %cst_141 = arith.constant dense<0.000000e+00> : vector<8x512xf32>
    %405 = tpu.matmul %346, %5, %cst_141 {dimension_numbers = #tpu.dot_dimension_numbers<[1], [0], [0], [1], [0, 0, 1, 1], [], []>} : vector<8x128xf32>, vector<128x512xf32>, vector<8x512xf32> -> vector<8x512xf32>
    %406 = arith.addf %404, %405 : vector<8x512xf32>
    %407 = vector.broadcast %6 : vector<1x512xf32> to vector<8x512xf32>
    %408 = arith.addf %406, %407 : vector<8x512xf32>
    %409 = vector.extract_strided_slice %408 {offsets = [0, 0], sizes = [8, 128], strides = [1, 1]} : vector<8x512xf32> to vector<8x128xf32>
    %cst_142 = arith.constant 5.000000e-01 : f32
    %410 = vector.broadcast %cst_142 : f32 to vector<8x128xf32>
    %411 = arith.mulf %410, %409 : vector<8x128xf32>
    %412 = math.tanh %411 : vector<8x128xf32>
    %cst_143 = arith.constant 5.000000e-01 : f32
    %413 = vector.broadcast %cst_143 : f32 to vector<8x128xf32>
    %414 = arith.mulf %413, %412 : vector<8x128xf32>
    %cst_144 = arith.constant 5.000000e-01 : f32
    %415 = vector.broadcast %cst_144 : f32 to vector<8x128xf32>
    %416 = arith.addf %414, %415 : vector<8x128xf32>
    %417 = vector.extract_strided_slice %408 {offsets = [0, 128], sizes = [8, 128], strides = [1, 1]} : vector<8x512xf32> to vector<8x128xf32>
    %cst_145 = arith.constant 5.000000e-01 : f32
    %418 = vector.broadcast %cst_145 : f32 to vector<8x128xf32>
    %419 = arith.mulf %418, %417 : vector<8x128xf32>
    %420 = math.tanh %419 : vector<8x128xf32>
    %cst_146 = arith.constant 5.000000e-01 : f32
    %421 = vector.broadcast %cst_146 : f32 to vector<8x128xf32>
    %422 = arith.mulf %421, %420 : vector<8x128xf32>
    %cst_147 = arith.constant 5.000000e-01 : f32
    %423 = vector.broadcast %cst_147 : f32 to vector<8x128xf32>
    %424 = arith.addf %422, %423 : vector<8x128xf32>
    %425 = vector.extract_strided_slice %408 {offsets = [0, 256], sizes = [8, 128], strides = [1, 1]} : vector<8x512xf32> to vector<8x128xf32>
    %426 = math.tanh %425 : vector<8x128xf32>
    %427 = vector.extract_strided_slice %408 {offsets = [0, 384], sizes = [8, 128], strides = [1, 1]} : vector<8x512xf32> to vector<8x128xf32>
    %cst_148 = arith.constant 5.000000e-01 : f32
    %428 = vector.broadcast %cst_148 : f32 to vector<8x128xf32>
    %429 = arith.mulf %428, %427 : vector<8x128xf32>
    %430 = math.tanh %429 : vector<8x128xf32>
    %cst_149 = arith.constant 5.000000e-01 : f32
    %431 = vector.broadcast %cst_149 : f32 to vector<8x128xf32>
    %432 = arith.mulf %431, %430 : vector<8x128xf32>
    %cst_150 = arith.constant 5.000000e-01 : f32
    %433 = vector.broadcast %cst_150 : f32 to vector<8x128xf32>
    %434 = arith.addf %432, %433 : vector<8x128xf32>
    %435 = arith.mulf %424, %347 : vector<8x128xf32>
    %436 = arith.mulf %416, %426 : vector<8x128xf32>
    %437 = arith.addf %435, %436 : vector<8x128xf32>
    %438 = math.tanh %437 : vector<8x128xf32>
    %439 = arith.mulf %434, %438 : vector<8x128xf32>
    %440 = arith.select %396, %439, %346 : vector<8x128xi1>, vector<8x128xf32>
    %441 = arith.select %396, %437, %347 : vector<8x128xi1>, vector<8x128xf32>
    %c7_i32_151 = arith.constant 7 : i32
    %442 = arith.subi %c7_i32_151, %c4_i32 : i32
    %443 = arith.index_cast %442 : i32 to index
    %c0_152 = arith.constant 0 : index
    %c0_153 = arith.constant 0 : index
    %444 = vector.load %arg3[%443, %c0_152, %c0_153] : memref<8x8x32xf32, #tpu.memory_space<vmem>>, vector<1x8x32xf32>
    %445 = vector.shape_cast %444 : vector<1x8x32xf32> to vector<8x32xf32>
    %cst_154 = arith.constant dense<0.000000e+00> : vector<8x512xf32>
    %446 = tpu.matmul %445, %7, %cst_154 {dimension_numbers = #tpu.dot_dimension_numbers<[1], [0], [0], [1], [0, 0, 1, 1], [], []>} : vector<8x32xf32>, vector<32x512xf32>, vector<8x512xf32> -> vector<8x512xf32>
    %cst_155 = arith.constant dense<0.000000e+00> : vector<8x512xf32>
    %447 = tpu.matmul %388, %8, %cst_155 {dimension_numbers = #tpu.dot_dimension_numbers<[1], [0], [0], [1], [0, 0, 1, 1], [], []>} : vector<8x128xf32>, vector<128x512xf32>, vector<8x512xf32> -> vector<8x512xf32>
    %448 = arith.addf %446, %447 : vector<8x512xf32>
    %449 = vector.broadcast %9 : vector<1x512xf32> to vector<8x512xf32>
    %450 = arith.addf %448, %449 : vector<8x512xf32>
    %451 = vector.extract_strided_slice %450 {offsets = [0, 0], sizes = [8, 128], strides = [1, 1]} : vector<8x512xf32> to vector<8x128xf32>
    %cst_156 = arith.constant 5.000000e-01 : f32
    %452 = vector.broadcast %cst_156 : f32 to vector<8x128xf32>
    %453 = arith.mulf %452, %451 : vector<8x128xf32>
    %454 = math.tanh %453 : vector<8x128xf32>
    %cst_157 = arith.constant 5.000000e-01 : f32
    %455 = vector.broadcast %cst_157 : f32 to vector<8x128xf32>
    %456 = arith.mulf %455, %454 : vector<8x128xf32>
    %cst_158 = arith.constant 5.000000e-01 : f32
    %457 = vector.broadcast %cst_158 : f32 to vector<8x128xf32>
    %458 = arith.addf %456, %457 : vector<8x128xf32>
    %459 = vector.extract_strided_slice %450 {offsets = [0, 128], sizes = [8, 128], strides = [1, 1]} : vector<8x512xf32> to vector<8x128xf32>
    %cst_159 = arith.constant 5.000000e-01 : f32
    %460 = vector.broadcast %cst_159 : f32 to vector<8x128xf32>
    %461 = arith.mulf %460, %459 : vector<8x128xf32>
    %462 = math.tanh %461 : vector<8x128xf32>
    %cst_160 = arith.constant 5.000000e-01 : f32
    %463 = vector.broadcast %cst_160 : f32 to vector<8x128xf32>
    %464 = arith.mulf %463, %462 : vector<8x128xf32>
    %cst_161 = arith.constant 5.000000e-01 : f32
    %465 = vector.broadcast %cst_161 : f32 to vector<8x128xf32>
    %466 = arith.addf %464, %465 : vector<8x128xf32>
    %467 = vector.extract_strided_slice %450 {offsets = [0, 256], sizes = [8, 128], strides = [1, 1]} : vector<8x512xf32> to vector<8x128xf32>
    %468 = math.tanh %467 : vector<8x128xf32>
    %469 = vector.extract_strided_slice %450 {offsets = [0, 384], sizes = [8, 128], strides = [1, 1]} : vector<8x512xf32> to vector<8x128xf32>
    %cst_162 = arith.constant 5.000000e-01 : f32
    %470 = vector.broadcast %cst_162 : f32 to vector<8x128xf32>
    %471 = arith.mulf %470, %469 : vector<8x128xf32>
    %472 = math.tanh %471 : vector<8x128xf32>
    %cst_163 = arith.constant 5.000000e-01 : f32
    %473 = vector.broadcast %cst_163 : f32 to vector<8x128xf32>
    %474 = arith.mulf %473, %472 : vector<8x128xf32>
    %cst_164 = arith.constant 5.000000e-01 : f32
    %475 = vector.broadcast %cst_164 : f32 to vector<8x128xf32>
    %476 = arith.addf %474, %475 : vector<8x128xf32>
    %477 = arith.mulf %466, %389 : vector<8x128xf32>
    %478 = arith.mulf %458, %468 : vector<8x128xf32>
    %479 = arith.addf %477, %478 : vector<8x128xf32>
    %480 = math.tanh %479 : vector<8x128xf32>
    %481 = arith.mulf %476, %480 : vector<8x128xf32>
    %482 = arith.select %400, %481, %388 : vector<8x128xi1>, vector<8x128xf32>
    %483 = arith.select %400, %479, %389 : vector<8x128xi1>, vector<8x128xf32>
    %c5_i32 = arith.constant 5 : i32
    %c8_i32_165 = arith.constant 8 : i32
    %484 = arith.muli %arg1, %c8_i32_165 : i32
    %485 = arith.addi %484, %c5_i32 : i32
    %c7_i32_166 = arith.constant 7 : i32
    %486 = arith.subi %c7_i32_166, %485 : i32
    %487 = vector.broadcast %485 : i32 to vector<8x1xi32>
    %488 = arith.cmpi slt, %487, %3 : vector<8x1xi32>
    %489 = vector.shape_cast %488 : vector<8x1xi1> to vector<8x1xi1>
    %490 = vector.broadcast %489 : vector<8x1xi1> to vector<8x128xi1>
    %491 = vector.broadcast %486 : i32 to vector<8x1xi32>
    %492 = arith.cmpi slt, %491, %3 : vector<8x1xi32>
    %493 = vector.shape_cast %492 : vector<8x1xi1> to vector<8x1xi1>
    %494 = vector.broadcast %493 : vector<8x1xi1> to vector<8x128xi1>
    %495 = arith.index_cast %c5_i32 : i32 to index
    %c0_167 = arith.constant 0 : index
    %c0_168 = arith.constant 0 : index
    %496 = vector.load %arg2[%495, %c0_167, %c0_168] : memref<8x8x32xf32, #tpu.memory_space<vmem>>, vector<1x8x32xf32>
    %497 = vector.shape_cast %496 : vector<1x8x32xf32> to vector<8x32xf32>
    %cst_169 = arith.constant dense<0.000000e+00> : vector<8x512xf32>
    %498 = tpu.matmul %497, %4, %cst_169 {dimension_numbers = #tpu.dot_dimension_numbers<[1], [0], [0], [1], [0, 0, 1, 1], [], []>} : vector<8x32xf32>, vector<32x512xf32>, vector<8x512xf32> -> vector<8x512xf32>
    %cst_170 = arith.constant dense<0.000000e+00> : vector<8x512xf32>
    %499 = tpu.matmul %440, %5, %cst_170 {dimension_numbers = #tpu.dot_dimension_numbers<[1], [0], [0], [1], [0, 0, 1, 1], [], []>} : vector<8x128xf32>, vector<128x512xf32>, vector<8x512xf32> -> vector<8x512xf32>
    %500 = arith.addf %498, %499 : vector<8x512xf32>
    %501 = vector.broadcast %6 : vector<1x512xf32> to vector<8x512xf32>
    %502 = arith.addf %500, %501 : vector<8x512xf32>
    %503 = vector.extract_strided_slice %502 {offsets = [0, 0], sizes = [8, 128], strides = [1, 1]} : vector<8x512xf32> to vector<8x128xf32>
    %cst_171 = arith.constant 5.000000e-01 : f32
    %504 = vector.broadcast %cst_171 : f32 to vector<8x128xf32>
    %505 = arith.mulf %504, %503 : vector<8x128xf32>
    %506 = math.tanh %505 : vector<8x128xf32>
    %cst_172 = arith.constant 5.000000e-01 : f32
    %507 = vector.broadcast %cst_172 : f32 to vector<8x128xf32>
    %508 = arith.mulf %507, %506 : vector<8x128xf32>
    %cst_173 = arith.constant 5.000000e-01 : f32
    %509 = vector.broadcast %cst_173 : f32 to vector<8x128xf32>
    %510 = arith.addf %508, %509 : vector<8x128xf32>
    %511 = vector.extract_strided_slice %502 {offsets = [0, 128], sizes = [8, 128], strides = [1, 1]} : vector<8x512xf32> to vector<8x128xf32>
    %cst_174 = arith.constant 5.000000e-01 : f32
    %512 = vector.broadcast %cst_174 : f32 to vector<8x128xf32>
    %513 = arith.mulf %512, %511 : vector<8x128xf32>
    %514 = math.tanh %513 : vector<8x128xf32>
    %cst_175 = arith.constant 5.000000e-01 : f32
    %515 = vector.broadcast %cst_175 : f32 to vector<8x128xf32>
    %516 = arith.mulf %515, %514 : vector<8x128xf32>
    %cst_176 = arith.constant 5.000000e-01 : f32
    %517 = vector.broadcast %cst_176 : f32 to vector<8x128xf32>
    %518 = arith.addf %516, %517 : vector<8x128xf32>
    %519 = vector.extract_strided_slice %502 {offsets = [0, 256], sizes = [8, 128], strides = [1, 1]} : vector<8x512xf32> to vector<8x128xf32>
    %520 = math.tanh %519 : vector<8x128xf32>
    %521 = vector.extract_strided_slice %502 {offsets = [0, 384], sizes = [8, 128], strides = [1, 1]} : vector<8x512xf32> to vector<8x128xf32>
    %cst_177 = arith.constant 5.000000e-01 : f32
    %522 = vector.broadcast %cst_177 : f32 to vector<8x128xf32>
    %523 = arith.mulf %522, %521 : vector<8x128xf32>
    %524 = math.tanh %523 : vector<8x128xf32>
    %cst_178 = arith.constant 5.000000e-01 : f32
    %525 = vector.broadcast %cst_178 : f32 to vector<8x128xf32>
    %526 = arith.mulf %525, %524 : vector<8x128xf32>
    %cst_179 = arith.constant 5.000000e-01 : f32
    %527 = vector.broadcast %cst_179 : f32 to vector<8x128xf32>
    %528 = arith.addf %526, %527 : vector<8x128xf32>
    %529 = arith.mulf %518, %441 : vector<8x128xf32>
    %530 = arith.mulf %510, %520 : vector<8x128xf32>
    %531 = arith.addf %529, %530 : vector<8x128xf32>
    %532 = math.tanh %531 : vector<8x128xf32>
    %533 = arith.mulf %528, %532 : vector<8x128xf32>
    %534 = arith.select %490, %533, %440 : vector<8x128xi1>, vector<8x128xf32>
    %535 = arith.select %490, %531, %441 : vector<8x128xi1>, vector<8x128xf32>
    %c7_i32_180 = arith.constant 7 : i32
    %536 = arith.subi %c7_i32_180, %c5_i32 : i32
    %537 = arith.index_cast %536 : i32 to index
    %c0_181 = arith.constant 0 : index
    %c0_182 = arith.constant 0 : index
    %538 = vector.load %arg3[%537, %c0_181, %c0_182] : memref<8x8x32xf32, #tpu.memory_space<vmem>>, vector<1x8x32xf32>
    %539 = vector.shape_cast %538 : vector<1x8x32xf32> to vector<8x32xf32>
    %cst_183 = arith.constant dense<0.000000e+00> : vector<8x512xf32>
    %540 = tpu.matmul %539, %7, %cst_183 {dimension_numbers = #tpu.dot_dimension_numbers<[1], [0], [0], [1], [0, 0, 1, 1], [], []>} : vector<8x32xf32>, vector<32x512xf32>, vector<8x512xf32> -> vector<8x512xf32>
    %cst_184 = arith.constant dense<0.000000e+00> : vector<8x512xf32>
    %541 = tpu.matmul %482, %8, %cst_184 {dimension_numbers = #tpu.dot_dimension_numbers<[1], [0], [0], [1], [0, 0, 1, 1], [], []>} : vector<8x128xf32>, vector<128x512xf32>, vector<8x512xf32> -> vector<8x512xf32>
    %542 = arith.addf %540, %541 : vector<8x512xf32>
    %543 = vector.broadcast %9 : vector<1x512xf32> to vector<8x512xf32>
    %544 = arith.addf %542, %543 : vector<8x512xf32>
    %545 = vector.extract_strided_slice %544 {offsets = [0, 0], sizes = [8, 128], strides = [1, 1]} : vector<8x512xf32> to vector<8x128xf32>
    %cst_185 = arith.constant 5.000000e-01 : f32
    %546 = vector.broadcast %cst_185 : f32 to vector<8x128xf32>
    %547 = arith.mulf %546, %545 : vector<8x128xf32>
    %548 = math.tanh %547 : vector<8x128xf32>
    %cst_186 = arith.constant 5.000000e-01 : f32
    %549 = vector.broadcast %cst_186 : f32 to vector<8x128xf32>
    %550 = arith.mulf %549, %548 : vector<8x128xf32>
    %cst_187 = arith.constant 5.000000e-01 : f32
    %551 = vector.broadcast %cst_187 : f32 to vector<8x128xf32>
    %552 = arith.addf %550, %551 : vector<8x128xf32>
    %553 = vector.extract_strided_slice %544 {offsets = [0, 128], sizes = [8, 128], strides = [1, 1]} : vector<8x512xf32> to vector<8x128xf32>
    %cst_188 = arith.constant 5.000000e-01 : f32
    %554 = vector.broadcast %cst_188 : f32 to vector<8x128xf32>
    %555 = arith.mulf %554, %553 : vector<8x128xf32>
    %556 = math.tanh %555 : vector<8x128xf32>
    %cst_189 = arith.constant 5.000000e-01 : f32
    %557 = vector.broadcast %cst_189 : f32 to vector<8x128xf32>
    %558 = arith.mulf %557, %556 : vector<8x128xf32>
    %cst_190 = arith.constant 5.000000e-01 : f32
    %559 = vector.broadcast %cst_190 : f32 to vector<8x128xf32>
    %560 = arith.addf %558, %559 : vector<8x128xf32>
    %561 = vector.extract_strided_slice %544 {offsets = [0, 256], sizes = [8, 128], strides = [1, 1]} : vector<8x512xf32> to vector<8x128xf32>
    %562 = math.tanh %561 : vector<8x128xf32>
    %563 = vector.extract_strided_slice %544 {offsets = [0, 384], sizes = [8, 128], strides = [1, 1]} : vector<8x512xf32> to vector<8x128xf32>
    %cst_191 = arith.constant 5.000000e-01 : f32
    %564 = vector.broadcast %cst_191 : f32 to vector<8x128xf32>
    %565 = arith.mulf %564, %563 : vector<8x128xf32>
    %566 = math.tanh %565 : vector<8x128xf32>
    %cst_192 = arith.constant 5.000000e-01 : f32
    %567 = vector.broadcast %cst_192 : f32 to vector<8x128xf32>
    %568 = arith.mulf %567, %566 : vector<8x128xf32>
    %cst_193 = arith.constant 5.000000e-01 : f32
    %569 = vector.broadcast %cst_193 : f32 to vector<8x128xf32>
    %570 = arith.addf %568, %569 : vector<8x128xf32>
    %571 = arith.mulf %560, %483 : vector<8x128xf32>
    %572 = arith.mulf %552, %562 : vector<8x128xf32>
    %573 = arith.addf %571, %572 : vector<8x128xf32>
    %574 = math.tanh %573 : vector<8x128xf32>
    %575 = arith.mulf %570, %574 : vector<8x128xf32>
    %576 = arith.select %494, %575, %482 : vector<8x128xi1>, vector<8x128xf32>
    %577 = arith.select %494, %573, %483 : vector<8x128xi1>, vector<8x128xf32>
    %c6_i32 = arith.constant 6 : i32
    %c8_i32_194 = arith.constant 8 : i32
    %578 = arith.muli %arg1, %c8_i32_194 : i32
    %579 = arith.addi %578, %c6_i32 : i32
    %c7_i32_195 = arith.constant 7 : i32
    %580 = arith.subi %c7_i32_195, %579 : i32
    %581 = vector.broadcast %579 : i32 to vector<8x1xi32>
    %582 = arith.cmpi slt, %581, %3 : vector<8x1xi32>
    %583 = vector.shape_cast %582 : vector<8x1xi1> to vector<8x1xi1>
    %584 = vector.broadcast %583 : vector<8x1xi1> to vector<8x128xi1>
    %585 = vector.broadcast %580 : i32 to vector<8x1xi32>
    %586 = arith.cmpi slt, %585, %3 : vector<8x1xi32>
    %587 = vector.shape_cast %586 : vector<8x1xi1> to vector<8x1xi1>
    %588 = vector.broadcast %587 : vector<8x1xi1> to vector<8x128xi1>
    %589 = arith.index_cast %c6_i32 : i32 to index
    %c0_196 = arith.constant 0 : index
    %c0_197 = arith.constant 0 : index
    %590 = vector.load %arg2[%589, %c0_196, %c0_197] : memref<8x8x32xf32, #tpu.memory_space<vmem>>, vector<1x8x32xf32>
    %591 = vector.shape_cast %590 : vector<1x8x32xf32> to vector<8x32xf32>
    %cst_198 = arith.constant dense<0.000000e+00> : vector<8x512xf32>
    %592 = tpu.matmul %591, %4, %cst_198 {dimension_numbers = #tpu.dot_dimension_numbers<[1], [0], [0], [1], [0, 0, 1, 1], [], []>} : vector<8x32xf32>, vector<32x512xf32>, vector<8x512xf32> -> vector<8x512xf32>
    %cst_199 = arith.constant dense<0.000000e+00> : vector<8x512xf32>
    %593 = tpu.matmul %534, %5, %cst_199 {dimension_numbers = #tpu.dot_dimension_numbers<[1], [0], [0], [1], [0, 0, 1, 1], [], []>} : vector<8x128xf32>, vector<128x512xf32>, vector<8x512xf32> -> vector<8x512xf32>
    %594 = arith.addf %592, %593 : vector<8x512xf32>
    %595 = vector.broadcast %6 : vector<1x512xf32> to vector<8x512xf32>
    %596 = arith.addf %594, %595 : vector<8x512xf32>
    %597 = vector.extract_strided_slice %596 {offsets = [0, 0], sizes = [8, 128], strides = [1, 1]} : vector<8x512xf32> to vector<8x128xf32>
    %cst_200 = arith.constant 5.000000e-01 : f32
    %598 = vector.broadcast %cst_200 : f32 to vector<8x128xf32>
    %599 = arith.mulf %598, %597 : vector<8x128xf32>
    %600 = math.tanh %599 : vector<8x128xf32>
    %cst_201 = arith.constant 5.000000e-01 : f32
    %601 = vector.broadcast %cst_201 : f32 to vector<8x128xf32>
    %602 = arith.mulf %601, %600 : vector<8x128xf32>
    %cst_202 = arith.constant 5.000000e-01 : f32
    %603 = vector.broadcast %cst_202 : f32 to vector<8x128xf32>
    %604 = arith.addf %602, %603 : vector<8x128xf32>
    %605 = vector.extract_strided_slice %596 {offsets = [0, 128], sizes = [8, 128], strides = [1, 1]} : vector<8x512xf32> to vector<8x128xf32>
    %cst_203 = arith.constant 5.000000e-01 : f32
    %606 = vector.broadcast %cst_203 : f32 to vector<8x128xf32>
    %607 = arith.mulf %606, %605 : vector<8x128xf32>
    %608 = math.tanh %607 : vector<8x128xf32>
    %cst_204 = arith.constant 5.000000e-01 : f32
    %609 = vector.broadcast %cst_204 : f32 to vector<8x128xf32>
    %610 = arith.mulf %609, %608 : vector<8x128xf32>
    %cst_205 = arith.constant 5.000000e-01 : f32
    %611 = vector.broadcast %cst_205 : f32 to vector<8x128xf32>
    %612 = arith.addf %610, %611 : vector<8x128xf32>
    %613 = vector.extract_strided_slice %596 {offsets = [0, 256], sizes = [8, 128], strides = [1, 1]} : vector<8x512xf32> to vector<8x128xf32>
    %614 = math.tanh %613 : vector<8x128xf32>
    %615 = vector.extract_strided_slice %596 {offsets = [0, 384], sizes = [8, 128], strides = [1, 1]} : vector<8x512xf32> to vector<8x128xf32>
    %cst_206 = arith.constant 5.000000e-01 : f32
    %616 = vector.broadcast %cst_206 : f32 to vector<8x128xf32>
    %617 = arith.mulf %616, %615 : vector<8x128xf32>
    %618 = math.tanh %617 : vector<8x128xf32>
    %cst_207 = arith.constant 5.000000e-01 : f32
    %619 = vector.broadcast %cst_207 : f32 to vector<8x128xf32>
    %620 = arith.mulf %619, %618 : vector<8x128xf32>
    %cst_208 = arith.constant 5.000000e-01 : f32
    %621 = vector.broadcast %cst_208 : f32 to vector<8x128xf32>
    %622 = arith.addf %620, %621 : vector<8x128xf32>
    %623 = arith.mulf %612, %535 : vector<8x128xf32>
    %624 = arith.mulf %604, %614 : vector<8x128xf32>
    %625 = arith.addf %623, %624 : vector<8x128xf32>
    %626 = math.tanh %625 : vector<8x128xf32>
    %627 = arith.mulf %622, %626 : vector<8x128xf32>
    %628 = arith.select %584, %627, %534 : vector<8x128xi1>, vector<8x128xf32>
    %629 = arith.select %584, %625, %535 : vector<8x128xi1>, vector<8x128xf32>
    %c7_i32_209 = arith.constant 7 : i32
    %630 = arith.subi %c7_i32_209, %c6_i32 : i32
    %631 = arith.index_cast %630 : i32 to index
    %c0_210 = arith.constant 0 : index
    %c0_211 = arith.constant 0 : index
    %632 = vector.load %arg3[%631, %c0_210, %c0_211] : memref<8x8x32xf32, #tpu.memory_space<vmem>>, vector<1x8x32xf32>
    %633 = vector.shape_cast %632 : vector<1x8x32xf32> to vector<8x32xf32>
    %cst_212 = arith.constant dense<0.000000e+00> : vector<8x512xf32>
    %634 = tpu.matmul %633, %7, %cst_212 {dimension_numbers = #tpu.dot_dimension_numbers<[1], [0], [0], [1], [0, 0, 1, 1], [], []>} : vector<8x32xf32>, vector<32x512xf32>, vector<8x512xf32> -> vector<8x512xf32>
    %cst_213 = arith.constant dense<0.000000e+00> : vector<8x512xf32>
    %635 = tpu.matmul %576, %8, %cst_213 {dimension_numbers = #tpu.dot_dimension_numbers<[1], [0], [0], [1], [0, 0, 1, 1], [], []>} : vector<8x128xf32>, vector<128x512xf32>, vector<8x512xf32> -> vector<8x512xf32>
    %636 = arith.addf %634, %635 : vector<8x512xf32>
    %637 = vector.broadcast %9 : vector<1x512xf32> to vector<8x512xf32>
    %638 = arith.addf %636, %637 : vector<8x512xf32>
    %639 = vector.extract_strided_slice %638 {offsets = [0, 0], sizes = [8, 128], strides = [1, 1]} : vector<8x512xf32> to vector<8x128xf32>
    %cst_214 = arith.constant 5.000000e-01 : f32
    %640 = vector.broadcast %cst_214 : f32 to vector<8x128xf32>
    %641 = arith.mulf %640, %639 : vector<8x128xf32>
    %642 = math.tanh %641 : vector<8x128xf32>
    %cst_215 = arith.constant 5.000000e-01 : f32
    %643 = vector.broadcast %cst_215 : f32 to vector<8x128xf32>
    %644 = arith.mulf %643, %642 : vector<8x128xf32>
    %cst_216 = arith.constant 5.000000e-01 : f32
    %645 = vector.broadcast %cst_216 : f32 to vector<8x128xf32>
    %646 = arith.addf %644, %645 : vector<8x128xf32>
    %647 = vector.extract_strided_slice %638 {offsets = [0, 128], sizes = [8, 128], strides = [1, 1]} : vector<8x512xf32> to vector<8x128xf32>
    %cst_217 = arith.constant 5.000000e-01 : f32
    %648 = vector.broadcast %cst_217 : f32 to vector<8x128xf32>
    %649 = arith.mulf %648, %647 : vector<8x128xf32>
    %650 = math.tanh %649 : vector<8x128xf32>
    %cst_218 = arith.constant 5.000000e-01 : f32
    %651 = vector.broadcast %cst_218 : f32 to vector<8x128xf32>
    %652 = arith.mulf %651, %650 : vector<8x128xf32>
    %cst_219 = arith.constant 5.000000e-01 : f32
    %653 = vector.broadcast %cst_219 : f32 to vector<8x128xf32>
    %654 = arith.addf %652, %653 : vector<8x128xf32>
    %655 = vector.extract_strided_slice %638 {offsets = [0, 256], sizes = [8, 128], strides = [1, 1]} : vector<8x512xf32> to vector<8x128xf32>
    %656 = math.tanh %655 : vector<8x128xf32>
    %657 = vector.extract_strided_slice %638 {offsets = [0, 384], sizes = [8, 128], strides = [1, 1]} : vector<8x512xf32> to vector<8x128xf32>
    %cst_220 = arith.constant 5.000000e-01 : f32
    %658 = vector.broadcast %cst_220 : f32 to vector<8x128xf32>
    %659 = arith.mulf %658, %657 : vector<8x128xf32>
    %660 = math.tanh %659 : vector<8x128xf32>
    %cst_221 = arith.constant 5.000000e-01 : f32
    %661 = vector.broadcast %cst_221 : f32 to vector<8x128xf32>
    %662 = arith.mulf %661, %660 : vector<8x128xf32>
    %cst_222 = arith.constant 5.000000e-01 : f32
    %663 = vector.broadcast %cst_222 : f32 to vector<8x128xf32>
    %664 = arith.addf %662, %663 : vector<8x128xf32>
    %665 = arith.mulf %654, %577 : vector<8x128xf32>
    %666 = arith.mulf %646, %656 : vector<8x128xf32>
    %667 = arith.addf %665, %666 : vector<8x128xf32>
    %668 = math.tanh %667 : vector<8x128xf32>
    %669 = arith.mulf %664, %668 : vector<8x128xf32>
    %670 = arith.select %588, %669, %576 : vector<8x128xi1>, vector<8x128xf32>
    %671 = arith.select %588, %667, %577 : vector<8x128xi1>, vector<8x128xf32>
    %c7_i32_223 = arith.constant 7 : i32
    %c8_i32_224 = arith.constant 8 : i32
    %672 = arith.muli %arg1, %c8_i32_224 : i32
    %673 = arith.addi %672, %c7_i32_223 : i32
    %c7_i32_225 = arith.constant 7 : i32
    %674 = arith.subi %c7_i32_225, %673 : i32
    %675 = vector.broadcast %673 : i32 to vector<8x1xi32>
    %676 = arith.cmpi slt, %675, %3 : vector<8x1xi32>
    %677 = vector.shape_cast %676 : vector<8x1xi1> to vector<8x1xi1>
    %678 = vector.broadcast %677 : vector<8x1xi1> to vector<8x128xi1>
    %679 = vector.broadcast %674 : i32 to vector<8x1xi32>
    %680 = arith.cmpi slt, %679, %3 : vector<8x1xi32>
    %681 = vector.shape_cast %680 : vector<8x1xi1> to vector<8x1xi1>
    %682 = vector.broadcast %681 : vector<8x1xi1> to vector<8x128xi1>
    %683 = arith.index_cast %c7_i32_223 : i32 to index
    %c0_226 = arith.constant 0 : index
    %c0_227 = arith.constant 0 : index
    %684 = vector.load %arg2[%683, %c0_226, %c0_227] : memref<8x8x32xf32, #tpu.memory_space<vmem>>, vector<1x8x32xf32>
    %685 = vector.shape_cast %684 : vector<1x8x32xf32> to vector<8x32xf32>
    %cst_228 = arith.constant dense<0.000000e+00> : vector<8x512xf32>
    %686 = tpu.matmul %685, %4, %cst_228 {dimension_numbers = #tpu.dot_dimension_numbers<[1], [0], [0], [1], [0, 0, 1, 1], [], []>} : vector<8x32xf32>, vector<32x512xf32>, vector<8x512xf32> -> vector<8x512xf32>
    %cst_229 = arith.constant dense<0.000000e+00> : vector<8x512xf32>
    %687 = tpu.matmul %628, %5, %cst_229 {dimension_numbers = #tpu.dot_dimension_numbers<[1], [0], [0], [1], [0, 0, 1, 1], [], []>} : vector<8x128xf32>, vector<128x512xf32>, vector<8x512xf32> -> vector<8x512xf32>
    %688 = arith.addf %686, %687 : vector<8x512xf32>
    %689 = vector.broadcast %6 : vector<1x512xf32> to vector<8x512xf32>
    %690 = arith.addf %688, %689 : vector<8x512xf32>
    %691 = vector.extract_strided_slice %690 {offsets = [0, 0], sizes = [8, 128], strides = [1, 1]} : vector<8x512xf32> to vector<8x128xf32>
    %cst_230 = arith.constant 5.000000e-01 : f32
    %692 = vector.broadcast %cst_230 : f32 to vector<8x128xf32>
    %693 = arith.mulf %692, %691 : vector<8x128xf32>
    %694 = math.tanh %693 : vector<8x128xf32>
    %cst_231 = arith.constant 5.000000e-01 : f32
    %695 = vector.broadcast %cst_231 : f32 to vector<8x128xf32>
    %696 = arith.mulf %695, %694 : vector<8x128xf32>
    %cst_232 = arith.constant 5.000000e-01 : f32
    %697 = vector.broadcast %cst_232 : f32 to vector<8x128xf32>
    %698 = arith.addf %696, %697 : vector<8x128xf32>
    %699 = vector.extract_strided_slice %690 {offsets = [0, 128], sizes = [8, 128], strides = [1, 1]} : vector<8x512xf32> to vector<8x128xf32>
    %cst_233 = arith.constant 5.000000e-01 : f32
    %700 = vector.broadcast %cst_233 : f32 to vector<8x128xf32>
    %701 = arith.mulf %700, %699 : vector<8x128xf32>
    %702 = math.tanh %701 : vector<8x128xf32>
    %cst_234 = arith.constant 5.000000e-01 : f32
    %703 = vector.broadcast %cst_234 : f32 to vector<8x128xf32>
    %704 = arith.mulf %703, %702 : vector<8x128xf32>
    %cst_235 = arith.constant 5.000000e-01 : f32
    %705 = vector.broadcast %cst_235 : f32 to vector<8x128xf32>
    %706 = arith.addf %704, %705 : vector<8x128xf32>
    %707 = vector.extract_strided_slice %690 {offsets = [0, 256], sizes = [8, 128], strides = [1, 1]} : vector<8x512xf32> to vector<8x128xf32>
    %708 = math.tanh %707 : vector<8x128xf32>
    %709 = vector.extract_strided_slice %690 {offsets = [0, 384], sizes = [8, 128], strides = [1, 1]} : vector<8x512xf32> to vector<8x128xf32>
    %cst_236 = arith.constant 5.000000e-01 : f32
    %710 = vector.broadcast %cst_236 : f32 to vector<8x128xf32>
    %711 = arith.mulf %710, %709 : vector<8x128xf32>
    %712 = math.tanh %711 : vector<8x128xf32>
    %cst_237 = arith.constant 5.000000e-01 : f32
    %713 = vector.broadcast %cst_237 : f32 to vector<8x128xf32>
    %714 = arith.mulf %713, %712 : vector<8x128xf32>
    %cst_238 = arith.constant 5.000000e-01 : f32
    %715 = vector.broadcast %cst_238 : f32 to vector<8x128xf32>
    %716 = arith.addf %714, %715 : vector<8x128xf32>
    %717 = arith.mulf %706, %629 : vector<8x128xf32>
    %718 = arith.mulf %698, %708 : vector<8x128xf32>
    %719 = arith.addf %717, %718 : vector<8x128xf32>
    %720 = math.tanh %719 : vector<8x128xf32>
    %721 = arith.mulf %716, %720 : vector<8x128xf32>
    %722 = arith.select %678, %721, %628 : vector<8x128xi1>, vector<8x128xf32>
    %723 = arith.select %678, %719, %629 : vector<8x128xi1>, vector<8x128xf32>
    %c7_i32_239 = arith.constant 7 : i32
    %724 = arith.subi %c7_i32_239, %c7_i32_223 : i32
    %725 = arith.index_cast %724 : i32 to index
    %c0_240 = arith.constant 0 : index
    %c0_241 = arith.constant 0 : index
    %726 = vector.load %arg3[%725, %c0_240, %c0_241] : memref<8x8x32xf32, #tpu.memory_space<vmem>>, vector<1x8x32xf32>
    %727 = vector.shape_cast %726 : vector<1x8x32xf32> to vector<8x32xf32>
    %cst_242 = arith.constant dense<0.000000e+00> : vector<8x512xf32>
    %728 = tpu.matmul %727, %7, %cst_242 {dimension_numbers = #tpu.dot_dimension_numbers<[1], [0], [0], [1], [0, 0, 1, 1], [], []>} : vector<8x32xf32>, vector<32x512xf32>, vector<8x512xf32> -> vector<8x512xf32>
    %cst_243 = arith.constant dense<0.000000e+00> : vector<8x512xf32>
    %729 = tpu.matmul %670, %8, %cst_243 {dimension_numbers = #tpu.dot_dimension_numbers<[1], [0], [0], [1], [0, 0, 1, 1], [], []>} : vector<8x128xf32>, vector<128x512xf32>, vector<8x512xf32> -> vector<8x512xf32>
    %730 = arith.addf %728, %729 : vector<8x512xf32>
    %731 = vector.broadcast %9 : vector<1x512xf32> to vector<8x512xf32>
    %732 = arith.addf %730, %731 : vector<8x512xf32>
    %733 = vector.extract_strided_slice %732 {offsets = [0, 0], sizes = [8, 128], strides = [1, 1]} : vector<8x512xf32> to vector<8x128xf32>
    %cst_244 = arith.constant 5.000000e-01 : f32
    %734 = vector.broadcast %cst_244 : f32 to vector<8x128xf32>
    %735 = arith.mulf %734, %733 : vector<8x128xf32>
    %736 = math.tanh %735 : vector<8x128xf32>
    %cst_245 = arith.constant 5.000000e-01 : f32
    %737 = vector.broadcast %cst_245 : f32 to vector<8x128xf32>
    %738 = arith.mulf %737, %736 : vector<8x128xf32>
    %cst_246 = arith.constant 5.000000e-01 : f32
    %739 = vector.broadcast %cst_246 : f32 to vector<8x128xf32>
    %740 = arith.addf %738, %739 : vector<8x128xf32>
    %741 = vector.extract_strided_slice %732 {offsets = [0, 128], sizes = [8, 128], strides = [1, 1]} : vector<8x512xf32> to vector<8x128xf32>
    %cst_247 = arith.constant 5.000000e-01 : f32
    %742 = vector.broadcast %cst_247 : f32 to vector<8x128xf32>
    %743 = arith.mulf %742, %741 : vector<8x128xf32>
    %744 = math.tanh %743 : vector<8x128xf32>
    %cst_248 = arith.constant 5.000000e-01 : f32
    %745 = vector.broadcast %cst_248 : f32 to vector<8x128xf32>
    %746 = arith.mulf %745, %744 : vector<8x128xf32>
    %cst_249 = arith.constant 5.000000e-01 : f32
    %747 = vector.broadcast %cst_249 : f32 to vector<8x128xf32>
    %748 = arith.addf %746, %747 : vector<8x128xf32>
    %749 = vector.extract_strided_slice %732 {offsets = [0, 256], sizes = [8, 128], strides = [1, 1]} : vector<8x512xf32> to vector<8x128xf32>
    %750 = math.tanh %749 : vector<8x128xf32>
    %751 = vector.extract_strided_slice %732 {offsets = [0, 384], sizes = [8, 128], strides = [1, 1]} : vector<8x512xf32> to vector<8x128xf32>
    %cst_250 = arith.constant 5.000000e-01 : f32
    %752 = vector.broadcast %cst_250 : f32 to vector<8x128xf32>
    %753 = arith.mulf %752, %751 : vector<8x128xf32>
    %754 = math.tanh %753 : vector<8x128xf32>
    %cst_251 = arith.constant 5.000000e-01 : f32
    %755 = vector.broadcast %cst_251 : f32 to vector<8x128xf32>
    %756 = arith.mulf %755, %754 : vector<8x128xf32>
    %cst_252 = arith.constant 5.000000e-01 : f32
    %757 = vector.broadcast %cst_252 : f32 to vector<8x128xf32>
    %758 = arith.addf %756, %757 : vector<8x128xf32>
    %759 = arith.mulf %748, %671 : vector<8x128xf32>
    %760 = arith.mulf %740, %750 : vector<8x128xf32>
    %761 = arith.addf %759, %760 : vector<8x128xf32>
    %762 = math.tanh %761 : vector<8x128xf32>
    %763 = arith.mulf %758, %762 : vector<8x128xf32>
    %764 = arith.select %682, %763, %670 : vector<8x128xi1>, vector<8x128xf32>
    %765 = arith.select %682, %761, %671 : vector<8x128xi1>, vector<8x128xf32>
    %c8_i32_253 = arith.constant 8 : i32
    %c0_254 = arith.constant 0 : index
    %c0_255 = arith.constant 0 : index
    %766 = vector.load %arg12[%c0_254, %c0_255] : memref<8x128xf32, #tpu.memory_space<vmem>>, vector<8x128xf32>
    tpu.vector_store %arg12[%c0_254, %c0_255], %722 {strides = array<i32>} : memref<8x128xf32, #tpu.memory_space<vmem>>, vector<8x128xf32>,
    %c0_256 = arith.constant 0 : index
    %c0_257 = arith.constant 0 : index
    %767 = vector.load %arg13[%c0_256, %c0_257] : memref<8x128xf32, #tpu.memory_space<vmem>>, vector<8x128xf32>
    tpu.vector_store %arg13[%c0_256, %c0_257], %723 {strides = array<i32>} : memref<8x128xf32, #tpu.memory_space<vmem>>, vector<8x128xf32>,
    %c0_258 = arith.constant 0 : index
    %c0_259 = arith.constant 0 : index
    %768 = vector.load %arg14[%c0_258, %c0_259] : memref<8x128xf32, #tpu.memory_space<vmem>>, vector<8x128xf32>
    tpu.vector_store %arg14[%c0_258, %c0_259], %764 {strides = array<i32>} : memref<8x128xf32, #tpu.memory_space<vmem>>, vector<8x128xf32>,
    %c0_260 = arith.constant 0 : index
    %c0_261 = arith.constant 0 : index
    %769 = vector.load %arg15[%c0_260, %c0_261] : memref<8x128xf32, #tpu.memory_space<vmem>>, vector<8x128xf32>
    tpu.vector_store %arg15[%c0_260, %c0_261], %765 {strides = array<i32>} : memref<8x128xf32, #tpu.memory_space<vmem>>, vector<8x128xf32>,
    %c0_i32_262 = arith.constant 0 : i32
    %770 = arith.cmpi eq, %arg1, %c0_i32_262 : i32
    %771 = arith.extui %770 : i1 to i32
    %c0_i32_263 = arith.constant 0 : i32
    %772 = arith.cmpi ne, %771, %c0_i32_263 : i32
    scf.if %772 {
      %c0_264 = arith.constant 0 : index
      %c0_265 = arith.constant 0 : index
      %773 = vector.load %arg11[%c0_264, %c0_265] : memref<8x256xf32, #tpu.memory_space<vmem>>, vector<8x128xf32>
      tpu.vector_store %arg11[%c0_264, %c0_265], %722 {strides = array<i32>} : memref<8x256xf32, #tpu.memory_space<vmem>>, vector<8x128xf32>,
      %c0_266 = arith.constant 0 : index
      %c128 = arith.constant 128 : index
      %774 = vector.load %arg11[%c0_266, %c128] : memref<8x256xf32, #tpu.memory_space<vmem>>, vector<8x128xf32>
      tpu.vector_store %arg11[%c0_266, %c128], %764 {strides = array<i32>} : memref<8x256xf32, #tpu.memory_space<vmem>>, vector<8x128xf32>,
    } else {
    }
    return
  }
  func.func @transform_0(%arg0: i32, %arg1: i32) -> (i32, i32, i32) {
    %c0_i32 = arith.constant 0 : i32
    %c0_i32_0 = arith.constant 0 : i32
    return %arg1, %arg0, %c0_i32 : i32, i32, i32
  }
  func.func @transform_1(%arg0: i32, %arg1: i32) -> (i32, i32, i32) {
    %c0_i32 = arith.constant 0 : i32
    %0 = arith.subi %c0_i32, %arg1 : i32
    %c0_i32_0 = arith.constant 0 : i32
    %c0_i32_1 = arith.constant 0 : i32
    return %0, %arg0, %c0_i32_0 : i32, i32, i32
  }
  func.func @transform_2(%arg0: i32, %arg1: i32) -> (i32, i32) {
    %c0_i32 = arith.constant 0 : i32
    %c0_i32_0 = arith.constant 0 : i32
    return %arg0, %c0_i32 : i32, i32
  }
  func.func @transform_3(%arg0: i32, %arg1: i32) -> (i32, i32) {
    %c0_i32 = arith.constant 0 : i32
    %c0_i32_0 = arith.constant 0 : i32
    %c0_i32_1 = arith.constant 0 : i32
    return %c0_i32, %c0_i32_0 : i32, i32
  }
  func.func @transform_4(%arg0: i32, %arg1: i32) -> (i32, i32) {
    %c0_i32 = arith.constant 0 : i32
    %c0_i32_0 = arith.constant 0 : i32
    %c0_i32_1 = arith.constant 0 : i32
    return %c0_i32, %c0_i32_0 : i32, i32
  }
  func.func @transform_5(%arg0: i32, %arg1: i32) -> (i32, i32) {
    %c0_i32 = arith.constant 0 : i32
    %c0_i32_0 = arith.constant 0 : i32
    %c0_i32_1 = arith.constant 0 : i32
    return %c0_i32, %c0_i32_0 : i32, i32
  }
  func.func @transform_6(%arg0: i32, %arg1: i32) -> (i32, i32) {
    %c0_i32 = arith.constant 0 : i32
    %c0_i32_0 = arith.constant 0 : i32
    %c0_i32_1 = arith.constant 0 : i32
    return %c0_i32, %c0_i32_0 : i32, i32
  }
  func.func @transform_7(%arg0: i32, %arg1: i32) -> (i32, i32) {
    %c0_i32 = arith.constant 0 : i32
    %c0_i32_0 = arith.constant 0 : i32
    %c0_i32_1 = arith.constant 0 : i32
    return %c0_i32, %c0_i32_0 : i32, i32
  }
  func.func @transform_8(%arg0: i32, %arg1: i32) -> (i32, i32) {
    %c0_i32 = arith.constant 0 : i32
    %c0_i32_0 = arith.constant 0 : i32
    %c0_i32_1 = arith.constant 0 : i32
    return %c0_i32, %c0_i32_0 : i32, i32
  }
  func.func @transform_9(%arg0: i32, %arg1: i32) -> (i32, i32) {
    %c0_i32 = arith.constant 0 : i32
    %c0_i32_0 = arith.constant 0 : i32
    return %arg0, %c0_i32 : i32, i32
  }
}

</mosaic_0001>

<llo_original>
// kernel: tpu_custom_call.1
$region0: #{tpu_custom_call.1}
  #allocation0 [shape = 'u32[]', space=smem, size = 0x4, offset = 0x4, fixed_abs, tag = 'smem constant byte address 0x4 - core index']
  #allocation1 [shape = 'u32[144,128]{1,0:T(1,128)}', space=vmem, size = 0x12000, scoped, tag = 'internal scratch']
  #allocation2 [shape = 'f32[8,128]{1,0:T(8,128)}', space=vmem, size = 0x1000, scoped, tag = 'scratch operand']
  #allocation3 [shape = 'f32[8,128]{1,0:T(8,128)}', space=vmem, size = 0x1000, scoped, tag = 'scratch operand']
  #allocation4 [shape = 'f32[8,128]{1,0:T(8,128)}', space=vmem, size = 0x1000, scoped, tag = 'scratch operand']
  #allocation5 [shape = 'f32[8,128]{1,0:T(8,128)}', space=vmem, size = 0x1000, scoped, tag = 'scratch operand']
  %s0 = inlined_call_operand.hbm [shape: f32[8,8,32], index: 0, kind: input, shape index: {}]
  %s1 = inlined_call_operand.hbm [shape: f32[8,8,32], index: 1, kind: input, shape index: {}]
  %s2 = inlined_call_operand.vmem [shape: s32[8,1], index: 2, kind: input, shape index: {}]
  %s3 = inlined_call_operand.hbm [shape: f32[32,512], index: 3, kind: input, shape index: {}]
  %s4 = inlined_call_operand.hbm [shape: f32[128,512], index: 4, kind: input, shape index: {}]
  %s5 = inlined_call_operand.vmem [shape: f32[1,512], index: 5, kind: input, shape index: {}]
  %s6 = inlined_call_operand.hbm [shape: f32[32,512], index: 6, kind: input, shape index: {}]
  %s7 = inlined_call_operand.hbm [shape: f32[128,512], index: 7, kind: input, shape index: {}]
  %s8 = inlined_call_operand.vmem [shape: f32[1,512], index: 8, kind: input, shape index: {}]
  %s9 = inlined_call_operand.hbm [shape: f32[8,256], index: 9, kind: output, shape index: {}]
  %s10 = sld [smem:[#allocation0]]
  $region78: #{tpu_custom_call.1} parent=0
    _
  %s12 = ssub.s32 1, %s10
  %s13 = scalar_select 0, %s12, %s10
  $region1: #{tpu_custom_call.1} parent=0
    #allocation6 [shape = 'u8[32768]{0}', space=vmem, size = 0x8000, scoped, tag = 'input window, operand 0, single buffered']
    #allocation7 [shape = 's32[1]{0}', space=sflag, size = 0x4, scoped, tag = 'scoped memory for tpu_custom_call.1']
    #allocation8 [shape = 's32[1]{0}', space=sflag, size = 0x4, scoped, tag = 'scoped memory for tpu_custom_call.1']
    #allocation9 [shape = 'u8[32768]{0}', space=vmem, size = 0x8000, scoped, tag = 'input window, operand 1, single buffered']
    #allocation10 [shape = 's32[1]{0}', space=sflag, size = 0x4, scoped, tag = 'scoped memory for tpu_custom_call.1']
    #allocation11 [shape = 'u8[65536]{0}', space=vmem, size = 0x10000, scoped, tag = 'input window, operand 3, single buffered']
    #allocation12 [shape = 'u8[262144]{0}', space=vmem, size = 0x40000, scoped, tag = 'input window, operand 4, single buffered']
    #allocation13 [shape = 's32[1]{0}', space=sflag, size = 0x4, scoped, tag = 'scoped memory for tpu_custom_call.1']
    #allocation14 [shape = 'u8[65536]{0}', space=vmem, size = 0x10000, scoped, tag = 'input window, operand 6, single buffered']
    #allocation15 [shape = 'u8[262144]{0}', space=vmem, size = 0x40000, scoped, tag = 'input window, operand 7, single buffered']
    #allocation16 [shape = 's32[1]{0}', space=sflag, size = 0x4, scoped, tag = 'scoped memory for tpu_custom_call.1']
    #allocation17 [shape = 'u8[8192]{0}', space=vmem, size = 0x2000, scoped, tag = 'output window, operand 0, single buffered']
    %14 = vsyncpa [#allocation7], 0
    %15 = vsyncpa [#allocation10], 0
    %16 = vsyncpa [#allocation13], 0
    %17 = vsyncpa [#allocation16], 0
    %18 = vsyncpa [#allocation8], 0
    // Predicated region
    $region2: #{tpu_custom_call.1} parent=1 // pred_check
      _
    $region3: #{tpu_custom_call.1} parent=1 // pred_check_branch
      %20 = sbr.rel (0) target = $region5
    $region4: #{tpu_custom_call.1} parent=1 // pred_region
      %s22 = ssub.s32 1024, 1024
      %23 = vsyncadd [#allocation7], %s22
      %s24 = sshll.u32 [#allocation6], 4
      %s25 = int_to_ptr.vmem [resolvable:$true] %s24
      %30 = dma.hbm_to_vmem [thread:$0]  %s0, 1024, %s25, [#allocation7], 128, 128, 8
    $region5: #{tpu_custom_call.1} parent=1 // pred_fallthru
      _
    // Predicated region
    $region6: #{tpu_custom_call.1} parent=1 // pred_check
      _
    $region7: #{tpu_custom_call.1} parent=1 // pred_check_branch
      %32 = sbr.rel (0) target = $region9
    $region8: #{tpu_custom_call.1} parent=1 // pred_region
      %s33 = ssub.s32 0, 0
      %s34 = smul.u32 8, %s33
      %s36 = ssub.s32 1024, 1024
      %37 = vsyncadd [#allocation10], %s36
      %s38 = smul.addr %s34, 128
      %s39 = scalar_lea.hbm %s1, %s38
      %s40 = sshll.u32 [#allocation9], 4
      %s41 = int_to_ptr.vmem [resolvable:$true] %s40
      %46 = dma.hbm_to_vmem [thread:$0]  %s39, 1024, %s41, [#allocation10], 128, 128, 8
    $region9: #{tpu_custom_call.1} parent=1 // pred_fallthru
      _
    // Predicated region
    $region10: #{tpu_custom_call.1} parent=1 // pred_check
      _
    $region11: #{tpu_custom_call.1} parent=1 // pred_check_branch
      %48 = sbr.rel (0) target = $region13
    $region12: #{tpu_custom_call.1} parent=1 // pred_region
      _
    $region13: #{tpu_custom_call.1} parent=1 // pred_fallthru
      _
    // Predicated region
    $region14: #{tpu_custom_call.1} parent=1 // pred_check
      _
    $region15: #{tpu_custom_call.1} parent=1 // pred_check_branch
      %50 = sbr.rel (0) target = $region17
    $region16: #{tpu_custom_call.1} parent=1 // pred_region
      %s52 = ssub.s32 2048, 2048
      %53 = vsyncadd [#allocation10], %s52
      %s54 = sshll.u32 [#allocation11], 4
      %s55 = int_to_ptr.vmem [resolvable:$true] %s54
      %60 = dma.hbm_to_vmem [thread:$0]  %s3, 2048, %s55, [#allocation10], 512, 512, 32
    $region17: #{tpu_custom_call.1} parent=1 // pred_fallthru
      _
    // Predicated region
    $region18: #{tpu_custom_call.1} parent=1 // pred_check
      _
    $region19: #{tpu_custom_call.1} parent=1 // pred_check_branch
      %62 = sbr.rel (0) target = $region21
    $region20: #{tpu_custom_call.1} parent=1 // pred_region
      %s64 = ssub.s32 8192, 8192
      %65 = vsyncadd [#allocation13], %s64
      %s66 = sshll.u32 [#allocation12], 4
      %s67 = int_to_ptr.vmem [resolvable:$true] %s66
      %72 = dma.hbm_to_vmem [thread:$0]  %s4, 8192, %s67, [#allocation13], 512, 512, 32
    $region21: #{tpu_custom_call.1} parent=1 // pred_fallthru
      _
    // Predicated region
    $region22: #{tpu_custom_call.1} parent=1 // pred_check
      _
    $region23: #{tpu_custom_call.1} parent=1 // pred_check_branch
      %74 = sbr.rel (0) target = $region25
    $region24: #{tpu_custom_call.1} parent=1 // pred_region
      _
    $region25: #{tpu_custom_call.1} parent=1 // pred_fallthru
      _
    // Predicated region
    $region26: #{tpu_custom_call.1} parent=1 // pred_check
      _
    $region27: #{tpu_custom_call.1} parent=1 // pred_check_branch
      %76 = sbr.rel (0) target = $region29
    $region28: #{tpu_custom_call.1} parent=1 // pred_region
      %s78 = ssub.s32 2048, 2048
      %79 = vsyncadd [#allocation13], %s78
      %s80 = sshll.u32 [#allocation14], 4
      %s81 = int_to_ptr.vmem [resolvable:$true] %s80
      %86 = dma.hbm_to_vmem [thread:$0]  %s6, 2048, %s81, [#allocation13], 512, 512, 32
    $region29: #{tpu_custom_call.1} parent=1 // pred_fallthru
      _
    // Predicated region
    $region30: #{tpu_custom_call.1} parent=1 // pred_check
      _
    $region31: #{tpu_custom_call.1} parent=1 // pred_check_branch
      %88 = sbr.rel (0) target = $region33
    $region32: #{tpu_custom_call.1} parent=1 // pred_region
      %s90 = ssub.s32 8192, 8192
      %91 = vsyncadd [#allocation16], %s90
      %s92 = sshll.u32 [#allocation15], 4
      %s93 = int_to_ptr.vmem [resolvable:$true] %s92
      %98 = dma.hbm_to_vmem [thread:$0]  %s7, 8192, %s93, [#allocation16], 512, 512, 32
    $region33: #{tpu_custom_call.1} parent=1 // pred_fallthru
      _
    // Predicated region
    $region34: #{tpu_custom_call.1} parent=1 // pred_check
      _
    $region35: #{tpu_custom_call.1} parent=1 // pred_check_branch
      %100 = sbr.rel (0) target = $region37
    $region36: #{tpu_custom_call.1} parent=1 // pred_region
      _
    $region37: #{tpu_custom_call.1} parent=1 // pred_fallthru
      _
    // Predicated region
    $region38: #{tpu_custom_call.1} parent=1 // pred_check
      _
    $region39: #{tpu_custom_call.1} parent=1 // pred_check_branch
      %102 = sbr.rel (0) target = $region41
    $region40: #{tpu_custom_call.1} parent=1 // pred_region
      %103 = dma.done [#allocation7], 1024
    $region41: #{tpu_custom_call.1} parent=1 // pred_fallthru
      _
    // Predicated region
    $region42: #{tpu_custom_call.1} parent=1 // pred_check
      _
    $region43: #{tpu_custom_call.1} parent=1 // pred_check_branch
      %105 = sbr.rel (0) target = $region45
    $region44: #{tpu_custom_call.1} parent=1 // pred_region
      %106 = dma.done [#allocation10], 1024
    $region45: #{tpu_custom_call.1} parent=1 // pred_fallthru
      _
    // Predicated region
    $region46: #{tpu_custom_call.1} parent=1 // pred_check
      _
    $region47: #{tpu_custom_call.1} parent=1 // pred_check_branch
      %108 = sbr.rel (0) target = $region49
    $region48: #{tpu_custom_call.1} parent=1 // pred_region
      %109 = dma.done [#allocation10], 2048
    $region49: #{tpu_custom_call.1} parent=1 // pred_fallthru
      _
    // Predicated region
    $region50: #{tpu_custom_call.1} parent=1 // pred_check
      _
    $region51: #{tpu_custom_call.1} parent=1 // pred_check_branch
      %111 = sbr.rel (0) target = $region53
    $region52: #{tpu_custom_call.1} parent=1 // pred_region
      %112 = dma.done [#allocation13], 8192
    $region53: #{tpu_custom_call.1} parent=1 // pred_fallthru
      _
    // Predicated region
    $region54: #{tpu_custom_call.1} parent=1 // pred_check
      _
    $region55: #{tpu_custom_call.1} parent=1 // pred_check_branch
      %114 = sbr.rel (0) target = $region57
    $region56: #{tpu_custom_call.1} parent=1 // pred_region
      %115 = dma.done [#allocation13], 2048
    $region57: #{tpu_custom_call.1} parent=1 // pred_fallthru
      _
    // Predicated region
    $region58: #{tpu_custom_call.1} parent=1 // pred_check
      _
    $region59: #{tpu_custom_call.1} parent=1 // pred_check_branch
      %117 = sbr.rel (0) target = $region61
    $region60: #{tpu_custom_call.1} parent=1 // pred_region
      %118 = dma.done [#allocation16], 8192
    $region61: #{tpu_custom_call.1} parent=1 // pred_fallthru
      _
    %s119 = ssub.s32 0, 0
    %s120 = smul.u32 8, %s119
    %p121 = scmp.eq.s32.totalorder 0, 0
    // Predicated region
    $region62: #{tpu_custom_call.1} parent=1 // pred_check
      %p122 = pneg %p121
    $region63: #{tpu_custom_call.1} parent=1 // pred_check_branch
      %124 = sbr.rel (%p122) target = $region65
    $region64: #{tpu_custom_call.1} parent=1 // pred_region
      %125 = vst [vmem:[#allocation2] sm:$0xff] 0.0
      %126 = vst [vmem:[#allocation3] sm:$0xff] 0.0
      %127 = vst [vmem:[#allocation4] sm:$0xff] 0.0
      %128 = vst [vmem:[#allocation5] sm:$0xff] 0.0
    $region65: #{tpu_custom_call.1} parent=1 // pred_fallthru
      _
    %v129 = vld [vmem:[%s2] sm:$0xff]
    %v130 = vld [vmem:[#allocation11] sm:$0xff]
    %v131 = vld [vmem:[#allocation11 + $0x8] sm:$0xff]
    %v132 = vld [vmem:[#allocation11 + $0x10] sm:$0xff]
    %v133 = vld [vmem:[#allocation11 + $0x18] sm:$0xff]
    %v134 = vld [vmem:[#allocation11 + $0x20] sm:$0xff]
    %v135 = vld [vmem:[#allocation11 + $0x28] sm:$0xff]
    %v136 = vld [vmem:[#allocation11 + $0x30] sm:$0xff]
    %v137 = vld [vmem:[#allocation11 + $0x38] sm:$0xff]
    %v138 = vld [vmem:[#allocation11 + $0x40] sm:$0xff]
    %v139 = vld [vmem:[#allocation11 + $0x48] sm:$0xff]
    %v140 = vld [vmem:[#allocation11 + $0x50] sm:$0xff]
    %v141 = vld [vmem:[#allocation11 + $0x58] sm:$0xff]
    %v142 = vld [vmem:[#allocation11 + $0x60] sm:$0xff]
    %v143 = vld [vmem:[#allocation11 + $0x68] sm:$0xff]
    %v144 = vld [vmem:[#allocation11 + $0x70] sm:$0xff]
    %v145 = vld [vmem:[#allocation11 + $0x78] sm:$0xff]
    %v146 = vld [vmem:[#allocation12] sm:$0xff]
    %v147 = vld [vmem:[#allocation12 + $0x8] sm:$0xff]
    %v148 = vld [vmem:[#allocation12 + $0x10] sm:$0xff]
    %v149 = vld [vmem:[#allocation12 + $0x18] sm:$0xff]
    %v150 = vld [vmem:[#allocation12 + $0x20] sm:$0xff]
    %v151 = vld [vmem:[#allocation12 + $0x28] sm:$0xff]
    %v152 = vld [vmem:[#allocation12 + $0x30] sm:$0xff]
    %v153 = vld [vmem:[#allocation12 + $0x38] sm:$0xff]
    %v154 = vld [vmem:[#allocation12 + $0x40] sm:$0xff]
    %v155 = vld [vmem:[#allocation12 + $0x48] sm:$0xff]
    %v156 = vld [vmem:[#allocation12 + $0x50] sm:$0xff]
    %v157 = vld [vmem:[#allocation12 + $0x58] sm:$0xff]
    %v158 = vld [vmem:[#allocation12 + $0x60] sm:$0xff]
    %v159 = vld [vmem:[#allocation12 + $0x68] sm:$0xff]
    %v160 = vld [vmem:[#allocation12 + $0x70] sm:$0xff]
    %v161 = vld [vmem:[#allocation12 + $0x78] sm:$0xff]
    %v162 = vld [vmem:[#allocation12 + $0x80] sm:$0xff]
    %v163 = vld [vmem:[#allocation12 + $0x88] sm:$0xff]
    %v164 = vld [vmem:[#allocation12 + $0x90] sm:$0xff]
    %v165 = vld [vmem:[#allocation12 + $0x98] sm:$0xff]
    %v166 = vld [vmem:[#allocation12 + $0xa0] sm:$0xff]
    %v167 = vld [vmem:[#allocation12 + $0xa8] sm:$0xff]
    %v168 = vld [vmem:[#allocation12 + $0xb0] sm:$0xff]
    %v169 = vld [vmem:[#allocation12 + $0xb8] sm:$0xff]
    %v170 = vld [vmem:[#allocation12 + $0xc0] sm:$0xff]
    %v171 = vld [vmem:[#allocation12 + $0xc8] sm:$0xff]
    %v172 = vld [vmem:[#allocation12 + $0xd0] sm:$0xff]
    %v173 = vld [vmem:[#allocation12 + $0xd8] sm:$0xff]
    %v174 = vld [vmem:[#allocation12 + $0xe0] sm:$0xff]
    %v175 = vld [vmem:[#allocation12 + $0xe8] sm:$0xff]
    %v176 = vld [vmem:[#allocation12 + $0xf0] sm:$0xff]
    %v177 = vld [vmem:[#allocation12 + $0xf8] sm:$0xff]
    %v178 = vld [vmem:[#allocation12 + $0x100] sm:$0xff]
    %v179 = vld [vmem:[#allocation12 + $0x108] sm:$0xff]
    %v180 = vld [vmem:[#allocation12 + $0x110] sm:$0xff]
    %v181 = vld [vmem:[#allocation12 + $0x118] sm:$0xff]
    %v182 = vld [vmem:[#allocation12 + $0x120] sm:$0xff]
    %v183 = vld [vmem:[#allocation12 + $0x128] sm:$0xff]
    %v184 = vld [vmem:[#allocation12 + $0x130] sm:$0xff]
    %v185 = vld [vmem:[#allocation12 + $0x138] sm:$0xff]
    %v186 = vld [vmem:[#allocation12 + $0x140] sm:$0xff]
    %v187 = vld [vmem:[#allocation12 + $0x148] sm:$0xff]
    %v188 = vld [vmem:[#allocation12 + $0x150] sm:$0xff]
    %v189 = vld [vmem:[#allocation12 + $0x158] sm:$0xff]
    %v190 = vld [vmem:[#allocation12 + $0x160] sm:$0xff]
    %v191 = vld [vmem:[#allocation12 + $0x168] sm:$0xff]
    %v192 = vld [vmem:[#allocation12 + $0x170] sm:$0xff]
    %v193 = vld [vmem:[#allocation12 + $0x178] sm:$0xff]
    %v194 = vld [vmem:[#allocation12 + $0x180] sm:$0xff]
    %v195 = vld [vmem:[#allocation12 + $0x188] sm:$0xff]
    %v196 = vld [vmem:[#allocation12 + $0x190] sm:$0xff]
    %v197 = vld [vmem:[#allocation12 + $0x198] sm:$0xff]
    %v198 = vld [vmem:[#allocation12 + $0x1a0] sm:$0xff]
    %v199 = vld [vmem:[#allocation12 + $0x1a8] sm:$0xff]
    %v200 = vld [vmem:[#allocation12 + $0x1b0] sm:$0xff]
    %v201 = vld [vmem:[#allocation12 + $0x1b8] sm:$0xff]
    %v202 = vld [vmem:[#allocation12 + $0x1c0] sm:$0xff]
    %v203 = vld [vmem:[#allocation12 + $0x1c8] sm:$0xff]
    %v204 = vld [vmem:[#allocation12 + $0x1d0] sm:$0xff]
    %v205 = vld [vmem:[#allocation12 + $0x1d8] sm:$0xff]
    %v206 = vld [vmem:[#allocation12 + $0x1e0] sm:$0xff]
    %v207 = vld [vmem:[#allocation12 + $0x1e8] sm:$0xff]
    %v208 = vld [vmem:[#allocation12 + $0x1f0] sm:$0xff]
    %v209 = vld [vmem:[#allocation12 + $0x1f8] sm:$0xff]
    %v210 = vld [vmem:[%s5] sm:$0xf]
    %v211 = vld [vmem:[#allocation14] sm:$0xff]
    %v212 = vld [vmem:[#allocation14 + $0x8] sm:$0xff]
    %v213 = vld [vmem:[#allocation14 + $0x10] sm:$0xff]
    %v214 = vld [vmem:[#allocation14 + $0x18] sm:$0xff]
    %v215 = vld [vmem:[#allocation14 + $0x20] sm:$0xff]
    %v216 = vld [vmem:[#allocation14 + $0x28] sm:$0xff]
    %v217 = vld [vmem:[#allocation14 + $0x30] sm:$0xff]
    %v218 = vld [vmem:[#allocation14 + $0x38] sm:$0xff]
    %v219 = vld [vmem:[#allocation14 + $0x40] sm:$0xff]
    %v220 = vld [vmem:[#allocation14 + $0x48] sm:$0xff]
    %v221 = vld [vmem:[#allocation14 + $0x50] sm:$0xff]
    %v222 = vld [vmem:[#allocation14 + $0x58] sm:$0xff]
    %v223 = vld [vmem:[#allocation14 + $0x60] sm:$0xff]
    %v224 = vld [vmem:[#allocation14 + $0x68] sm:$0xff]
    %v225 = vld [vmem:[#allocation14 + $0x70] sm:$0xff]
    %v226 = vld [vmem:[#allocation14 + $0x78] sm:$0xff]
    %v227 = vld [vmem:[#allocation15] sm:$0xff]
    %v228 = vld [vmem:[#allocation15 + $0x8] sm:$0xff]
    %v229 = vld [vmem:[#allocation15 + $0x10] sm:$0xff]
    %v230 = vld [vmem:[#allocation15 + $0x18] sm:$0xff]
    %v231 = vld [vmem:[#allocation15 + $0x20] sm:$0xff]
    %v232 = vld [vmem:[#allocation15 + $0x28] sm:$0xff]
    %v233 = vld [vmem:[#allocation15 + $0x30] sm:$0xff]
    %v234 = vld [vmem:[#allocation15 + $0x38] sm:$0xff]
    %v235 = vld [vmem:[#allocation15 + $0x40] sm:$0xff]
    %v236 = vld [vmem:[#allocation15 + $0x48] sm:$0xff]
    %v237 = vld [vmem:[#allocation15 + $0x50] sm:$0xff]
    %v238 = vld [vmem:[#allocation15 + $0x58] sm:$0xff]
    %v239 = vld [vmem:[#allocation15 + $0x60] sm:$0xff]
    %v240 = vld [vmem:[#allocation15 + $0x68] sm:$0xff]
    %v241 = vld [vmem:[#allocation15 + $0x70] sm:$0xff]
    %v242 = vld [vmem:[#allocation15 + $0x78] sm:$0xff]
    %v243 = vld [vmem:[#allocation15 + $0x80] sm:$0xff]
    %v244 = vld [vmem:[#allocation15 + $0x88] sm:$0xff]
    %v245 = vld [vmem:[#allocation15 + $0x90] sm:$0xff]
    %v246 = vld [vmem:[#allocation15 + $0x98] sm:$0xff]
    %v247 = vld [vmem:[#allocation15 + $0xa0] sm:$0xff]
    %v248 = vld [vmem:[#allocation15 + $0xa8] sm:$0xff]
    %v249 = vld [vmem:[#allocation15 + $0xb0] sm:$0xff]
    %v250 = vld [vmem:[#allocation15 + $0xb8] sm:$0xff]
    %v251 = vld [vmem:[#allocation15 + $0xc0] sm:$0xff]
    %v252 = vld [vmem:[#allocation15 + $0xc8] sm:$0xff]
    %v253 = vld [vmem:[#allocation15 + $0xd0] sm:$0xff]
    %v254 = vld [vmem:[#allocation15 + $0xd8] sm:$0xff]
    %v255 = vld [vmem:[#allocation15 + $0xe0] sm:$0xff]
    %v256 = vld [vmem:[#allocation15 + $0xe8] sm:$0xff]
    %v257 = vld [vmem:[#allocation15 + $0xf0] sm:$0xff]
    %v258 = vld [vmem:[#allocation15 + $0xf8] sm:$0xff]
    %v259 = vld [vmem:[#allocation15 + $0x100] sm:$0xff]
    %v260 = vld [vmem:[#allocation15 + $0x108] sm:$0xff]
    %v261 = vld [vmem:[#allocation15 + $0x110] sm:$0xff]
    %v262 = vld [vmem:[#allocation15 + $0x118] sm:$0xff]
    %v263 = vld [vmem:[#allocation15 + $0x120] sm:$0xff]
    %v264 = vld [vmem:[#allocation15 + $0x128] sm:$0xff]
    %v265 = vld [vmem:[#allocation15 + $0x130] sm:$0xff]
    %v266 = vld [vmem:[#allocation15 + $0x138] sm:$0xff]
    %v267 = vld [vmem:[#allocation15 + $0x140] sm:$0xff]
    %v268 = vld [vmem:[#allocation15 + $0x148] sm:$0xff]
    %v269 = vld [vmem:[#allocation15 + $0x150] sm:$0xff]
    %v270 = vld [vmem:[#allocation15 + $0x158] sm:$0xff]
    %v271 = vld [vmem:[#allocation15 + $0x160] sm:$0xff]
    %v272 = vld [vmem:[#allocation15 + $0x168] sm:$0xff]
    %v273 = vld [vmem:[#allocation15 + $0x170] sm:$0xff]
    %v274 = vld [vmem:[#allocation15 + $0x178] sm:$0xff]
    %v275 = vld [vmem:[#allocation15 + $0x180] sm:$0xff]
    %v276 = vld [vmem:[#allocation15 + $0x188] sm:$0xff]
    %v277 = vld [vmem:[#allocation15 + $0x190] sm:$0xff]
    %v278 = vld [vmem:[#allocation15 + $0x198] sm:$0xff]
    %v279 = vld [vmem:[#allocation15 + $0x1a0] sm:$0xff]
    %v280 = vld [vmem:[#allocation15 + $0x1a8] sm:$0xff]
    %v281 = vld [vmem:[#allocation15 + $0x1b0] sm:$0xff]
    %v282 = vld [vmem:[#allocation15 + $0x1b8] sm:$0xff]
    %v283 = vld [vmem:[#allocation15 + $0x1c0] sm:$0xff]
    %v284 = vld [vmem:[#allocation15 + $0x1c8] sm:$0xff]
    %v285 = vld [vmem:[#allocation15 + $0x1d0] sm:$0xff]
    %v286 = vld [vmem:[#allocation15 + $0x1d8] sm:$0xff]
    %v287 = vld [vmem:[#allocation15 + $0x1e0] sm:$0xff]
    %v288 = vld [vmem:[#allocation15 + $0x1e8] sm:$0xff]
    %v289 = vld [vmem:[#allocation15 + $0x1f0] sm:$0xff]
    %v290 = vld [vmem:[#allocation15 + $0x1f8] sm:$0xff]
    %v291 = vld [vmem:[%s8] sm:$0xf]
    %v292 = vld [vmem:[#allocation2] sm:$0xff]
    %v293 = vld [vmem:[#allocation3] sm:$0xff]
    %v294 = vld [vmem:[#allocation4] sm:$0xff]
    %v295 = vld [vmem:[#allocation5] sm:$0xff]
    %s296 = smul.u32 0, 8
    %s297 = ssub.s32 7, %s296
    %v298 = vstv %s296
    %vm299 = vcmp.lt.s32.totalorder %v298, %v129
    %v300 = vsel %vm299, 1, 0
    %301 = vset.pattern.permute.xlu0 0
    %302 = vperm.xlu0 %301, %v300
    %v303 = vpop.permute.xlu0 %302
    %vm304 = vcmp.eq.s32.totalorder %v303, 1
    %v305 = vstv %s297
    %vm306 = vcmp.lt.s32.totalorder %v305, %v129
    %v307 = vsel %vm306, 1, 0
    %308 = vset.pattern.permute.xlu0 0
    %309 = vperm.xlu0 %308, %v307
    %v310 = vpop.permute.xlu0 %309
    %vm311 = vcmp.eq.s32.totalorder %v310, 1
    %v312 = vld [vmem:[#allocation6] sm:$0xff]
    %313 = vmatprep.subr.mxu0 %v207
    %314 = vmatpush1.msra.mxu0 %v206
    %315 = vmatprep.subr.mxu0 %v203
    %316 = vmatpush1.msra.mxu0 %v202
    %317 = vmatprep.subr.mxu0 %v199
    %318 = vmatpush1.msra.mxu0 %v198
    %319 = vmatprep.subr.mxu0 %v195
    %320 = vmatpush1.msra.mxu0 %v194
    %321 = vmatprep.subr.mxu0 %v191
    %322 = vmatpush1.msra.mxu0 %v190
    %323 = vmatprep.subr.mxu0 %v187
    %324 = vmatpush1.msra.mxu0 %v186
    %325 = vmatprep.subr.mxu0 %v183
    %326 = vmatpush1.msra.mxu0 %v182
    %327 = vmatprep.subr.mxu0 %v179
    %328 = vmatpush1.msra.mxu0 %v178
    %329 = vmatprep.subr.mxu0 %v175
    %330 = vmatpush1.msra.mxu0 %v174
    %331 = vmatprep.subr.mxu0 %v171
    %332 = vmatpush1.msra.mxu0 %v170
    %333 = vmatprep.subr.mxu0 %v167
    %334 = vmatpush1.msra.mxu0 %v166
    %335 = vmatprep.subr.mxu0 %v163
    %336 = vmatpush1.msra.mxu0 %v162
    %337 = vmatprep.subr.mxu0 %v159
    %338 = vmatpush1.msra.mxu0 %v158
    %339 = vmatprep.subr.mxu0 %v155
    %340 = vmatpush1.msra.mxu0 %v154
    %341 = vmatprep.subr.mxu0 %v151
    %342 = vmatpush1.msra.mxu0 %v150
    %343 = vmatprep.subr.mxu0 %v147
    %344 = vmatpush1.msra.mxu0 %v146
    %345 = vmatprep.subr.mxu0 0.0
    %346 = vmatpush2.msra.mxu0 0.0
    %347 = vmatprep.subr.mxu0 0.0
    %348 = vmatpush2.msra.mxu0 0.0
    %349 = vmatprep.subr.mxu0 0.0
    %350 = vmatpush2.msra.mxu0 0.0
    %351 = vmatprep.subr.mxu0 0.0
    %352 = vmatpush2.msra.mxu0 0.0
    %353 = vmatprep.subr.mxu0 0.0
    %354 = vmatpush2.msra.mxu0 0.0
    %355 = vmatprep.subr.mxu0 0.0
    %356 = vmatpush2.msra.mxu0 0.0
    %357 = vmatprep.subr.mxu0 0.0
    %358 = vmatpush2.msra.mxu0 0.0
    %359 = vmatprep.subr.mxu0 0.0
    %360 = vmatpush2.msra.mxu0 0.0
    %361 = vmatprep.subr.mxu0 0.0
    %362 = vmatpush2.msra.mxu0 0.0
    %363 = vmatprep.subr.mxu0 0.0
    %364 = vmatpush2.msra.mxu0 0.0
    %365 = vmatprep.subr.mxu0 0.0
    %366 = vmatpush2.msra.mxu0 0.0
    %367 = vmatprep.subr.mxu0 0.0
    %368 = vmatpush2.msra.mxu0 0.0
    %369 = vmatprep.subr.mxu0 0.0
    %370 = vmatpush2.msra.mxu0 0.0
    %371 = vmatprep.subr.mxu0 0.0
    %372 = vmatpush2.msra.mxu0 0.0
    %373 = vmatprep.subr.mxu0 0.0
    %374 = vmatpush2.msra.mxu0 0.0
    %375 = vmatprep.subr.mxu0 0.0
    %376 = vmatpush2.msra.mxu0 0.0
    %377 = vmatprep.mubr.f32.mxu0 0.0
    %378 = vmatmul.mubr.f32.gmra.mxu0 %v292
    %v379 = vpop.f32.mrf.mxu0
    %v380 = vadd.f32 0.0, %v379
    %v381 = vpop.f32.mrf.mxu0
    %v382 = vadd.f32 0.0, %v381
    %383 = vdwg.mxu0
    %384 = vmatprep.subr.mxu0 %v209
    %385 = vmatpush1.msra.mxu0 %v208
    %386 = vmatprep.subr.mxu0 %v205
    %387 = vmatpush1.msra.mxu0 %v204
    %388 = vmatprep.subr.mxu0 %v201
    %389 = vmatpush1.msra.mxu0 %v200
    %390 = vmatprep.subr.mxu0 %v197
    %391 = vmatpush1.msra.mxu0 %v196
    %392 = vmatprep.subr.mxu0 %v193
    %393 = vmatpush1.msra.mxu0 %v192
    %394 = vmatprep.subr.mxu0 %v189
    %395 = vmatpush1.msra.mxu0 %v188
    %396 = vmatprep.subr.mxu0 %v185
    %397 = vmatpush1.msra.mxu0 %v184
    %398 = vmatprep.subr.mxu0 %v181
    %399 = vmatpush1.msra.mxu0 %v180
    %400 = vmatprep.subr.mxu0 %v177
    %401 = vmatpush1.msra.mxu0 %v176
    %402 = vmatprep.subr.mxu0 %v173
    %403 = vmatpush1.msra.mxu0 %v172
    %404 = vmatprep.subr.mxu0 %v169
    %405 = vmatpush1.msra.mxu0 %v168
    %406 = vmatprep.subr.mxu0 %v165
    %407 = vmatpush1.msra.mxu0 %v164
    %408 = vmatprep.subr.mxu0 %v161
    %409 = vmatpush1.msra.mxu0 %v160
    %410 = vmatprep.subr.mxu0 %v157
    %411 = vmatpush1.msra.mxu0 %v156
    %412 = vmatprep.subr.mxu0 %v153
    %413 = vmatpush1.msra.mxu0 %v152
    %414 = vmatprep.subr.mxu0 %v149
    %415 = vmatpush1.msra.mxu0 %v148
    %416 = vmatprep.subr.mxu0 0.0
    %417 = vmatpush2.msra.mxu0 0.0
    %418 = vmatprep.subr.mxu0 0.0
    %419 = vmatpush2.msra.mxu0 0.0
    %420 = vmatprep.subr.mxu0 0.0
    %421 = vmatpush2.msra.mxu0 0.0
    %422 = vmatprep.subr.mxu0 0.0
    %423 = vmatpush2.msra.mxu0 0.0
    %424 = vmatprep.subr.mxu0 0.0
    %425 = vmatpush2.msra.mxu0 0.0
    %426 = vmatprep.subr.mxu0 0.0
    %427 = vmatpush2.msra.mxu0 0.0
    %428 = vmatprep.subr.mxu0 0.0
    %429 = vmatpush2.msra.mxu0 0.0
    %430 = vmatprep.subr.mxu0 0.0
    %431 = vmatpush2.msra.mxu0 0.0
    %432 = vmatprep.subr.mxu0 0.0
    %433 = vmatpush2.msra.mxu0 0.0
    %434 = vmatprep.subr.mxu0 0.0
    %435 = vmatpush2.msra.mxu0 0.0
    %436 = vmatprep.subr.mxu0 0.0
    %437 = vmatpush2.msra.mxu0 0.0
    %438 = vmatprep.subr.mxu0 0.0
    %439 = vmatpush2.msra.mxu0 0.0
    %440 = vmatprep.subr.mxu0 0.0
    %441 = vmatpush2.msra.mxu0 0.0
    %442 = vmatprep.subr.mxu0 0.0
    %443 = vmatpush2.msra.mxu0 0.0
    %444 = vmatprep.subr.mxu0 0.0
    %445 = vmatpush2.msra.mxu0 0.0
    %446 = vmatprep.subr.mxu0 0.0
    %447 = vmatpush2.msra.mxu0 0.0
    %448 = vmatprep.mubr.f32.mxu0 0.0
    %449 = vmatmul.mubr.f32.gmra.mxu0 %v292
    %v450 = vpop.f32.mrf.mxu0
    %v451 = vadd.f32 0.0, %v450
    %v452 = vpop.f32.mrf.mxu0
    %v453 = vadd.f32 0.0, %v452
    %454 = vdwg.mxu0
    %vm455 = vcmask 261120
    %v457 = vsel %vm455, %v312, 0
    %459 = vmatprep.subr.mxu0 0.0
    %460 = vmatpush1.msra.mxu0 0.0
    %461 = vmatprep.subr.mxu0 0.0
    %462 = vmatpush1.msra.mxu0 0.0
    %463 = vmatprep.subr.mxu0 0.0
    %464 = vmatpush1.msra.mxu0 0.0
    %465 = vmatprep.subr.mxu0 0.0
    %466 = vmatpush1.msra.mxu0 0.0
    %467 = vmatprep.subr.mxu0 0.0
    %468 = vmatpush1.msra.mxu0 0.0
    %469 = vmatprep.subr.mxu0 0.0
    %470 = vmatpush1.msra.mxu0 0.0
    %471 = vmatprep.subr.mxu0 0.0
    %472 = vmatpush1.msra.mxu0 0.0
    %473 = vmatprep.subr.mxu0 0.0
    %474 = vmatpush1.msra.mxu0 0.0
    %475 = vmatprep.subr.mxu0 0.0
    %476 = vmatpush1.msra.mxu0 0.0
    %477 = vmatprep.subr.mxu0 0.0
    %478 = vmatpush1.msra.mxu0 0.0
    %479 = vmatprep.subr.mxu0 0.0
    %480 = vmatpush1.msra.mxu0 0.0
    %481 = vmatprep.subr.mxu0 0.0
    %482 = vmatpush1.msra.mxu0 0.0
    %483 = vmatprep.subr.mxu0 %v143
    %484 = vmatpush1.msra.mxu0 %v142
    %485 = vmatprep.subr.mxu0 %v139
    %486 = vmatpush1.msra.mxu0 %v138
    %487 = vmatprep.subr.mxu0 %v135
    %488 = vmatpush1.msra.mxu0 %v134
    %489 = vmatprep.subr.mxu0 %v131
    %490 = vmatpush1.msra.mxu0 %v130
    %491 = vmatprep.subr.mxu0 0.0
    %492 = vmatpush2.msra.mxu0 0.0
    %493 = vmatprep.subr.mxu0 0.0
    %494 = vmatpush2.msra.mxu0 0.0
    %495 = vmatprep.subr.mxu0 0.0
    %496 = vmatpush2.msra.mxu0 0.0
    %497 = vmatprep.subr.mxu0 0.0
    %498 = vmatpush2.msra.mxu0 0.0
    %499 = vmatprep.subr.mxu0 0.0
    %500 = vmatpush2.msra.mxu0 0.0
    %501 = vmatprep.subr.mxu0 0.0
    %502 = vmatpush2.msra.mxu0 0.0
    %503 = vmatprep.subr.mxu0 0.0
    %504 = vmatpush2.msra.mxu0 0.0
    %505 = vmatprep.subr.mxu0 0.0
    %506 = vmatpush2.msra.mxu0 0.0
    %507 = vmatprep.subr.mxu0 0.0
    %508 = vmatpush2.msra.mxu0 0.0
    %509 = vmatprep.subr.mxu0 0.0
    %510 = vmatpush2.msra.mxu0 0.0
    %511 = vmatprep.subr.mxu0 0.0
    %512 = vmatpush2.msra.mxu0 0.0
    %513 = vmatprep.subr.mxu0 0.0
    %514 = vmatpush2.msra.mxu0 0.0
    %515 = vmatprep.subr.mxu0 0.0
    %516 = vmatpush2.msra.mxu0 0.0
    %517 = vmatprep.subr.mxu0 0.0
    %518 = vmatpush2.msra.mxu0 0.0
    %519 = vmatprep.subr.mxu0 0.0
    %520 = vmatpush2.msra.mxu0 0.0
    %521 = vmatprep.subr.mxu0 0.0
    %522 = vmatpush2.msra.mxu0 0.0
    %523 = vmatprep.mubr.f32.mxu0 0.0
    %524 = vmatmul.mubr.f32.gmra.mxu0 %v457
    %v525 = vpop.f32.mrf.mxu0
    %v526 = vadd.f32 %v380, %v525
    %v527 = vpop.f32.mrf.mxu0
    %v528 = vadd.f32 %v382, %v527
    %529 = vdwg.mxu0
    %530 = vmatprep.subr.mxu0 0.0
    %531 = vmatpush1.msra.mxu0 0.0
    %532 = vmatprep.subr.mxu0 0.0
    %533 = vmatpush1.msra.mxu0 0.0
    %534 = vmatprep.subr.mxu0 0.0
    %535 = vmatpush1.msra.mxu0 0.0
    %536 = vmatprep.subr.mxu0 0.0
    %537 = vmatpush1.msra.mxu0 0.0
    %538 = vmatprep.subr.mxu0 0.0
    %539 = vmatpush1.msra.mxu0 0.0
    %540 = vmatprep.subr.mxu0 0.0
    %541 = vmatpush1.msra.mxu0 0.0
    %542 = vmatprep.subr.mxu0 0.0
    %543 = vmatpush1.msra.mxu0 0.0
    %544 = vmatprep.subr.mxu0 0.0
    %545 = vmatpush1.msra.mxu0 0.0
    %546 = vmatprep.subr.mxu0 0.0
    %547 = vmatpush1.msra.mxu0 0.0
    %548 = vmatprep.subr.mxu0 0.0
    %549 = vmatpush1.msra.mxu0 0.0
    %550 = vmatprep.subr.mxu0 0.0
    %551 = vmatpush1.msra.mxu0 0.0
    %552 = vmatprep.subr.mxu0 0.0
    %553 = vmatpush1.msra.mxu0 0.0
    %554 = vmatprep.subr.mxu0 %v145
    %555 = vmatpush1.msra.mxu0 %v144
    %556 = vmatprep.subr.mxu0 %v141
    %557 = vmatpush1.msra.mxu0 %v140
    %558 = vmatprep.subr.mxu0 %v137
    %559 = vmatpush1.msra.mxu0 %v136
    %560 = vmatprep.subr.mxu0 %v133
    %561 = vmatpush1.msra.mxu0 %v132
    %562 = vmatprep.subr.mxu0 0.0
    %563 = vmatpush2.msra.mxu0 0.0
    %564 = vmatprep.subr.mxu0 0.0
    %565 = vmatpush2.msra.mxu0 0.0
    %566 = vmatprep.subr.mxu0 0.0
    %567 = vmatpush2.msra.mxu0 0.0
    %568 = vmatprep.subr.mxu0 0.0
    %569 = vmatpush2.msra.mxu0 0.0
    %570 = vmatprep.subr.mxu0 0.0
    %571 = vmatpush2.msra.mxu0 0.0
    %572 = vmatprep.subr.mxu0 0.0
    %573 = vmatpush2.msra.mxu0 0.0
    %574 = vmatprep.subr.mxu0 0.0
    %575 = vmatpush2.msra.mxu0 0.0
    %576 = vmatprep.subr.mxu0 0.0
    %577 = vmatpush2.msra.mxu0 0.0
    %578 = vmatprep.subr.mxu0 0.0
    %579 = vmatpush2.msra.mxu0 0.0
    %580 = vmatprep.subr.mxu0 0.0
    %581 = vmatpush2.msra.mxu0 0.0
    %582 = vmatprep.subr.mxu0 0.0
    %583 = vmatpush2.msra.mxu0 0.0
    %584 = vmatprep.subr.mxu0 0.0
    %585 = vmatpush2.msra.mxu0 0.0
    %586 = vmatprep.subr.mxu0 0.0
    %587 = vmatpush2.msra.mxu0 0.0
    %588 = vmatprep.subr.mxu0 0.0
    %589 = vmatpush2.msra.mxu0 0.0
    %590 = vmatprep.subr.mxu0 0.0
    %591 = vmatpush2.msra.mxu0 0.0
    %592 = vmatprep.subr.mxu0 0.0
    %593 = vmatpush2.msra.mxu0 0.0
    %594 = vmatprep.mubr.f32.mxu0 0.0
    %595 = vmatmul.mubr.f32.gmra.mxu0 %v457
    %v596 = vpop.f32.mrf.mxu0
    %v597 = vadd.f32 %v451, %v596
    %v598 = vpop.f32.mrf.mxu0
    %v599 = vadd.f32 %v453, %v598
    %600 = vdwg.mxu0
    %v602 = vlaneseq
    %v603 = vshrl.u32 %v602, 7
    %v604 = vsub.s32 0, %v603
    %v605 = vrot.slane %v210, %v604
    %v606 = vlaneseq
    %v607 = vshrl.u32 %v606, 7
    %v608 = vsub.s32 1, %v607
    %v609 = vrot.slane %v210, %v608
    %v610 = vlaneseq
    %v611 = vshrl.u32 %v610, 7
    %v612 = vsub.s32 2, %v611
    %v613 = vrot.slane %v210, %v612
    %v614 = vlaneseq
    %v615 = vshrl.u32 %v614, 7
    %v616 = vsub.s32 3, %v615
    %v617 = vrot.slane %v210, %v616
    %v622 = vadd.f32 %v526, %v605
    %v623 = vadd.f32 %v528, %v609
    %v624 = vadd.f32 %v597, %v613
    %v625 = vadd.f32 %v599, %v617
    %v626 = vmul.f32 %v622, 0.5
    %v627 = vtanh.pop %v626
    %v628 = vmul.f32 %v627, 0.5
    %v629 = vadd.f32 %v628, 0.5
    %v630 = vmul.f32 %v623, 0.5
    %v631 = vtanh.pop %v630
    %v632 = vmul.f32 %v631, 0.5
    %v633 = vadd.f32 %v632, 0.5
    %v634 = vtanh.pop %v624
    %v635 = vmul.f32 %v625, 0.5
    %v636 = vtanh.pop %v635
    %v637 = vmul.f32 %v636, 0.5
    %v638 = vadd.f32 %v637, 0.5
    %v639 = vmul.f32 %v633, %v293
    %v640 = vmul.f32 %v629, %v634
    %v641 = vadd.f32 %v639, %v640
    %v642 = vtanh.pop %v641
    %v643 = vmul.f32 %v638, %v642
    %v644 = vsel %vm304, %v643, %v292
    %v645 = vsel %vm304, %v641, %v293
    %s646 = scalar_lea.vmem [#allocation9], 56
    %v647 = vld [vmem:[%s646] sm:$0xff]
    %648 = vmatprep.subr.mxu0 %v288
    %649 = vmatpush1.msra.mxu0 %v287
    %650 = vmatprep.subr.mxu0 %v284
    %651 = vmatpush1.msra.mxu0 %v283
    %652 = vmatprep.subr.mxu0 %v280
    %653 = vmatpush1.msra.mxu0 %v279
    %654 = vmatprep.subr.mxu0 %v276
    %655 = vmatpush1.msra.mxu0 %v275
    %656 = vmatprep.subr.mxu0 %v272
    %657 = vmatpush1.msra.mxu0 %v271
    %658 = vmatprep.subr.mxu0 %v268
    %659 = vmatpush1.msra.mxu0 %v267
    %660 = vmatprep.subr.mxu0 %v264
    %661 = vmatpush1.msra.mxu0 %v263
    %662 = vmatprep.subr.mxu0 %v260
    %663 = vmatpush1.msra.mxu0 %v259
    %664 = vmatprep.subr.mxu0 %v256
    %665 = vmatpush1.msra.mxu0 %v255
    %666 = vmatprep.subr.mxu0 %v252
    %667 = vmatpush1.msra.mxu0 %v251
    %668 = vmatprep.subr.mxu0 %v248
    %669 = vmatpush1.msra.mxu0 %v247
    %670 = vmatprep.subr.mxu0 %v244
    %671 = vmatpush1.msra.mxu0 %v243
    %672 = vmatprep.subr.mxu0 %v240
    %673 = vmatpush1.msra.mxu0 %v239
    %674 = vmatprep.subr.mxu0 %v236
    %675 = vmatpush1.msra.mxu0 %v235
    %676 = vmatprep.subr.mxu0 %v232
    %677 = vmatpush1.msra.mxu0 %v231
    %678 = vmatprep.subr.mxu0 %v228
    %679 = vmatpush1.msra.mxu0 %v227
    %680 = vmatprep.subr.mxu0 0.0
    %681 = vmatpush2.msra.mxu0 0.0
    %682 = vmatprep.subr.mxu0 0.0
    %683 = vmatpush2.msra.mxu0 0.0
    %684 = vmatprep.subr.mxu0 0.0
    %685 = vmatpush2.msra.mxu0 0.0
    %686 = vmatprep.subr.mxu0 0.0
    %687 = vmatpush2.msra.mxu0 0.0
    %688 = vmatprep.subr.mxu0 0.0
    %689 = vmatpush2.msra.mxu0 0.0
    %690 = vmatprep.subr.mxu0 0.0
    %691 = vmatpush2.msra.mxu0 0.0
    %692 = vmatprep.subr.mxu0 0.0
    %693 = vmatpush2.msra.mxu0 0.0
    %694 = vmatprep.subr.mxu0 0.0
    %695 = vmatpush2.msra.mxu0 0.0
    %696 = vmatprep.subr.mxu0 0.0
    %697 = vmatpush2.msra.mxu0 0.0
    %698 = vmatprep.subr.mxu0 0.0
    %699 = vmatpush2.msra.mxu0 0.0
    %700 = vmatprep.subr.mxu0 0.0
    %701 = vmatpush2.msra.mxu0 0.0
    %702 = vmatprep.subr.mxu0 0.0
    %703 = vmatpush2.msra.mxu0 0.0
    %704 = vmatprep.subr.mxu0 0.0
    %705 = vmatpush2.msra.mxu0 0.0
    %706 = vmatprep.subr.mxu0 0.0
    %707 = vmatpush2.msra.mxu0 0.0
    %708 = vmatprep.subr.mxu0 0.0
    %709 = vmatpush2.msra.mxu0 0.0
    %710 = vmatprep.subr.mxu0 0.0
    %711 = vmatpush2.msra.mxu0 0.0
    %712 = vmatprep.mubr.f32.mxu0 0.0
    %713 = vmatmul.mubr.f32.gmra.mxu0 %v294
    %v714 = vpop.f32.mrf.mxu0
    %v715 = vadd.f32 0.0, %v714
    %v716 = vpop.f32.mrf.mxu0
    %v717 = vadd.f32 0.0, %v716
    %718 = vdwg.mxu0
    %719 = vmatprep.subr.mxu0 %v290
    %720 = vmatpush1.msra.mxu0 %v289
    %721 = vmatprep.subr.mxu0 %v286
    %722 = vmatpush1.msra.mxu0 %v285
    %723 = vmatprep.subr.mxu0 %v282
    %724 = vmatpush1.msra.mxu0 %v281
    %725 = vmatprep.subr.mxu0 %v278
    %726 = vmatpush1.msra.mxu0 %v277
    %727 = vmatprep.subr.mxu0 %v274
    %728 = vmatpush1.msra.mxu0 %v273
    %729 = vmatprep.subr.mxu0 %v270
    %730 = vmatpush1.msra.mxu0 %v269
    %731 = vmatprep.subr.mxu0 %v266
    %732 = vmatpush1.msra.mxu0 %v265
    %733 = vmatprep.subr.mxu0 %v262
    %734 = vmatpush1.msra.mxu0 %v261
    %735 = vmatprep.subr.mxu0 %v258
    %736 = vmatpush1.msra.mxu0 %v257
    %737 = vmatprep.subr.mxu0 %v254
    %738 = vmatpush1.msra.mxu0 %v253
    %739 = vmatprep.subr.mxu0 %v250
    %740 = vmatpush1.msra.mxu0 %v249
    %741 = vmatprep.subr.mxu0 %v246
    %742 = vmatpush1.msra.mxu0 %v245
    %743 = vmatprep.subr.mxu0 %v242
    %744 = vmatpush1.msra.mxu0 %v241
    %745 = vmatprep.subr.mxu0 %v238
    %746 = vmatpush1.msra.mxu0 %v237
    %747 = vmatprep.subr.mxu0 %v234
    %748 = vmatpush1.msra.mxu0 %v233
    %749 = vmatprep.subr.mxu0 %v230
    %750 = vmatpush1.msra.mxu0 %v229
    %751 = vmatprep.subr.mxu0 0.0
    %752 = vmatpush2.msra.mxu0 0.0
    %753 = vmatprep.subr.mxu0 0.0
    %754 = vmatpush2.msra.mxu0 0.0
    %755 = vmatprep.subr.mxu0 0.0
    %756 = vmatpush2.msra.mxu0 0.0
    %757 = vmatprep.subr.mxu0 0.0
    %758 = vmatpush2.msra.mxu0 0.0
    %759 = vmatprep.subr.mxu0 0.0
    %760 = vmatpush2.msra.mxu0 0.0
    %761 = vmatprep.subr.mxu0 0.0
    %762 = vmatpush2.msra.mxu0 0.0
    %763 = vmatprep.subr.mxu0 0.0
    %764 = vmatpush2.msra.mxu0 0.0
    %765 = vmatprep.subr.mxu0 0.0
    %766 = vmatpush2.msra.mxu0 0.0
    %767 = vmatprep.subr.mxu0 0.0
    %768 = vmatpush2.msra.mxu0 0.0
    %769 = vmatprep.subr.mxu0 0.0
    %770 = vmatpush2.msra.mxu0 0.0
    %771 = vmatprep.subr.mxu0 0.0
    %772 = vmatpush2.msra.mxu0 0.0
    %773 = vmatprep.subr.mxu0 0.0
    %774 = vmatpush2.msra.mxu0 0.0
    %775 = vmatprep.subr.mxu0 0.0
    %776 = vmatpush2.msra.mxu0 0.0
    %777 = vmatprep.subr.mxu0 0.0
    %778 = vmatpush2.msra.mxu0 0.0
    %779 = vmatprep.subr.mxu0 0.0
    %780 = vmatpush2.msra.mxu0 0.0
    %781 = vmatprep.subr.mxu0 0.0
    %782 = vmatpush2.msra.mxu0 0.0
    %783 = vmatprep.mubr.f32.mxu0 0.0
    %784 = vmatmul.mubr.f32.gmra.mxu0 %v294
    %v785 = vpop.f32.mrf.mxu0
    %v786 = vadd.f32 0.0, %v785
    %v787 = vpop.f32.mrf.mxu0
    %v788 = vadd.f32 0.0, %v787
    %789 = vdwg.mxu0
    %v791 = vsel %vm455, %v647, 0
    %793 = vmatprep.subr.mxu0 0.0
    %794 = vmatpush1.msra.mxu0 0.0
    %795 = vmatprep.subr.mxu0 0.0
    %796 = vmatpush1.msra.mxu0 0.0
    %797 = vmatprep.subr.mxu0 0.0
    %798 = vmatpush1.msra.mxu0 0.0
    %799 = vmatprep.subr.mxu0 0.0
    %800 = vmatpush1.msra.mxu0 0.0
    %801 = vmatprep.subr.mxu0 0.0
    %802 = vmatpush1.msra.mxu0 0.0
    %803 = vmatprep.subr.mxu0 0.0
    %804 = vmatpush1.msra.mxu0 0.0
    %805 = vmatprep.subr.mxu0 0.0
    %806 = vmatpush1.msra.mxu0 0.0
    %807 = vmatprep.subr.mxu0 0.0
    %808 = vmatpush1.msra.mxu0 0.0
    %809 = vmatprep.subr.mxu0 0.0
    %810 = vmatpush1.msra.mxu0 0.0
    %811 = vmatprep.subr.mxu0 0.0
    %812 = vmatpush1.msra.mxu0 0.0
    %813 = vmatprep.subr.mxu0 0.0
    %814 = vmatpush1.msra.mxu0 0.0
    %815 = vmatprep.subr.mxu0 0.0
    %816 = vmatpush1.msra.mxu0 0.0
    %817 = vmatprep.subr.mxu0 %v224
    %818 = vmatpush1.msra.mxu0 %v223
    %819 = vmatprep.subr.mxu0 %v220
    %820 = vmatpush1.msra.mxu0 %v219
    %821 = vmatprep.subr.mxu0 %v216
    %822 = vmatpush1.msra.mxu0 %v215
    %823 = vmatprep.subr.mxu0 %v212
    %824 = vmatpush1.msra.mxu0 %v211
    %825 = vmatprep.subr.mxu0 0.0
    %826 = vmatpush2.msra.mxu0 0.0
    %827 = vmatprep.subr.mxu0 0.0
    %828 = vmatpush2.msra.mxu0 0.0
    %829 = vmatprep.subr.mxu0 0.0
    %830 = vmatpush2.msra.mxu0 0.0
    %831 = vmatprep.subr.mxu0 0.0
    %832 = vmatpush2.msra.mxu0 0.0
    %833 = vmatprep.subr.mxu0 0.0
    %834 = vmatpush2.msra.mxu0 0.0
    %835 = vmatprep.subr.mxu0 0.0
    %836 = vmatpush2.msra.mxu0 0.0
    %837 = vmatprep.subr.mxu0 0.0
    %838 = vmatpush2.msra.mxu0 0.0
    %839 = vmatprep.subr.mxu0 0.0
    %840 = vmatpush2.msra.mxu0 0.0
    %841 = vmatprep.subr.mxu0 0.0
    %842 = vmatpush2.msra.mxu0 0.0
    %843 = vmatprep.subr.mxu0 0.0
    %844 = vmatpush2.msra.mxu0 0.0
    %845 = vmatprep.subr.mxu0 0.0
    %846 = vmatpush2.msra.mxu0 0.0
    %847 = vmatprep.subr.mxu0 0.0
    %848 = vmatpush2.msra.mxu0 0.0
    %849 = vmatprep.subr.mxu0 0.0
    %850 = vmatpush2.msra.mxu0 0.0
    %851 = vmatprep.subr.mxu0 0.0
    %852 = vmatpush2.msra.mxu0 0.0
    %853 = vmatprep.subr.mxu0 0.0
    %854 = vmatpush2.msra.mxu0 0.0
    %855 = vmatprep.subr.mxu0 0.0
    %856 = vmatpush2.msra.mxu0 0.0
    %857 = vmatprep.mubr.f32.mxu0 0.0
    %858 = vmatmul.mubr.f32.gmra.mxu0 %v791
    %v859 = vpop.f32.mrf.mxu0
    %v860 = vadd.f32 %v715, %v859
    %v861 = vpop.f32.mrf.mxu0
    %v862 = vadd.f32 %v717, %v861
    %863 = vdwg.mxu0
    %864 = vmatprep.subr.mxu0 0.0
    %865 = vmatpush1.msra.mxu0 0.0
    %866 = vmatprep.subr.mxu0 0.0
    %867 = vmatpush1.msra.mxu0 0.0
    %868 = vmatprep.subr.mxu0 0.0
    %869 = vmatpush1.msra.mxu0 0.0
    %870 = vmatprep.subr.mxu0 0.0
    %871 = vmatpush1.msra.mxu0 0.0
    %872 = vmatprep.subr.mxu0 0.0
    %873 = vmatpush1.msra.mxu0 0.0
    %874 = vmatprep.subr.mxu0 0.0
    %875 = vmatpush1.msra.mxu0 0.0
    %876 = vmatprep.subr.mxu0 0.0
    %877 = vmatpush1.msra.mxu0 0.0
    %878 = vmatprep.subr.mxu0 0.0
    %879 = vmatpush1.msra.mxu0 0.0
    %880 = vmatprep.subr.mxu0 0.0
    %881 = vmatpush1.msra.mxu0 0.0
    %882 = vmatprep.subr.mxu0 0.0
    %883 = vmatpush1.msra.mxu0 0.0
    %884 = vmatprep.subr.mxu0 0.0
    %885 = vmatpush1.msra.mxu0 0.0
    %886 = vmatprep.subr.mxu0 0.0
    %887 = vmatpush1.msra.mxu0 0.0
    %888 = vmatprep.subr.mxu0 %v226
    %889 = vmatpush1.msra.mxu0 %v225
    %890 = vmatprep.subr.mxu0 %v222
    %891 = vmatpush1.msra.mxu0 %v221
    %892 = vmatprep.subr.mxu0 %v218
    %893 = vmatpush1.msra.mxu0 %v217
    %894 = vmatprep.subr.mxu0 %v214
    %895 = vmatpush1.msra.mxu0 %v213
    %896 = vmatprep.subr.mxu0 0.0
    %897 = vmatpush2.msra.mxu0 0.0
    %898 = vmatprep.subr.mxu0 0.0
    %899 = vmatpush2.msra.mxu0 0.0
    %900 = vmatprep.subr.mxu0 0.0
    %901 = vmatpush2.msra.mxu0 0.0
    %902 = vmatprep.subr.mxu0 0.0
    %903 = vmatpush2.msra.mxu0 0.0
    %904 = vmatprep.subr.mxu0 0.0
    %905 = vmatpush2.msra.mxu0 0.0
    %906 = vmatprep.subr.mxu0 0.0
    %907 = vmatpush2.msra.mxu0 0.0
    %908 = vmatprep.subr.mxu0 0.0
    %909 = vmatpush2.msra.mxu0 0.0
    %910 = vmatprep.subr.mxu0 0.0
    %911 = vmatpush2.msra.mxu0 0.0
    %912 = vmatprep.subr.mxu0 0.0
    %913 = vmatpush2.msra.mxu0 0.0
    %914 = vmatprep.subr.mxu0 0.0
    %915 = vmatpush2.msra.mxu0 0.0
    %916 = vmatprep.subr.mxu0 0.0
    %917 = vmatpush2.msra.mxu0 0.0
    %918 = vmatprep.subr.mxu0 0.0
    %919 = vmatpush2.msra.mxu0 0.0
    %920 = vmatprep.subr.mxu0 0.0
    %921 = vmatpush2.msra.mxu0 0.0
    %922 = vmatprep.subr.mxu0 0.0
    %923 = vmatpush2.msra.mxu0 0.0
    %924 = vmatprep.subr.mxu0 0.0
    %925 = vmatpush2.msra.mxu0 0.0
    %926 = vmatprep.subr.mxu0 0.0
    %927 = vmatpush2.msra.mxu0 0.0
    %928 = vmatprep.mubr.f32.mxu0 0.0
    %929 = vmatmul.mubr.f32.gmra.mxu0 %v791
    %v930 = vpop.f32.mrf.mxu0
    %v931 = vadd.f32 %v786, %v930
    %v932 = vpop.f32.mrf.mxu0
    %v933 = vadd.f32 %v788, %v932
    %934 = vdwg.mxu0
    %v936 = vlaneseq
    %v937 = vshrl.u32 %v936, 7
    %v938 = vsub.s32 0, %v937
    %v939 = vrot.slane %v291, %v938
    %v940 = vlaneseq
    %v941 = vshrl.u32 %v940, 7
    %v942 = vsub.s32 1, %v941
    %v943 = vrot.slane %v291, %v942
    %v944 = vlaneseq
    %v945 = vshrl.u32 %v944, 7
    %v946 = vsub.s32 2, %v945
    %v947 = vrot.slane %v291, %v946
    %v948 = vlaneseq
    %v949 = vshrl.u32 %v948, 7
    %v950 = vsub.s32 3, %v949
    %v951 = vrot.slane %v291, %v950
    %v956 = vadd.f32 %v860, %v939
    %v957 = vadd.f32 %v862, %v943
    %v958 = vadd.f32 %v931, %v947
    %v959 = vadd.f32 %v933, %v951
    %v960 = vmul.f32 %v956, 0.5
    %v961 = vtanh.pop %v960
    %v962 = vmul.f32 %v961, 0.5
    %v963 = vadd.f32 %v962, 0.5
    %v964 = vmul.f32 %v957, 0.5
    %v965 = vtanh.pop %v964
    %v966 = vmul.f32 %v965, 0.5
    %v967 = vadd.f32 %v966, 0.5
    %v968 = vtanh.pop %v958
    %v969 = vmul.f32 %v959, 0.5
    %v970 = vtanh.pop %v969
    %v971 = vmul.f32 %v970, 0.5
    %v972 = vadd.f32 %v971, 0.5
    %v973 = vmul.f32 %v967, %v295
    %v974 = vmul.f32 %v963, %v968
    %v975 = vadd.f32 %v973, %v974
    %v976 = vtanh.pop %v975
    %v977 = vmul.f32 %v972, %v976
    %v978 = vsel %vm311, %v977, %v294
    %v979 = vsel %vm311, %v975, %v295
    %s980 = sadd.s32 %s296, 1
    %s981 = ssub.s32 6, %s296
    %v982 = vstv %s980
    %vm983 = vcmp.lt.s32.totalorder %v982, %v129
    %v984 = vsel %vm983, 1, 0
    %985 = vset.pattern.permute.xlu0 0
    %986 = vperm.xlu0 %985, %v984
    %v987 = vpop.permute.xlu0 %986
    %vm988 = vcmp.eq.s32.totalorder %v987, 1
    %v989 = vstv %s981
    %vm990 = vcmp.lt.s32.totalorder %v989, %v129
    %v991 = vsel %vm990, 1, 0
    %992 = vset.pattern.permute.xlu0 0
    %993 = vperm.xlu0 %992, %v991
    %v994 = vpop.permute.xlu0 %993
    %vm995 = vcmp.eq.s32.totalorder %v994, 1
    %s996 = scalar_lea.vmem [#allocation6], 8
    %v997 = vld [vmem:[%s996] sm:$0xff]
    %998 = vmatprep.subr.mxu0 %v207
    %999 = vmatpush1.msra.mxu0 %v206
    %1000 = vmatprep.subr.mxu0 %v203
    %1001 = vmatpush1.msra.mxu0 %v202
    %1002 = vmatprep.subr.mxu0 %v199
    %1003 = vmatpush1.msra.mxu0 %v198
    %1004 = vmatprep.subr.mxu0 %v195
    %1005 = vmatpush1.msra.mxu0 %v194
    %1006 = vmatprep.subr.mxu0 %v191
    %1007 = vmatpush1.msra.mxu0 %v190
    %1008 = vmatprep.subr.mxu0 %v187
    %1009 = vmatpush1.msra.mxu0 %v186
    %1010 = vmatprep.subr.mxu0 %v183
    %1011 = vmatpush1.msra.mxu0 %v182
    %1012 = vmatprep.subr.mxu0 %v179
    %1013 = vmatpush1.msra.mxu0 %v178
    %1014 = vmatprep.subr.mxu0 %v175
    %1015 = vmatpush1.msra.mxu0 %v174
    %1016 = vmatprep.subr.mxu0 %v171
    %1017 = vmatpush1.msra.mxu0 %v170
    %1018 = vmatprep.subr.mxu0 %v167
    %1019 = vmatpush1.msra.mxu0 %v166
    %1020 = vmatprep.subr.mxu0 %v163
    %1021 = vmatpush1.msra.mxu0 %v162
    %1022 = vmatprep.subr.mxu0 %v159
    %1023 = vmatpush1.msra.mxu0 %v158
    %1024 = vmatprep.subr.mxu0 %v155
    %1025 = vmatpush1.msra.mxu0 %v154
    %1026 = vmatprep.subr.mxu0 %v151
    %1027 = vmatpush1.msra.mxu0 %v150
    %1028 = vmatprep.subr.mxu0 %v147
    %1029 = vmatpush1.msra.mxu0 %v146
    %1030 = vmatprep.subr.mxu0 0.0
    %1031 = vmatpush2.msra.mxu0 0.0
    %1032 = vmatprep.subr.mxu0 0.0
    %1033 = vmatpush2.msra.mxu0 0.0
    %1034 = vmatprep.subr.mxu0 0.0
    %1035 = vmatpush2.msra.mxu0 0.0
    %1036 = vmatprep.subr.mxu0 0.0
    %1037 = vmatpush2.msra.mxu0 0.0
    %1038 = vmatprep.subr.mxu0 0.0
    %1039 = vmatpush2.msra.mxu0 0.0
    %1040 = vmatprep.subr.mxu0 0.0
    %1041 = vmatpush2.msra.mxu0 0.0
    %1042 = vmatprep.subr.mxu0 0.0
    %1043 = vmatpush2.msra.mxu0 0.0
    %1044 = vmatprep.subr.mxu0 0.0
    %1045 = vmatpush2.msra.mxu0 0.0
    %1046 = vmatprep.subr.mxu0 0.0
    %1047 = vmatpush2.msra.mxu0 0.0
    %1048 = vmatprep.subr.mxu0 0.0
    %1049 = vmatpush2.msra.mxu0 0.0
    %1050 = vmatprep.subr.mxu0 0.0
    %1051 = vmatpush2.msra.mxu0 0.0
    %1052 = vmatprep.subr.mxu0 0.0
    %1053 = vmatpush2.msra.mxu0 0.0
    %1054 = vmatprep.subr.mxu0 0.0
    %1055 = vmatpush2.msra.mxu0 0.0
    %1056 = vmatprep.subr.mxu0 0.0
    %1057 = vmatpush2.msra.mxu0 0.0
    %1058 = vmatprep.subr.mxu0 0.0
    %1059 = vmatpush2.msra.mxu0 0.0
    %1060 = vmatprep.subr.mxu0 0.0
    %1061 = vmatpush2.msra.mxu0 0.0
    %1062 = vmatprep.mubr.f32.mxu0 0.0
    %1063 = vmatmul.mubr.f32.gmra.mxu0 %v644
    %v1064 = vpop.f32.mrf.mxu0
    %v1065 = vadd.f32 0.0, %v1064
    %v1066 = vpop.f32.mrf.mxu0
    %v1067 = vadd.f32 0.0, %v1066
    %1068 = vdwg.mxu0
    %1069 = vmatprep.subr.mxu0 %v209
    %1070 = vmatpush1.msra.mxu0 %v208
    %1071 = vmatprep.subr.mxu0 %v205
    %1072 = vmatpush1.msra.mxu0 %v204
    %1073 = vmatprep.subr.mxu0 %v201
    %1074 = vmatpush1.msra.mxu0 %v200
    %1075 = vmatprep.subr.mxu0 %v197
    %1076 = vmatpush1.msra.mxu0 %v196
    %1077 = vmatprep.subr.mxu0 %v193
    %1078 = vmatpush1.msra.mxu0 %v192
    %1079 = vmatprep.subr.mxu0 %v189
    %1080 = vmatpush1.msra.mxu0 %v188
    %1081 = vmatprep.subr.mxu0 %v185
    %1082 = vmatpush1.msra.mxu0 %v184
    %1083 = vmatprep.subr.mxu0 %v181
    %1084 = vmatpush1.msra.mxu0 %v180
    %1085 = vmatprep.subr.mxu0 %v177
    %1086 = vmatpush1.msra.mxu0 %v176
    %1087 = vmatprep.subr.mxu0 %v173
    %1088 = vmatpush1.msra.mxu0 %v172
    %1089 = vmatprep.subr.mxu0 %v169
    %1090 = vmatpush1.msra.mxu0 %v168
    %1091 = vmatprep.subr.mxu0 %v165
    %1092 = vmatpush1.msra.mxu0 %v164
    %1093 = vmatprep.subr.mxu0 %v161
    %1094 = vmatpush1.msra.mxu0 %v160
    %1095 = vmatprep.subr.mxu0 %v157
    %1096 = vmatpush1.msra.mxu0 %v156
    %1097 = vmatprep.subr.mxu0 %v153
    %1098 = vmatpush1.msra.mxu0 %v152
    %1099 = vmatprep.subr.mxu0 %v149
    %1100 = vmatpush1.msra.mxu0 %v148
    %1101 = vmatprep.subr.mxu0 0.0
    %1102 = vmatpush2.msra.mxu0 0.0
    %1103 = vmatprep.subr.mxu0 0.0
    %1104 = vmatpush2.msra.mxu0 0.0
    %1105 = vmatprep.subr.mxu0 0.0
    %1106 = vmatpush2.msra.mxu0 0.0
    %1107 = vmatprep.subr.mxu0 0.0
    %1108 = vmatpush2.msra.mxu0 0.0
    %1109 = vmatprep.subr.mxu0 0.0
    %1110 = vmatpush2.msra.mxu0 0.0
    %1111 = vmatprep.subr.mxu0 0.0
    %1112 = vmatpush2.msra.mxu0 0.0
    %1113 = vmatprep.subr.mxu0 0.0
    %1114 = vmatpush2.msra.mxu0 0.0
    %1115 = vmatprep.subr.mxu0 0.0
    %1116 = vmatpush2.msra.mxu0 0.0
    %1117 = vmatprep.subr.mxu0 0.0
    %1118 = vmatpush2.msra.mxu0 0.0
    %1119 = vmatprep.subr.mxu0 0.0
    %1120 = vmatpush2.msra.mxu0 0.0
    %1121 = vmatprep.subr.mxu0 0.0
    %1122 = vmatpush2.msra.mxu0 0.0
    %1123 = vmatprep.subr.mxu0 0.0
    %1124 = vmatpush2.msra.mxu0 0.0
    %1125 = vmatprep.subr.mxu0 0.0
    %1126 = vmatpush2.msra.mxu0 0.0
    %1127 = vmatprep.subr.mxu0 0.0
    %1128 = vmatpush2.msra.mxu0 0.0
    %1129 = vmatprep.subr.mxu0 0.0
    %1130 = vmatpush2.msra.mxu0 0.0
    %1131 = vmatprep.subr.mxu0 0.0
    %1132 = vmatpush2.msra.mxu0 0.0
    %1133 = vmatprep.mubr.f32.mxu0 0.0
    %1134 = vmatmul.mubr.f32.gmra.mxu0 %v644
    %v1135 = vpop.f32.mrf.mxu0
    %v1136 = vadd.f32 0.0, %v1135
    %v1137 = vpop.f32.mrf.mxu0
    %v1138 = vadd.f32 0.0, %v1137
    %1139 = vdwg.mxu0
    %v1141 = vsel %vm455, %v997, 0
    %1143 = vmatprep.subr.mxu0 0.0
    %1144 = vmatpush1.msra.mxu0 0.0
    %1145 = vmatprep.subr.mxu0 0.0
    %1146 = vmatpush1.msra.mxu0 0.0
    %1147 = vmatprep.subr.mxu0 0.0
    %1148 = vmatpush1.msra.mxu0 0.0
    %1149 = vmatprep.subr.mxu0 0.0
    %1150 = vmatpush1.msra.mxu0 0.0
    %1151 = vmatprep.subr.mxu0 0.0
    %1152 = vmatpush1.msra.mxu0 0.0
    %1153 = vmatprep.subr.mxu0 0.0
    %1154 = vmatpush1.msra.mxu0 0.0
    %1155 = vmatprep.subr.mxu0 0.0
    %1156 = vmatpush1.msra.mxu0 0.0
    %1157 = vmatprep.subr.mxu0 0.0
    %1158 = vmatpush1.msra.mxu0 0.0
    %1159 = vmatprep.subr.mxu0 0.0
    %1160 = vmatpush1.msra.mxu0 0.0
    %1161 = vmatprep.subr.mxu0 0.0
    %1162 = vmatpush1.msra.mxu0 0.0
    %1163 = vmatprep.subr.mxu0 0.0
    %1164 = vmatpush1.msra.mxu0 0.0
    %1165 = vmatprep.subr.mxu0 0.0
    %1166 = vmatpush1.msra.mxu0 0.0
    %1167 = vmatprep.subr.mxu0 %v143
    %1168 = vmatpush1.msra.mxu0 %v142
    %1169 = vmatprep.subr.mxu0 %v139
    %1170 = vmatpush1.msra.mxu0 %v138
    %1171 = vmatprep.subr.mxu0 %v135
    %1172 = vmatpush1.msra.mxu0 %v134
    %1173 = vmatprep.subr.mxu0 %v131
    %1174 = vmatpush1.msra.mxu0 %v130
    %1175 = vmatprep.subr.mxu0 0.0
    %1176 = vmatpush2.msra.mxu0 0.0
    %1177 = vmatprep.subr.mxu0 0.0
    %1178 = vmatpush2.msra.mxu0 0.0
    %1179 = vmatprep.subr.mxu0 0.0
    %1180 = vmatpush2.msra.mxu0 0.0
    %1181 = vmatprep.subr.mxu0 0.0
    %1182 = vmatpush2.msra.mxu0 0.0
    %1183 = vmatprep.subr.mxu0 0.0
    %1184 = vmatpush2.msra.mxu0 0.0
    %1185 = vmatprep.subr.mxu0 0.0
    %1186 = vmatpush2.msra.mxu0 0.0
    %1187 = vmatprep.subr.mxu0 0.0
    %1188 = vmatpush2.msra.mxu0 0.0
    %1189 = vmatprep.subr.mxu0 0.0
    %1190 = vmatpush2.msra.mxu0 0.0
    %1191 = vmatprep.subr.mxu0 0.0
    %1192 = vmatpush2.msra.mxu0 0.0
    %1193 = vmatprep.subr.mxu0 0.0
    %1194 = vmatpush2.msra.mxu0 0.0
    %1195 = vmatprep.subr.mxu0 0.0
    %1196 = vmatpush2.msra.mxu0 0.0
    %1197 = vmatprep.subr.mxu0 0.0
    %1198 = vmatpush2.msra.mxu0 0.0
    %1199 = vmatprep.subr.mxu0 0.0
    %1200 = vmatpush2.msra.mxu0 0.0
    %1201 = vmatprep.subr.mxu0 0.0
    %1202 = vmatpush2.msra.mxu0 0.0
    %1203 = vmatprep.subr.mxu0 0.0
    %1204 = vmatpush2.msra.mxu0 0.0
    %1205 = vmatprep.subr.mxu0 0.0
    %1206 = vmatpush2.msra.mxu0 0.0
    %1207 = vmatprep.mubr.f32.mxu0 0.0
    %1208 = vmatmul.mubr.f32.gmra.mxu0 %v1141
    %v1209 = vpop.f32.mrf.mxu0
    %v1210 = vadd.f32 %v1065, %v1209
    %v1211 = vpop.f32.mrf.mxu0
    %v1212 = vadd.f32 %v1067, %v1211
    %1213 = vdwg.mxu0
    %1214 = vmatprep.subr.mxu0 0.0
    %1215 = vmatpush1.msra.mxu0 0.0
    %1216 = vmatprep.subr.mxu0 0.0
    %1217 = vmatpush1.msra.mxu0 0.0
    %1218 = vmatprep.subr.mxu0 0.0
    %1219 = vmatpush1.msra.mxu0 0.0
    %1220 = vmatprep.subr.mxu0 0.0
    %1221 = vmatpush1.msra.mxu0 0.0
    %1222 = vmatprep.subr.mxu0 0.0
    %1223 = vmatpush1.msra.mxu0 0.0
    %1224 = vmatprep.subr.mxu0 0.0
    %1225 = vmatpush1.msra.mxu0 0.0
    %1226 = vmatprep.subr.mxu0 0.0
    %1227 = vmatpush1.msra.mxu0 0.0
    %1228 = vmatprep.subr.mxu0 0.0
    %1229 = vmatpush1.msra.mxu0 0.0
    %1230 = vmatprep.subr.mxu0 0.0
    %1231 = vmatpush1.msra.mxu0 0.0
    %1232 = vmatprep.subr.mxu0 0.0
    %1233 = vmatpush1.msra.mxu0 0.0
    %1234 = vmatprep.subr.mxu0 0.0
    %1235 = vmatpush1.msra.mxu0 0.0
    %1236 = vmatprep.subr.mxu0 0.0
    %1237 = vmatpush1.msra.mxu0 0.0
    %1238 = vmatprep.subr.mxu0 %v145
    %1239 = vmatpush1.msra.mxu0 %v144
    %1240 = vmatprep.subr.mxu0 %v141
    %1241 = vmatpush1.msra.mxu0 %v140
    %1242 = vmatprep.subr.mxu0 %v137
    %1243 = vmatpush1.msra.mxu0 %v136
    %1244 = vmatprep.subr.mxu0 %v133
    %1245 = vmatpush1.msra.mxu0 %v132
    %1246 = vmatprep.subr.mxu0 0.0
    %1247 = vmatpush2.msra.mxu0 0.0
    %1248 = vmatprep.subr.mxu0 0.0
    %1249 = vmatpush2.msra.mxu0 0.0
    %1250 = vmatprep.subr.mxu0 0.0
    %1251 = vmatpush2.msra.mxu0 0.0
    %1252 = vmatprep.subr.mxu0 0.0
    %1253 = vmatpush2.msra.mxu0 0.0
    %1254 = vmatprep.subr.mxu0 0.0
    %1255 = vmatpush2.msra.mxu0 0.0
    %1256 = vmatprep.subr.mxu0 0.0
    %1257 = vmatpush2.msra.mxu0 0.0
    %1258 = vmatprep.subr.mxu0 0.0
    %1259 = vmatpush2.msra.mxu0 0.0
    %1260 = vmatprep.subr.mxu0 0.0
    %1261 = vmatpush2.msra.mxu0 0.0
    %1262 = vmatprep.subr.mxu0 0.0
    %1263 = vmatpush2.msra.mxu0 0.0
    %1264 = vmatprep.subr.mxu0 0.0
    %1265 = vmatpush2.msra.mxu0 0.0
    %1266 = vmatprep.subr.mxu0 0.0
    %1267 = vmatpush2.msra.mxu0 0.0
    %1268 = vmatprep.subr.mxu0 0.0
    %1269 = vmatpush2.msra.mxu0 0.0
    %1270 = vmatprep.subr.mxu0 0.0
    %1271 = vmatpush2.msra.mxu0 0.0
    %1272 = vmatprep.subr.mxu0 0.0
    %1273 = vmatpush2.msra.mxu0 0.0
    %1274 = vmatprep.subr.mxu0 0.0
    %1275 = vmatpush2.msra.mxu0 0.0
    %1276 = vmatprep.subr.mxu0 0.0
    %1277 = vmatpush2.msra.mxu0 0.0
    %1278 = vmatprep.mubr.f32.mxu0 0.0
    %1279 = vmatmul.mubr.f32.gmra.mxu0 %v1141
    %v1280 = vpop.f32.mrf.mxu0
    %v1281 = vadd.f32 %v1136, %v1280
    %v1282 = vpop.f32.mrf.mxu0
    %v1283 = vadd.f32 %v1138, %v1282
    %1284 = vdwg.mxu0
    %v1285 = vadd.f32 %v1210, %v605
    %v1286 = vadd.f32 %v1212, %v609
    %v1287 = vadd.f32 %v1281, %v613
    %v1288 = vadd.f32 %v1283, %v617
    %v1289 = vmul.f32 %v1285, 0.5
    %v1290 = vtanh.pop %v1289
    %v1291 = vmul.f32 %v1290, 0.5
    %v1292 = vadd.f32 %v1291, 0.5
    %v1293 = vmul.f32 %v1286, 0.5
    %v1294 = vtanh.pop %v1293
    %v1295 = vmul.f32 %v1294, 0.5
    %v1296 = vadd.f32 %v1295, 0.5
    %v1297 = vtanh.pop %v1287
    %v1298 = vmul.f32 %v1288, 0.5
    %v1299 = vtanh.pop %v1298
    %v1300 = vmul.f32 %v1299, 0.5
    %v1301 = vadd.f32 %v1300, 0.5
    %v1302 = vmul.f32 %v1296, %v645
    %v1303 = vmul.f32 %v1292, %v1297
    %v1304 = vadd.f32 %v1302, %v1303
    %v1305 = vtanh.pop %v1304
    %v1306 = vmul.f32 %v1301, %v1305
    %v1307 = vsel %vm988, %v1306, %v644
    %v1308 = vsel %vm988, %v1304, %v645
    %s1309 = scalar_lea.vmem [#allocation9], 48
    %v1310 = vld [vmem:[%s1309] sm:$0xff]
    %1311 = vmatprep.subr.mxu0 %v288
    %1312 = vmatpush1.msra.mxu0 %v287
    %1313 = vmatprep.subr.mxu0 %v284
    %1314 = vmatpush1.msra.mxu0 %v283
    %1315 = vmatprep.subr.mxu0 %v280
    %1316 = vmatpush1.msra.mxu0 %v279
    %1317 = vmatprep.subr.mxu0 %v276
    %1318 = vmatpush1.msra.mxu0 %v275
    %1319 = vmatprep.subr.mxu0 %v272
    %1320 = vmatpush1.msra.mxu0 %v271
    %1321 = vmatprep.subr.mxu0 %v268
    %1322 = vmatpush1.msra.mxu0 %v267
    %1323 = vmatprep.subr.mxu0 %v264
    %1324 = vmatpush1.msra.mxu0 %v263
    %1325 = vmatprep.subr.mxu0 %v260
    %1326 = vmatpush1.msra.mxu0 %v259
    %1327 = vmatprep.subr.mxu0 %v256
    %1328 = vmatpush1.msra.mxu0 %v255
    %1329 = vmatprep.subr.mxu0 %v252
    %1330 = vmatpush1.msra.mxu0 %v251
    %1331 = vmatprep.subr.mxu0 %v248
    %1332 = vmatpush1.msra.mxu0 %v247
    %1333 = vmatprep.subr.mxu0 %v244
    %1334 = vmatpush1.msra.mxu0 %v243
    %1335 = vmatprep.subr.mxu0 %v240
    %1336 = vmatpush1.msra.mxu0 %v239
    %1337 = vmatprep.subr.mxu0 %v236
    %1338 = vmatpush1.msra.mxu0 %v235
    %1339 = vmatprep.subr.mxu0 %v232
    %1340 = vmatpush1.msra.mxu0 %v231
    %1341 = vmatprep.subr.mxu0 %v228
    %1342 = vmatpush1.msra.mxu0 %v227
    %1343 = vmatprep.subr.mxu0 0.0
    %1344 = vmatpush2.msra.mxu0 0.0
    %1345 = vmatprep.subr.mxu0 0.0
    %1346 = vmatpush2.msra.mxu0 0.0
    %1347 = vmatprep.subr.mxu0 0.0
    %1348 = vmatpush2.msra.mxu0 0.0
    %1349 = vmatprep.subr.mxu0 0.0
    %1350 = vmatpush2.msra.mxu0 0.0
    %1351 = vmatprep.subr.mxu0 0.0
    %1352 = vmatpush2.msra.mxu0 0.0
    %1353 = vmatprep.subr.mxu0 0.0
    %1354 = vmatpush2.msra.mxu0 0.0
    %1355 = vmatprep.subr.mxu0 0.0
    %1356 = vmatpush2.msra.mxu0 0.0
    %1357 = vmatprep.subr.mxu0 0.0
    %1358 = vmatpush2.msra.mxu0 0.0
    %1359 = vmatprep.subr.mxu0 0.0
    %1360 = vmatpush2.msra.mxu0 0.0
    %1361 = vmatprep.subr.mxu0 0.0
    %1362 = vmatpush2.msra.mxu0 0.0
    %1363 = vmatprep.subr.mxu0 0.0
    %1364 = vmatpush2.msra.mxu0 0.0
    %1365 = vmatprep.subr.mxu0 0.0
    %1366 = vmatpush2.msra.mxu0 0.0
    %1367 = vmatprep.subr.mxu0 0.0
    %1368 = vmatpush2.msra.mxu0 0.0
    %1369 = vmatprep.subr.mxu0 0.0
    %1370 = vmatpush2.msra.mxu0 0.0
    %1371 = vmatprep.subr.mxu0 0.0
    %1372 = vmatpush2.msra.mxu0 0.0
    %1373 = vmatprep.subr.mxu0 0.0
    %1374 = vmatpush2.msra.mxu0 0.0
    %1375 = vmatprep.mubr.f32.mxu0 0.0
    %1376 = vmatmul.mubr.f32.gmra.mxu0 %v978
    %v1377 = vpop.f32.mrf.mxu0
    %v1378 = vadd.f32 0.0, %v1377
    %v1379 = vpop.f32.mrf.mxu0
    %v1380 = vadd.f32 0.0, %v1379
    %1381 = vdwg.mxu0
    %1382 = vmatprep.subr.mxu0 %v290
    %1383 = vmatpush1.msra.mxu0 %v289
    %1384 = vmatprep.subr.mxu0 %v286
    %1385 = vmatpush1.msra.mxu0 %v285
    %1386 = vmatprep.subr.mxu0 %v282
    %1387 = vmatpush1.msra.mxu0 %v281
    %1388 = vmatprep.subr.mxu0 %v278
    %1389 = vmatpush1.msra.mxu0 %v277
    %1390 = vmatprep.subr.mxu0 %v274
    %1391 = vmatpush1.msra.mxu0 %v273
    %1392 = vmatprep.subr.mxu0 %v270
    %1393 = vmatpush1.msra.mxu0 %v269
    %1394 = vmatprep.subr.mxu0 %v266
    %1395 = vmatpush1.msra.mxu0 %v265
    %1396 = vmatprep.subr.mxu0 %v262
    %1397 = vmatpush1.msra.mxu0 %v261
    %1398 = vmatprep.subr.mxu0 %v258
    %1399 = vmatpush1.msra.mxu0 %v257
    %1400 = vmatprep.subr.mxu0 %v254
    %1401 = vmatpush1.msra.mxu0 %v253
    %1402 = vmatprep.subr.mxu0 %v250
    %1403 = vmatpush1.msra.mxu0 %v249
    %1404 = vmatprep.subr.mxu0 %v246
    %1405 = vmatpush1.msra.mxu0 %v245
    %1406 = vmatprep.subr.mxu0 %v242
    %1407 = vmatpush1.msra.mxu0 %v241
    %1408 = vmatprep.subr.mxu0 %v238
    %1409 = vmatpush1.msra.mxu0 %v237
    %1410 = vmatprep.subr.mxu0 %v234
    %1411 = vmatpush1.msra.mxu0 %v233
    %1412 = vmatprep.subr.mxu0 %v230
    %1413 = vmatpush1.msra.mxu0 %v229
    %1414 = vmatprep.subr.mxu0 0.0
    %1415 = vmatpush2.msra.mxu0 0.0
    %1416 = vmatprep.subr.mxu0 0.0
    %1417 = vmatpush2.msra.mxu0 0.0
    %1418 = vmatprep.subr.mxu0 0.0
    %1419 = vmatpush2.msra.mxu0 0.0
    %1420 = vmatprep.subr.mxu0 0.0
    %1421 = vmatpush2.msra.mxu0 0.0
    %1422 = vmatprep.subr.mxu0 0.0
    %1423 = vmatpush2.msra.mxu0 0.0
    %1424 = vmatprep.subr.mxu0 0.0
    %1425 = vmatpush2.msra.mxu0 0.0
    %1426 = vmatprep.subr.mxu0 0.0
    %1427 = vmatpush2.msra.mxu0 0.0
    %1428 = vmatprep.subr.mxu0 0.0
    %1429 = vmatpush2.msra.mxu0 0.0
    %1430 = vmatprep.subr.mxu0 0.0
    %1431 = vmatpush2.msra.mxu0 0.0
    %1432 = vmatprep.subr.mxu0 0.0
    %1433 = vmatpush2.msra.mxu0 0.0
    %1434 = vmatprep.subr.mxu0 0.0
    %1435 = vmatpush2.msra.mxu0 0.0
    %1436 = vmatprep.subr.mxu0 0.0
    %1437 = vmatpush2.msra.mxu0 0.0
    %1438 = vmatprep.subr.mxu0 0.0
    %1439 = vmatpush2.msra.mxu0 0.0
    %1440 = vmatprep.subr.mxu0 0.0
    %1441 = vmatpush2.msra.mxu0 0.0
    %1442 = vmatprep.subr.mxu0 0.0
    %1443 = vmatpush2.msra.mxu0 0.0
    %1444 = vmatprep.subr.mxu0 0.0
    %1445 = vmatpush2.msra.mxu0 0.0
    %1446 = vmatprep.mubr.f32.mxu0 0.0
    %1447 = vmatmul.mubr.f32.gmra.mxu0 %v978
    %v1448 = vpop.f32.mrf.mxu0
    %v1449 = vadd.f32 0.0, %v1448
    %v1450 = vpop.f32.mrf.mxu0
    %v1451 = vadd.f32 0.0, %v1450
    %1452 = vdwg.mxu0
    %v1454 = vsel %vm455, %v1310, 0
    %1456 = vmatprep.subr.mxu0 0.0
    %1457 = vmatpush1.msra.mxu0 0.0
    %1458 = vmatprep.subr.mxu0 0.0
    %1459 = vmatpush1.msra.mxu0 0.0
    %1460 = vmatprep.subr.mxu0 0.0
    %1461 = vmatpush1.msra.mxu0 0.0
    %1462 = vmatprep.subr.mxu0 0.0
    %1463 = vmatpush1.msra.mxu0 0.0
    %1464 = vmatprep.subr.mxu0 0.0
    %1465 = vmatpush1.msra.mxu0 0.0
    %1466 = vmatprep.subr.mxu0 0.0
    %1467 = vmatpush1.msra.mxu0 0.0
    %1468 = vmatprep.subr.mxu0 0.0
    %1469 = vmatpush1.msra.mxu0 0.0
    %1470 = vmatprep.subr.mxu0 0.0
    %1471 = vmatpush1.msra.mxu0 0.0
    %1472 = vmatprep.subr.mxu0 0.0
    %1473 = vmatpush1.msra.mxu0 0.0
    %1474 = vmatprep.subr.mxu0 0.0
    %1475 = vmatpush1.msra.mxu0 0.0
    %1476 = vmatprep.subr.mxu0 0.0
    %1477 = vmatpush1.msra.mxu0 0.0
    %1478 = vmatprep.subr.mxu0 0.0
    %1479 = vmatpush1.msra.mxu0 0.0
    %1480 = vmatprep.subr.mxu0 %v224
    %1481 = vmatpush1.msra.mxu0 %v223
    %1482 = vmatprep.subr.mxu0 %v220
    %1483 = vmatpush1.msra.mxu0 %v219
    %1484 = vmatprep.subr.mxu0 %v216
    %1485 = vmatpush1.msra.mxu0 %v215
    %1486 = vmatprep.subr.mxu0 %v212
    %1487 = vmatpush1.msra.mxu0 %v211
    %1488 = vmatprep.subr.mxu0 0.0
    %1489 = vmatpush2.msra.mxu0 0.0
    %1490 = vmatprep.subr.mxu0 0.0
    %1491 = vmatpush2.msra.mxu0 0.0
    %1492 = vmatprep.subr.mxu0 0.0
    %1493 = vmatpush2.msra.mxu0 0.0
    %1494 = vmatprep.subr.mxu0 0.0
    %1495 = vmatpush2.msra.mxu0 0.0
    %1496 = vmatprep.subr.mxu0 0.0
    %1497 = vmatpush2.msra.mxu0 0.0
    %1498 = vmatprep.subr.mxu0 0.0
    %1499 = vmatpush2.msra.mxu0 0.0
    %1500 = vmatprep.subr.mxu0 0.0
    %1501 = vmatpush2.msra.mxu0 0.0
    %1502 = vmatprep.subr.mxu0 0.0
    %1503 = vmatpush2.msra.mxu0 0.0
    %1504 = vmatprep.subr.mxu0 0.0
    %1505 = vmatpush2.msra.mxu0 0.0
    %1506 = vmatprep.subr.mxu0 0.0
    %1507 = vmatpush2.msra.mxu0 0.0
    %1508 = vmatprep.subr.mxu0 0.0
    %1509 = vmatpush2.msra.mxu0 0.0
    %1510 = vmatprep.subr.mxu0 0.0
    %1511 = vmatpush2.msra.mxu0 0.0
    %1512 = vmatprep.subr.mxu0 0.0
    %1513 = vmatpush2.msra.mxu0 0.0
    %1514 = vmatprep.subr.mxu0 0.0
    %1515 = vmatpush2.msra.mxu0 0.0
    %1516 = vmatprep.subr.mxu0 0.0
    %1517 = vmatpush2.msra.mxu0 0.0
    %1518 = vmatprep.subr.mxu0 0.0
    %1519 = vmatpush2.msra.mxu0 0.0
    %1520 = vmatprep.mubr.f32.mxu0 0.0
    %1521 = vmatmul.mubr.f32.gmra.mxu0 %v1454
    %v1522 = vpop.f32.mrf.mxu0
    %v1523 = vadd.f32 %v1378, %v1522
    %v1524 = vpop.f32.mrf.mxu0
    %v1525 = vadd.f32 %v1380, %v1524
    %1526 = vdwg.mxu0
    %1527 = vmatprep.subr.mxu0 0.0
    %1528 = vmatpush1.msra.mxu0 0.0
    %1529 = vmatprep.subr.mxu0 0.0
    %1530 = vmatpush1.msra.mxu0 0.0
    %1531 = vmatprep.subr.mxu0 0.0
    %1532 = vmatpush1.msra.mxu0 0.0
    %1533 = vmatprep.subr.mxu0 0.0
    %1534 = vmatpush1.msra.mxu0 0.0
    %1535 = vmatprep.subr.mxu0 0.0
    %1536 = vmatpush1.msra.mxu0 0.0
    %1537 = vmatprep.subr.mxu0 0.0
    %1538 = vmatpush1.msra.mxu0 0.0
    %1539 = vmatprep.subr.mxu0 0.0
    %1540 = vmatpush1.msra.mxu0 0.0
    %1541 = vmatprep.subr.mxu0 0.0
    %1542 = vmatpush1.msra.mxu0 0.0
    %1543 = vmatprep.subr.mxu0 0.0
    %1544 = vmatpush1.msra.mxu0 0.0
    %1545 = vmatprep.subr.mxu0 0.0
    %1546 = vmatpush1.msra.mxu0 0.0
    %1547 = vmatprep.subr.mxu0 0.0
    %1548 = vmatpush1.msra.mxu0 0.0
    %1549 = vmatprep.subr.mxu0 0.0
    %1550 = vmatpush1.msra.mxu0 0.0
    %1551 = vmatprep.subr.mxu0 %v226
    %1552 = vmatpush1.msra.mxu0 %v225
    %1553 = vmatprep.subr.mxu0 %v222
    %1554 = vmatpush1.msra.mxu0 %v221
    %1555 = vmatprep.subr.mxu0 %v218
    %1556 = vmatpush1.msra.mxu0 %v217
    %1557 = vmatprep.subr.mxu0 %v214
    %1558 = vmatpush1.msra.mxu0 %v213
    %1559 = vmatprep.subr.mxu0 0.0
    %1560 = vmatpush2.msra.mxu0 0.0
    %1561 = vmatprep.subr.mxu0 0.0
    %1562 = vmatpush2.msra.mxu0 0.0
    %1563 = vmatprep.subr.mxu0 0.0
    %1564 = vmatpush2.msra.mxu0 0.0
    %1565 = vmatprep.subr.mxu0 0.0
    %1566 = vmatpush2.msra.mxu0 0.0
    %1567 = vmatprep.subr.mxu0 0.0
    %1568 = vmatpush2.msra.mxu0 0.0
    %1569 = vmatprep.subr.mxu0 0.0
    %1570 = vmatpush2.msra.mxu0 0.0
    %1571 = vmatprep.subr.mxu0 0.0
    %1572 = vmatpush2.msra.mxu0 0.0
    %1573 = vmatprep.subr.mxu0 0.0
    %1574 = vmatpush2.msra.mxu0 0.0
    %1575 = vmatprep.subr.mxu0 0.0
    %1576 = vmatpush2.msra.mxu0 0.0
    %1577 = vmatprep.subr.mxu0 0.0
    %1578 = vmatpush2.msra.mxu0 0.0
    %1579 = vmatprep.subr.mxu0 0.0
    %1580 = vmatpush2.msra.mxu0 0.0
    %1581 = vmatprep.subr.mxu0 0.0
    %1582 = vmatpush2.msra.mxu0 0.0
    %1583 = vmatprep.subr.mxu0 0.0
    %1584 = vmatpush2.msra.mxu0 0.0
    %1585 = vmatprep.subr.mxu0 0.0
    %1586 = vmatpush2.msra.mxu0 0.0
    %1587 = vmatprep.subr.mxu0 0.0
    %1588 = vmatpush2.msra.mxu0 0.0
    %1589 = vmatprep.subr.mxu0 0.0
    %1590 = vmatpush2.msra.mxu0 0.0
    %1591 = vmatprep.mubr.f32.mxu0 0.0
    %1592 = vmatmul.mubr.f32.gmra.mxu0 %v1454
    %v1593 = vpop.f32.mrf.mxu0
    %v1594 = vadd.f32 %v1449, %v1593
    %v1595 = vpop.f32.mrf.mxu0
    %v1596 = vadd.f32 %v1451, %v1595
    %1597 = vdwg.mxu0
    %v1598 = vadd.f32 %v1523, %v939
    %v1599 = vadd.f32 %v1525, %v943
    %v1600 = vadd.f32 %v1594, %v947
    %v1601 = vadd.f32 %v1596, %v951
    %v1602 = vmul.f32 %v1598, 0.5
    %v1603 = vtanh.pop %v1602
    %v1604 = vmul.f32 %v1603, 0.5
    %v1605 = vadd.f32 %v1604, 0.5
    %v1606 = vmul.f32 %v1599, 0.5
    %v1607 = vtanh.pop %v1606
    %v1608 = vmul.f32 %v1607, 0.5
    %v1609 = vadd.f32 %v1608, 0.5
    %v1610 = vtanh.pop %v1600
    %v1611 = vmul.f32 %v1601, 0.5
    %v1612 = vtanh.pop %v1611
    %v1613 = vmul.f32 %v1612, 0.5
    %v1614 = vadd.f32 %v1613, 0.5
    %v1615 = vmul.f32 %v1609, %v979
    %v1616 = vmul.f32 %v1605, %v1610
    %v1617 = vadd.f32 %v1615, %v1616
    %v1618 = vtanh.pop %v1617
    %v1619 = vmul.f32 %v1614, %v1618
    %v1620 = vsel %vm995, %v1619, %v978
    %v1621 = vsel %vm995, %v1617, %v979
    %s1622 = sadd.s32 %s296, 2
    %s1623 = ssub.s32 5, %s296
    %v1624 = vstv %s1622
    %vm1625 = vcmp.lt.s32.totalorder %v1624, %v129
    %v1626 = vsel %vm1625, 1, 0
    %1627 = vset.pattern.permute.xlu0 0
    %1628 = vperm.xlu0 %1627, %v1626
    %v1629 = vpop.permute.xlu0 %1628
    %vm1630 = vcmp.eq.s32.totalorder %v1629, 1
    %v1631 = vstv %s1623
    %vm1632 = vcmp.lt.s32.totalorder %v1631, %v129
    %v1633 = vsel %vm1632, 1, 0
    %1634 = vset.pattern.permute.xlu0 0
    %1635 = vperm.xlu0 %1634, %v1633
    %v1636 = vpop.permute.xlu0 %1635
    %vm1637 = vcmp.eq.s32.totalorder %v1636, 1
    %s1638 = scalar_lea.vmem [#allocation6], 16
    %v1639 = vld [vmem:[%s1638] sm:$0xff]
    %1640 = vmatprep.subr.mxu0 %v207
    %1641 = vmatpush1.msra.mxu0 %v206
    %1642 = vmatprep.subr.mxu0 %v203
    %1643 = vmatpush1.msra.mxu0 %v202
    %1644 = vmatprep.subr.mxu0 %v199
    %1645 = vmatpush1.msra.mxu0 %v198
    %1646 = vmatprep.subr.mxu0 %v195
    %1647 = vmatpush1.msra.mxu0 %v194
    %1648 = vmatprep.subr.mxu0 %v191
    %1649 = vmatpush1.msra.mxu0 %v190
    %1650 = vmatprep.subr.mxu0 %v187
    %1651 = vmatpush1.msra.mxu0 %v186
    %1652 = vmatprep.subr.mxu0 %v183
    %1653 = vmatpush1.msra.mxu0 %v182
    %1654 = vmatprep.subr.mxu0 %v179
    %1655 = vmatpush1.msra.mxu0 %v178
    %1656 = vmatprep.subr.mxu0 %v175
    %1657 = vmatpush1.msra.mxu0 %v174
    %1658 = vmatprep.subr.mxu0 %v171
    %1659 = vmatpush1.msra.mxu0 %v170
    %1660 = vmatprep.subr.mxu0 %v167
    %1661 = vmatpush1.msra.mxu0 %v166
    %1662 = vmatprep.subr.mxu0 %v163
    %1663 = vmatpush1.msra.mxu0 %v162
    %1664 = vmatprep.subr.mxu0 %v159
    %1665 = vmatpush1.msra.mxu0 %v158
    %1666 = vmatprep.subr.mxu0 %v155
    %1667 = vmatpush1.msra.mxu0 %v154
    %1668 = vmatprep.subr.mxu0 %v151
    %1669 = vmatpush1.msra.mxu0 %v150
    %1670 = vmatprep.subr.mxu0 %v147
    %1671 = vmatpush1.msra.mxu0 %v146
    %1672 = vmatprep.subr.mxu0 0.0
    %1673 = vmatpush2.msra.mxu0 0.0
    %1674 = vmatprep.subr.mxu0 0.0
    %1675 = vmatpush2.msra.mxu0 0.0
    %1676 = vmatprep.subr.mxu0 0.0
    %1677 = vmatpush2.msra.mxu0 0.0
    %1678 = vmatprep.subr.mxu0 0.0
    %1679 = vmatpush2.msra.mxu0 0.0
    %1680 = vmatprep.subr.mxu0 0.0
    %1681 = vmatpush2.msra.mxu0 0.0
    %1682 = vmatprep.subr.mxu0 0.0
    %1683 = vmatpush2.msra.mxu0 0.0
    %1684 = vmatprep.subr.mxu0 0.0
    %1685 = vmatpush2.msra.mxu0 0.0
    %1686 = vmatprep.subr.mxu0 0.0
    %1687 = vmatpush2.msra.mxu0 0.0
    %1688 = vmatprep.subr.mxu0 0.0
    %1689 = vmatpush2.msra.mxu0 0.0
    %1690 = vmatprep.subr.mxu0 0.0
    %1691 = vmatpush2.msra.mxu0 0.0
    %1692 = vmatprep.subr.mxu0 0.0
    %1693 = vmatpush2.msra.mxu0 0.0
    %1694 = vmatprep.subr.mxu0 0.0
    %1695 = vmatpush2.msra.mxu0 0.0
    %1696 = vmatprep.subr.mxu0 0.0
    %1697 = vmatpush2.msra.mxu0 0.0
    %1698 = vmatprep.subr.mxu0 0.0
    %1699 = vmatpush2.msra.mxu0 0.0
    %1700 = vmatprep.subr.mxu0 0.0
    %1701 = vmatpush2.msra.mxu0 0.0
    %1702 = vmatprep.subr.mxu0 0.0
    %1703 = vmatpush2.msra.mxu0 0.0
    %1704 = vmatprep.mubr.f32.mxu0 0.0
    %1705 = vmatmul.mubr.f32.gmra.mxu0 %v1307
    %v1706 = vpop.f32.mrf.mxu0
    %v1707 = vadd.f32 0.0, %v1706
    %v1708 = vpop.f32.mrf.mxu0
    %v1709 = vadd.f32 0.0, %v1708
    %1710 = vdwg.mxu0
    %1711 = vmatprep.subr.mxu0 %v209
    %1712 = vmatpush1.msra.mxu0 %v208
    %1713 = vmatprep.subr.mxu0 %v205
    %1714 = vmatpush1.msra.mxu0 %v204
    %1715 = vmatprep.subr.mxu0 %v201
    %1716 = vmatpush1.msra.mxu0 %v200
    %1717 = vmatprep.subr.mxu0 %v197
    %1718 = vmatpush1.msra.mxu0 %v196
    %1719 = vmatprep.subr.mxu0 %v193
    %1720 = vmatpush1.msra.mxu0 %v192
    %1721 = vmatprep.subr.mxu0 %v189
    %1722 = vmatpush1.msra.mxu0 %v188
    %1723 = vmatprep.subr.mxu0 %v185
    %1724 = vmatpush1.msra.mxu0 %v184
    %1725 = vmatprep.subr.mxu0 %v181
    %1726 = vmatpush1.msra.mxu0 %v180
    %1727 = vmatprep.subr.mxu0 %v177
    %1728 = vmatpush1.msra.mxu0 %v176
    %1729 = vmatprep.subr.mxu0 %v173
    %1730 = vmatpush1.msra.mxu0 %v172
    %1731 = vmatprep.subr.mxu0 %v169
    %1732 = vmatpush1.msra.mxu0 %v168
    %1733 = vmatprep.subr.mxu0 %v165
    %1734 = vmatpush1.msra.mxu0 %v164
    %1735 = vmatprep.subr.mxu0 %v161
    %1736 = vmatpush1.msra.mxu0 %v160
    %1737 = vmatprep.subr.mxu0 %v157
    %1738 = vmatpush1.msra.mxu0 %v156
    %1739 = vmatprep.subr.mxu0 %v153
    %1740 = vmatpush1.msra.mxu0 %v152
    %1741 = vmatprep.subr.mxu0 %v149
    %1742 = vmatpush1.msra.mxu0 %v148
    %1743 = vmatprep.subr.mxu0 0.0
    %1744 = vmatpush2.msra.mxu0 0.0
    %1745 = vmatprep.subr.mxu0 0.0
    %1746 = vmatpush2.msra.mxu0 0.0
    %1747 = vmatprep.subr.mxu0 0.0
    %1748 = vmatpush2.msra.mxu0 0.0
    %1749 = vmatprep.subr.mxu0 0.0
    %1750 = vmatpush2.msra.mxu0 0.0
    %1751 = vmatprep.subr.mxu0 0.0
    %1752 = vmatpush2.msra.mxu0 0.0
    %1753 = vmatprep.subr.mxu0 0.0
    %1754 = vmatpush2.msra.mxu0 0.0
    %1755 = vmatprep.subr.mxu0 0.0
    %1756 = vmatpush2.msra.mxu0 0.0
    %1757 = vmatprep.subr.mxu0 0.0
    %1758 = vmatpush2.msra.mxu0 0.0
    %1759 = vmatprep.subr.mxu0 0.0
    %1760 = vmatpush2.msra.mxu0 0.0
    %1761 = vmatprep.subr.mxu0 0.0
    %1762 = vmatpush2.msra.mxu0 0.0
    %1763 = vmatprep.subr.mxu0 0.0
    %1764 = vmatpush2.msra.mxu0 0.0
    %1765 = vmatprep.subr.mxu0 0.0
    %1766 = vmatpush2.msra.mxu0 0.0
    %1767 = vmatprep.subr.mxu0 0.0
    %1768 = vmatpush2.msra.mxu0 0.0
    %1769 = vmatprep.subr.mxu0 0.0
    %1770 = vmatpush2.msra.mxu0 0.0
    %1771 = vmatprep.subr.mxu0 0.0
    %1772 = vmatpush2.msra.mxu0 0.0
    %1773 = vmatprep.subr.mxu0 0.0
    %1774 = vmatpush2.msra.mxu0 0.0
    %1775 = vmatprep.mubr.f32.mxu0 0.0
    %1776 = vmatmul.mubr.f32.gmra.mxu0 %v1307
    %v1777 = vpop.f32.mrf.mxu0
    %v1778 = vadd.f32 0.0, %v1777
    %v1779 = vpop.f32.mrf.mxu0
    %v1780 = vadd.f32 0.0, %v1779
    %1781 = vdwg.mxu0
    %v1783 = vsel %vm455, %v1639, 0
    %1785 = vmatprep.subr.mxu0 0.0
    %1786 = vmatpush1.msra.mxu0 0.0
    %1787 = vmatprep.subr.mxu0 0.0
    %1788 = vmatpush1.msra.mxu0 0.0
    %1789 = vmatprep.subr.mxu0 0.0
    %1790 = vmatpush1.msra.mxu0 0.0
    %1791 = vmatprep.subr.mxu0 0.0
    %1792 = vmatpush1.msra.mxu0 0.0
    %1793 = vmatprep.subr.mxu0 0.0
    %1794 = vmatpush1.msra.mxu0 0.0
    %1795 = vmatprep.subr.mxu0 0.0
    %1796 = vmatpush1.msra.mxu0 0.0
    %1797 = vmatprep.subr.mxu0 0.0
    %1798 = vmatpush1.msra.mxu0 0.0
    %1799 = vmatprep.subr.mxu0 0.0
    %1800 = vmatpush1.msra.mxu0 0.0
    %1801 = vmatprep.subr.mxu0 0.0
    %1802 = vmatpush1.msra.mxu0 0.0
    %1803 = vmatprep.subr.mxu0 0.0
    %1804 = vmatpush1.msra.mxu0 0.0
    %1805 = vmatprep.subr.mxu0 0.0
    %1806 = vmatpush1.msra.mxu0 0.0
    %1807 = vmatprep.subr.mxu0 0.0
    %1808 = vmatpush1.msra.mxu0 0.0
    %1809 = vmatprep.subr.mxu0 %v143
    %1810 = vmatpush1.msra.mxu0 %v142
    %1811 = vmatprep.subr.mxu0 %v139
    %1812 = vmatpush1.msra.mxu0 %v138
    %1813 = vmatprep.subr.mxu0 %v135
    %1814 = vmatpush1.msra.mxu0 %v134
    %1815 = vmatprep.subr.mxu0 %v131
    %1816 = vmatpush1.msra.mxu0 %v130
    %1817 = vmatprep.subr.mxu0 0.0
    %1818 = vmatpush2.msra.mxu0 0.0
    %1819 = vmatprep.subr.mxu0 0.0
    %1820 = vmatpush2.msra.mxu0 0.0
    %1821 = vmatprep.subr.mxu0 0.0
    %1822 = vmatpush2.msra.mxu0 0.0
    %1823 = vmatprep.subr.mxu0 0.0
    %1824 = vmatpush2.msra.mxu0 0.0
    %1825 = vmatprep.subr.mxu0 0.0
    %1826 = vmatpush2.msra.mxu0 0.0
    %1827 = vmatprep.subr.mxu0 0.0
    %1828 = vmatpush2.msra.mxu0 0.0
    %1829 = vmatprep.subr.mxu0 0.0
    %1830 = vmatpush2.msra.mxu0 0.0
    %1831 = vmatprep.subr.mxu0 0.0
    %1832 = vmatpush2.msra.mxu0 0.0
    %1833 = vmatprep.subr.mxu0 0.0
    %1834 = vmatpush2.msra.mxu0 0.0
    %1835 = vmatprep.subr.mxu0 0.0
    %1836 = vmatpush2.msra.mxu0 0.0
    %1837 = vmatprep.subr.mxu0 0.0
    %1838 = vmatpush2.msra.mxu0 0.0
    %1839 = vmatprep.subr.mxu0 0.0
    %1840 = vmatpush2.msra.mxu0 0.0
    %1841 = vmatprep.subr.mxu0 0.0
    %1842 = vmatpush2.msra.mxu0 0.0
    %1843 = vmatprep.subr.mxu0 0.0
    %1844 = vmatpush2.msra.mxu0 0.0
    %1845 = vmatprep.subr.mxu0 0.0
    %1846 = vmatpush2.msra.mxu0 0.0
    %1847 = vmatprep.subr.mxu0 0.0
    %1848 = vmatpush2.msra.mxu0 0.0
    %1849 = vmatprep.mubr.f32.mxu0 0.0
    %1850 = vmatmul.mubr.f32.gmra.mxu0 %v1783
    %v1851 = vpop.f32.mrf.mxu0
    %v1852 = vadd.f32 %v1707, %v1851
    %v1853 = vpop.f32.mrf.mxu0
    %v1854 = vadd.f32 %v1709, %v1853
    %1855 = vdwg.mxu0
    %1856 = vmatprep.subr.mxu0 0.0
    %1857 = vmatpush1.msra.mxu0 0.0
    %1858 = vmatprep.subr.mxu0 0.0
    %1859 = vmatpush1.msra.mxu0 0.0
    %1860 = vmatprep.subr.mxu0 0.0
    %1861 = vmatpush1.msra.mxu0 0.0
    %1862 = vmatprep.subr.mxu0 0.0
    %1863 = vmatpush1.msra.mxu0 0.0
    %1864 = vmatprep.subr.mxu0 0.0
    %1865 = vmatpush1.msra.mxu0 0.0
    %1866 = vmatprep.subr.mxu0 0.0
    %1867 = vmatpush1.msra.mxu0 0.0
    %1868 = vmatprep.subr.mxu0 0.0
    %1869 = vmatpush1.msra.mxu0 0.0
    %1870 = vmatprep.subr.mxu0 0.0
    %1871 = vmatpush1.msra.mxu0 0.0
    %1872 = vmatprep.subr.mxu0 0.0
    %1873 = vmatpush1.msra.mxu0 0.0
    %1874 = vmatprep.subr.mxu0 0.0
    %1875 = vmatpush1.msra.mxu0 0.0
    %1876 = vmatprep.subr.mxu0 0.0
    %1877 = vmatpush1.msra.mxu0 0.0
    %1878 = vmatprep.subr.mxu0 0.0
    %1879 = vmatpush1.msra.mxu0 0.0
    %1880 = vmatprep.subr.mxu0 %v145
    %1881 = vmatpush1.msra.mxu0 %v144
    %1882 = vmatprep.subr.mxu0 %v141
    %1883 = vmatpush1.msra.mxu0 %v140
    %1884 = vmatprep.subr.mxu0 %v137
    %1885 = vmatpush1.msra.mxu0 %v136
    %1886 = vmatprep.subr.mxu0 %v133
    %1887 = vmatpush1.msra.mxu0 %v132
    %1888 = vmatprep.subr.mxu0 0.0
    %1889 = vmatpush2.msra.mxu0 0.0
    %1890 = vmatprep.subr.mxu0 0.0
    %1891 = vmatpush2.msra.mxu0 0.0
    %1892 = vmatprep.subr.mxu0 0.0
    %1893 = vmatpush2.msra.mxu0 0.0
    %1894 = vmatprep.subr.mxu0 0.0
    %1895 = vmatpush2.msra.mxu0 0.0
    %1896 = vmatprep.subr.mxu0 0.0
    %1897 = vmatpush2.msra.mxu0 0.0
    %1898 = vmatprep.subr.mxu0 0.0
    %1899 = vmatpush2.msra.mxu0 0.0
    %1900 = vmatprep.subr.mxu0 0.0
    %1901 = vmatpush2.msra.mxu0 0.0
    %1902 = vmatprep.subr.mxu0 0.0
    %1903 = vmatpush2.msra.mxu0 0.0
    %1904 = vmatprep.subr.mxu0 0.0
    %1905 = vmatpush2.msra.mxu0 0.0
    %1906 = vmatprep.subr.mxu0 0.0
    %1907 = vmatpush2.msra.mxu0 0.0
    %1908 = vmatprep.subr.mxu0 0.0
    %1909 = vmatpush2.msra.mxu0 0.0
    %1910 = vmatprep.subr.mxu0 0.0
    %1911 = vmatpush2.msra.mxu0 0.0
    %1912 = vmatprep.subr.mxu0 0.0
    %1913 = vmatpush2.msra.mxu0 0.0
    %1914 = vmatprep.subr.mxu0 0.0
    %1915 = vmatpush2.msra.mxu0 0.0
    %1916 = vmatprep.subr.mxu0 0.0
    %1917 = vmatpush2.msra.mxu0 0.0
    %1918 = vmatprep.subr.mxu0 0.0
    %1919 = vmatpush2.msra.mxu0 0.0
    %1920 = vmatprep.mubr.f32.mxu0 0.0
    %1921 = vmatmul.mubr.f32.gmra.mxu0 %v1783
    %v1922 = vpop.f32.mrf.mxu0
    %v1923 = vadd.f32 %v1778, %v1922
    %v1924 = vpop.f32.mrf.mxu0
    %v1925 = vadd.f32 %v1780, %v1924
    %1926 = vdwg.mxu0
    %v1927 = vadd.f32 %v1852, %v605
    %v1928 = vadd.f32 %v1854, %v609
    %v1929 = vadd.f32 %v1923, %v613
    %v1930 = vadd.f32 %v1925, %v617
    %v1931 = vmul.f32 %v1927, 0.5
    %v1932 = vtanh.pop %v1931
    %v1933 = vmul.f32 %v1932, 0.5
    %v1934 = vadd.f32 %v1933, 0.5
    %v1935 = vmul.f32 %v1928, 0.5
    %v1936 = vtanh.pop %v1935
    %v1937 = vmul.f32 %v1936, 0.5
    %v1938 = vadd.f32 %v1937, 0.5
    %v1939 = vtanh.pop %v1929
    %v1940 = vmul.f32 %v1930, 0.5
    %v1941 = vtanh.pop %v1940
    %v1942 = vmul.f32 %v1941, 0.5
    %v1943 = vadd.f32 %v1942, 0.5
    %v1944 = vmul.f32 %v1938, %v1308
    %v1945 = vmul.f32 %v1934, %v1939
    %v1946 = vadd.f32 %v1944, %v1945
    %v1947 = vtanh.pop %v1946
    %v1948 = vmul.f32 %v1943, %v1947
    %v1949 = vsel %vm1630, %v1948, %v1307
    %v1950 = vsel %vm1630, %v1946, %v1308
    %s1951 = scalar_lea.vmem [#allocation9], 40
    %v1952 = vld [vmem:[%s1951] sm:$0xff]
    %1953 = vmatprep.subr.mxu0 %v288
    %1954 = vmatpush1.msra.mxu0 %v287
    %1955 = vmatprep.subr.mxu0 %v284
    %1956 = vmatpush1.msra.mxu0 %v283
    %1957 = vmatprep.subr.mxu0 %v280
    %1958 = vmatpush1.msra.mxu0 %v279
    %1959 = vmatprep.subr.mxu0 %v276
    %1960 = vmatpush1.msra.mxu0 %v275
    %1961 = vmatprep.subr.mxu0 %v272
    %1962 = vmatpush1.msra.mxu0 %v271
    %1963 = vmatprep.subr.mxu0 %v268
    %1964 = vmatpush1.msra.mxu0 %v267
    %1965 = vmatprep.subr.mxu0 %v264
    %1966 = vmatpush1.msra.mxu0 %v263
    %1967 = vmatprep.subr.mxu0 %v260
    %1968 = vmatpush1.msra.mxu0 %v259
    %1969 = vmatprep.subr.mxu0 %v256
    %1970 = vmatpush1.msra.mxu0 %v255
    %1971 = vmatprep.subr.mxu0 %v252
    %1972 = vmatpush1.msra.mxu0 %v251
    %1973 = vmatprep.subr.mxu0 %v248
    %1974 = vmatpush1.msra.mxu0 %v247
    %1975 = vmatprep.subr.mxu0 %v244
    %1976 = vmatpush1.msra.mxu0 %v243
    %1977 = vmatprep.subr.mxu0 %v240
    %1978 = vmatpush1.msra.mxu0 %v239
    %1979 = vmatprep.subr.mxu0 %v236
    %1980 = vmatpush1.msra.mxu0 %v235
    %1981 = vmatprep.subr.mxu0 %v232
    %1982 = vmatpush1.msra.mxu0 %v231
    %1983 = vmatprep.subr.mxu0 %v228
    %1984 = vmatpush1.msra.mxu0 %v227
    %1985 = vmatprep.subr.mxu0 0.0
    %1986 = vmatpush2.msra.mxu0 0.0
    %1987 = vmatprep.subr.mxu0 0.0
    %1988 = vmatpush2.msra.mxu0 0.0
    %1989 = vmatprep.subr.mxu0 0.0
    %1990 = vmatpush2.msra.mxu0 0.0
    %1991 = vmatprep.subr.mxu0 0.0
    %1992 = vmatpush2.msra.mxu0 0.0
    %1993 = vmatprep.subr.mxu0 0.0
    %1994 = vmatpush2.msra.mxu0 0.0
    %1995 = vmatprep.subr.mxu0 0.0
    %1996 = vmatpush2.msra.mxu0 0.0
    %1997 = vmatprep.subr.mxu0 0.0
    %1998 = vmatpush2.msra.mxu0 0.0
    %1999 = vmatprep.subr.mxu0 0.0
    %2000 = vmatpush2.msra.mxu0 0.0
    %2001 = vmatprep.subr.mxu0 0.0
    %2002 = vmatpush2.msra.mxu0 0.0
    %2003 = vmatprep.subr.mxu0 0.0
    %2004 = vmatpush2.msra.mxu0 0.0
    %2005 = vmatprep.subr.mxu0 0.0
    %2006 = vmatpush2.msra.mxu0 0.0
    %2007 = vmatprep.subr.mxu0 0.0
    %2008 = vmatpush2.msra.mxu0 0.0
    %2009 = vmatprep.subr.mxu0 0.0
    %2010 = vmatpush2.msra.mxu0 0.0
    %2011 = vmatprep.subr.mxu0 0.0
    %2012 = vmatpush2.msra.mxu0 0.0
    %2013 = vmatprep.subr.mxu0 0.0
    %2014 = vmatpush2.msra.mxu0 0.0
    %2015 = vmatprep.subr.mxu0 0.0
    %2016 = vmatpush2.msra.mxu0 0.0
    %2017 = vmatprep.mubr.f32.mxu0 0.0
    %2018 = vmatmul.mubr.f32.gmra.mxu0 %v1620
    %v2019 = vpop.f32.mrf.mxu0
    %v2020 = vadd.f32 0.0, %v2019
    %v2021 = vpop.f32.mrf.mxu0
    %v2022 = vadd.f32 0.0, %v2021
    %2023 = vdwg.mxu0
    %2024 = vmatprep.subr.mxu0 %v290
    %2025 = vmatpush1.msra.mxu0 %v289
    %2026 = vmatprep.subr.mxu0 %v286
    %2027 = vmatpush1.msra.mxu0 %v285
    %2028 = vmatprep.subr.mxu0 %v282
    %2029 = vmatpush1.msra.mxu0 %v281
    %2030 = vmatprep.subr.mxu0 %v278
    %2031 = vmatpush1.msra.mxu0 %v277
    %2032 = vmatprep.subr.mxu0 %v274
    %2033 = vmatpush1.msra.mxu0 %v273
    %2034 = vmatprep.subr.mxu0 %v270
    %2035 = vmatpush1.msra.mxu0 %v269
    %2036 = vmatprep.subr.mxu0 %v266
    %2037 = vmatpush1.msra.mxu0 %v265
    %2038 = vmatprep.subr.mxu0 %v262
    %2039 = vmatpush1.msra.mxu0 %v261
    %2040 = vmatprep.subr.mxu0 %v258
    %2041 = vmatpush1.msra.mxu0 %v257
    %2042 = vmatprep.subr.mxu0 %v254
    %2043 = vmatpush1.msra.mxu0 %v253
    %2044 = vmatprep.subr.mxu0 %v250
    %2045 = vmatpush1.msra.mxu0 %v249
    %2046 = vmatprep.subr.mxu0 %v246
    %2047 = vmatpush1.msra.mxu0 %v245
    %2048 = vmatprep.subr.mxu0 %v242
    %2049 = vmatpush1.msra.mxu0 %v241
    %2050 = vmatprep.subr.mxu0 %v238
    %2051 = vmatpush1.msra.mxu0 %v237
    %2052 = vmatprep.subr.mxu0 %v234
    %2053 = vmatpush1.msra.mxu0 %v233
    %2054 = vmatprep.subr.mxu0 %v230
    %2055 = vmatpush1.msra.mxu0 %v229
    %2056 = vmatprep.subr.mxu0 0.0
    %2057 = vmatpush2.msra.mxu0 0.0
    %2058 = vmatprep.subr.mxu0 0.0
    %2059 = vmatpush2.msra.mxu0 0.0
    %2060 = vmatprep.subr.mxu0 0.0
    %2061 = vmatpush2.msra.mxu0 0.0
    %2062 = vmatprep.subr.mxu0 0.0
    %2063 = vmatpush2.msra.mxu0 0.0
    %2064 = vmatprep.subr.mxu0 0.0
    %2065 = vmatpush2.msra.mxu0 0.0
    %2066 = vmatprep.subr.mxu0 0.0
    %2067 = vmatpush2.msra.mxu0 0.0
    %2068 = vmatprep.subr.mxu0 0.0
    %2069 = vmatpush2.msra.mxu0 0.0
    %2070 = vmatprep.subr.mxu0 0.0
    %2071 = vmatpush2.msra.mxu0 0.0
    %2072 = vmatprep.subr.mxu0 0.0
    %2073 = vmatpush2.msra.mxu0 0.0
    %2074 = vmatprep.subr.mxu0 0.0
    %2075 = vmatpush2.msra.mxu0 0.0
    %2076 = vmatprep.subr.mxu0 0.0
    %2077 = vmatpush2.msra.mxu0 0.0
    %2078 = vmatprep.subr.mxu0 0.0
    %2079 = vmatpush2.msra.mxu0 0.0
    %2080 = vmatprep.subr.mxu0 0.0
    %2081 = vmatpush2.msra.mxu0 0.0
    %2082 = vmatprep.subr.mxu0 0.0
    %2083 = vmatpush2.msra.mxu0 0.0
    %2084 = vmatprep.subr.mxu0 0.0
    %2085 = vmatpush2.msra.mxu0 0.0
    %2086 = vmatprep.subr.mxu0 0.0
    %2087 = vmatpush2.msra.mxu0 0.0
    %2088 = vmatprep.mubr.f32.mxu0 0.0
    %2089 = vmatmul.mubr.f32.gmra.mxu0 %v1620
    %v2090 = vpop.f32.mrf.mxu0
    %v2091 = vadd.f32 0.0, %v2090
    %v2092 = vpop.f32.mrf.mxu0
    %v2093 = vadd.f32 0.0, %v2092
    %2094 = vdwg.mxu0
    %v2096 = vsel %vm455, %v1952, 0
    %2098 = vmatprep.subr.mxu0 0.0
    %2099 = vmatpush1.msra.mxu0 0.0
    %2100 = vmatprep.subr.mxu0 0.0
    %2101 = vmatpush1.msra.mxu0 0.0
    %2102 = vmatprep.subr.mxu0 0.0
    %2103 = vmatpush1.msra.mxu0 0.0
    %2104 = vmatprep.subr.mxu0 0.0
    %2105 = vmatpush1.msra.mxu0 0.0
    %2106 = vmatprep.subr.mxu0 0.0
    %2107 = vmatpush1.msra.mxu0 0.0
    %2108 = vmatprep.subr.mxu0 0.0
    %2109 = vmatpush1.msra.mxu0 0.0
    %2110 = vmatprep.subr.mxu0 0.0
    %2111 = vmatpush1.msra.mxu0 0.0
    %2112 = vmatprep.subr.mxu0 0.0
    %2113 = vmatpush1.msra.mxu0 0.0
    %2114 = vmatprep.subr.mxu0 0.0
    %2115 = vmatpush1.msra.mxu0 0.0
    %2116 = vmatprep.subr.mxu0 0.0
    %2117 = vmatpush1.msra.mxu0 0.0
    %2118 = vmatprep.subr.mxu0 0.0
    %2119 = vmatpush1.msra.mxu0 0.0
    %2120 = vmatprep.subr.mxu0 0.0
    %2121 = vmatpush1.msra.mxu0 0.0
    %2122 = vmatprep.subr.mxu0 %v224
    %2123 = vmatpush1.msra.mxu0 %v223
    %2124 = vmatprep.subr.mxu0 %v220
    %2125 = vmatpush1.msra.mxu0 %v219
    %2126 = vmatprep.subr.mxu0 %v216
    %2127 = vmatpush1.msra.mxu0 %v215
    %2128 = vmatprep.subr.mxu0 %v212
    %2129 = vmatpush1.msra.mxu0 %v211
    %2130 = vmatprep.subr.mxu0 0.0
    %2131 = vmatpush2.msra.mxu0 0.0
    %2132 = vmatprep.subr.mxu0 0.0
    %2133 = vmatpush2.msra.mxu0 0.0
    %2134 = vmatprep.subr.mxu0 0.0
    %2135 = vmatpush2.msra.mxu0 0.0
    %2136 = vmatprep.subr.mxu0 0.0
    %2137 = vmatpush2.msra.mxu0 0.0
    %2138 = vmatprep.subr.mxu0 0.0
    %2139 = vmatpush2.msra.mxu0 0.0
    %2140 = vmatprep.subr.mxu0 0.0
    %2141 = vmatpush2.msra.mxu0 0.0
    %2142 = vmatprep.subr.mxu0 0.0
    %2143 = vmatpush2.msra.mxu0 0.0
    %2144 = vmatprep.subr.mxu0 0.0
    %2145 = vmatpush2.msra.mxu0 0.0
    %2146 = vmatprep.subr.mxu0 0.0
    %2147 = vmatpush2.msra.mxu0 0.0
    %2148 = vmatprep.subr.mxu0 0.0
    %2149 = vmatpush2.msra.mxu0 0.0
    %2150 = vmatprep.subr.mxu0 0.0
    %2151 = vmatpush2.msra.mxu0 0.0
    %2152 = vmatprep.subr.mxu0 0.0
    %2153 = vmatpush2.msra.mxu0 0.0
    %2154 = vmatprep.subr.mxu0 0.0
    %2155 = vmatpush2.msra.mxu0 0.0
    %2156 = vmatprep.subr.mxu0 0.0
    %2157 = vmatpush2.msra.mxu0 0.0
    %2158 = vmatprep.subr.mxu0 0.0
    %2159 = vmatpush2.msra.mxu0 0.0
    %2160 = vmatprep.subr.mxu0 0.0
    %2161 = vmatpush2.msra.mxu0 0.0
    %2162 = vmatprep.mubr.f32.mxu0 0.0
    %2163 = vmatmul.mubr.f32.gmra.mxu0 %v2096
    %v2164 = vpop.f32.mrf.mxu0
    %v2165 = vadd.f32 %v2020, %v2164
    %v2166 = vpop.f32.mrf.mxu0
    %v2167 = vadd.f32 %v2022, %v2166
    %2168 = vdwg.mxu0
    %2169 = vmatprep.subr.mxu0 0.0
    %2170 = vmatpush1.msra.mxu0 0.0
    %2171 = vmatprep.subr.mxu0 0.0
    %2172 = vmatpush1.msra.mxu0 0.0
    %2173 = vmatprep.subr.mxu0 0.0
    %2174 = vmatpush1.msra.mxu0 0.0
    %2175 = vmatprep.subr.mxu0 0.0
    %2176 = vmatpush1.msra.mxu0 0.0
    %2177 = vmatprep.subr.mxu0 0.0
    %2178 = vmatpush1.msra.mxu0 0.0
    %2179 = vmatprep.subr.mxu0 0.0
    %2180 = vmatpush1.msra.mxu0 0.0
    %2181 = vmatprep.subr.mxu0 0.0
    %2182 = vmatpush1.msra.mxu0 0.0
    %2183 = vmatprep.subr.mxu0 0.0
    %2184 = vmatpush1.msra.mxu0 0.0
    %2185 = vmatprep.subr.mxu0 0.0
    %2186 = vmatpush1.msra.mxu0 0.0
    %2187 = vmatprep.subr.mxu0 0.0
    %2188 = vmatpush1.msra.mxu0 0.0
    %2189 = vmatprep.subr.mxu0 0.0
    %2190 = vmatpush1.msra.mxu0 0.0
    %2191 = vmatprep.subr.mxu0 0.0
    %2192 = vmatpush1.msra.mxu0 0.0
    %2193 = vmatprep.subr.mxu0 %v226
    %2194 = vmatpush1.msra.mxu0 %v225
    %2195 = vmatprep.subr.mxu0 %v222
    %2196 = vmatpush1.msra.mxu0 %v221
    %2197 = vmatprep.subr.mxu0 %v218
    %2198 = vmatpush1.msra.mxu0 %v217
    %2199 = vmatprep.subr.mxu0 %v214
    %2200 = vmatpush1.msra.mxu0 %v213
    %2201 = vmatprep.subr.mxu0 0.0
    %2202 = vmatpush2.msra.mxu0 0.0
    %2203 = vmatprep.subr.mxu0 0.0
    %2204 = vmatpush2.msra.mxu0 0.0
    %2205 = vmatprep.subr.mxu0 0.0
    %2206 = vmatpush2.msra.mxu0 0.0
    %2207 = vmatprep.subr.mxu0 0.0
    %2208 = vmatpush2.msra.mxu0 0.0
    %2209 = vmatprep.subr.mxu0 0.0
    %2210 = vmatpush2.msra.mxu0 0.0
    %2211 = vmatprep.subr.mxu0 0.0
    %2212 = vmatpush2.msra.mxu0 0.0
    %2213 = vmatprep.subr.mxu0 0.0
    %2214 = vmatpush2.msra.mxu0 0.0
    %2215 = vmatprep.subr.mxu0 0.0
    %2216 = vmatpush2.msra.mxu0 0.0
    %2217 = vmatprep.subr.mxu0 0.0
    %2218 = vmatpush2.msra.mxu0 0.0
    %2219 = vmatprep.subr.mxu0 0.0
    %2220 = vmatpush2.msra.mxu0 0.0
    %2221 = vmatprep.subr.mxu0 0.0
    %2222 = vmatpush2.msra.mxu0 0.0
    %2223 = vmatprep.subr.mxu0 0.0
    %2224 = vmatpush2.msra.mxu0 0.0
    %2225 = vmatprep.subr.mxu0 0.0
    %2226 = vmatpush2.msra.mxu0 0.0
    %2227 = vmatprep.subr.mxu0 0.0
    %2228 = vmatpush2.msra.mxu0 0.0
    %2229 = vmatprep.subr.mxu0 0.0
    %2230 = vmatpush2.msra.mxu0 0.0
    %2231 = vmatprep.subr.mxu0 0.0
    %2232 = vmatpush2.msra.mxu0 0.0
    %2233 = vmatprep.mubr.f32.mxu0 0.0
    %2234 = vmatmul.mubr.f32.gmra.mxu0 %v2096
    %v2235 = vpop.f32.mrf.mxu0
    %v2236 = vadd.f32 %v2091, %v2235
    %v2237 = vpop.f32.mrf.mxu0
    %v2238 = vadd.f32 %v2093, %v2237
    %2239 = vdwg.mxu0
    %v2240 = vadd.f32 %v2165, %v939
    %v2241 = vadd.f32 %v2167, %v943
    %v2242 = vadd.f32 %v2236, %v947
    %v2243 = vadd.f32 %v2238, %v951
    %v2244 = vmul.f32 %v2240, 0.5
    %v2245 = vtanh.pop %v2244
    %v2246 = vmul.f32 %v2245, 0.5
    %v2247 = vadd.f32 %v2246, 0.5
    %v2248 = vmul.f32 %v2241, 0.5
    %v2249 = vtanh.pop %v2248
    %v2250 = vmul.f32 %v2249, 0.5
    %v2251 = vadd.f32 %v2250, 0.5
    %v2252 = vtanh.pop %v2242
    %v2253 = vmul.f32 %v2243, 0.5
    %v2254 = vtanh.pop %v2253
    %v2255 = vmul.f32 %v2254, 0.5
    %v2256 = vadd.f32 %v2255, 0.5
    %v2257 = vmul.f32 %v2251, %v1621
    %v2258 = vmul.f32 %v2247, %v2252
    %v2259 = vadd.f32 %v2257, %v2258
    %v2260 = vtanh.pop %v2259
    %v2261 = vmul.f32 %v2256, %v2260
    %v2262 = vsel %vm1637, %v2261, %v1620
    %v2263 = vsel %vm1637, %v2259, %v1621
    %s2264 = sadd.s32 %s296, 3
    %s2265 = ssub.s32 4, %s296
    %v2266 = vstv %s2264
    %vm2267 = vcmp.lt.s32.totalorder %v2266, %v129
    %v2268 = vsel %vm2267, 1, 0
    %2269 = vset.pattern.permute.xlu0 0
    %2270 = vperm.xlu0 %2269, %v2268
    %v2271 = vpop.permute.xlu0 %2270
    %vm2272 = vcmp.eq.s32.totalorder %v2271, 1
    %v2273 = vstv %s2265
    %vm2274 = vcmp.lt.s32.totalorder %v2273, %v129
    %v2275 = vsel %vm2274, 1, 0
    %2276 = vset.pattern.permute.xlu0 0
    %2277 = vperm.xlu0 %2276, %v2275
    %v2278 = vpop.permute.xlu0 %2277
    %vm2279 = vcmp.eq.s32.totalorder %v2278, 1
    %s2280 = scalar_lea.vmem [#allocation6], 24
    %v2281 = vld [vmem:[%s2280] sm:$0xff]
    %2282 = vmatprep.subr.mxu0 %v207
    %2283 = vmatpush1.msra.mxu0 %v206
    %2284 = vmatprep.subr.mxu0 %v203
    %2285 = vmatpush1.msra.mxu0 %v202
    %2286 = vmatprep.subr.mxu0 %v199
    %2287 = vmatpush1.msra.mxu0 %v198
    %2288 = vmatprep.subr.mxu0 %v195
    %2289 = vmatpush1.msra.mxu0 %v194
    %2290 = vmatprep.subr.mxu0 %v191
    %2291 = vmatpush1.msra.mxu0 %v190
    %2292 = vmatprep.subr.mxu0 %v187
    %2293 = vmatpush1.msra.mxu0 %v186
    %2294 = vmatprep.subr.mxu0 %v183
    %2295 = vmatpush1.msra.mxu0 %v182
    %2296 = vmatprep.subr.mxu0 %v179
    %2297 = vmatpush1.msra.mxu0 %v178
    %2298 = vmatprep.subr.mxu0 %v175
    %2299 = vmatpush1.msra.mxu0 %v174
    %2300 = vmatprep.subr.mxu0 %v171
    %2301 = vmatpush1.msra.mxu0 %v170
    %2302 = vmatprep.subr.mxu0 %v167
    %2303 = vmatpush1.msra.mxu0 %v166
    %2304 = vmatprep.subr.mxu0 %v163
    %2305 = vmatpush1.msra.mxu0 %v162
    %2306 = vmatprep.subr.mxu0 %v159
    %2307 = vmatpush1.msra.mxu0 %v158
    %2308 = vmatprep.subr.mxu0 %v155
    %2309 = vmatpush1.msra.mxu0 %v154
    %2310 = vmatprep.subr.mxu0 %v151
    %2311 = vmatpush1.msra.mxu0 %v150
    %2312 = vmatprep.subr.mxu0 %v147
    %2313 = vmatpush1.msra.mxu0 %v146
    %2314 = vmatprep.subr.mxu0 0.0
    %2315 = vmatpush2.msra.mxu0 0.0
    %2316 = vmatprep.subr.mxu0 0.0
    %2317 = vmatpush2.msra.mxu0 0.0
    %2318 = vmatprep.subr.mxu0 0.0
    %2319 = vmatpush2.msra.mxu0 0.0
    %2320 = vmatprep.subr.mxu0 0.0
    %2321 = vmatpush2.msra.mxu0 0.0
    %2322 = vmatprep.subr.mxu0 0.0
    %2323 = vmatpush2.msra.mxu0 0.0
    %2324 = vmatprep.subr.mxu0 0.0
    %2325 = vmatpush2.msra.mxu0 0.0
    %2326 = vmatprep.subr.mxu0 0.0
    %2327 = vmatpush2.msra.mxu0 0.0
    %2328 = vmatprep.subr.mxu0 0.0
    %2329 = vmatpush2.msra.mxu0 0.0
    %2330 = vmatprep.subr.mxu0 0.0
    %2331 = vmatpush2.msra.mxu0 0.0
    %2332 = vmatprep.subr.mxu0 0.0
    %2333 = vmatpush2.msra.mxu0 0.0
    %2334 = vmatprep.subr.mxu0 0.0
    %2335 = vmatpush2.msra.mxu0 0.0
    %2336 = vmatprep.subr.mxu0 0.0
    %2337 = vmatpush2.msra.mxu0 0.0
    %2338 = vmatprep.subr.mxu0 0.0
    %2339 = vmatpush2.msra.mxu0 0.0
    %2340 = vmatprep.subr.mxu0 0.0
    %2341 = vmatpush2.msra.mxu0 0.0
    %2342 = vmatprep.subr.mxu0 0.0
    %2343 = vmatpush2.msra.mxu0 0.0
    %2344 = vmatprep.subr.mxu0 0.0
    %2345 = vmatpush2.msra.mxu0 0.0
    %2346 = vmatprep.mubr.f32.mxu0 0.0
    %2347 = vmatmul.mubr.f32.gmra.mxu0 %v1949
    %v2348 = vpop.f32.mrf.mxu0
    %v2349 = vadd.f32 0.0, %v2348
    %v2350 = vpop.f32.mrf.mxu0
    %v2351 = vadd.f32 0.0, %v2350
    %2352 = vdwg.mxu0
    %2353 = vmatprep.subr.mxu0 %v209
    %2354 = vmatpush1.msra.mxu0 %v208
    %2355 = vmatprep.subr.mxu0 %v205
    %2356 = vmatpush1.msra.mxu0 %v204
    %2357 = vmatprep.subr.mxu0 %v201
    %2358 = vmatpush1.msra.mxu0 %v200
    %2359 = vmatprep.subr.mxu0 %v197
    %2360 = vmatpush1.msra.mxu0 %v196
    %2361 = vmatprep.subr.mxu0 %v193
    %2362 = vmatpush1.msra.mxu0 %v192
    %2363 = vmatprep.subr.mxu0 %v189
    %2364 = vmatpush1.msra.mxu0 %v188
    %2365 = vmatprep.subr.mxu0 %v185
    %2366 = vmatpush1.msra.mxu0 %v184
    %2367 = vmatprep.subr.mxu0 %v181
    %2368 = vmatpush1.msra.mxu0 %v180
    %2369 = vmatprep.subr.mxu0 %v177
    %2370 = vmatpush1.msra.mxu0 %v176
    %2371 = vmatprep.subr.mxu0 %v173
    %2372 = vmatpush1.msra.mxu0 %v172
    %2373 = vmatprep.subr.mxu0 %v169
    %2374 = vmatpush1.msra.mxu0 %v168
    %2375 = vmatprep.subr.mxu0 %v165
    %2376 = vmatpush1.msra.mxu0 %v164
    %2377 = vmatprep.subr.mxu0 %v161
    %2378 = vmatpush1.msra.mxu0 %v160
    %2379 = vmatprep.subr.mxu0 %v157
    %2380 = vmatpush1.msra.mxu0 %v156
    %2381 = vmatprep.subr.mxu0 %v153
    %2382 = vmatpush1.msra.mxu0 %v152
    %2383 = vmatprep.subr.mxu0 %v149
    %2384 = vmatpush1.msra.mxu0 %v148
    %2385 = vmatprep.subr.mxu0 0.0
    %2386 = vmatpush2.msra.mxu0 0.0
    %2387 = vmatprep.subr.mxu0 0.0
    %2388 = vmatpush2.msra.mxu0 0.0
    %2389 = vmatprep.subr.mxu0 0.0
    %2390 = vmatpush2.msra.mxu0 0.0
    %2391 = vmatprep.subr.mxu0 0.0
    %2392 = vmatpush2.msra.mxu0 0.0
    %2393 = vmatprep.subr.mxu0 0.0
    %2394 = vmatpush2.msra.mxu0 0.0
    %2395 = vmatprep.subr.mxu0 0.0
    %2396 = vmatpush2.msra.mxu0 0.0
    %2397 = vmatprep.subr.mxu0 0.0
    %2398 = vmatpush2.msra.mxu0 0.0
    %2399 = vmatprep.subr.mxu0 0.0
    %2400 = vmatpush2.msra.mxu0 0.0
    %2401 = vmatprep.subr.mxu0 0.0
    %2402 = vmatpush2.msra.mxu0 0.0
    %2403 = vmatprep.subr.mxu0 0.0
    %2404 = vmatpush2.msra.mxu0 0.0
    %2405 = vmatprep.subr.mxu0 0.0
    %2406 = vmatpush2.msra.mxu0 0.0
    %2407 = vmatprep.subr.mxu0 0.0
    %2408 = vmatpush2.msra.mxu0 0.0
    %2409 = vmatprep.subr.mxu0 0.0
    %2410 = vmatpush2.msra.mxu0 0.0
    %2411 = vmatprep.subr.mxu0 0.0
    %2412 = vmatpush2.msra.mxu0 0.0
    %2413 = vmatprep.subr.mxu0 0.0
    %2414 = vmatpush2.msra.mxu0 0.0
    %2415 = vmatprep.subr.mxu0 0.0
    %2416 = vmatpush2.msra.mxu0 0.0
    %2417 = vmatprep.mubr.f32.mxu0 0.0
    %2418 = vmatmul.mubr.f32.gmra.mxu0 %v1949
    %v2419 = vpop.f32.mrf.mxu0
    %v2420 = vadd.f32 0.0, %v2419
    %v2421 = vpop.f32.mrf.mxu0
    %v2422 = vadd.f32 0.0, %v2421
    %2423 = vdwg.mxu0
    %v2425 = vsel %vm455, %v2281, 0
    %2427 = vmatprep.subr.mxu0 0.0
    %2428 = vmatpush1.msra.mxu0 0.0
    %2429 = vmatprep.subr.mxu0 0.0
    %2430 = vmatpush1.msra.mxu0 0.0
    %2431 = vmatprep.subr.mxu0 0.0
    %2432 = vmatpush1.msra.mxu0 0.0
    %2433 = vmatprep.subr.mxu0 0.0
    %2434 = vmatpush1.msra.mxu0 0.0
    %2435 = vmatprep.subr.mxu0 0.0
    %2436 = vmatpush1.msra.mxu0 0.0
    %2437 = vmatprep.subr.mxu0 0.0
    %2438 = vmatpush1.msra.mxu0 0.0
    %2439 = vmatprep.subr.mxu0 0.0
    %2440 = vmatpush1.msra.mxu0 0.0
    %2441 = vmatprep.subr.mxu0 0.0
    %2442 = vmatpush1.msra.mxu0 0.0
    %2443 = vmatprep.subr.mxu0 0.0
    %2444 = vmatpush1.msra.mxu0 0.0
    %2445 = vmatprep.subr.mxu0 0.0
    %2446 = vmatpush1.msra.mxu0 0.0
    %2447 = vmatprep.subr.mxu0 0.0
    %2448 = vmatpush1.msra.mxu0 0.0
    %2449 = vmatprep.subr.mxu0 0.0
    %2450 = vmatpush1.msra.mxu0 0.0
    %2451 = vmatprep.subr.mxu0 %v143
    %2452 = vmatpush1.msra.mxu0 %v142
    %2453 = vmatprep.subr.mxu0 %v139
    %2454 = vmatpush1.msra.mxu0 %v138
    %2455 = vmatprep.subr.mxu0 %v135
    %2456 = vmatpush1.msra.mxu0 %v134
    %2457 = vmatprep.subr.mxu0 %v131
    %2458 = vmatpush1.msra.mxu0 %v130
    %2459 = vmatprep.subr.mxu0 0.0
    %2460 = vmatpush2.msra.mxu0 0.0
    %2461 = vmatprep.subr.mxu0 0.0
    %2462 = vmatpush2.msra.mxu0 0.0
    %2463 = vmatprep.subr.mxu0 0.0
    %2464 = vmatpush2.msra.mxu0 0.0
    %2465 = vmatprep.subr.mxu0 0.0
    %2466 = vmatpush2.msra.mxu0 0.0
    %2467 = vmatprep.subr.mxu0 0.0
    %2468 = vmatpush2.msra.mxu0 0.0
    %2469 = vmatprep.subr.mxu0 0.0
    %2470 = vmatpush2.msra.mxu0 0.0
    %2471 = vmatprep.subr.mxu0 0.0
    %2472 = vmatpush2.msra.mxu0 0.0
    %2473 = vmatprep.subr.mxu0 0.0
    %2474 = vmatpush2.msra.mxu0 0.0
    %2475 = vmatprep.subr.mxu0 0.0
    %2476 = vmatpush2.msra.mxu0 0.0
    %2477 = vmatprep.subr.mxu0 0.0
    %2478 = vmatpush2.msra.mxu0 0.0
    %2479 = vmatprep.subr.mxu0 0.0
    %2480 = vmatpush2.msra.mxu0 0.0
    %2481 = vmatprep.subr.mxu0 0.0
    %2482 = vmatpush2.msra.mxu0 0.0
    %2483 = vmatprep.subr.mxu0 0.0
    %2484 = vmatpush2.msra.mxu0 0.0
    %2485 = vmatprep.subr.mxu0 0.0
    %2486 = vmatpush2.msra.mxu0 0.0
    %2487 = vmatprep.subr.mxu0 0.0
    %2488 = vmatpush2.msra.mxu0 0.0
    %2489 = vmatprep.subr.mxu0 0.0
    %2490 = vmatpush2.msra.mxu0 0.0
    %2491 = vmatprep.mubr.f32.mxu0 0.0
    %2492 = vmatmul.mubr.f32.gmra.mxu0 %v2425
    %v2493 = vpop.f32.mrf.mxu0
    %v2494 = vadd.f32 %v2349, %v2493
    %v2495 = vpop.f32.mrf.mxu0
    %v2496 = vadd.f32 %v2351, %v2495
    %2497 = vdwg.mxu0
    %2498 = vmatprep.subr.mxu0 0.0
    %2499 = vmatpush1.msra.mxu0 0.0
    %2500 = vmatprep.subr.mxu0 0.0
    %2501 = vmatpush1.msra.mxu0 0.0
    %2502 = vmatprep.subr.mxu0 0.0
    %2503 = vmatpush1.msra.mxu0 0.0
    %2504 = vmatprep.subr.mxu0 0.0
    %2505 = vmatpush1.msra.mxu0 0.0
    %2506 = vmatprep.subr.mxu0 0.0
    %2507 = vmatpush1.msra.mxu0 0.0
    %2508 = vmatprep.subr.mxu0 0.0
    %2509 = vmatpush1.msra.mxu0 0.0
    %2510 = vmatprep.subr.mxu0 0.0
    %2511 = vmatpush1.msra.mxu0 0.0
    %2512 = vmatprep.subr.mxu0 0.0
    %2513 = vmatpush1.msra.mxu0 0.0
    %2514 = vmatprep.subr.mxu0 0.0
    %2515 = vmatpush1.msra.mxu0 0.0
    %2516 = vmatprep.subr.mxu0 0.0
    %2517 = vmatpush1.msra.mxu0 0.0
    %2518 = vmatprep.subr.mxu0 0.0
    %2519 = vmatpush1.msra.mxu0 0.0
    %2520 = vmatprep.subr.mxu0 0.0
    %2521 = vmatpush1.msra.mxu0 0.0
    %2522 = vmatprep.subr.mxu0 %v145
    %2523 = vmatpush1.msra.mxu0 %v144
    %2524 = vmatprep.subr.mxu0 %v141
    %2525 = vmatpush1.msra.mxu0 %v140
    %2526 = vmatprep.subr.mxu0 %v137
    %2527 = vmatpush1.msra.mxu0 %v136
    %2528 = vmatprep.subr.mxu0 %v133
    %2529 = vmatpush1.msra.mxu0 %v132
    %2530 = vmatprep.subr.mxu0 0.0
    %2531 = vmatpush2.msra.mxu0 0.0
    %2532 = vmatprep.subr.mxu0 0.0
    %2533 = vmatpush2.msra.mxu0 0.0
    %2534 = vmatprep.subr.mxu0 0.0
    %2535 = vmatpush2.msra.mxu0 0.0
    %2536 = vmatprep.subr.mxu0 0.0
    %2537 = vmatpush2.msra.mxu0 0.0
    %2538 = vmatprep.subr.mxu0 0.0
    %2539 = vmatpush2.msra.mxu0 0.0
    %2540 = vmatprep.subr.mxu0 0.0
    %2541 = vmatpush2.msra.mxu0 0.0
    %2542 = vmatprep.subr.mxu0 0.0
    %2543 = vmatpush2.msra.mxu0 0.0
    %2544 = vmatprep.subr.mxu0 0.0
    %2545 = vmatpush2.msra.mxu0 0.0
    %2546 = vmatprep.subr.mxu0 0.0
    %2547 = vmatpush2.msra.mxu0 0.0
    %2548 = vmatprep.subr.mxu0 0.0
    %2549 = vmatpush2.msra.mxu0 0.0
    %2550 = vmatprep.subr.mxu0 0.0
    %2551 = vmatpush2.msra.mxu0 0.0
    %2552 = vmatprep.subr.mxu0 0.0
    %2553 = vmatpush2.msra.mxu0 0.0
    %2554 = vmatprep.subr.mxu0 0.0
    %2555 = vmatpush2.msra.mxu0 0.0
    %2556 = vmatprep.subr.mxu0 0.0
    %2557 = vmatpush2.msra.mxu0 0.0
    %2558 = vmatprep.subr.mxu0 0.0
    %2559 = vmatpush2.msra.mxu0 0.0
    %2560 = vmatprep.subr.mxu0 0.0
    %2561 = vmatpush2.msra.mxu0 0.0
    %2562 = vmatprep.mubr.f32.mxu0 0.0
    %2563 = vmatmul.mubr.f32.gmra.mxu0 %v2425
    %v2564 = vpop.f32.mrf.mxu0
    %v2565 = vadd.f32 %v2420, %v2564
    %v2566 = vpop.f32.mrf.mxu0
    %v2567 = vadd.f32 %v2422, %v2566
    %2568 = vdwg.mxu0
    %v2569 = vadd.f32 %v2494, %v605
    %v2570 = vadd.f32 %v2496, %v609
    %v2571 = vadd.f32 %v2565, %v613
    %v2572 = vadd.f32 %v2567, %v617
    %v2573 = vmul.f32 %v2569, 0.5
    %v2574 = vtanh.pop %v2573
    %v2575 = vmul.f32 %v2574, 0.5
    %v2576 = vadd.f32 %v2575, 0.5
    %v2577 = vmul.f32 %v2570, 0.5
    %v2578 = vtanh.pop %v2577
    %v2579 = vmul.f32 %v2578, 0.5
    %v2580 = vadd.f32 %v2579, 0.5
    %v2581 = vtanh.pop %v2571
    %v2582 = vmul.f32 %v2572, 0.5
    %v2583 = vtanh.pop %v2582
    %v2584 = vmul.f32 %v2583, 0.5
    %v2585 = vadd.f32 %v2584, 0.5
    %v2586 = vmul.f32 %v2580, %v1950
    %v2587 = vmul.f32 %v2576, %v2581
    %v2588 = vadd.f32 %v2586, %v2587
    %v2589 = vtanh.pop %v2588
    %v2590 = vmul.f32 %v2585, %v2589
    %v2591 = vsel %vm2272, %v2590, %v1949
    %v2592 = vsel %vm2272, %v2588, %v1950
    %s2593 = scalar_lea.vmem [#allocation9], 32
    %v2594 = vld [vmem:[%s2593] sm:$0xff]
    %2595 = vmatprep.subr.mxu0 %v288
    %2596 = vmatpush1.msra.mxu0 %v287
    %2597 = vmatprep.subr.mxu0 %v284
    %2598 = vmatpush1.msra.mxu0 %v283
    %2599 = vmatprep.subr.mxu0 %v280
    %2600 = vmatpush1.msra.mxu0 %v279
    %2601 = vmatprep.subr.mxu0 %v276
    %2602 = vmatpush1.msra.mxu0 %v275
    %2603 = vmatprep.subr.mxu0 %v272
    %2604 = vmatpush1.msra.mxu0 %v271
    %2605 = vmatprep.subr.mxu0 %v268
    %2606 = vmatpush1.msra.mxu0 %v267
    %2607 = vmatprep.subr.mxu0 %v264
    %2608 = vmatpush1.msra.mxu0 %v263
    %2609 = vmatprep.subr.mxu0 %v260
    %2610 = vmatpush1.msra.mxu0 %v259
    %2611 = vmatprep.subr.mxu0 %v256
    %2612 = vmatpush1.msra.mxu0 %v255
    %2613 = vmatprep.subr.mxu0 %v252
    %2614 = vmatpush1.msra.mxu0 %v251
    %2615 = vmatprep.subr.mxu0 %v248
    %2616 = vmatpush1.msra.mxu0 %v247
    %2617 = vmatprep.subr.mxu0 %v244
    %2618 = vmatpush1.msra.mxu0 %v243
    %2619 = vmatprep.subr.mxu0 %v240
    %2620 = vmatpush1.msra.mxu0 %v239
    %2621 = vmatprep.subr.mxu0 %v236
    %2622 = vmatpush1.msra.mxu0 %v235
    %2623 = vmatprep.subr.mxu0 %v232
    %2624 = vmatpush1.msra.mxu0 %v231
    %2625 = vmatprep.subr.mxu0 %v228
    %2626 = vmatpush1.msra.mxu0 %v227
    %2627 = vmatprep.subr.mxu0 0.0
    %2628 = vmatpush2.msra.mxu0 0.0
    %2629 = vmatprep.subr.mxu0 0.0
    %2630 = vmatpush2.msra.mxu0 0.0
    %2631 = vmatprep.subr.mxu0 0.0
    %2632 = vmatpush2.msra.mxu0 0.0
    %2633 = vmatprep.subr.mxu0 0.0
    %2634 = vmatpush2.msra.mxu0 0.0
    %2635 = vmatprep.subr.mxu0 0.0
    %2636 = vmatpush2.msra.mxu0 0.0
    %2637 = vmatprep.subr.mxu0 0.0
    %2638 = vmatpush2.msra.mxu0 0.0
    %2639 = vmatprep.subr.mxu0 0.0
    %2640 = vmatpush2.msra.mxu0 0.0
    %2641 = vmatprep.subr.mxu0 0.0
    %2642 = vmatpush2.msra.mxu0 0.0
    %2643 = vmatprep.subr.mxu0 0.0
    %2644 = vmatpush2.msra.mxu0 0.0
    %2645 = vmatprep.subr.mxu0 0.0
    %2646 = vmatpush2.msra.mxu0 0.0
    %2647 = vmatprep.subr.mxu0 0.0
    %2648 = vmatpush2.msra.mxu0 0.0
    %2649 = vmatprep.subr.mxu0 0.0
    %2650 = vmatpush2.msra.mxu0 0.0
    %2651 = vmatprep.subr.mxu0 0.0
    %2652 = vmatpush2.msra.mxu0 0.0
    %2653 = vmatprep.subr.mxu0 0.0
    %2654 = vmatpush2.msra.mxu0 0.0
    %2655 = vmatprep.subr.mxu0 0.0
    %2656 = vmatpush2.msra.mxu0 0.0
    %2657 = vmatprep.subr.mxu0 0.0
    %2658 = vmatpush2.msra.mxu0 0.0
    %2659 = vmatprep.mubr.f32.mxu0 0.0
    %2660 = vmatmul.mubr.f32.gmra.mxu0 %v2262
    %v2661 = vpop.f32.mrf.mxu0
    %v2662 = vadd.f32 0.0, %v2661
    %v2663 = vpop.f32.mrf.mxu0
    %v2664 = vadd.f32 0.0, %v2663
    %2665 = vdwg.mxu0
    %2666 = vmatprep.subr.mxu0 %v290
    %2667 = vmatpush1.msra.mxu0 %v289
    %2668 = vmatprep.subr.mxu0 %v286
    %2669 = vmatpush1.msra.mxu0 %v285
    %2670 = vmatprep.subr.mxu0 %v282
    %2671 = vmatpush1.msra.mxu0 %v281
    %2672 = vmatprep.subr.mxu0 %v278
    %2673 = vmatpush1.msra.mxu0 %v277
    %2674 = vmatprep.subr.mxu0 %v274
    %2675 = vmatpush1.msra.mxu0 %v273
    %2676 = vmatprep.subr.mxu0 %v270
    %2677 = vmatpush1.msra.mxu0 %v269
    %2678 = vmatprep.subr.mxu0 %v266
    %2679 = vmatpush1.msra.mxu0 %v265
    %2680 = vmatprep.subr.mxu0 %v262
    %2681 = vmatpush1.msra.mxu0 %v261
    %2682 = vmatprep.subr.mxu0 %v258
    %2683 = vmatpush1.msra.mxu0 %v257
    %2684 = vmatprep.subr.mxu0 %v254
    %2685 = vmatpush1.msra.mxu0 %v253
    %2686 = vmatprep.subr.mxu0 %v250
    %2687 = vmatpush1.msra.mxu0 %v249
    %2688 = vmatprep.subr.mxu0 %v246
    %2689 = vmatpush1.msra.mxu0 %v245
    %2690 = vmatprep.subr.mxu0 %v242
    %2691 = vmatpush1.msra.mxu0 %v241
    %2692 = vmatprep.subr.mxu0 %v238
    %2693 = vmatpush1.msra.mxu0 %v237
    %2694 = vmatprep.subr.mxu0 %v234
    %2695 = vmatpush1.msra.mxu0 %v233
    %2696 = vmatprep.subr.mxu0 %v230
    %2697 = vmatpush1.msra.mxu0 %v229
    %2698 = vmatprep.subr.mxu0 0.0
    %2699 = vmatpush2.msra.mxu0 0.0
    %2700 = vmatprep.subr.mxu0 0.0
    %2701 = vmatpush2.msra.mxu0 0.0
    %2702 = vmatprep.subr.mxu0 0.0
    %2703 = vmatpush2.msra.mxu0 0.0
    %2704 = vmatprep.subr.mxu0 0.0
    %2705 = vmatpush2.msra.mxu0 0.0
    %2706 = vmatprep.subr.mxu0 0.0
    %2707 = vmatpush2.msra.mxu0 0.0
    %2708 = vmatprep.subr.mxu0 0.0
    %2709 = vmatpush2.msra.mxu0 0.0
    %2710 = vmatprep.subr.mxu0 0.0
    %2711 = vmatpush2.msra.mxu0 0.0
    %2712 = vmatprep.subr.mxu0 0.0
    %2713 = vmatpush2.msra.mxu0 0.0
    %2714 = vmatprep.subr.mxu0 0.0
    %2715 = vmatpush2.msra.mxu0 0.0
    %2716 = vmatprep.subr.mxu0 0.0
    %2717 = vmatpush2.msra.mxu0 0.0
    %2718 = vmatprep.subr.mxu0 0.0
    %2719 = vmatpush2.msra.mxu0 0.0
    %2720 = vmatprep.subr.mxu0 0.0
    %2721 = vmatpush2.msra.mxu0 0.0
    %2722 = vmatprep.subr.mxu0 0.0
    %2723 = vmatpush2.msra.mxu0 0.0
    %2724 = vmatprep.subr.mxu0 0.0
    %2725 = vmatpush2.msra.mxu0 0.0
    %2726 = vmatprep.subr.mxu0 0.0
    %2727 = vmatpush2.msra.mxu0 0.0
    %2728 = vmatprep.subr.mxu0 0.0
    %2729 = vmatpush2.msra.mxu0 0.0
    %2730 = vmatprep.mubr.f32.mxu0 0.0
    %2731 = vmatmul.mubr.f32.gmra.mxu0 %v2262
    %v2732 = vpop.f32.mrf.mxu0
    %v2733 = vadd.f32 0.0, %v2732
    %v2734 = vpop.f32.mrf.mxu0
    %v2735 = vadd.f32 0.0, %v2734
    %2736 = vdwg.mxu0
    %v2738 = vsel %vm455, %v2594, 0
    %2740 = vmatprep.subr.mxu0 0.0
    %2741 = vmatpush1.msra.mxu0 0.0
    %2742 = vmatprep.subr.mxu0 0.0
    %2743 = vmatpush1.msra.mxu0 0.0
    %2744 = vmatprep.subr.mxu0 0.0
    %2745 = vmatpush1.msra.mxu0 0.0
    %2746 = vmatprep.subr.mxu0 0.0
    %2747 = vmatpush1.msra.mxu0 0.0
    %2748 = vmatprep.subr.mxu0 0.0
    %2749 = vmatpush1.msra.mxu0 0.0
    %2750 = vmatprep.subr.mxu0 0.0
    %2751 = vmatpush1.msra.mxu0 0.0
    %2752 = vmatprep.subr.mxu0 0.0
    %2753 = vmatpush1.msra.mxu0 0.0
    %2754 = vmatprep.subr.mxu0 0.0
    %2755 = vmatpush1.msra.mxu0 0.0
    %2756 = vmatprep.subr.mxu0 0.0
    %2757 = vmatpush1.msra.mxu0 0.0
    %2758 = vmatprep.subr.mxu0 0.0
    %2759 = vmatpush1.msra.mxu0 0.0
    %2760 = vmatprep.subr.mxu0 0.0
    %2761 = vmatpush1.msra.mxu0 0.0
    %2762 = vmatprep.subr.mxu0 0.0
    %2763 = vmatpush1.msra.mxu0 0.0
    %2764 = vmatprep.subr.mxu0 %v224
    %2765 = vmatpush1.msra.mxu0 %v223
    %2766 = vmatprep.subr.mxu0 %v220
    %2767 = vmatpush1.msra.mxu0 %v219
    %2768 = vmatprep.subr.mxu0 %v216
    %2769 = vmatpush1.msra.mxu0 %v215
    %2770 = vmatprep.subr.mxu0 %v212
    %2771 = vmatpush1.msra.mxu0 %v211
    %2772 = vmatprep.subr.mxu0 0.0
    %2773 = vmatpush2.msra.mxu0 0.0
    %2774 = vmatprep.subr.mxu0 0.0
    %2775 = vmatpush2.msra.mxu0 0.0
    %2776 = vmatprep.subr.mxu0 0.0
    %2777 = vmatpush2.msra.mxu0 0.0
    %2778 = vmatprep.subr.mxu0 0.0
    %2779 = vmatpush2.msra.mxu0 0.0
    %2780 = vmatprep.subr.mxu0 0.0
    %2781 = vmatpush2.msra.mxu0 0.0
    %2782 = vmatprep.subr.mxu0 0.0
    %2783 = vmatpush2.msra.mxu0 0.0
    %2784 = vmatprep.subr.mxu0 0.0
    %2785 = vmatpush2.msra.mxu0 0.0
    %2786 = vmatprep.subr.mxu0 0.0
    %2787 = vmatpush2.msra.mxu0 0.0
    %2788 = vmatprep.subr.mxu0 0.0
    %2789 = vmatpush2.msra.mxu0 0.0
    %2790 = vmatprep.subr.mxu0 0.0
    %2791 = vmatpush2.msra.mxu0 0.0
    %2792 = vmatprep.subr.mxu0 0.0
    %2793 = vmatpush2.msra.mxu0 0.0
    %2794 = vmatprep.subr.mxu0 0.0
    %2795 = vmatpush2.msra.mxu0 0.0
    %2796 = vmatprep.subr.mxu0 0.0
    %2797 = vmatpush2.msra.mxu0 0.0
    %2798 = vmatprep.subr.mxu0 0.0
    %2799 = vmatpush2.msra.mxu0 0.0
    %2800 = vmatprep.subr.mxu0 0.0
    %2801 = vmatpush2.msra.mxu0 0.0
    %2802 = vmatprep.subr.mxu0 0.0
    %2803 = vmatpush2.msra.mxu0 0.0
    %2804 = vmatprep.mubr.f32.mxu0 0.0
    %2805 = vmatmul.mubr.f32.gmra.mxu0 %v2738
    %v2806 = vpop.f32.mrf.mxu0
    %v2807 = vadd.f32 %v2662, %v2806
    %v2808 = vpop.f32.mrf.mxu0
    %v2809 = vadd.f32 %v2664, %v2808
    %2810 = vdwg.mxu0
    %2811 = vmatprep.subr.mxu0 0.0
    %2812 = vmatpush1.msra.mxu0 0.0
    %2813 = vmatprep.subr.mxu0 0.0
    %2814 = vmatpush1.msra.mxu0 0.0
    %2815 = vmatprep.subr.mxu0 0.0
    %2816 = vmatpush1.msra.mxu0 0.0
    %2817 = vmatprep.subr.mxu0 0.0
    %2818 = vmatpush1.msra.mxu0 0.0
    %2819 = vmatprep.subr.mxu0 0.0
    %2820 = vmatpush1.msra.mxu0 0.0
    %2821 = vmatprep.subr.mxu0 0.0
    %2822 = vmatpush1.msra.mxu0 0.0
    %2823 = vmatprep.subr.mxu0 0.0
    %2824 = vmatpush1.msra.mxu0 0.0
    %2825 = vmatprep.subr.mxu0 0.0
    %2826 = vmatpush1.msra.mxu0 0.0
    %2827 = vmatprep.subr.mxu0 0.0
    %2828 = vmatpush1.msra.mxu0 0.0
    %2829 = vmatprep.subr.mxu0 0.0
    %2830 = vmatpush1.msra.mxu0 0.0
    %2831 = vmatprep.subr.mxu0 0.0
    %2832 = vmatpush1.msra.mxu0 0.0
    %2833 = vmatprep.subr.mxu0 0.0
    %2834 = vmatpush1.msra.mxu0 0.0
    %2835 = vmatprep.subr.mxu0 %v226
    %2836 = vmatpush1.msra.mxu0 %v225
    %2837 = vmatprep.subr.mxu0 %v222
    %2838 = vmatpush1.msra.mxu0 %v221
    %2839 = vmatprep.subr.mxu0 %v218
    %2840 = vmatpush1.msra.mxu0 %v217
    %2841 = vmatprep.subr.mxu0 %v214
    %2842 = vmatpush1.msra.mxu0 %v213
    %2843 = vmatprep.subr.mxu0 0.0
    %2844 = vmatpush2.msra.mxu0 0.0
    %2845 = vmatprep.subr.mxu0 0.0
    %2846 = vmatpush2.msra.mxu0 0.0
    %2847 = vmatprep.subr.mxu0 0.0
    %2848 = vmatpush2.msra.mxu0 0.0
    %2849 = vmatprep.subr.mxu0 0.0
    %2850 = vmatpush2.msra.mxu0 0.0
    %2851 = vmatprep.subr.mxu0 0.0
    %2852 = vmatpush2.msra.mxu0 0.0
    %2853 = vmatprep.subr.mxu0 0.0
    %2854 = vmatpush2.msra.mxu0 0.0
    %2855 = vmatprep.subr.mxu0 0.0
    %2856 = vmatpush2.msra.mxu0 0.0
    %2857 = vmatprep.subr.mxu0 0.0
    %2858 = vmatpush2.msra.mxu0 0.0
    %2859 = vmatprep.subr.mxu0 0.0
    %2860 = vmatpush2.msra.mxu0 0.0
    %2861 = vmatprep.subr.mxu0 0.0
    %2862 = vmatpush2.msra.mxu0 0.0
    %2863 = vmatprep.subr.mxu0 0.0
    %2864 = vmatpush2.msra.mxu0 0.0
    %2865 = vmatprep.subr.mxu0 0.0
    %2866 = vmatpush2.msra.mxu0 0.0
    %2867 = vmatprep.subr.mxu0 0.0
    %2868 = vmatpush2.msra.mxu0 0.0
    %2869 = vmatprep.subr.mxu0 0.0
    %2870 = vmatpush2.msra.mxu0 0.0
    %2871 = vmatprep.subr.mxu0 0.0
    %2872 = vmatpush2.msra.mxu0 0.0
    %2873 = vmatprep.subr.mxu0 0.0
    %2874 = vmatpush2.msra.mxu0 0.0
    %2875 = vmatprep.mubr.f32.mxu0 0.0
    %2876 = vmatmul.mubr.f32.gmra.mxu0 %v2738
    %v2877 = vpop.f32.mrf.mxu0
    %v2878 = vadd.f32 %v2733, %v2877
    %v2879 = vpop.f32.mrf.mxu0
    %v2880 = vadd.f32 %v2735, %v2879
    %2881 = vdwg.mxu0
    %v2882 = vadd.f32 %v2807, %v939
    %v2883 = vadd.f32 %v2809, %v943
    %v2884 = vadd.f32 %v2878, %v947
    %v2885 = vadd.f32 %v2880, %v951
    %v2886 = vmul.f32 %v2882, 0.5
    %v2887 = vtanh.pop %v2886
    %v2888 = vmul.f32 %v2887, 0.5
    %v2889 = vadd.f32 %v2888, 0.5
    %v2890 = vmul.f32 %v2883, 0.5
    %v2891 = vtanh.pop %v2890
    %v2892 = vmul.f32 %v2891, 0.5
    %v2893 = vadd.f32 %v2892, 0.5
    %v2894 = vtanh.pop %v2884
    %v2895 = vmul.f32 %v2885, 0.5
    %v2896 = vtanh.pop %v2895
    %v2897 = vmul.f32 %v2896, 0.5
    %v2898 = vadd.f32 %v2897, 0.5
    %v2899 = vmul.f32 %v2893, %v2263
    %v2900 = vmul.f32 %v2889, %v2894
    %v2901 = vadd.f32 %v2899, %v2900
    %v2902 = vtanh.pop %v2901
    %v2903 = vmul.f32 %v2898, %v2902
    %v2904 = vsel %vm2279, %v2903, %v2262
    %v2905 = vsel %vm2279, %v2901, %v2263
    %s2906 = sadd.s32 %s296, 4
    %s2907 = ssub.s32 3, %s296
    %v2908 = vstv %s2906
    %vm2909 = vcmp.lt.s32.totalorder %v2908, %v129
    %v2910 = vsel %vm2909, 1, 0
    %2911 = vset.pattern.permute.xlu0 0
    %2912 = vperm.xlu0 %2911, %v2910
    %v2913 = vpop.permute.xlu0 %2912
    %vm2914 = vcmp.eq.s32.totalorder %v2913, 1
    %v2915 = vstv %s2907
    %vm2916 = vcmp.lt.s32.totalorder %v2915, %v129
    %v2917 = vsel %vm2916, 1, 0
    %2918 = vset.pattern.permute.xlu0 0
    %2919 = vperm.xlu0 %2918, %v2917
    %v2920 = vpop.permute.xlu0 %2919
    %vm2921 = vcmp.eq.s32.totalorder %v2920, 1
    %s2922 = scalar_lea.vmem [#allocation6], 32
    %v2923 = vld [vmem:[%s2922] sm:$0xff]
    %2924 = vmatprep.subr.mxu0 %v207
    %2925 = vmatpush1.msra.mxu0 %v206
    %2926 = vmatprep.subr.mxu0 %v203
    %2927 = vmatpush1.msra.mxu0 %v202
    %2928 = vmatprep.subr.mxu0 %v199
    %2929 = vmatpush1.msra.mxu0 %v198
    %2930 = vmatprep.subr.mxu0 %v195
    %2931 = vmatpush1.msra.mxu0 %v194
    %2932 = vmatprep.subr.mxu0 %v191
    %2933 = vmatpush1.msra.mxu0 %v190
    %2934 = vmatprep.subr.mxu0 %v187
    %2935 = vmatpush1.msra.mxu0 %v186
    %2936 = vmatprep.subr.mxu0 %v183
    %2937 = vmatpush1.msra.mxu0 %v182
    %2938 = vmatprep.subr.mxu0 %v179
    %2939 = vmatpush1.msra.mxu0 %v178
    %2940 = vmatprep.subr.mxu0 %v175
    %2941 = vmatpush1.msra.mxu0 %v174
    %2942 = vmatprep.subr.mxu0 %v171
    %2943 = vmatpush1.msra.mxu0 %v170
    %2944 = vmatprep.subr.mxu0 %v167
    %2945 = vmatpush1.msra.mxu0 %v166
    %2946 = vmatprep.subr.mxu0 %v163
    %2947 = vmatpush1.msra.mxu0 %v162
    %2948 = vmatprep.subr.mxu0 %v159
    %2949 = vmatpush1.msra.mxu0 %v158
    %2950 = vmatprep.subr.mxu0 %v155
    %2951 = vmatpush1.msra.mxu0 %v154
    %2952 = vmatprep.subr.mxu0 %v151
    %2953 = vmatpush1.msra.mxu0 %v150
    %2954 = vmatprep.subr.mxu0 %v147
    %2955 = vmatpush1.msra.mxu0 %v146
    %2956 = vmatprep.subr.mxu0 0.0
    %2957 = vmatpush2.msra.mxu0 0.0
    %2958 = vmatprep.subr.mxu0 0.0
    %2959 = vmatpush2.msra.mxu0 0.0
    %2960 = vmatprep.subr.mxu0 0.0
    %2961 = vmatpush2.msra.mxu0 0.0
    %2962 = vmatprep.subr.mxu0 0.0
    %2963 = vmatpush2.msra.mxu0 0.0
    %2964 = vmatprep.subr.mxu0 0.0
    %2965 = vmatpush2.msra.mxu0 0.0
    %2966 = vmatprep.subr.mxu0 0.0
    %2967 = vmatpush2.msra.mxu0 0.0
    %2968 = vmatprep.subr.mxu0 0.0
    %2969 = vmatpush2.msra.mxu0 0.0
    %2970 = vmatprep.subr.mxu0 0.0
    %2971 = vmatpush2.msra.mxu0 0.0
    %2972 = vmatprep.subr.mxu0 0.0
    %2973 = vmatpush2.msra.mxu0 0.0
    %2974 = vmatprep.subr.mxu0 0.0
    %2975 = vmatpush2.msra.mxu0 0.0
    %2976 = vmatprep.subr.mxu0 0.0
    %2977 = vmatpush2.msra.mxu0 0.0
    %2978 = vmatprep.subr.mxu0 0.0
    %2979 = vmatpush2.msra.mxu0 0.0
    %2980 = vmatprep.subr.mxu0 0.0
    %2981 = vmatpush2.msra.mxu0 0.0
    %2982 = vmatprep.subr.mxu0 0.0
    %2983 = vmatpush2.msra.mxu0 0.0
    %2984 = vmatprep.subr.mxu0 0.0
    %2985 = vmatpush2.msra.mxu0 0.0
    %2986 = vmatprep.subr.mxu0 0.0
    %2987 = vmatpush2.msra.mxu0 0.0
    %2988 = vmatprep.mubr.f32.mxu0 0.0
    %2989 = vmatmul.mubr.f32.gmra.mxu0 %v2591
    %v2990 = vpop.f32.mrf.mxu0
    %v2991 = vadd.f32 0.0, %v2990
    %v2992 = vpop.f32.mrf.mxu0
    %v2993 = vadd.f32 0.0, %v2992
    %2994 = vdwg.mxu0
    %2995 = vmatprep.subr.mxu0 %v209
    %2996 = vmatpush1.msra.mxu0 %v208
    %2997 = vmatprep.subr.mxu0 %v205
    %2998 = vmatpush1.msra.mxu0 %v204
    %2999 = vmatprep.subr.mxu0 %v201
    %3000 = vmatpush1.msra.mxu0 %v200
    %3001 = vmatprep.subr.mxu0 %v197
    %3002 = vmatpush1.msra.mxu0 %v196
    %3003 = vmatprep.subr.mxu0 %v193
    %3004 = vmatpush1.msra.mxu0 %v192
    %3005 = vmatprep.subr.mxu0 %v189
    %3006 = vmatpush1.msra.mxu0 %v188
    %3007 = vmatprep.subr.mxu0 %v185
    %3008 = vmatpush1.msra.mxu0 %v184
    %3009 = vmatprep.subr.mxu0 %v181
    %3010 = vmatpush1.msra.mxu0 %v180
    %3011 = vmatprep.subr.mxu0 %v177
    %3012 = vmatpush1.msra.mxu0 %v176
    %3013 = vmatprep.subr.mxu0 %v173
    %3014 = vmatpush1.msra.mxu0 %v172
    %3015 = vmatprep.subr.mxu0 %v169
    %3016 = vmatpush1.msra.mxu0 %v168
    %3017 = vmatprep.subr.mxu0 %v165
    %3018 = vmatpush1.msra.mxu0 %v164
    %3019 = vmatprep.subr.mxu0 %v161
    %3020 = vmatpush1.msra.mxu0 %v160
    %3021 = vmatprep.subr.mxu0 %v157
    %3022 = vmatpush1.msra.mxu0 %v156
    %3023 = vmatprep.subr.mxu0 %v153
    %3024 = vmatpush1.msra.mxu0 %v152
    %3025 = vmatprep.subr.mxu0 %v149
    %3026 = vmatpush1.msra.mxu0 %v148
    %3027 = vmatprep.subr.mxu0 0.0
    %3028 = vmatpush2.msra.mxu0 0.0
    %3029 = vmatprep.subr.mxu0 0.0
    %3030 = vmatpush2.msra.mxu0 0.0
    %3031 = vmatprep.subr.mxu0 0.0
    %3032 = vmatpush2.msra.mxu0 0.0
    %3033 = vmatprep.subr.mxu0 0.0
    %3034 = vmatpush2.msra.mxu0 0.0
    %3035 = vmatprep.subr.mxu0 0.0
    %3036 = vmatpush2.msra.mxu0 0.0
    %3037 = vmatprep.subr.mxu0 0.0
    %3038 = vmatpush2.msra.mxu0 0.0
    %3039 = vmatprep.subr.mxu0 0.0
    %3040 = vmatpush2.msra.mxu0 0.0
    %3041 = vmatprep.subr.mxu0 0.0
    %3042 = vmatpush2.msra.mxu0 0.0
    %3043 = vmatprep.subr.mxu0 0.0
    %3044 = vmatpush2.msra.mxu0 0.0
    %3045 = vmatprep.subr.mxu0 0.0
    %3046 = vmatpush2.msra.mxu0 0.0
    %3047 = vmatprep.subr.mxu0 0.0
    %3048 = vmatpush2.msra.mxu0 0.0
    %3049 = vmatprep.subr.mxu0 0.0
    %3050 = vmatpush2.msra.mxu0 0.0
    %3051 = vmatprep.subr.mxu0 0.0
    %3052 = vmatpush2.msra.mxu0 0.0
    %3053 = vmatprep.subr.mxu0 0.0
    %3054 = vmatpush2.msra.mxu0 0.0
    %3055 = vmatprep.subr.mxu0 0.0
    %3056 = vmatpush2.msra.mxu0 0.0
    %3057 = vmatprep.subr.mxu0 0.0
    %3058 = vmatpush2.msra.mxu0 0.0
    %3059 = vmatprep.mubr.f32.mxu0 0.0
    %3060 = vmatmul.mubr.f32.gmra.mxu0 %v2591
    %v3061 = vpop.f32.mrf.mxu0
    %v3062 = vadd.f32 0.0, %v3061
    %v3063 = vpop.f32.mrf.mxu0
    %v3064 = vadd.f32 0.0, %v3063
    %3065 = vdwg.mxu0
    %v3067 = vsel %vm455, %v2923, 0
    %3069 = vmatprep.subr.mxu0 0.0
    %3070 = vmatpush1.msra.mxu0 0.0
    %3071 = vmatprep.subr.mxu0 0.0
    %3072 = vmatpush1.msra.mxu0 0.0
    %3073 = vmatprep.subr.mxu0 0.0
    %3074 = vmatpush1.msra.mxu0 0.0
    %3075 = vmatprep.subr.mxu0 0.0
    %3076 = vmatpush1.msra.mxu0 0.0
    %3077 = vmatprep.subr.mxu0 0.0
    %3078 = vmatpush1.msra.mxu0 0.0
    %3079 = vmatprep.subr.mxu0 0.0
    %3080 = vmatpush1.msra.mxu0 0.0
    %3081 = vmatprep.subr.mxu0 0.0
    %3082 = vmatpush1.msra.mxu0 0.0
    %3083 = vmatprep.subr.mxu0 0.0
    %3084 = vmatpush1.msra.mxu0 0.0
    %3085 = vmatprep.subr.mxu0 0.0
    %3086 = vmatpush1.msra.mxu0 0.0
    %3087 = vmatprep.subr.mxu0 0.0
    %3088 = vmatpush1.msra.mxu0 0.0
    %3089 = vmatprep.subr.mxu0 0.0
    %3090 = vmatpush1.msra.mxu0 0.0
    %3091 = vmatprep.subr.mxu0 0.0
    %3092 = vmatpush1.msra.mxu0 0.0
    %3093 = vmatprep.subr.mxu0 %v143
    %3094 = vmatpush1.msra.mxu0 %v142
    %3095 = vmatprep.subr.mxu0 %v139
    %3096 = vmatpush1.msra.mxu0 %v138
    %3097 = vmatprep.subr.mxu0 %v135
    %3098 = vmatpush1.msra.mxu0 %v134
    %3099 = vmatprep.subr.mxu0 %v131
    %3100 = vmatpush1.msra.mxu0 %v130
    %3101 = vmatprep.subr.mxu0 0.0
    %3102 = vmatpush2.msra.mxu0 0.0
    %3103 = vmatprep.subr.mxu0 0.0
    %3104 = vmatpush2.msra.mxu0 0.0
    %3105 = vmatprep.subr.mxu0 0.0
    %3106 = vmatpush2.msra.mxu0 0.0
    %3107 = vmatprep.subr.mxu0 0.0
    %3108 = vmatpush2.msra.mxu0 0.0
    %3109 = vmatprep.subr.mxu0 0.0
    %3110 = vmatpush2.msra.mxu0 0.0
    %3111 = vmatprep.subr.mxu0 0.0
    %3112 = vmatpush2.msra.mxu0 0.0
    %3113 = vmatprep.subr.mxu0 0.0
    %3114 = vmatpush2.msra.mxu0 0.0
    %3115 = vmatprep.subr.mxu0 0.0
    %3116 = vmatpush2.msra.mxu0 0.0
    %3117 = vmatprep.subr.mxu0 0.0
    %3118 = vmatpush2.msra.mxu0 0.0
    %3119 = vmatprep.subr.mxu0 0.0
    %3120 = vmatpush2.msra.mxu0 0.0
    %3121 = vmatprep.subr.mxu0 0.0
    %3122 = vmatpush2.msra.mxu0 0.0
    %3123 = vmatprep.subr.mxu0 0.0
    %3124 = vmatpush2.msra.mxu0 0.0
    %3125 = vmatprep.subr.mxu0 0.0
    %3126 = vmatpush2.msra.mxu0 0.0
    %3127 = vmatprep.subr.mxu0 0.0
    %3128 = vmatpush2.msra.mxu0 0.0
    %3129 = vmatprep.subr.mxu0 0.0
    %3130 = vmatpush2.msra.mxu0 0.0
    %3131 = vmatprep.subr.mxu0 0.0
    %3132 = vmatpush2.msra.mxu0 0.0
    %3133 = vmatprep.mubr.f32.mxu0 0.0
    %3134 = vmatmul.mubr.f32.gmra.mxu0 %v3067
    %v3135 = vpop.f32.mrf.mxu0
    %v3136 = vadd.f32 %v2991, %v3135
    %v3137 = vpop.f32.mrf.mxu0
    %v3138 = vadd.f32 %v2993, %v3137
    %3139 = vdwg.mxu0
    %3140 = vmatprep.subr.mxu0 0.0
    %3141 = vmatpush1.msra.mxu0 0.0
    %3142 = vmatprep.subr.mxu0 0.0
    %3143 = vmatpush1.msra.mxu0 0.0
    %3144 = vmatprep.subr.mxu0 0.0
    %3145 = vmatpush1.msra.mxu0 0.0
    %3146 = vmatprep.subr.mxu0 0.0
    %3147 = vmatpush1.msra.mxu0 0.0
    %3148 = vmatprep.subr.mxu0 0.0
    %3149 = vmatpush1.msra.mxu0 0.0
    %3150 = vmatprep.subr.mxu0 0.0
    %3151 = vmatpush1.msra.mxu0 0.0
    %3152 = vmatprep.subr.mxu0 0.0
    %3153 = vmatpush1.msra.mxu0 0.0
    %3154 = vmatprep.subr.mxu0 0.0
    %3155 = vmatpush1.msra.mxu0 0.0
    %3156 = vmatprep.subr.mxu0 0.0
    %3157 = vmatpush1.msra.mxu0 0.0
    %3158 = vmatprep.subr.mxu0 0.0
    %3159 = vmatpush1.msra.mxu0 0.0
    %3160 = vmatprep.subr.mxu0 0.0
    %3161 = vmatpush1.msra.mxu0 0.0
    %3162 = vmatprep.subr.mxu0 0.0
    %3163 = vmatpush1.msra.mxu0 0.0
    %3164 = vmatprep.subr.mxu0 %v145
    %3165 = vmatpush1.msra.mxu0 %v144
    %3166 = vmatprep.subr.mxu0 %v141
    %3167 = vmatpush1.msra.mxu0 %v140
    %3168 = vmatprep.subr.mxu0 %v137
    %3169 = vmatpush1.msra.mxu0 %v136
    %3170 = vmatprep.subr.mxu0 %v133
    %3171 = vmatpush1.msra.mxu0 %v132
    %3172 = vmatprep.subr.mxu0 0.0
    %3173 = vmatpush2.msra.mxu0 0.0
    %3174 = vmatprep.subr.mxu0 0.0
    %3175 = vmatpush2.msra.mxu0 0.0
    %3176 = vmatprep.subr.mxu0 0.0
    %3177 = vmatpush2.msra.mxu0 0.0
    %3178 = vmatprep.subr.mxu0 0.0
    %3179 = vmatpush2.msra.mxu0 0.0
    %3180 = vmatprep.subr.mxu0 0.0
    %3181 = vmatpush2.msra.mxu0 0.0
    %3182 = vmatprep.subr.mxu0 0.0
    %3183 = vmatpush2.msra.mxu0 0.0
    %3184 = vmatprep.subr.mxu0 0.0
    %3185 = vmatpush2.msra.mxu0 0.0
    %3186 = vmatprep.subr.mxu0 0.0
    %3187 = vmatpush2.msra.mxu0 0.0
    %3188 = vmatprep.subr.mxu0 0.0
    %3189 = vmatpush2.msra.mxu0 0.0
    %3190 = vmatprep.subr.mxu0 0.0
    %3191 = vmatpush2.msra.mxu0 0.0
    %3192 = vmatprep.subr.mxu0 0.0
    %3193 = vmatpush2.msra.mxu0 0.0
    %3194 = vmatprep.subr.mxu0 0.0
    %3195 = vmatpush2.msra.mxu0 0.0
    %3196 = vmatprep.subr.mxu0 0.0
    %3197 = vmatpush2.msra.mxu0 0.0
    %3198 = vmatprep.subr.mxu0 0.0
    %3199 = vmatpush2.msra.mxu0 0.0
    %3200 = vmatprep.subr.mxu0 0.0
    %3201 = vmatpush2.msra.mxu0 0.0
    %3202 = vmatprep.subr.mxu0 0.0
    %3203 = vmatpush2.msra.mxu0 0.0
    %3204 = vmatprep.mubr.f32.mxu0 0.0
    %3205 = vmatmul.mubr.f32.gmra.mxu0 %v3067
    %v3206 = vpop.f32.mrf.mxu0
    %v3207 = vadd.f32 %v3062, %v3206
    %v3208 = vpop.f32.mrf.mxu0
    %v3209 = vadd.f32 %v3064, %v3208
    %3210 = vdwg.mxu0
    %v3211 = vadd.f32 %v3136, %v605
    %v3212 = vadd.f32 %v3138, %v609
    %v3213 = vadd.f32 %v3207, %v613
    %v3214 = vadd.f32 %v3209, %v617
    %v3215 = vmul.f32 %v3211, 0.5
    %v3216 = vtanh.pop %v3215
    %v3217 = vmul.f32 %v3216, 0.5
    %v3218 = vadd.f32 %v3217, 0.5
    %v3219 = vmul.f32 %v3212, 0.5
    %v3220 = vtanh.pop %v3219
    %v3221 = vmul.f32 %v3220, 0.5
    %v3222 = vadd.f32 %v3221, 0.5
    %v3223 = vtanh.pop %v3213
    %v3224 = vmul.f32 %v3214, 0.5
    %v3225 = vtanh.pop %v3224
    %v3226 = vmul.f32 %v3225, 0.5
    %v3227 = vadd.f32 %v3226, 0.5
    %v3228 = vmul.f32 %v3222, %v2592
    %v3229 = vmul.f32 %v3218, %v3223
    %v3230 = vadd.f32 %v3228, %v3229
    %v3231 = vtanh.pop %v3230
    %v3232 = vmul.f32 %v3227, %v3231
    %v3233 = vsel %vm2914, %v3232, %v2591
    %v3234 = vsel %vm2914, %v3230, %v2592
    %s3235 = scalar_lea.vmem [#allocation9], 24
    %v3236 = vld [vmem:[%s3235] sm:$0xff]
    %3237 = vmatprep.subr.mxu0 %v288
    %3238 = vmatpush1.msra.mxu0 %v287
    %3239 = vmatprep.subr.mxu0 %v284
    %3240 = vmatpush1.msra.mxu0 %v283
    %3241 = vmatprep.subr.mxu0 %v280
    %3242 = vmatpush1.msra.mxu0 %v279
    %3243 = vmatprep.subr.mxu0 %v276
    %3244 = vmatpush1.msra.mxu0 %v275
    %3245 = vmatprep.subr.mxu0 %v272
    %3246 = vmatpush1.msra.mxu0 %v271
    %3247 = vmatprep.subr.mxu0 %v268
    %3248 = vmatpush1.msra.mxu0 %v267
    %3249 = vmatprep.subr.mxu0 %v264
    %3250 = vmatpush1.msra.mxu0 %v263
    %3251 = vmatprep.subr.mxu0 %v260
    %3252 = vmatpush1.msra.mxu0 %v259
    %3253 = vmatprep.subr.mxu0 %v256
    %3254 = vmatpush1.msra.mxu0 %v255
    %3255 = vmatprep.subr.mxu0 %v252
    %3256 = vmatpush1.msra.mxu0 %v251
    %3257 = vmatprep.subr.mxu0 %v248
    %3258 = vmatpush1.msra.mxu0 %v247
    %3259 = vmatprep.subr.mxu0 %v244
    %3260 = vmatpush1.msra.mxu0 %v243
    %3261 = vmatprep.subr.mxu0 %v240
    %3262 = vmatpush1.msra.mxu0 %v239
    %3263 = vmatprep.subr.mxu0 %v236
    %3264 = vmatpush1.msra.mxu0 %v235
    %3265 = vmatprep.subr.mxu0 %v232
    %3266 = vmatpush1.msra.mxu0 %v231
    %3267 = vmatprep.subr.mxu0 %v228
    %3268 = vmatpush1.msra.mxu0 %v227
    %3269 = vmatprep.subr.mxu0 0.0
    %3270 = vmatpush2.msra.mxu0 0.0
    %3271 = vmatprep.subr.mxu0 0.0
    %3272 = vmatpush2.msra.mxu0 0.0
    %3273 = vmatprep.subr.mxu0 0.0
    %3274 = vmatpush2.msra.mxu0 0.0
    %3275 = vmatprep.subr.mxu0 0.0
    %3276 = vmatpush2.msra.mxu0 0.0
    %3277 = vmatprep.subr.mxu0 0.0
    %3278 = vmatpush2.msra.mxu0 0.0
    %3279 = vmatprep.subr.mxu0 0.0
    %3280 = vmatpush2.msra.mxu0 0.0
    %3281 = vmatprep.subr.mxu0 0.0
    %3282 = vmatpush2.msra.mxu0 0.0
    %3283 = vmatprep.subr.mxu0 0.0
    %3284 = vmatpush2.msra.mxu0 0.0
    %3285 = vmatprep.subr.mxu0 0.0
    %3286 = vmatpush2.msra.mxu0 0.0
    %3287 = vmatprep.subr.mxu0 0.0
    %3288 = vmatpush2.msra.mxu0 0.0
    %3289 = vmatprep.subr.mxu0 0.0
    %3290 = vmatpush2.msra.mxu0 0.0
    %3291 = vmatprep.subr.mxu0 0.0
    %3292 = vmatpush2.msra.mxu0 0.0
    %3293 = vmatprep.subr.mxu0 0.0
    %3294 = vmatpush2.msra.mxu0 0.0
    %3295 = vmatprep.subr.mxu0 0.0
    %3296 = vmatpush2.msra.mxu0 0.0
    %3297 = vmatprep.subr.mxu0 0.0
    %3298 = vmatpush2.msra.mxu0 0.0
    %3299 = vmatprep.subr.mxu0 0.0
    %3300 = vmatpush2.msra.mxu0 0.0
    %3301 = vmatprep.mubr.f32.mxu0 0.0
    %3302 = vmatmul.mubr.f32.gmra.mxu0 %v2904
    %v3303 = vpop.f32.mrf.mxu0
    %v3304 = vadd.f32 0.0, %v3303
    %v3305 = vpop.f32.mrf.mxu0
    %v3306 = vadd.f32 0.0, %v3305
    %3307 = vdwg.mxu0
    %3308 = vmatprep.subr.mxu0 %v290
    %3309 = vmatpush1.msra.mxu0 %v289
    %3310 = vmatprep.subr.mxu0 %v286
    %3311 = vmatpush1.msra.mxu0 %v285
    %3312 = vmatprep.subr.mxu0 %v282
    %3313 = vmatpush1.msra.mxu0 %v281
    %3314 = vmatprep.subr.mxu0 %v278
    %3315 = vmatpush1.msra.mxu0 %v277
    %3316 = vmatprep.subr.mxu0 %v274
    %3317 = vmatpush1.msra.mxu0 %v273
    %3318 = vmatprep.subr.mxu0 %v270
    %3319 = vmatpush1.msra.mxu0 %v269
    %3320 = vmatprep.subr.mxu0 %v266
    %3321 = vmatpush1.msra.mxu0 %v265
    %3322 = vmatprep.subr.mxu0 %v262
    %3323 = vmatpush1.msra.mxu0 %v261
    %3324 = vmatprep.subr.mxu0 %v258
    %3325 = vmatpush1.msra.mxu0 %v257
    %3326 = vmatprep.subr.mxu0 %v254
    %3327 = vmatpush1.msra.mxu0 %v253
    %3328 = vmatprep.subr.mxu0 %v250
    %3329 = vmatpush1.msra.mxu0 %v249
    %3330 = vmatprep.subr.mxu0 %v246
    %3331 = vmatpush1.msra.mxu0 %v245
    %3332 = vmatprep.subr.mxu0 %v242
    %3333 = vmatpush1.msra.mxu0 %v241
    %3334 = vmatprep.subr.mxu0 %v238
    %3335 = vmatpush1.msra.mxu0 %v237
    %3336 = vmatprep.subr.mxu0 %v234
    %3337 = vmatpush1.msra.mxu0 %v233
    %3338 = vmatprep.subr.mxu0 %v230
    %3339 = vmatpush1.msra.mxu0 %v229
    %3340 = vmatprep.subr.mxu0 0.0
    %3341 = vmatpush2.msra.mxu0 0.0
    %3342 = vmatprep.subr.mxu0 0.0
    %3343 = vmatpush2.msra.mxu0 0.0
    %3344 = vmatprep.subr.mxu0 0.0
    %3345 = vmatpush2.msra.mxu0 0.0
    %3346 = vmatprep.subr.mxu0 0.0
    %3347 = vmatpush2.msra.mxu0 0.0
    %3348 = vmatprep.subr.mxu0 0.0
    %3349 = vmatpush2.msra.mxu0 0.0
    %3350 = vmatprep.subr.mxu0 0.0
    %3351 = vmatpush2.msra.mxu0 0.0
    %3352 = vmatprep.subr.mxu0 0.0
    %3353 = vmatpush2.msra.mxu0 0.0
    %3354 = vmatprep.subr.mxu0 0.0
    %3355 = vmatpush2.msra.mxu0 0.0
    %3356 = vmatprep.subr.mxu0 0.0
    %3357 = vmatpush2.msra.mxu0 0.0
    %3358 = vmatprep.subr.mxu0 0.0
    %3359 = vmatpush2.msra.mxu0 0.0
    %3360 = vmatprep.subr.mxu0 0.0
    %3361 = vmatpush2.msra.mxu0 0.0
    %3362 = vmatprep.subr.mxu0 0.0
    %3363 = vmatpush2.msra.mxu0 0.0
    %3364 = vmatprep.subr.mxu0 0.0
    %3365 = vmatpush2.msra.mxu0 0.0
    %3366 = vmatprep.subr.mxu0 0.0
    %3367 = vmatpush2.msra.mxu0 0.0
    %3368 = vmatprep.subr.mxu0 0.0
    %3369 = vmatpush2.msra.mxu0 0.0
    %3370 = vmatprep.subr.mxu0 0.0
    %3371 = vmatpush2.msra.mxu0 0.0
    %3372 = vmatprep.mubr.f32.mxu0 0.0
    %3373 = vmatmul.mubr.f32.gmra.mxu0 %v2904
    %v3374 = vpop.f32.mrf.mxu0
    %v3375 = vadd.f32 0.0, %v3374
    %v3376 = vpop.f32.mrf.mxu0
    %v3377 = vadd.f32 0.0, %v3376
    %3378 = vdwg.mxu0
    %v3380 = vsel %vm455, %v3236, 0
    %3382 = vmatprep.subr.mxu0 0.0
    %3383 = vmatpush1.msra.mxu0 0.0
    %3384 = vmatprep.subr.mxu0 0.0
    %3385 = vmatpush1.msra.mxu0 0.0
    %3386 = vmatprep.subr.mxu0 0.0
    %3387 = vmatpush1.msra.mxu0 0.0
    %3388 = vmatprep.subr.mxu0 0.0
    %3389 = vmatpush1.msra.mxu0 0.0
    %3390 = vmatprep.subr.mxu0 0.0
    %3391 = vmatpush1.msra.mxu0 0.0
    %3392 = vmatprep.subr.mxu0 0.0
    %3393 = vmatpush1.msra.mxu0 0.0
    %3394 = vmatprep.subr.mxu0 0.0
    %3395 = vmatpush1.msra.mxu0 0.0
    %3396 = vmatprep.subr.mxu0 0.0
    %3397 = vmatpush1.msra.mxu0 0.0
    %3398 = vmatprep.subr.mxu0 0.0
    %3399 = vmatpush1.msra.mxu0 0.0
    %3400 = vmatprep.subr.mxu0 0.0
    %3401 = vmatpush1.msra.mxu0 0.0
    %3402 = vmatprep.subr.mxu0 0.0
    %3403 = vmatpush1.msra.mxu0 0.0
    %3404 = vmatprep.subr.mxu0 0.0
    %3405 = vmatpush1.msra.mxu0 0.0
    %3406 = vmatprep.subr.mxu0 %v224
    %3407 = vmatpush1.msra.mxu0 %v223
    %3408 = vmatprep.subr.mxu0 %v220
    %3409 = vmatpush1.msra.mxu0 %v219
    %3410 = vmatprep.subr.mxu0 %v216
    %3411 = vmatpush1.msra.mxu0 %v215
    %3412 = vmatprep.subr.mxu0 %v212
    %3413 = vmatpush1.msra.mxu0 %v211
    %3414 = vmatprep.subr.mxu0 0.0
    %3415 = vmatpush2.msra.mxu0 0.0
    %3416 = vmatprep.subr.mxu0 0.0
    %3417 = vmatpush2.msra.mxu0 0.0
    %3418 = vmatprep.subr.mxu0 0.0
    %3419 = vmatpush2.msra.mxu0 0.0
    %3420 = vmatprep.subr.mxu0 0.0
    %3421 = vmatpush2.msra.mxu0 0.0
    %3422 = vmatprep.subr.mxu0 0.0
    %3423 = vmatpush2.msra.mxu0 0.0
    %3424 = vmatprep.subr.mxu0 0.0
    %3425 = vmatpush2.msra.mxu0 0.0
    %3426 = vmatprep.subr.mxu0 0.0
    %3427 = vmatpush2.msra.mxu0 0.0
    %3428 = vmatprep.subr.mxu0 0.0
    %3429 = vmatpush2.msra.mxu0 0.0
    %3430 = vmatprep.subr.mxu0 0.0
    %3431 = vmatpush2.msra.mxu0 0.0
    %3432 = vmatprep.subr.mxu0 0.0
    %3433 = vmatpush2.msra.mxu0 0.0
    %3434 = vmatprep.subr.mxu0 0.0
    %3435 = vmatpush2.msra.mxu0 0.0
    %3436 = vmatprep.subr.mxu0 0.0
    %3437 = vmatpush2.msra.mxu0 0.0
    %3438 = vmatprep.subr.mxu0 0.0
    %3439 = vmatpush2.msra.mxu0 0.0
    %3440 = vmatprep.subr.mxu0 0.0
    %3441 = vmatpush2.msra.mxu0 0.0
    %3442 = vmatprep.subr.mxu0 0.0
    %3443 = vmatpush2.msra.mxu0 0.0
    %3444 = vmatprep.subr.mxu0 0.0
    %3445 = vmatpush2.msra.mxu0 0.0
    %3446 = vmatprep.mubr.f32.mxu0 0.0
    %3447 = vmatmul.mubr.f32.gmra.mxu0 %v3380
    %v3448 = vpop.f32.mrf.mxu0
    %v3449 = vadd.f32 %v3304, %v3448
    %v3450 = vpop.f32.mrf.mxu0
    %v3451 = vadd.f32 %v3306, %v3450
    %3452 = vdwg.mxu0
    %3453 = vmatprep.subr.mxu0 0.0
    %3454 = vmatpush1.msra.mxu0 0.0
    %3455 = vmatprep.subr.mxu0 0.0
    %3456 = vmatpush1.msra.mxu0 0.0
    %3457 = vmatprep.subr.mxu0 0.0
    %3458 = vmatpush1.msra.mxu0 0.0
    %3459 = vmatprep.subr.mxu0 0.0
    %3460 = vmatpush1.msra.mxu0 0.0
    %3461 = vmatprep.subr.mxu0 0.0
    %3462 = vmatpush1.msra.mxu0 0.0
    %3463 = vmatprep.subr.mxu0 0.0
    %3464 = vmatpush1.msra.mxu0 0.0
    %3465 = vmatprep.subr.mxu0 0.0
    %3466 = vmatpush1.msra.mxu0 0.0
    %3467 = vmatprep.subr.mxu0 0.0
    %3468 = vmatpush1.msra.mxu0 0.0
    %3469 = vmatprep.subr.mxu0 0.0
    %3470 = vmatpush1.msra.mxu0 0.0
    %3471 = vmatprep.subr.mxu0 0.0
    %3472 = vmatpush1.msra.mxu0 0.0
    %3473 = vmatprep.subr.mxu0 0.0
    %3474 = vmatpush1.msra.mxu0 0.0
    %3475 = vmatprep.subr.mxu0 0.0
    %3476 = vmatpush1.msra.mxu0 0.0
    %3477 = vmatprep.subr.mxu0 %v226
    %3478 = vmatpush1.msra.mxu0 %v225
    %3479 = vmatprep.subr.mxu0 %v222
    %3480 = vmatpush1.msra.mxu0 %v221
    %3481 = vmatprep.subr.mxu0 %v218
    %3482 = vmatpush1.msra.mxu0 %v217
    %3483 = vmatprep.subr.mxu0 %v214
    %3484 = vmatpush1.msra.mxu0 %v213
    %3485 = vmatprep.subr.mxu0 0.0
    %3486 = vmatpush2.msra.mxu0 0.0
    %3487 = vmatprep.subr.mxu0 0.0
    %3488 = vmatpush2.msra.mxu0 0.0
    %3489 = vmatprep.subr.mxu0 0.0
    %3490 = vmatpush2.msra.mxu0 0.0
    %3491 = vmatprep.subr.mxu0 0.0
    %3492 = vmatpush2.msra.mxu0 0.0
    %3493 = vmatprep.subr.mxu0 0.0
    %3494 = vmatpush2.msra.mxu0 0.0
    %3495 = vmatprep.subr.mxu0 0.0
    %3496 = vmatpush2.msra.mxu0 0.0
    %3497 = vmatprep.subr.mxu0 0.0
    %3498 = vmatpush2.msra.mxu0 0.0
    %3499 = vmatprep.subr.mxu0 0.0
    %3500 = vmatpush2.msra.mxu0 0.0
    %3501 = vmatprep.subr.mxu0 0.0
    %3502 = vmatpush2.msra.mxu0 0.0
    %3503 = vmatprep.subr.mxu0 0.0
    %3504 = vmatpush2.msra.mxu0 0.0
    %3505 = vmatprep.subr.mxu0 0.0
    %3506 = vmatpush2.msra.mxu0 0.0
    %3507 = vmatprep.subr.mxu0 0.0
    %3508 = vmatpush2.msra.mxu0 0.0
    %3509 = vmatprep.subr.mxu0 0.0
    %3510 = vmatpush2.msra.mxu0 0.0
    %3511 = vmatprep.subr.mxu0 0.0
    %3512 = vmatpush2.msra.mxu0 0.0
    %3513 = vmatprep.subr.mxu0 0.0
    %3514 = vmatpush2.msra.mxu0 0.0
    %3515 = vmatprep.subr.mxu0 0.0
    %3516 = vmatpush2.msra.mxu0 0.0
    %3517 = vmatprep.mubr.f32.mxu0 0.0
    %3518 = vmatmul.mubr.f32.gmra.mxu0 %v3380
    %v3519 = vpop.f32.mrf.mxu0
    %v3520 = vadd.f32 %v3375, %v3519
    %v3521 = vpop.f32.mrf.mxu0
    %v3522 = vadd.f32 %v3377, %v3521
    %3523 = vdwg.mxu0
    %v3524 = vadd.f32 %v3449, %v939
    %v3525 = vadd.f32 %v3451, %v943
    %v3526 = vadd.f32 %v3520, %v947
    %v3527 = vadd.f32 %v3522, %v951
    %v3528 = vmul.f32 %v3524, 0.5
    %v3529 = vtanh.pop %v3528
    %v3530 = vmul.f32 %v3529, 0.5
    %v3531 = vadd.f32 %v3530, 0.5
    %v3532 = vmul.f32 %v3525, 0.5
    %v3533 = vtanh.pop %v3532
    %v3534 = vmul.f32 %v3533, 0.5
    %v3535 = vadd.f32 %v3534, 0.5
    %v3536 = vtanh.pop %v3526
    %v3537 = vmul.f32 %v3527, 0.5
    %v3538 = vtanh.pop %v3537
    %v3539 = vmul.f32 %v3538, 0.5
    %v3540 = vadd.f32 %v3539, 0.5
    %v3541 = vmul.f32 %v3535, %v2905
    %v3542 = vmul.f32 %v3531, %v3536
    %v3543 = vadd.f32 %v3541, %v3542
    %v3544 = vtanh.pop %v3543
    %v3545 = vmul.f32 %v3540, %v3544
    %v3546 = vsel %vm2921, %v3545, %v2904
    %v3547 = vsel %vm2921, %v3543, %v2905
    %s3548 = sadd.s32 %s296, 5
    %s3549 = ssub.s32 2, %s296
    %v3550 = vstv %s3548
    %vm3551 = vcmp.lt.s32.totalorder %v3550, %v129
    %v3552 = vsel %vm3551, 1, 0
    %3553 = vset.pattern.permute.xlu0 0
    %3554 = vperm.xlu0 %3553, %v3552
    %v3555 = vpop.permute.xlu0 %3554
    %vm3556 = vcmp.eq.s32.totalorder %v3555, 1
    %v3557 = vstv %s3549
    %vm3558 = vcmp.lt.s32.totalorder %v3557, %v129
    %v3559 = vsel %vm3558, 1, 0
    %3560 = vset.pattern.permute.xlu0 0
    %3561 = vperm.xlu0 %3560, %v3559
    %v3562 = vpop.permute.xlu0 %3561
    %vm3563 = vcmp.eq.s32.totalorder %v3562, 1
    %s3564 = scalar_lea.vmem [#allocation6], 40
    %v3565 = vld [vmem:[%s3564] sm:$0xff]
    %3566 = vmatprep.subr.mxu0 %v207
    %3567 = vmatpush1.msra.mxu0 %v206
    %3568 = vmatprep.subr.mxu0 %v203
    %3569 = vmatpush1.msra.mxu0 %v202
    %3570 = vmatprep.subr.mxu0 %v199
    %3571 = vmatpush1.msra.mxu0 %v198
    %3572 = vmatprep.subr.mxu0 %v195
    %3573 = vmatpush1.msra.mxu0 %v194
    %3574 = vmatprep.subr.mxu0 %v191
    %3575 = vmatpush1.msra.mxu0 %v190
    %3576 = vmatprep.subr.mxu0 %v187
    %3577 = vmatpush1.msra.mxu0 %v186
    %3578 = vmatprep.subr.mxu0 %v183
    %3579 = vmatpush1.msra.mxu0 %v182
    %3580 = vmatprep.subr.mxu0 %v179
    %3581 = vmatpush1.msra.mxu0 %v178
    %3582 = vmatprep.subr.mxu0 %v175
    %3583 = vmatpush1.msra.mxu0 %v174
    %3584 = vmatprep.subr.mxu0 %v171
    %3585 = vmatpush1.msra.mxu0 %v170
    %3586 = vmatprep.subr.mxu0 %v167
    %3587 = vmatpush1.msra.mxu0 %v166
    %3588 = vmatprep.subr.mxu0 %v163
    %3589 = vmatpush1.msra.mxu0 %v162
    %3590 = vmatprep.subr.mxu0 %v159
    %3591 = vmatpush1.msra.mxu0 %v158
    %3592 = vmatprep.subr.mxu0 %v155
    %3593 = vmatpush1.msra.mxu0 %v154
    %3594 = vmatprep.subr.mxu0 %v151
    %3595 = vmatpush1.msra.mxu0 %v150
    %3596 = vmatprep.subr.mxu0 %v147
    %3597 = vmatpush1.msra.mxu0 %v146
    %3598 = vmatprep.subr.mxu0 0.0
    %3599 = vmatpush2.msra.mxu0 0.0
    %3600 = vmatprep.subr.mxu0 0.0
    %3601 = vmatpush2.msra.mxu0 0.0
    %3602 = vmatprep.subr.mxu0 0.0
    %3603 = vmatpush2.msra.mxu0 0.0
    %3604 = vmatprep.subr.mxu0 0.0
    %3605 = vmatpush2.msra.mxu0 0.0
    %3606 = vmatprep.subr.mxu0 0.0
    %3607 = vmatpush2.msra.mxu0 0.0
    %3608 = vmatprep.subr.mxu0 0.0
    %3609 = vmatpush2.msra.mxu0 0.0
    %3610 = vmatprep.subr.mxu0 0.0
    %3611 = vmatpush2.msra.mxu0 0.0
    %3612 = vmatprep.subr.mxu0 0.0
    %3613 = vmatpush2.msra.mxu0 0.0
    %3614 = vmatprep.subr.mxu0 0.0
    %3615 = vmatpush2.msra.mxu0 0.0
    %3616 = vmatprep.subr.mxu0 0.0
    %3617 = vmatpush2.msra.mxu0 0.0
    %3618 = vmatprep.subr.mxu0 0.0
    %3619 = vmatpush2.msra.mxu0 0.0
    %3620 = vmatprep.subr.mxu0 0.0
    %3621 = vmatpush2.msra.mxu0 0.0
    %3622 = vmatprep.subr.mxu0 0.0
    %3623 = vmatpush2.msra.mxu0 0.0
    %3624 = vmatprep.subr.mxu0 0.0
    %3625 = vmatpush2.msra.mxu0 0.0
    %3626 = vmatprep.subr.mxu0 0.0
    %3627 = vmatpush2.msra.mxu0 0.0
    %3628 = vmatprep.subr.mxu0 0.0
    %3629 = vmatpush2.msra.mxu0 0.0
    %3630 = vmatprep.mubr.f32.mxu0 0.0
    %3631 = vmatmul.mubr.f32.gmra.mxu0 %v3233
    %v3632 = vpop.f32.mrf.mxu0
    %v3633 = vadd.f32 0.0, %v3632
    %v3634 = vpop.f32.mrf.mxu0
    %v3635 = vadd.f32 0.0, %v3634
    %3636 = vdwg.mxu0
    %3637 = vmatprep.subr.mxu0 %v209
    %3638 = vmatpush1.msra.mxu0 %v208
    %3639 = vmatprep.subr.mxu0 %v205
    %3640 = vmatpush1.msra.mxu0 %v204
    %3641 = vmatprep.subr.mxu0 %v201
    %3642 = vmatpush1.msra.mxu0 %v200
    %3643 = vmatprep.subr.mxu0 %v197
    %3644 = vmatpush1.msra.mxu0 %v196
    %3645 = vmatprep.subr.mxu0 %v193
    %3646 = vmatpush1.msra.mxu0 %v192
    %3647 = vmatprep.subr.mxu0 %v189
    %3648 = vmatpush1.msra.mxu0 %v188
    %3649 = vmatprep.subr.mxu0 %v185
    %3650 = vmatpush1.msra.mxu0 %v184
    %3651 = vmatprep.subr.mxu0 %v181
    %3652 = vmatpush1.msra.mxu0 %v180
    %3653 = vmatprep.subr.mxu0 %v177
    %3654 = vmatpush1.msra.mxu0 %v176
    %3655 = vmatprep.subr.mxu0 %v173
    %3656 = vmatpush1.msra.mxu0 %v172
    %3657 = vmatprep.subr.mxu0 %v169
    %3658 = vmatpush1.msra.mxu0 %v168
    %3659 = vmatprep.subr.mxu0 %v165
    %3660 = vmatpush1.msra.mxu0 %v164
    %3661 = vmatprep.subr.mxu0 %v161
    %3662 = vmatpush1.msra.mxu0 %v160
    %3663 = vmatprep.subr.mxu0 %v157
    %3664 = vmatpush1.msra.mxu0 %v156
    %3665 = vmatprep.subr.mxu0 %v153
    %3666 = vmatpush1.msra.mxu0 %v152
    %3667 = vmatprep.subr.mxu0 %v149
    %3668 = vmatpush1.msra.mxu0 %v148
    %3669 = vmatprep.subr.mxu0 0.0
    %3670 = vmatpush2.msra.mxu0 0.0
    %3671 = vmatprep.subr.mxu0 0.0
    %3672 = vmatpush2.msra.mxu0 0.0
    %3673 = vmatprep.subr.mxu0 0.0
    %3674 = vmatpush2.msra.mxu0 0.0
    %3675 = vmatprep.subr.mxu0 0.0
    %3676 = vmatpush2.msra.mxu0 0.0
    %3677 = vmatprep.subr.mxu0 0.0
    %3678 = vmatpush2.msra.mxu0 0.0
    %3679 = vmatprep.subr.mxu0 0.0
    %3680 = vmatpush2.msra.mxu0 0.0
    %3681 = vmatprep.subr.mxu0 0.0
    %3682 = vmatpush2.msra.mxu0 0.0
    %3683 = vmatprep.subr.mxu0 0.0
    %3684 = vmatpush2.msra.mxu0 0.0
    %3685 = vmatprep.subr.mxu0 0.0
    %3686 = vmatpush2.msra.mxu0 0.0
    %3687 = vmatprep.subr.mxu0 0.0
    %3688 = vmatpush2.msra.mxu0 0.0
    %3689 = vmatprep.subr.mxu0 0.0
    %3690 = vmatpush2.msra.mxu0 0.0
    %3691 = vmatprep.subr.mxu0 0.0
    %3692 = vmatpush2.msra.mxu0 0.0
    %3693 = vmatprep.subr.mxu0 0.0
    %3694 = vmatpush2.msra.mxu0 0.0
    %3695 = vmatprep.subr.mxu0 0.0
    %3696 = vmatpush2.msra.mxu0 0.0
    %3697 = vmatprep.subr.mxu0 0.0
    %3698 = vmatpush2.msra.mxu0 0.0
    %3699 = vmatprep.subr.mxu0 0.0
    %3700 = vmatpush2.msra.mxu0 0.0
    %3701 = vmatprep.mubr.f32.mxu0 0.0
    %3702 = vmatmul.mubr.f32.gmra.mxu0 %v3233
    %v3703 = vpop.f32.mrf.mxu0
    %v3704 = vadd.f32 0.0, %v3703
    %v3705 = vpop.f32.mrf.mxu0
    %v3706 = vadd.f32 0.0, %v3705
    %3707 = vdwg.mxu0
    %v3709 = vsel %vm455, %v3565, 0
    %3711 = vmatprep.subr.mxu0 0.0
    %3712 = vmatpush1.msra.mxu0 0.0
    %3713 = vmatprep.subr.mxu0 0.0
    %3714 = vmatpush1.msra.mxu0 0.0
    %3715 = vmatprep.subr.mxu0 0.0
    %3716 = vmatpush1.msra.mxu0 0.0
    %3717 = vmatprep.subr.mxu0 0.0
    %3718 = vmatpush1.msra.mxu0 0.0
    %3719 = vmatprep.subr.mxu0 0.0
    %3720 = vmatpush1.msra.mxu0 0.0
    %3721 = vmatprep.subr.mxu0 0.0
    %3722 = vmatpush1.msra.mxu0 0.0
    %3723 = vmatprep.subr.mxu0 0.0
    %3724 = vmatpush1.msra.mxu0 0.0
    %3725 = vmatprep.subr.mxu0 0.0
    %3726 = vmatpush1.msra.mxu0 0.0
    %3727 = vmatprep.subr.mxu0 0.0
    %3728 = vmatpush1.msra.mxu0 0.0
    %3729 = vmatprep.subr.mxu0 0.0
    %3730 = vmatpush1.msra.mxu0 0.0
    %3731 = vmatprep.subr.mxu0 0.0
    %3732 = vmatpush1.msra.mxu0 0.0
    %3733 = vmatprep.subr.mxu0 0.0
    %3734 = vmatpush1.msra.mxu0 0.0
    %3735 = vmatprep.subr.mxu0 %v143
    %3736 = vmatpush1.msra.mxu0 %v142
    %3737 = vmatprep.subr.mxu0 %v139
    %3738 = vmatpush1.msra.mxu0 %v138
    %3739 = vmatprep.subr.mxu0 %v135
    %3740 = vmatpush1.msra.mxu0 %v134
    %3741 = vmatprep.subr.mxu0 %v131
    %3742 = vmatpush1.msra.mxu0 %v130
    %3743 = vmatprep.subr.mxu0 0.0
    %3744 = vmatpush2.msra.mxu0 0.0
    %3745 = vmatprep.subr.mxu0 0.0
    %3746 = vmatpush2.msra.mxu0 0.0
    %3747 = vmatprep.subr.mxu0 0.0
    %3748 = vmatpush2.msra.mxu0 0.0
    %3749 = vmatprep.subr.mxu0 0.0
    %3750 = vmatpush2.msra.mxu0 0.0
    %3751 = vmatprep.subr.mxu0 0.0
    %3752 = vmatpush2.msra.mxu0 0.0
    %3753 = vmatprep.subr.mxu0 0.0
    %3754 = vmatpush2.msra.mxu0 0.0
    %3755 = vmatprep.subr.mxu0 0.0
    %3756 = vmatpush2.msra.mxu0 0.0
    %3757 = vmatprep.subr.mxu0 0.0
    %3758 = vmatpush2.msra.mxu0 0.0
    %3759 = vmatprep.subr.mxu0 0.0
    %3760 = vmatpush2.msra.mxu0 0.0
    %3761 = vmatprep.subr.mxu0 0.0
    %3762 = vmatpush2.msra.mxu0 0.0
    %3763 = vmatprep.subr.mxu0 0.0
    %3764 = vmatpush2.msra.mxu0 0.0
    %3765 = vmatprep.subr.mxu0 0.0
    %3766 = vmatpush2.msra.mxu0 0.0
    %3767 = vmatprep.subr.mxu0 0.0
    %3768 = vmatpush2.msra.mxu0 0.0
    %3769 = vmatprep.subr.mxu0 0.0
    %3770 = vmatpush2.msra.mxu0 0.0
    %3771 = vmatprep.subr.mxu0 0.0
    %3772 = vmatpush2.msra.mxu0 0.0
    %3773 = vmatprep.subr.mxu0 0.0
    %3774 = vmatpush2.msra.mxu0 0.0
    %3775 = vmatprep.mubr.f32.mxu0 0.0
    %3776 = vmatmul.mubr.f32.gmra.mxu0 %v3709
    %v3777 = vpop.f32.mrf.mxu0
    %v3778 = vadd.f32 %v3633, %v3777
    %v3779 = vpop.f32.mrf.mxu0
    %v3780 = vadd.f32 %v3635, %v3779
    %3781 = vdwg.mxu0
    %3782 = vmatprep.subr.mxu0 0.0
    %3783 = vmatpush1.msra.mxu0 0.0
    %3784 = vmatprep.subr.mxu0 0.0
    %3785 = vmatpush1.msra.mxu0 0.0
    %3786 = vmatprep.subr.mxu0 0.0
    %3787 = vmatpush1.msra.mxu0 0.0
    %3788 = vmatprep.subr.mxu0 0.0
    %3789 = vmatpush1.msra.mxu0 0.0
    %3790 = vmatprep.subr.mxu0 0.0
    %3791 = vmatpush1.msra.mxu0 0.0
    %3792 = vmatprep.subr.mxu0 0.0
    %3793 = vmatpush1.msra.mxu0 0.0
    %3794 = vmatprep.subr.mxu0 0.0
    %3795 = vmatpush1.msra.mxu0 0.0
    %3796 = vmatprep.subr.mxu0 0.0
    %3797 = vmatpush1.msra.mxu0 0.0
    %3798 = vmatprep.subr.mxu0 0.0
    %3799 = vmatpush1.msra.mxu0 0.0
    %3800 = vmatprep.subr.mxu0 0.0
    %3801 = vmatpush1.msra.mxu0 0.0
    %3802 = vmatprep.subr.mxu0 0.0
    %3803 = vmatpush1.msra.mxu0 0.0
    %3804 = vmatprep.subr.mxu0 0.0
    %3805 = vmatpush1.msra.mxu0 0.0
    %3806 = vmatprep.subr.mxu0 %v145
    %3807 = vmatpush1.msra.mxu0 %v144
    %3808 = vmatprep.subr.mxu0 %v141
    %3809 = vmatpush1.msra.mxu0 %v140
    %3810 = vmatprep.subr.mxu0 %v137
    %3811 = vmatpush1.msra.mxu0 %v136
    %3812 = vmatprep.subr.mxu0 %v133
    %3813 = vmatpush1.msra.mxu0 %v132
    %3814 = vmatprep.subr.mxu0 0.0
    %3815 = vmatpush2.msra.mxu0 0.0
    %3816 = vmatprep.subr.mxu0 0.0
    %3817 = vmatpush2.msra.mxu0 0.0
    %3818 = vmatprep.subr.mxu0 0.0
    %3819 = vmatpush2.msra.mxu0 0.0
    %3820 = vmatprep.subr.mxu0 0.0
    %3821 = vmatpush2.msra.mxu0 0.0
    %3822 = vmatprep.subr.mxu0 0.0
    %3823 = vmatpush2.msra.mxu0 0.0
    %3824 = vmatprep.subr.mxu0 0.0
    %3825 = vmatpush2.msra.mxu0 0.0
    %3826 = vmatprep.subr.mxu0 0.0
    %3827 = vmatpush2.msra.mxu0 0.0
    %3828 = vmatprep.subr.mxu0 0.0
    %3829 = vmatpush2.msra.mxu0 0.0
    %3830 = vmatprep.subr.mxu0 0.0
    %3831 = vmatpush2.msra.mxu0 0.0
    %3832 = vmatprep.subr.mxu0 0.0
    %3833 = vmatpush2.msra.mxu0 0.0
    %3834 = vmatprep.subr.mxu0 0.0
    %3835 = vmatpush2.msra.mxu0 0.0
    %3836 = vmatprep.subr.mxu0 0.0
    %3837 = vmatpush2.msra.mxu0 0.0
    %3838 = vmatprep.subr.mxu0 0.0
    %3839 = vmatpush2.msra.mxu0 0.0
    %3840 = vmatprep.subr.mxu0 0.0
    %3841 = vmatpush2.msra.mxu0 0.0
    %3842 = vmatprep.subr.mxu0 0.0
    %3843 = vmatpush2.msra.mxu0 0.0
    %3844 = vmatprep.subr.mxu0 0.0
    %3845 = vmatpush2.msra.mxu0 0.0
    %3846 = vmatprep.mubr.f32.mxu0 0.0
    %3847 = vmatmul.mubr.f32.gmra.mxu0 %v3709
    %v3848 = vpop.f32.mrf.mxu0
    %v3849 = vadd.f32 %v3704, %v3848
    %v3850 = vpop.f32.mrf.mxu0
    %v3851 = vadd.f32 %v3706, %v3850
    %3852 = vdwg.mxu0
    %v3853 = vadd.f32 %v3778, %v605
    %v3854 = vadd.f32 %v3780, %v609
    %v3855 = vadd.f32 %v3849, %v613
    %v3856 = vadd.f32 %v3851, %v617
    %v3857 = vmul.f32 %v3853, 0.5
    %v3858 = vtanh.pop %v3857
    %v3859 = vmul.f32 %v3858, 0.5
    %v3860 = vadd.f32 %v3859, 0.5
    %v3861 = vmul.f32 %v3854, 0.5
    %v3862 = vtanh.pop %v3861
    %v3863 = vmul.f32 %v3862, 0.5
    %v3864 = vadd.f32 %v3863, 0.5
    %v3865 = vtanh.pop %v3855
    %v3866 = vmul.f32 %v3856, 0.5
    %v3867 = vtanh.pop %v3866
    %v3868 = vmul.f32 %v3867, 0.5
    %v3869 = vadd.f32 %v3868, 0.5
    %v3870 = vmul.f32 %v3864, %v3234
    %v3871 = vmul.f32 %v3860, %v3865
    %v3872 = vadd.f32 %v3870, %v3871
    %v3873 = vtanh.pop %v3872
    %v3874 = vmul.f32 %v3869, %v3873
    %v3875 = vsel %vm3556, %v3874, %v3233
    %v3876 = vsel %vm3556, %v3872, %v3234
    %s3877 = scalar_lea.vmem [#allocation9], 16
    %v3878 = vld [vmem:[%s3877] sm:$0xff]
    %3879 = vmatprep.subr.mxu0 %v288
    %3880 = vmatpush1.msra.mxu0 %v287
    %3881 = vmatprep.subr.mxu0 %v284
    %3882 = vmatpush1.msra.mxu0 %v283
    %3883 = vmatprep.subr.mxu0 %v280
    %3884 = vmatpush1.msra.mxu0 %v279
    %3885 = vmatprep.subr.mxu0 %v276
    %3886 = vmatpush1.msra.mxu0 %v275
    %3887 = vmatprep.subr.mxu0 %v272
    %3888 = vmatpush1.msra.mxu0 %v271
    %3889 = vmatprep.subr.mxu0 %v268
    %3890 = vmatpush1.msra.mxu0 %v267
    %3891 = vmatprep.subr.mxu0 %v264
    %3892 = vmatpush1.msra.mxu0 %v263
    %3893 = vmatprep.subr.mxu0 %v260
    %3894 = vmatpush1.msra.mxu0 %v259
    %3895 = vmatprep.subr.mxu0 %v256
    %3896 = vmatpush1.msra.mxu0 %v255
    %3897 = vmatprep.subr.mxu0 %v252
    %3898 = vmatpush1.msra.mxu0 %v251
    %3899 = vmatprep.subr.mxu0 %v248
    %3900 = vmatpush1.msra.mxu0 %v247
    %3901 = vmatprep.subr.mxu0 %v244
    %3902 = vmatpush1.msra.mxu0 %v243
    %3903 = vmatprep.subr.mxu0 %v240
    %3904 = vmatpush1.msra.mxu0 %v239
    %3905 = vmatprep.subr.mxu0 %v236
    %3906 = vmatpush1.msra.mxu0 %v235
    %3907 = vmatprep.subr.mxu0 %v232
    %3908 = vmatpush1.msra.mxu0 %v231
    %3909 = vmatprep.subr.mxu0 %v228
    %3910 = vmatpush1.msra.mxu0 %v227
    %3911 = vmatprep.subr.mxu0 0.0
    %3912 = vmatpush2.msra.mxu0 0.0
    %3913 = vmatprep.subr.mxu0 0.0
    %3914 = vmatpush2.msra.mxu0 0.0
    %3915 = vmatprep.subr.mxu0 0.0
    %3916 = vmatpush2.msra.mxu0 0.0
    %3917 = vmatprep.subr.mxu0 0.0
    %3918 = vmatpush2.msra.mxu0 0.0
    %3919 = vmatprep.subr.mxu0 0.0
    %3920 = vmatpush2.msra.mxu0 0.0
    %3921 = vmatprep.subr.mxu0 0.0
    %3922 = vmatpush2.msra.mxu0 0.0
    %3923 = vmatprep.subr.mxu0 0.0
    %3924 = vmatpush2.msra.mxu0 0.0
    %3925 = vmatprep.subr.mxu0 0.0
    %3926 = vmatpush2.msra.mxu0 0.0
    %3927 = vmatprep.subr.mxu0 0.0
    %3928 = vmatpush2.msra.mxu0 0.0
    %3929 = vmatprep.subr.mxu0 0.0
    %3930 = vmatpush2.msra.mxu0 0.0
    %3931 = vmatprep.subr.mxu0 0.0
    %3932 = vmatpush2.msra.mxu0 0.0
    %3933 = vmatprep.subr.mxu0 0.0
    %3934 = vmatpush2.msra.mxu0 0.0
    %3935 = vmatprep.subr.mxu0 0.0
    %3936 = vmatpush2.msra.mxu0 0.0
    %3937 = vmatprep.subr.mxu0 0.0
    %3938 = vmatpush2.msra.mxu0 0.0
    %3939 = vmatprep.subr.mxu0 0.0
    %3940 = vmatpush2.msra.mxu0 0.0
    %3941 = vmatprep.subr.mxu0 0.0
    %3942 = vmatpush2.msra.mxu0 0.0
    %3943 = vmatprep.mubr.f32.mxu0 0.0
    %3944 = vmatmul.mubr.f32.gmra.mxu0 %v3546
    %v3945 = vpop.f32.mrf.mxu0
    %v3946 = vadd.f32 0.0, %v3945
    %v3947 = vpop.f32.mrf.mxu0
    %v3948 = vadd.f32 0.0, %v3947
    %3949 = vdwg.mxu0
    %3950 = vmatprep.subr.mxu0 %v290
    %3951 = vmatpush1.msra.mxu0 %v289
    %3952 = vmatprep.subr.mxu0 %v286
    %3953 = vmatpush1.msra.mxu0 %v285
    %3954 = vmatprep.subr.mxu0 %v282
    %3955 = vmatpush1.msra.mxu0 %v281
    %3956 = vmatprep.subr.mxu0 %v278
    %3957 = vmatpush1.msra.mxu0 %v277
    %3958 = vmatprep.subr.mxu0 %v274
    %3959 = vmatpush1.msra.mxu0 %v273
    %3960 = vmatprep.subr.mxu0 %v270
    %3961 = vmatpush1.msra.mxu0 %v269
    %3962 = vmatprep.subr.mxu0 %v266
    %3963 = vmatpush1.msra.mxu0 %v265
    %3964 = vmatprep.subr.mxu0 %v262
    %3965 = vmatpush1.msra.mxu0 %v261
    %3966 = vmatprep.subr.mxu0 %v258
    %3967 = vmatpush1.msra.mxu0 %v257
    %3968 = vmatprep.subr.mxu0 %v254
    %3969 = vmatpush1.msra.mxu0 %v253
    %3970 = vmatprep.subr.mxu0 %v250
    %3971 = vmatpush1.msra.mxu0 %v249
    %3972 = vmatprep.subr.mxu0 %v246
    %3973 = vmatpush1.msra.mxu0 %v245
    %3974 = vmatprep.subr.mxu0 %v242
    %3975 = vmatpush1.msra.mxu0 %v241
    %3976 = vmatprep.subr.mxu0 %v238
    %3977 = vmatpush1.msra.mxu0 %v237
    %3978 = vmatprep.subr.mxu0 %v234
    %3979 = vmatpush1.msra.mxu0 %v233
    %3980 = vmatprep.subr.mxu0 %v230
    %3981 = vmatpush1.msra.mxu0 %v229
    %3982 = vmatprep.subr.mxu0 0.0
    %3983 = vmatpush2.msra.mxu0 0.0
    %3984 = vmatprep.subr.mxu0 0.0
    %3985 = vmatpush2.msra.mxu0 0.0
    %3986 = vmatprep.subr.mxu0 0.0
    %3987 = vmatpush2.msra.mxu0 0.0
    %3988 = vmatprep.subr.mxu0 0.0
    %3989 = vmatpush2.msra.mxu0 0.0
    %3990 = vmatprep.subr.mxu0 0.0
    %3991 = vmatpush2.msra.mxu0 0.0
    %3992 = vmatprep.subr.mxu0 0.0
    %3993 = vmatpush2.msra.mxu0 0.0
    %3994 = vmatprep.subr.mxu0 0.0
    %3995 = vmatpush2.msra.mxu0 0.0
    %3996 = vmatprep.subr.mxu0 0.0
    %3997 = vmatpush2.msra.mxu0 0.0
    %3998 = vmatprep.subr.mxu0 0.0
    %3999 = vmatpush2.msra.mxu0 0.0
    %4000 = vmatprep.subr.mxu0 0.0
    %4001 = vmatpush2.msra.mxu0 0.0
    %4002 = vmatprep.subr.mxu0 0.0
    %4003 = vmatpush2.msra.mxu0 0.0
    %4004 = vmatprep.subr.mxu0 0.0
    %4005 = vmatpush2.msra.mxu0 0.0
    %4006 = vmatprep.subr.mxu0 0.0
    %4007 = vmatpush2.msra.mxu0 0.0
    %4008 = vmatprep.subr.mxu0 0.0
    %4009 = vmatpush2.msra.mxu0 0.0
    %4010 = vmatprep.subr.mxu0 0.0
    %4011 = vmatpush2.msra.mxu0 0.0
    %4012 = vmatprep.subr.mxu0 0.0
    %4013 = vmatpush2.msra.mxu0 0.0
    %4014 = vmatprep.mubr.f32.mxu0 0.0
    %4015 = vmatmul.mubr.f32.gmra.mxu0 %v3546
    %v4016 = vpop.f32.mrf.mxu0
    %v4017 = vadd.f32 0.0, %v4016
    %v4018 = vpop.f32.mrf.mxu0
    %v4019 = vadd.f32 0.0, %v4018
    %4020 = vdwg.mxu0
    %v4022 = vsel %vm455, %v3878, 0
    %4024 = vmatprep.subr.mxu0 0.0
    %4025 = vmatpush1.msra.mxu0 0.0
    %4026 = vmatprep.subr.mxu0 0.0
    %4027 = vmatpush1.msra.mxu0 0.0
    %4028 = vmatprep.subr.mxu0 0.0
    %4029 = vmatpush1.msra.mxu0 0.0
    %4030 = vmatprep.subr.mxu0 0.0
    %4031 = vmatpush1.msra.mxu0 0.0
    %4032 = vmatprep.subr.mxu0 0.0
    %4033 = vmatpush1.msra.mxu0 0.0
    %4034 = vmatprep.subr.mxu0 0.0
    %4035 = vmatpush1.msra.mxu0 0.0
    %4036 = vmatprep.subr.mxu0 0.0
    %4037 = vmatpush1.msra.mxu0 0.0
    %4038 = vmatprep.subr.mxu0 0.0
    %4039 = vmatpush1.msra.mxu0 0.0
    %4040 = vmatprep.subr.mxu0 0.0
    %4041 = vmatpush1.msra.mxu0 0.0
    %4042 = vmatprep.subr.mxu0 0.0
    %4043 = vmatpush1.msra.mxu0 0.0
    %4044 = vmatprep.subr.mxu0 0.0
    %4045 = vmatpush1.msra.mxu0 0.0
    %4046 = vmatprep.subr.mxu0 0.0
    %4047 = vmatpush1.msra.mxu0 0.0
    %4048 = vmatprep.subr.mxu0 %v224
    %4049 = vmatpush1.msra.mxu0 %v223
    %4050 = vmatprep.subr.mxu0 %v220
    %4051 = vmatpush1.msra.mxu0 %v219
    %4052 = vmatprep.subr.mxu0 %v216
    %4053 = vmatpush1.msra.mxu0 %v215
    %4054 = vmatprep.subr.mxu0 %v212
    %4055 = vmatpush1.msra.mxu0 %v211
    %4056 = vmatprep.subr.mxu0 0.0
    %4057 = vmatpush2.msra.mxu0 0.0
    %4058 = vmatprep.subr.mxu0 0.0
    %4059 = vmatpush2.msra.mxu0 0.0
    %4060 = vmatprep.subr.mxu0 0.0
    %4061 = vmatpush2.msra.mxu0 0.0
    %4062 = vmatprep.subr.mxu0 0.0
    %4063 = vmatpush2.msra.mxu0 0.0
    %4064 = vmatprep.subr.mxu0 0.0
    %4065 = vmatpush2.msra.mxu0 0.0
    %4066 = vmatprep.subr.mxu0 0.0
    %4067 = vmatpush2.msra.mxu0 0.0
    %4068 = vmatprep.subr.mxu0 0.0
    %4069 = vmatpush2.msra.mxu0 0.0
    %4070 = vmatprep.subr.mxu0 0.0
    %4071 = vmatpush2.msra.mxu0 0.0
    %4072 = vmatprep.subr.mxu0 0.0
    %4073 = vmatpush2.msra.mxu0 0.0
    %4074 = vmatprep.subr.mxu0 0.0
    %4075 = vmatpush2.msra.mxu0 0.0
    %4076 = vmatprep.subr.mxu0 0.0
    %4077 = vmatpush2.msra.mxu0 0.0
    %4078 = vmatprep.subr.mxu0 0.0
    %4079 = vmatpush2.msra.mxu0 0.0
    %4080 = vmatprep.subr.mxu0 0.0
    %4081 = vmatpush2.msra.mxu0 0.0
    %4082 = vmatprep.subr.mxu0 0.0
    %4083 = vmatpush2.msra.mxu0 0.0
    %4084 = vmatprep.subr.mxu0 0.0
    %4085 = vmatpush2.msra.mxu0 0.0
    %4086 = vmatprep.subr.mxu0 0.0
    %4087 = vmatpush2.msra.mxu0 0.0
    %4088 = vmatprep.mubr.f32.mxu0 0.0
    %4089 = vmatmul.mubr.f32.gmra.mxu0 %v4022
    %v4090 = vpop.f32.mrf.mxu0
    %v4091 = vadd.f32 %v3946, %v4090
    %v4092 = vpop.f32.mrf.mxu0
    %v4093 = vadd.f32 %v3948, %v4092
    %4094 = vdwg.mxu0
    %4095 = vmatprep.subr.mxu0 0.0
    %4096 = vmatpush1.msra.mxu0 0.0
    %4097 = vmatprep.subr.mxu0 0.0
    %4098 = vmatpush1.msra.mxu0 0.0
    %4099 = vmatprep.subr.mxu0 0.0
    %4100 = vmatpush1.msra.mxu0 0.0
    %4101 = vmatprep.subr.mxu0 0.0
    %4102 = vmatpush1.msra.mxu0 0.0
    %4103 = vmatprep.subr.mxu0 0.0
    %4104 = vmatpush1.msra.mxu0 0.0
    %4105 = vmatprep.subr.mxu0 0.0
    %4106 = vmatpush1.msra.mxu0 0.0
    %4107 = vmatprep.subr.mxu0 0.0
    %4108 = vmatpush1.msra.mxu0 0.0
    %4109 = vmatprep.subr.mxu0 0.0
    %4110 = vmatpush1.msra.mxu0 0.0
    %4111 = vmatprep.subr.mxu0 0.0
    %4112 = vmatpush1.msra.mxu0 0.0
    %4113 = vmatprep.subr.mxu0 0.0
    %4114 = vmatpush1.msra.mxu0 0.0
    %4115 = vmatprep.subr.mxu0 0.0
    %4116 = vmatpush1.msra.mxu0 0.0
    %4117 = vmatprep.subr.mxu0 0.0
    %4118 = vmatpush1.msra.mxu0 0.0
    %4119 = vmatprep.subr.mxu0 %v226
    %4120 = vmatpush1.msra.mxu0 %v225
    %4121 = vmatprep.subr.mxu0 %v222
    %4122 = vmatpush1.msra.mxu0 %v221
    %4123 = vmatprep.subr.mxu0 %v218
    %4124 = vmatpush1.msra.mxu0 %v217
    %4125 = vmatprep.subr.mxu0 %v214
    %4126 = vmatpush1.msra.mxu0 %v213
    %4127 = vmatprep.subr.mxu0 0.0
    %4128 = vmatpush2.msra.mxu0 0.0
    %4129 = vmatprep.subr.mxu0 0.0
    %4130 = vmatpush2.msra.mxu0 0.0
    %4131 = vmatprep.subr.mxu0 0.0
    %4132 = vmatpush2.msra.mxu0 0.0
    %4133 = vmatprep.subr.mxu0 0.0
    %4134 = vmatpush2.msra.mxu0 0.0
    %4135 = vmatprep.subr.mxu0 0.0
    %4136 = vmatpush2.msra.mxu0 0.0
    %4137 = vmatprep.subr.mxu0 0.0
    %4138 = vmatpush2.msra.mxu0 0.0
    %4139 = vmatprep.subr.mxu0 0.0
    %4140 = vmatpush2.msra.mxu0 0.0
    %4141 = vmatprep.subr.mxu0 0.0
    %4142 = vmatpush2.msra.mxu0 0.0
    %4143 = vmatprep.subr.mxu0 0.0
    %4144 = vmatpush2.msra.mxu0 0.0
    %4145 = vmatprep.subr.mxu0 0.0
    %4146 = vmatpush2.msra.mxu0 0.0
    %4147 = vmatprep.subr.mxu0 0.0
    %4148 = vmatpush2.msra.mxu0 0.0
    %4149 = vmatprep.subr.mxu0 0.0
    %4150 = vmatpush2.msra.mxu0 0.0
    %4151 = vmatprep.subr.mxu0 0.0
    %4152 = vmatpush2.msra.mxu0 0.0
    %4153 = vmatprep.subr.mxu0 0.0
    %4154 = vmatpush2.msra.mxu0 0.0
    %4155 = vmatprep.subr.mxu0 0.0
    %4156 = vmatpush2.msra.mxu0 0.0
    %4157 = vmatprep.subr.mxu0 0.0
    %4158 = vmatpush2.msra.mxu0 0.0
    %4159 = vmatprep.mubr.f32.mxu0 0.0
    %4160 = vmatmul.mubr.f32.gmra.mxu0 %v4022
    %v4161 = vpop.f32.mrf.mxu0
    %v4162 = vadd.f32 %v4017, %v4161
    %v4163 = vpop.f32.mrf.mxu0
    %v4164 = vadd.f32 %v4019, %v4163
    %4165 = vdwg.mxu0
    %v4166 = vadd.f32 %v4091, %v939
    %v4167 = vadd.f32 %v4093, %v943
    %v4168 = vadd.f32 %v4162, %v947
    %v4169 = vadd.f32 %v4164, %v951
    %v4170 = vmul.f32 %v4166, 0.5
    %v4171 = vtanh.pop %v4170
    %v4172 = vmul.f32 %v4171, 0.5
    %v4173 = vadd.f32 %v4172, 0.5
    %v4174 = vmul.f32 %v4167, 0.5
    %v4175 = vtanh.pop %v4174
    %v4176 = vmul.f32 %v4175, 0.5
    %v4177 = vadd.f32 %v4176, 0.5
    %v4178 = vtanh.pop %v4168
    %v4179 = vmul.f32 %v4169, 0.5
    %v4180 = vtanh.pop %v4179
    %v4181 = vmul.f32 %v4180, 0.5
    %v4182 = vadd.f32 %v4181, 0.5
    %v4183 = vmul.f32 %v4177, %v3547
    %v4184 = vmul.f32 %v4173, %v4178
    %v4185 = vadd.f32 %v4183, %v4184
    %v4186 = vtanh.pop %v4185
    %v4187 = vmul.f32 %v4182, %v4186
    %v4188 = vsel %vm3563, %v4187, %v3546
    %v4189 = vsel %vm3563, %v4185, %v3547
    %s4190 = sadd.s32 %s296, 6
    %s4191 = ssub.s32 1, %s296
    %v4192 = vstv %s4190
    %vm4193 = vcmp.lt.s32.totalorder %v4192, %v129
    %v4194 = vsel %vm4193, 1, 0
    %4195 = vset.pattern.permute.xlu0 0
    %4196 = vperm.xlu0 %4195, %v4194
    %v4197 = vpop.permute.xlu0 %4196
    %vm4198 = vcmp.eq.s32.totalorder %v4197, 1
    %v4199 = vstv %s4191
    %vm4200 = vcmp.lt.s32.totalorder %v4199, %v129
    %v4201 = vsel %vm4200, 1, 0
    %4202 = vset.pattern.permute.xlu0 0
    %4203 = vperm.xlu0 %4202, %v4201
    %v4204 = vpop.permute.xlu0 %4203
    %vm4205 = vcmp.eq.s32.totalorder %v4204, 1
    %s4206 = scalar_lea.vmem [#allocation6], 48
    %v4207 = vld [vmem:[%s4206] sm:$0xff]
    %4208 = vmatprep.subr.mxu0 %v207
    %4209 = vmatpush1.msra.mxu0 %v206
    %4210 = vmatprep.subr.mxu0 %v203
    %4211 = vmatpush1.msra.mxu0 %v202
    %4212 = vmatprep.subr.mxu0 %v199
    %4213 = vmatpush1.msra.mxu0 %v198
    %4214 = vmatprep.subr.mxu0 %v195
    %4215 = vmatpush1.msra.mxu0 %v194
    %4216 = vmatprep.subr.mxu0 %v191
    %4217 = vmatpush1.msra.mxu0 %v190
    %4218 = vmatprep.subr.mxu0 %v187
    %4219 = vmatpush1.msra.mxu0 %v186
    %4220 = vmatprep.subr.mxu0 %v183
    %4221 = vmatpush1.msra.mxu0 %v182
    %4222 = vmatprep.subr.mxu0 %v179
    %4223 = vmatpush1.msra.mxu0 %v178
    %4224 = vmatprep.subr.mxu0 %v175
    %4225 = vmatpush1.msra.mxu0 %v174
    %4226 = vmatprep.subr.mxu0 %v171
    %4227 = vmatpush1.msra.mxu0 %v170
    %4228 = vmatprep.subr.mxu0 %v167
    %4229 = vmatpush1.msra.mxu0 %v166
    %4230 = vmatprep.subr.mxu0 %v163
    %4231 = vmatpush1.msra.mxu0 %v162
    %4232 = vmatprep.subr.mxu0 %v159
    %4233 = vmatpush1.msra.mxu0 %v158
    %4234 = vmatprep.subr.mxu0 %v155
    %4235 = vmatpush1.msra.mxu0 %v154
    %4236 = vmatprep.subr.mxu0 %v151
    %4237 = vmatpush1.msra.mxu0 %v150
    %4238 = vmatprep.subr.mxu0 %v147
    %4239 = vmatpush1.msra.mxu0 %v146
    %4240 = vmatprep.subr.mxu0 0.0
    %4241 = vmatpush2.msra.mxu0 0.0
    %4242 = vmatprep.subr.mxu0 0.0
    %4243 = vmatpush2.msra.mxu0 0.0
    %4244 = vmatprep.subr.mxu0 0.0
    %4245 = vmatpush2.msra.mxu0 0.0
    %4246 = vmatprep.subr.mxu0 0.0
    %4247 = vmatpush2.msra.mxu0 0.0
    %4248 = vmatprep.subr.mxu0 0.0
    %4249 = vmatpush2.msra.mxu0 0.0
    %4250 = vmatprep.subr.mxu0 0.0
    %4251 = vmatpush2.msra.mxu0 0.0
    %4252 = vmatprep.subr.mxu0 0.0
    %4253 = vmatpush2.msra.mxu0 0.0
    %4254 = vmatprep.subr.mxu0 0.0
    %4255 = vmatpush2.msra.mxu0 0.0
    %4256 = vmatprep.subr.mxu0 0.0
    %4257 = vmatpush2.msra.mxu0 0.0
    %4258 = vmatprep.subr.mxu0 0.0
    %4259 = vmatpush2.msra.mxu0 0.0
    %4260 = vmatprep.subr.mxu0 0.0
    %4261 = vmatpush2.msra.mxu0 0.0
    %4262 = vmatprep.subr.mxu0 0.0
    %4263 = vmatpush2.msra.mxu0 0.0
    %4264 = vmatprep.subr.mxu0 0.0
    %4265 = vmatpush2.msra.mxu0 0.0
    %4266 = vmatprep.subr.mxu0 0.0
    %4267 = vmatpush2.msra.mxu0 0.0
    %4268 = vmatprep.subr.mxu0 0.0
    %4269 = vmatpush2.msra.mxu0 0.0
    %4270 = vmatprep.subr.mxu0 0.0
    %4271 = vmatpush2.msra.mxu0 0.0
    %4272 = vmatprep.mubr.f32.mxu0 0.0
    %4273 = vmatmul.mubr.f32.gmra.mxu0 %v3875
    %v4274 = vpop.f32.mrf.mxu0
    %v4275 = vadd.f32 0.0, %v4274
    %v4276 = vpop.f32.mrf.mxu0
    %v4277 = vadd.f32 0.0, %v4276
    %4278 = vdwg.mxu0
    %4279 = vmatprep.subr.mxu0 %v209
    %4280 = vmatpush1.msra.mxu0 %v208
    %4281 = vmatprep.subr.mxu0 %v205
    %4282 = vmatpush1.msra.mxu0 %v204
    %4283 = vmatprep.subr.mxu0 %v201
    %4284 = vmatpush1.msra.mxu0 %v200
    %4285 = vmatprep.subr.mxu0 %v197
    %4286 = vmatpush1.msra.mxu0 %v196
    %4287 = vmatprep.subr.mxu0 %v193
    %4288 = vmatpush1.msra.mxu0 %v192
    %4289 = vmatprep.subr.mxu0 %v189
    %4290 = vmatpush1.msra.mxu0 %v188
    %4291 = vmatprep.subr.mxu0 %v185
    %4292 = vmatpush1.msra.mxu0 %v184
    %4293 = vmatprep.subr.mxu0 %v181
    %4294 = vmatpush1.msra.mxu0 %v180
    %4295 = vmatprep.subr.mxu0 %v177
    %4296 = vmatpush1.msra.mxu0 %v176
    %4297 = vmatprep.subr.mxu0 %v173
    %4298 = vmatpush1.msra.mxu0 %v172
    %4299 = vmatprep.subr.mxu0 %v169
    %4300 = vmatpush1.msra.mxu0 %v168
    %4301 = vmatprep.subr.mxu0 %v165
    %4302 = vmatpush1.msra.mxu0 %v164
    %4303 = vmatprep.subr.mxu0 %v161
    %4304 = vmatpush1.msra.mxu0 %v160
    %4305 = vmatprep.subr.mxu0 %v157
    %4306 = vmatpush1.msra.mxu0 %v156
    %4307 = vmatprep.subr.mxu0 %v153
    %4308 = vmatpush1.msra.mxu0 %v152
    %4309 = vmatprep.subr.mxu0 %v149
    %4310 = vmatpush1.msra.mxu0 %v148
    %4311 = vmatprep.subr.mxu0 0.0
    %4312 = vmatpush2.msra.mxu0 0.0
    %4313 = vmatprep.subr.mxu0 0.0
    %4314 = vmatpush2.msra.mxu0 0.0
    %4315 = vmatprep.subr.mxu0 0.0
    %4316 = vmatpush2.msra.mxu0 0.0
    %4317 = vmatprep.subr.mxu0 0.0
    %4318 = vmatpush2.msra.mxu0 0.0
    %4319 = vmatprep.subr.mxu0 0.0
    %4320 = vmatpush2.msra.mxu0 0.0
    %4321 = vmatprep.subr.mxu0 0.0
    %4322 = vmatpush2.msra.mxu0 0.0
    %4323 = vmatprep.subr.mxu0 0.0
    %4324 = vmatpush2.msra.mxu0 0.0
    %4325 = vmatprep.subr.mxu0 0.0
    %4326 = vmatpush2.msra.mxu0 0.0
    %4327 = vmatprep.subr.mxu0 0.0
    %4328 = vmatpush2.msra.mxu0 0.0
    %4329 = vmatprep.subr.mxu0 0.0
    %4330 = vmatpush2.msra.mxu0 0.0
    %4331 = vmatprep.subr.mxu0 0.0
    %4332 = vmatpush2.msra.mxu0 0.0
    %4333 = vmatprep.subr.mxu0 0.0
    %4334 = vmatpush2.msra.mxu0 0.0
    %4335 = vmatprep.subr.mxu0 0.0
    %4336 = vmatpush2.msra.mxu0 0.0
    %4337 = vmatprep.subr.mxu0 0.0
    %4338 = vmatpush2.msra.mxu0 0.0
    %4339 = vmatprep.subr.mxu0 0.0
    %4340 = vmatpush2.msra.mxu0 0.0
    %4341 = vmatprep.subr.mxu0 0.0
    %4342 = vmatpush2.msra.mxu0 0.0
    %4343 = vmatprep.mubr.f32.mxu0 0.0
    %4344 = vmatmul.mubr.f32.gmra.mxu0 %v3875
    %v4345 = vpop.f32.mrf.mxu0
    %v4346 = vadd.f32 0.0, %v4345
    %v4347 = vpop.f32.mrf.mxu0
    %v4348 = vadd.f32 0.0, %v4347
    %4349 = vdwg.mxu0
    %v4351 = vsel %vm455, %v4207, 0
    %4353 = vmatprep.subr.mxu0 0.0
    %4354 = vmatpush1.msra.mxu0 0.0
    %4355 = vmatprep.subr.mxu0 0.0
    %4356 = vmatpush1.msra.mxu0 0.0
    %4357 = vmatprep.subr.mxu0 0.0
    %4358 = vmatpush1.msra.mxu0 0.0
    %4359 = vmatprep.subr.mxu0 0.0
    %4360 = vmatpush1.msra.mxu0 0.0
    %4361 = vmatprep.subr.mxu0 0.0
    %4362 = vmatpush1.msra.mxu0 0.0
    %4363 = vmatprep.subr.mxu0 0.0
    %4364 = vmatpush1.msra.mxu0 0.0
    %4365 = vmatprep.subr.mxu0 0.0
    %4366 = vmatpush1.msra.mxu0 0.0
    %4367 = vmatprep.subr.mxu0 0.0
    %4368 = vmatpush1.msra.mxu0 0.0
    %4369 = vmatprep.subr.mxu0 0.0
    %4370 = vmatpush1.msra.mxu0 0.0
    %4371 = vmatprep.subr.mxu0 0.0
    %4372 = vmatpush1.msra.mxu0 0.0
    %4373 = vmatprep.subr.mxu0 0.0
    %4374 = vmatpush1.msra.mxu0 0.0
    %4375 = vmatprep.subr.mxu0 0.0
    %4376 = vmatpush1.msra.mxu0 0.0
    %4377 = vmatprep.subr.mxu0 %v143
    %4378 = vmatpush1.msra.mxu0 %v142
    %4379 = vmatprep.subr.mxu0 %v139
    %4380 = vmatpush1.msra.mxu0 %v138
    %4381 = vmatprep.subr.mxu0 %v135
    %4382 = vmatpush1.msra.mxu0 %v134
    %4383 = vmatprep.subr.mxu0 %v131
    %4384 = vmatpush1.msra.mxu0 %v130
    %4385 = vmatprep.subr.mxu0 0.0
    %4386 = vmatpush2.msra.mxu0 0.0
    %4387 = vmatprep.subr.mxu0 0.0
    %4388 = vmatpush2.msra.mxu0 0.0
    %4389 = vmatprep.subr.mxu0 0.0
    %4390 = vmatpush2.msra.mxu0 0.0
    %4391 = vmatprep.subr.mxu0 0.0
    %4392 = vmatpush2.msra.mxu0 0.0
    %4393 = vmatprep.subr.mxu0 0.0
    %4394 = vmatpush2.msra.mxu0 0.0
    %4395 = vmatprep.subr.mxu0 0.0
    %4396 = vmatpush2.msra.mxu0 0.0
    %4397 = vmatprep.subr.mxu0 0.0
    %4398 = vmatpush2.msra.mxu0 0.0
    %4399 = vmatprep.subr.mxu0 0.0
    %4400 = vmatpush2.msra.mxu0 0.0
    %4401 = vmatprep.subr.mxu0 0.0
    %4402 = vmatpush2.msra.mxu0 0.0
    %4403 = vmatprep.subr.mxu0 0.0
    %4404 = vmatpush2.msra.mxu0 0.0
    %4405 = vmatprep.subr.mxu0 0.0
    %4406 = vmatpush2.msra.mxu0 0.0
    %4407 = vmatprep.subr.mxu0 0.0
    %4408 = vmatpush2.msra.mxu0 0.0
    %4409 = vmatprep.subr.mxu0 0.0
    %4410 = vmatpush2.msra.mxu0 0.0
    %4411 = vmatprep.subr.mxu0 0.0
    %4412 = vmatpush2.msra.mxu0 0.0
    %4413 = vmatprep.subr.mxu0 0.0
    %4414 = vmatpush2.msra.mxu0 0.0
    %4415 = vmatprep.subr.mxu0 0.0
    %4416 = vmatpush2.msra.mxu0 0.0
    %4417 = vmatprep.mubr.f32.mxu0 0.0
    %4418 = vmatmul.mubr.f32.gmra.mxu0 %v4351
    %v4419 = vpop.f32.mrf.mxu0
    %v4420 = vadd.f32 %v4275, %v4419
    %v4421 = vpop.f32.mrf.mxu0
    %v4422 = vadd.f32 %v4277, %v4421
    %4423 = vdwg.mxu0
    %4424 = vmatprep.subr.mxu0 0.0
    %4425 = vmatpush1.msra.mxu0 0.0
    %4426 = vmatprep.subr.mxu0 0.0
    %4427 = vmatpush1.msra.mxu0 0.0
    %4428 = vmatprep.subr.mxu0 0.0
    %4429 = vmatpush1.msra.mxu0 0.0
    %4430 = vmatprep.subr.mxu0 0.0
    %4431 = vmatpush1.msra.mxu0 0.0
    %4432 = vmatprep.subr.mxu0 0.0
    %4433 = vmatpush1.msra.mxu0 0.0
    %4434 = vmatprep.subr.mxu0 0.0
    %4435 = vmatpush1.msra.mxu0 0.0
    %4436 = vmatprep.subr.mxu0 0.0
    %4437 = vmatpush1.msra.mxu0 0.0
    %4438 = vmatprep.subr.mxu0 0.0
    %4439 = vmatpush1.msra.mxu0 0.0
    %4440 = vmatprep.subr.mxu0 0.0
    %4441 = vmatpush1.msra.mxu0 0.0
    %4442 = vmatprep.subr.mxu0 0.0
    %4443 = vmatpush1.msra.mxu0 0.0
    %4444 = vmatprep.subr.mxu0 0.0
    %4445 = vmatpush1.msra.mxu0 0.0
    %4446 = vmatprep.subr.mxu0 0.0
    %4447 = vmatpush1.msra.mxu0 0.0
    %4448 = vmatprep.subr.mxu0 %v145
    %4449 = vmatpush1.msra.mxu0 %v144
    %4450 = vmatprep.subr.mxu0 %v141
    %4451 = vmatpush1.msra.mxu0 %v140
    %4452 = vmatprep.subr.mxu0 %v137
    %4453 = vmatpush1.msra.mxu0 %v136
    %4454 = vmatprep.subr.mxu0 %v133
    %4455 = vmatpush1.msra.mxu0 %v132
    %4456 = vmatprep.subr.mxu0 0.0
    %4457 = vmatpush2.msra.mxu0 0.0
    %4458 = vmatprep.subr.mxu0 0.0
    %4459 = vmatpush2.msra.mxu0 0.0
    %4460 = vmatprep.subr.mxu0 0.0
    %4461 = vmatpush2.msra.mxu0 0.0
    %4462 = vmatprep.subr.mxu0 0.0
    %4463 = vmatpush2.msra.mxu0 0.0
    %4464 = vmatprep.subr.mxu0 0.0
    %4465 = vmatpush2.msra.mxu0 0.0
    %4466 = vmatprep.subr.mxu0 0.0
    %4467 = vmatpush2.msra.mxu0 0.0
    %4468 = vmatprep.subr.mxu0 0.0
    %4469 = vmatpush2.msra.mxu0 0.0
    %4470 = vmatprep.subr.mxu0 0.0
    %4471 = vmatpush2.msra.mxu0 0.0
    %4472 = vmatprep.subr.mxu0 0.0
    %4473 = vmatpush2.msra.mxu0 0.0
    %4474 = vmatprep.subr.mxu0 0.0
    %4475 = vmatpush2.msra.mxu0 0.0
    %4476 = vmatprep.subr.mxu0 0.0
    %4477 = vmatpush2.msra.mxu0 0.0
    %4478 = vmatprep.subr.mxu0 0.0
    %4479 = vmatpush2.msra.mxu0 0.0
    %4480 = vmatprep.subr.mxu0 0.0
    %4481 = vmatpush2.msra.mxu0 0.0
    %4482 = vmatprep.subr.mxu0 0.0
    %4483 = vmatpush2.msra.mxu0 0.0
    %4484 = vmatprep.subr.mxu0 0.0
    %4485 = vmatpush2.msra.mxu0 0.0
    %4486 = vmatprep.subr.mxu0 0.0
    %4487 = vmatpush2.msra.mxu0 0.0
    %4488 = vmatprep.mubr.f32.mxu0 0.0
    %4489 = vmatmul.mubr.f32.gmra.mxu0 %v4351
    %v4490 = vpop.f32.mrf.mxu0
    %v4491 = vadd.f32 %v4346, %v4490
    %v4492 = vpop.f32.mrf.mxu0
    %v4493 = vadd.f32 %v4348, %v4492
    %4494 = vdwg.mxu0
    %v4495 = vadd.f32 %v4420, %v605
    %v4496 = vadd.f32 %v4422, %v609
    %v4497 = vadd.f32 %v4491, %v613
    %v4498 = vadd.f32 %v4493, %v617
    %v4499 = vmul.f32 %v4495, 0.5
    %v4500 = vtanh.pop %v4499
    %v4501 = vmul.f32 %v4500, 0.5
    %v4502 = vadd.f32 %v4501, 0.5
    %v4503 = vmul.f32 %v4496, 0.5
    %v4504 = vtanh.pop %v4503
    %v4505 = vmul.f32 %v4504, 0.5
    %v4506 = vadd.f32 %v4505, 0.5
    %v4507 = vtanh.pop %v4497
    %v4508 = vmul.f32 %v4498, 0.5
    %v4509 = vtanh.pop %v4508
    %v4510 = vmul.f32 %v4509, 0.5
    %v4511 = vadd.f32 %v4510, 0.5
    %v4512 = vmul.f32 %v4506, %v3876
    %v4513 = vmul.f32 %v4502, %v4507
    %v4514 = vadd.f32 %v4512, %v4513
    %v4515 = vtanh.pop %v4514
    %v4516 = vmul.f32 %v4511, %v4515
    %v4517 = vsel %vm4198, %v4516, %v3875
    %v4518 = vsel %vm4198, %v4514, %v3876
    %s4519 = scalar_lea.vmem [#allocation9], 8
    %v4520 = vld [vmem:[%s4519] sm:$0xff]
    %4521 = vmatprep.subr.mxu0 %v288
    %4522 = vmatpush1.msra.mxu0 %v287
    %4523 = vmatprep.subr.mxu0 %v284
    %4524 = vmatpush1.msra.mxu0 %v283
    %4525 = vmatprep.subr.mxu0 %v280
    %4526 = vmatpush1.msra.mxu0 %v279
    %4527 = vmatprep.subr.mxu0 %v276
    %4528 = vmatpush1.msra.mxu0 %v275
    %4529 = vmatprep.subr.mxu0 %v272
    %4530 = vmatpush1.msra.mxu0 %v271
    %4531 = vmatprep.subr.mxu0 %v268
    %4532 = vmatpush1.msra.mxu0 %v267
    %4533 = vmatprep.subr.mxu0 %v264
    %4534 = vmatpush1.msra.mxu0 %v263
    %4535 = vmatprep.subr.mxu0 %v260
    %4536 = vmatpush1.msra.mxu0 %v259
    %4537 = vmatprep.subr.mxu0 %v256
    %4538 = vmatpush1.msra.mxu0 %v255
    %4539 = vmatprep.subr.mxu0 %v252
    %4540 = vmatpush1.msra.mxu0 %v251
    %4541 = vmatprep.subr.mxu0 %v248
    %4542 = vmatpush1.msra.mxu0 %v247
    %4543 = vmatprep.subr.mxu0 %v244
    %4544 = vmatpush1.msra.mxu0 %v243
    %4545 = vmatprep.subr.mxu0 %v240
    %4546 = vmatpush1.msra.mxu0 %v239
    %4547 = vmatprep.subr.mxu0 %v236
    %4548 = vmatpush1.msra.mxu0 %v235
    %4549 = vmatprep.subr.mxu0 %v232
    %4550 = vmatpush1.msra.mxu0 %v231
    %4551 = vmatprep.subr.mxu0 %v228
    %4552 = vmatpush1.msra.mxu0 %v227
    %4553 = vmatprep.subr.mxu0 0.0
    %4554 = vmatpush2.msra.mxu0 0.0
    %4555 = vmatprep.subr.mxu0 0.0
    %4556 = vmatpush2.msra.mxu0 0.0
    %4557 = vmatprep.subr.mxu0 0.0
    %4558 = vmatpush2.msra.mxu0 0.0
    %4559 = vmatprep.subr.mxu0 0.0
    %4560 = vmatpush2.msra.mxu0 0.0
    %4561 = vmatprep.subr.mxu0 0.0
    %4562 = vmatpush2.msra.mxu0 0.0
    %4563 = vmatprep.subr.mxu0 0.0
    %4564 = vmatpush2.msra.mxu0 0.0
    %4565 = vmatprep.subr.mxu0 0.0
    %4566 = vmatpush2.msra.mxu0 0.0
    %4567 = vmatprep.subr.mxu0 0.0
    %4568 = vmatpush2.msra.mxu0 0.0
    %4569 = vmatprep.subr.mxu0 0.0
    %4570 = vmatpush2.msra.mxu0 0.0
    %4571 = vmatprep.subr.mxu0 0.0
    %4572 = vmatpush2.msra.mxu0 0.0
    %4573 = vmatprep.subr.mxu0 0.0
    %4574 = vmatpush2.msra.mxu0 0.0
    %4575 = vmatprep.subr.mxu0 0.0
    %4576 = vmatpush2.msra.mxu0 0.0
    %4577 = vmatprep.subr.mxu0 0.0
    %4578 = vmatpush2.msra.mxu0 0.0
    %4579 = vmatprep.subr.mxu0 0.0
    %4580 = vmatpush2.msra.mxu0 0.0
    %4581 = vmatprep.subr.mxu0 0.0
    %4582 = vmatpush2.msra.mxu0 0.0
    %4583 = vmatprep.subr.mxu0 0.0
    %4584 = vmatpush2.msra.mxu0 0.0
    %4585 = vmatprep.mubr.f32.mxu0 0.0
    %4586 = vmatmul.mubr.f32.gmra.mxu0 %v4188
    %v4587 = vpop.f32.mrf.mxu0
    %v4588 = vadd.f32 0.0, %v4587
    %v4589 = vpop.f32.mrf.mxu0
    %v4590 = vadd.f32 0.0, %v4589
    %4591 = vdwg.mxu0
    %4592 = vmatprep.subr.mxu0 %v290
    %4593 = vmatpush1.msra.mxu0 %v289
    %4594 = vmatprep.subr.mxu0 %v286
    %4595 = vmatpush1.msra.mxu0 %v285
    %4596 = vmatprep.subr.mxu0 %v282
    %4597 = vmatpush1.msra.mxu0 %v281
    %4598 = vmatprep.subr.mxu0 %v278
    %4599 = vmatpush1.msra.mxu0 %v277
    %4600 = vmatprep.subr.mxu0 %v274
    %4601 = vmatpush1.msra.mxu0 %v273
    %4602 = vmatprep.subr.mxu0 %v270
    %4603 = vmatpush1.msra.mxu0 %v269
    %4604 = vmatprep.subr.mxu0 %v266
    %4605 = vmatpush1.msra.mxu0 %v265
    %4606 = vmatprep.subr.mxu0 %v262
    %4607 = vmatpush1.msra.mxu0 %v261
    %4608 = vmatprep.subr.mxu0 %v258
    %4609 = vmatpush1.msra.mxu0 %v257
    %4610 = vmatprep.subr.mxu0 %v254
    %4611 = vmatpush1.msra.mxu0 %v253
    %4612 = vmatprep.subr.mxu0 %v250
    %4613 = vmatpush1.msra.mxu0 %v249
    %4614 = vmatprep.subr.mxu0 %v246
    %4615 = vmatpush1.msra.mxu0 %v245
    %4616 = vmatprep.subr.mxu0 %v242
    %4617 = vmatpush1.msra.mxu0 %v241
    %4618 = vmatprep.subr.mxu0 %v238
    %4619 = vmatpush1.msra.mxu0 %v237
    %4620 = vmatprep.subr.mxu0 %v234
    %4621 = vmatpush1.msra.mxu0 %v233
    %4622 = vmatprep.subr.mxu0 %v230
    %4623 = vmatpush1.msra.mxu0 %v229
    %4624 = vmatprep.subr.mxu0 0.0
    %4625 = vmatpush2.msra.mxu0 0.0
    %4626 = vmatprep.subr.mxu0 0.0
    %4627 = vmatpush2.msra.mxu0 0.0
    %4628 = vmatprep.subr.mxu0 0.0
    %4629 = vmatpush2.msra.mxu0 0.0
    %4630 = vmatprep.subr.mxu0 0.0
    %4631 = vmatpush2.msra.mxu0 0.0
    %4632 = vmatprep.subr.mxu0 0.0
    %4633 = vmatpush2.msra.mxu0 0.0
    %4634 = vmatprep.subr.mxu0 0.0
    %4635 = vmatpush2.msra.mxu0 0.0
    %4636 = vmatprep.subr.mxu0 0.0
    %4637 = vmatpush2.msra.mxu0 0.0
    %4638 = vmatprep.subr.mxu0 0.0
    %4639 = vmatpush2.msra.mxu0 0.0
    %4640 = vmatprep.subr.mxu0 0.0
    %4641 = vmatpush2.msra.mxu0 0.0
    %4642 = vmatprep.subr.mxu0 0.0
    %4643 = vmatpush2.msra.mxu0 0.0
    %4644 = vmatprep.subr.mxu0 0.0
    %4645 = vmatpush2.msra.mxu0 0.0
    %4646 = vmatprep.subr.mxu0 0.0
    %4647 = vmatpush2.msra.mxu0 0.0
    %4648 = vmatprep.subr.mxu0 0.0
    %4649 = vmatpush2.msra.mxu0 0.0
    %4650 = vmatprep.subr.mxu0 0.0
    %4651 = vmatpush2.msra.mxu0 0.0
    %4652 = vmatprep.subr.mxu0 0.0
    %4653 = vmatpush2.msra.mxu0 0.0
    %4654 = vmatprep.subr.mxu0 0.0
    %4655 = vmatpush2.msra.mxu0 0.0
    %4656 = vmatprep.mubr.f32.mxu0 0.0
    %4657 = vmatmul.mubr.f32.gmra.mxu0 %v4188
    %v4658 = vpop.f32.mrf.mxu0
    %v4659 = vadd.f32 0.0, %v4658
    %v4660 = vpop.f32.mrf.mxu0
    %v4661 = vadd.f32 0.0, %v4660
    %4662 = vdwg.mxu0
    %v4664 = vsel %vm455, %v4520, 0
    %4666 = vmatprep.subr.mxu0 0.0
    %4667 = vmatpush1.msra.mxu0 0.0
    %4668 = vmatprep.subr.mxu0 0.0
    %4669 = vmatpush1.msra.mxu0 0.0
    %4670 = vmatprep.subr.mxu0 0.0
    %4671 = vmatpush1.msra.mxu0 0.0
    %4672 = vmatprep.subr.mxu0 0.0
    %4673 = vmatpush1.msra.mxu0 0.0
    %4674 = vmatprep.subr.mxu0 0.0
    %4675 = vmatpush1.msra.mxu0 0.0
    %4676 = vmatprep.subr.mxu0 0.0
    %4677 = vmatpush1.msra.mxu0 0.0
    %4678 = vmatprep.subr.mxu0 0.0
    %4679 = vmatpush1.msra.mxu0 0.0
    %4680 = vmatprep.subr.mxu0 0.0
    %4681 = vmatpush1.msra.mxu0 0.0
    %4682 = vmatprep.subr.mxu0 0.0
    %4683 = vmatpush1.msra.mxu0 0.0
    %4684 = vmatprep.subr.mxu0 0.0
    %4685 = vmatpush1.msra.mxu0 0.0
    %4686 = vmatprep.subr.mxu0 0.0
    %4687 = vmatpush1.msra.mxu0 0.0
    %4688 = vmatprep.subr.mxu0 0.0
    %4689 = vmatpush1.msra.mxu0 0.0
    %4690 = vmatprep.subr.mxu0 %v224
    %4691 = vmatpush1.msra.mxu0 %v223
    %4692 = vmatprep.subr.mxu0 %v220
    %4693 = vmatpush1.msra.mxu0 %v219
    %4694 = vmatprep.subr.mxu0 %v216
    %4695 = vmatpush1.msra.mxu0 %v215
    %4696 = vmatprep.subr.mxu0 %v212
    %4697 = vmatpush1.msra.mxu0 %v211
    %4698 = vmatprep.subr.mxu0 0.0
    %4699 = vmatpush2.msra.mxu0 0.0
    %4700 = vmatprep.subr.mxu0 0.0
    %4701 = vmatpush2.msra.mxu0 0.0
    %4702 = vmatprep.subr.mxu0 0.0
    %4703 = vmatpush2.msra.mxu0 0.0
    %4704 = vmatprep.subr.mxu0 0.0
    %4705 = vmatpush2.msra.mxu0 0.0
    %4706 = vmatprep.subr.mxu0 0.0
    %4707 = vmatpush2.msra.mxu0 0.0
    %4708 = vmatprep.subr.mxu0 0.0
    %4709 = vmatpush2.msra.mxu0 0.0
    %4710 = vmatprep.subr.mxu0 0.0
    %4711 = vmatpush2.msra.mxu0 0.0
    %4712 = vmatprep.subr.mxu0 0.0
    %4713 = vmatpush2.msra.mxu0 0.0
    %4714 = vmatprep.subr.mxu0 0.0
    %4715 = vmatpush2.msra.mxu0 0.0
    %4716 = vmatprep.subr.mxu0 0.0
    %4717 = vmatpush2.msra.mxu0 0.0
    %4718 = vmatprep.subr.mxu0 0.0
    %4719 = vmatpush2.msra.mxu0 0.0
    %4720 = vmatprep.subr.mxu0 0.0
    %4721 = vmatpush2.msra.mxu0 0.0
    %4722 = vmatprep.subr.mxu0 0.0
    %4723 = vmatpush2.msra.mxu0 0.0
    %4724 = vmatprep.subr.mxu0 0.0
    %4725 = vmatpush2.msra.mxu0 0.0
    %4726 = vmatprep.subr.mxu0 0.0
    %4727 = vmatpush2.msra.mxu0 0.0
    %4728 = vmatprep.subr.mxu0 0.0
    %4729 = vmatpush2.msra.mxu0 0.0
    %4730 = vmatprep.mubr.f32.mxu0 0.0
    %4731 = vmatmul.mubr.f32.gmra.mxu0 %v4664
    %v4732 = vpop.f32.mrf.mxu0
    %v4733 = vadd.f32 %v4588, %v4732
    %v4734 = vpop.f32.mrf.mxu0
    %v4735 = vadd.f32 %v4590, %v4734
    %4736 = vdwg.mxu0
    %4737 = vmatprep.subr.mxu0 0.0
    %4738 = vmatpush1.msra.mxu0 0.0
    %4739 = vmatprep.subr.mxu0 0.0
    %4740 = vmatpush1.msra.mxu0 0.0
    %4741 = vmatprep.subr.mxu0 0.0
    %4742 = vmatpush1.msra.mxu0 0.0
    %4743 = vmatprep.subr.mxu0 0.0
    %4744 = vmatpush1.msra.mxu0 0.0
    %4745 = vmatprep.subr.mxu0 0.0
    %4746 = vmatpush1.msra.mxu0 0.0
    %4747 = vmatprep.subr.mxu0 0.0
    %4748 = vmatpush1.msra.mxu0 0.0
    %4749 = vmatprep.subr.mxu0 0.0
    %4750 = vmatpush1.msra.mxu0 0.0
    %4751 = vmatprep.subr.mxu0 0.0
    %4752 = vmatpush1.msra.mxu0 0.0
    %4753 = vmatprep.subr.mxu0 0.0
    %4754 = vmatpush1.msra.mxu0 0.0
    %4755 = vmatprep.subr.mxu0 0.0
    %4756 = vmatpush1.msra.mxu0 0.0
    %4757 = vmatprep.subr.mxu0 0.0
    %4758 = vmatpush1.msra.mxu0 0.0
    %4759 = vmatprep.subr.mxu0 0.0
    %4760 = vmatpush1.msra.mxu0 0.0
    %4761 = vmatprep.subr.mxu0 %v226
    %4762 = vmatpush1.msra.mxu0 %v225
    %4763 = vmatprep.subr.mxu0 %v222
    %4764 = vmatpush1.msra.mxu0 %v221
    %4765 = vmatprep.subr.mxu0 %v218
    %4766 = vmatpush1.msra.mxu0 %v217
    %4767 = vmatprep.subr.mxu0 %v214
    %4768 = vmatpush1.msra.mxu0 %v213
    %4769 = vmatprep.subr.mxu0 0.0
    %4770 = vmatpush2.msra.mxu0 0.0
    %4771 = vmatprep.subr.mxu0 0.0
    %4772 = vmatpush2.msra.mxu0 0.0
    %4773 = vmatprep.subr.mxu0 0.0
    %4774 = vmatpush2.msra.mxu0 0.0
    %4775 = vmatprep.subr.mxu0 0.0
    %4776 = vmatpush2.msra.mxu0 0.0
    %4777 = vmatprep.subr.mxu0 0.0
    %4778 = vmatpush2.msra.mxu0 0.0
    %4779 = vmatprep.subr.mxu0 0.0
    %4780 = vmatpush2.msra.mxu0 0.0
    %4781 = vmatprep.subr.mxu0 0.0
    %4782 = vmatpush2.msra.mxu0 0.0
    %4783 = vmatprep.subr.mxu0 0.0
    %4784 = vmatpush2.msra.mxu0 0.0
    %4785 = vmatprep.subr.mxu0 0.0
    %4786 = vmatpush2.msra.mxu0 0.0
    %4787 = vmatprep.subr.mxu0 0.0
    %4788 = vmatpush2.msra.mxu0 0.0
    %4789 = vmatprep.subr.mxu0 0.0
    %4790 = vmatpush2.msra.mxu0 0.0
    %4791 = vmatprep.subr.mxu0 0.0
    %4792 = vmatpush2.msra.mxu0 0.0
    %4793 = vmatprep.subr.mxu0 0.0
    %4794 = vmatpush2.msra.mxu0 0.0
    %4795 = vmatprep.subr.mxu0 0.0
    %4796 = vmatpush2.msra.mxu0 0.0
    %4797 = vmatprep.subr.mxu0 0.0
    %4798 = vmatpush2.msra.mxu0 0.0
    %4799 = vmatprep.subr.mxu0 0.0
    %4800 = vmatpush2.msra.mxu0 0.0
    %4801 = vmatprep.mubr.f32.mxu0 0.0
    %4802 = vmatmul.mubr.f32.gmra.mxu0 %v4664
    %v4803 = vpop.f32.mrf.mxu0
    %v4804 = vadd.f32 %v4659, %v4803
    %v4805 = vpop.f32.mrf.mxu0
    %v4806 = vadd.f32 %v4661, %v4805
    %4807 = vdwg.mxu0
    %v4808 = vadd.f32 %v4733, %v939
    %v4809 = vadd.f32 %v4735, %v943
    %v4810 = vadd.f32 %v4804, %v947
    %v4811 = vadd.f32 %v4806, %v951
    %v4812 = vmul.f32 %v4808, 0.5
    %v4813 = vtanh.pop %v4812
    %v4814 = vmul.f32 %v4813, 0.5
    %v4815 = vadd.f32 %v4814, 0.5
    %v4816 = vmul.f32 %v4809, 0.5
    %v4817 = vtanh.pop %v4816
    %v4818 = vmul.f32 %v4817, 0.5
    %v4819 = vadd.f32 %v4818, 0.5
    %v4820 = vtanh.pop %v4810
    %v4821 = vmul.f32 %v4811, 0.5
    %v4822 = vtanh.pop %v4821
    %v4823 = vmul.f32 %v4822, 0.5
    %v4824 = vadd.f32 %v4823, 0.5
    %v4825 = vmul.f32 %v4819, %v4189
    %v4826 = vmul.f32 %v4815, %v4820
    %v4827 = vadd.f32 %v4825, %v4826
    %v4828 = vtanh.pop %v4827
    %v4829 = vmul.f32 %v4824, %v4828
    %v4830 = vsel %vm4205, %v4829, %v4188
    %v4831 = vsel %vm4205, %v4827, %v4189
    %s4832 = sadd.s32 %s296, 7
    %s4833 = ssub.s32 0, %s296
    %v4834 = vstv %s4832
    %vm4835 = vcmp.lt.s32.totalorder %v4834, %v129
    %v4836 = vsel %vm4835, 1, 0
    %4837 = vset.pattern.permute.xlu0 0
    %4838 = vperm.xlu0 %4837, %v4836
    %v4839 = vpop.permute.xlu0 %4838
    %vm4840 = vcmp.eq.s32.totalorder %v4839, 1
    %v4841 = vstv %s4833
    %vm4842 = vcmp.lt.s32.totalorder %v4841, %v129
    %v4843 = vsel %vm4842, 1, 0
    %4844 = vset.pattern.permute.xlu0 0
    %4845 = vperm.xlu0 %4844, %v4843
    %v4846 = vpop.permute.xlu0 %4845
    %vm4847 = vcmp.eq.s32.totalorder %v4846, 1
    %s4848 = scalar_lea.vmem [#allocation6], 56
    %v4849 = vld [vmem:[%s4848] sm:$0xff]
    %4850 = vmatprep.subr.mxu0 %v207
    %4851 = vmatpush1.msra.mxu0 %v206
    %4852 = vmatprep.subr.mxu0 %v203
    %4853 = vmatpush1.msra.mxu0 %v202
    %4854 = vmatprep.subr.mxu0 %v199
    %4855 = vmatpush1.msra.mxu0 %v198
    %4856 = vmatprep.subr.mxu0 %v195
    %4857 = vmatpush1.msra.mxu0 %v194
    %4858 = vmatprep.subr.mxu0 %v191
    %4859 = vmatpush1.msra.mxu0 %v190
    %4860 = vmatprep.subr.mxu0 %v187
    %4861 = vmatpush1.msra.mxu0 %v186
    %4862 = vmatprep.subr.mxu0 %v183
    %4863 = vmatpush1.msra.mxu0 %v182
    %4864 = vmatprep.subr.mxu0 %v179
    %4865 = vmatpush1.msra.mxu0 %v178
    %4866 = vmatprep.subr.mxu0 %v175
    %4867 = vmatpush1.msra.mxu0 %v174
    %4868 = vmatprep.subr.mxu0 %v171
    %4869 = vmatpush1.msra.mxu0 %v170
    %4870 = vmatprep.subr.mxu0 %v167
    %4871 = vmatpush1.msra.mxu0 %v166
    %4872 = vmatprep.subr.mxu0 %v163
    %4873 = vmatpush1.msra.mxu0 %v162
    %4874 = vmatprep.subr.mxu0 %v159
    %4875 = vmatpush1.msra.mxu0 %v158
    %4876 = vmatprep.subr.mxu0 %v155
    %4877 = vmatpush1.msra.mxu0 %v154
    %4878 = vmatprep.subr.mxu0 %v151
    %4879 = vmatpush1.msra.mxu0 %v150
    %4880 = vmatprep.subr.mxu0 %v147
    %4881 = vmatpush1.msra.mxu0 %v146
    %4882 = vmatprep.subr.mxu0 0.0
    %4883 = vmatpush2.msra.mxu0 0.0
    %4884 = vmatprep.subr.mxu0 0.0
    %4885 = vmatpush2.msra.mxu0 0.0
    %4886 = vmatprep.subr.mxu0 0.0
    %4887 = vmatpush2.msra.mxu0 0.0
    %4888 = vmatprep.subr.mxu0 0.0
    %4889 = vmatpush2.msra.mxu0 0.0
    %4890 = vmatprep.subr.mxu0 0.0
    %4891 = vmatpush2.msra.mxu0 0.0
    %4892 = vmatprep.subr.mxu0 0.0
    %4893 = vmatpush2.msra.mxu0 0.0
    %4894 = vmatprep.subr.mxu0 0.0
    %4895 = vmatpush2.msra.mxu0 0.0
    %4896 = vmatprep.subr.mxu0 0.0
    %4897 = vmatpush2.msra.mxu0 0.0
    %4898 = vmatprep.subr.mxu0 0.0
    %4899 = vmatpush2.msra.mxu0 0.0
    %4900 = vmatprep.subr.mxu0 0.0
    %4901 = vmatpush2.msra.mxu0 0.0
    %4902 = vmatprep.subr.mxu0 0.0
    %4903 = vmatpush2.msra.mxu0 0.0
    %4904 = vmatprep.subr.mxu0 0.0
    %4905 = vmatpush2.msra.mxu0 0.0
    %4906 = vmatprep.subr.mxu0 0.0
    %4907 = vmatpush2.msra.mxu0 0.0
    %4908 = vmatprep.subr.mxu0 0.0
    %4909 = vmatpush2.msra.mxu0 0.0
    %4910 = vmatprep.subr.mxu0 0.0
    %4911 = vmatpush2.msra.mxu0 0.0
    %4912 = vmatprep.subr.mxu0 0.0
    %4913 = vmatpush2.msra.mxu0 0.0
    %4914 = vmatprep.mubr.f32.mxu0 0.0
    %4915 = vmatmul.mubr.f32.gmra.mxu0 %v4517
    %v4916 = vpop.f32.mrf.mxu0
    %v4917 = vadd.f32 0.0, %v4916
    %v4918 = vpop.f32.mrf.mxu0
    %v4919 = vadd.f32 0.0, %v4918
    %4920 = vdwg.mxu0
    %4921 = vmatprep.subr.mxu0 %v209
    %4922 = vmatpush1.msra.mxu0 %v208
    %4923 = vmatprep.subr.mxu0 %v205
    %4924 = vmatpush1.msra.mxu0 %v204
    %4925 = vmatprep.subr.mxu0 %v201
    %4926 = vmatpush1.msra.mxu0 %v200
    %4927 = vmatprep.subr.mxu0 %v197
    %4928 = vmatpush1.msra.mxu0 %v196
    %4929 = vmatprep.subr.mxu0 %v193
    %4930 = vmatpush1.msra.mxu0 %v192
    %4931 = vmatprep.subr.mxu0 %v189
    %4932 = vmatpush1.msra.mxu0 %v188
    %4933 = vmatprep.subr.mxu0 %v185
    %4934 = vmatpush1.msra.mxu0 %v184
    %4935 = vmatprep.subr.mxu0 %v181
    %4936 = vmatpush1.msra.mxu0 %v180
    %4937 = vmatprep.subr.mxu0 %v177
    %4938 = vmatpush1.msra.mxu0 %v176
    %4939 = vmatprep.subr.mxu0 %v173
    %4940 = vmatpush1.msra.mxu0 %v172
    %4941 = vmatprep.subr.mxu0 %v169
    %4942 = vmatpush1.msra.mxu0 %v168
    %4943 = vmatprep.subr.mxu0 %v165
    %4944 = vmatpush1.msra.mxu0 %v164
    %4945 = vmatprep.subr.mxu0 %v161
    %4946 = vmatpush1.msra.mxu0 %v160
    %4947 = vmatprep.subr.mxu0 %v157
    %4948 = vmatpush1.msra.mxu0 %v156
    %4949 = vmatprep.subr.mxu0 %v153
    %4950 = vmatpush1.msra.mxu0 %v152
    %4951 = vmatprep.subr.mxu0 %v149
    %4952 = vmatpush1.msra.mxu0 %v148
    %4953 = vmatprep.subr.mxu0 0.0
    %4954 = vmatpush2.msra.mxu0 0.0
    %4955 = vmatprep.subr.mxu0 0.0
    %4956 = vmatpush2.msra.mxu0 0.0
    %4957 = vmatprep.subr.mxu0 0.0
    %4958 = vmatpush2.msra.mxu0 0.0
    %4959 = vmatprep.subr.mxu0 0.0
    %4960 = vmatpush2.msra.mxu0 0.0
    %4961 = vmatprep.subr.mxu0 0.0
    %4962 = vmatpush2.msra.mxu0 0.0
    %4963 = vmatprep.subr.mxu0 0.0
    %4964 = vmatpush2.msra.mxu0 0.0
    %4965 = vmatprep.subr.mxu0 0.0
    %4966 = vmatpush2.msra.mxu0 0.0
    %4967 = vmatprep.subr.mxu0 0.0
    %4968 = vmatpush2.msra.mxu0 0.0
    %4969 = vmatprep.subr.mxu0 0.0
    %4970 = vmatpush2.msra.mxu0 0.0
    %4971 = vmatprep.subr.mxu0 0.0
    %4972 = vmatpush2.msra.mxu0 0.0
    %4973 = vmatprep.subr.mxu0 0.0
    %4974 = vmatpush2.msra.mxu0 0.0
    %4975 = vmatprep.subr.mxu0 0.0
    %4976 = vmatpush2.msra.mxu0 0.0
    %4977 = vmatprep.subr.mxu0 0.0
    %4978 = vmatpush2.msra.mxu0 0.0
    %4979 = vmatprep.subr.mxu0 0.0
    %4980 = vmatpush2.msra.mxu0 0.0
    %4981 = vmatprep.subr.mxu0 0.0
    %4982 = vmatpush2.msra.mxu0 0.0
    %4983 = vmatprep.subr.mxu0 0.0
    %4984 = vmatpush2.msra.mxu0 0.0
    %4985 = vmatprep.mubr.f32.mxu0 0.0
    %4986 = vmatmul.mubr.f32.gmra.mxu0 %v4517
    %v4987 = vpop.f32.mrf.mxu0
    %v4988 = vadd.f32 0.0, %v4987
    %v4989 = vpop.f32.mrf.mxu0
    %v4990 = vadd.f32 0.0, %v4989
    %4991 = vdwg.mxu0
    %v4993 = vsel %vm455, %v4849, 0
    %4995 = vmatprep.subr.mxu0 0.0
    %4996 = vmatpush1.msra.mxu0 0.0
    %4997 = vmatprep.subr.mxu0 0.0
    %4998 = vmatpush1.msra.mxu0 0.0
    %4999 = vmatprep.subr.mxu0 0.0
    %5000 = vmatpush1.msra.mxu0 0.0
    %5001 = vmatprep.subr.mxu0 0.0
    %5002 = vmatpush1.msra.mxu0 0.0
    %5003 = vmatprep.subr.mxu0 0.0
    %5004 = vmatpush1.msra.mxu0 0.0
    %5005 = vmatprep.subr.mxu0 0.0
    %5006 = vmatpush1.msra.mxu0 0.0
    %5007 = vmatprep.subr.mxu0 0.0
    %5008 = vmatpush1.msra.mxu0 0.0
    %5009 = vmatprep.subr.mxu0 0.0
    %5010 = vmatpush1.msra.mxu0 0.0
    %5011 = vmatprep.subr.mxu0 0.0
    %5012 = vmatpush1.msra.mxu0 0.0
    %5013 = vmatprep.subr.mxu0 0.0
    %5014 = vmatpush1.msra.mxu0 0.0
    %5015 = vmatprep.subr.mxu0 0.0
    %5016 = vmatpush1.msra.mxu0 0.0
    %5017 = vmatprep.subr.mxu0 0.0
    %5018 = vmatpush1.msra.mxu0 0.0
    %5019 = vmatprep.subr.mxu0 %v143
    %5020 = vmatpush1.msra.mxu0 %v142
    %5021 = vmatprep.subr.mxu0 %v139
    %5022 = vmatpush1.msra.mxu0 %v138
    %5023 = vmatprep.subr.mxu0 %v135
    %5024 = vmatpush1.msra.mxu0 %v134
    %5025 = vmatprep.subr.mxu0 %v131
    %5026 = vmatpush1.msra.mxu0 %v130
    %5027 = vmatprep.subr.mxu0 0.0
    %5028 = vmatpush2.msra.mxu0 0.0
    %5029 = vmatprep.subr.mxu0 0.0
    %5030 = vmatpush2.msra.mxu0 0.0
    %5031 = vmatprep.subr.mxu0 0.0
    %5032 = vmatpush2.msra.mxu0 0.0
    %5033 = vmatprep.subr.mxu0 0.0
    %5034 = vmatpush2.msra.mxu0 0.0
    %5035 = vmatprep.subr.mxu0 0.0
    %5036 = vmatpush2.msra.mxu0 0.0
    %5037 = vmatprep.subr.mxu0 0.0
    %5038 = vmatpush2.msra.mxu0 0.0
    %5039 = vmatprep.subr.mxu0 0.0
    %5040 = vmatpush2.msra.mxu0 0.0
    %5041 = vmatprep.subr.mxu0 0.0
    %5042 = vmatpush2.msra.mxu0 0.0
    %5043 = vmatprep.subr.mxu0 0.0
    %5044 = vmatpush2.msra.mxu0 0.0
    %5045 = vmatprep.subr.mxu0 0.0
    %5046 = vmatpush2.msra.mxu0 0.0
    %5047 = vmatprep.subr.mxu0 0.0
    %5048 = vmatpush2.msra.mxu0 0.0
    %5049 = vmatprep.subr.mxu0 0.0
    %5050 = vmatpush2.msra.mxu0 0.0
    %5051 = vmatprep.subr.mxu0 0.0
    %5052 = vmatpush2.msra.mxu0 0.0
    %5053 = vmatprep.subr.mxu0 0.0
    %5054 = vmatpush2.msra.mxu0 0.0
    %5055 = vmatprep.subr.mxu0 0.0
    %5056 = vmatpush2.msra.mxu0 0.0
    %5057 = vmatprep.subr.mxu0 0.0
    %5058 = vmatpush2.msra.mxu0 0.0
    %5059 = vmatprep.mubr.f32.mxu0 0.0
    %5060 = vmatmul.mubr.f32.gmra.mxu0 %v4993
    %v5061 = vpop.f32.mrf.mxu0
    %v5062 = vadd.f32 %v4917, %v5061
    %v5063 = vpop.f32.mrf.mxu0
    %v5064 = vadd.f32 %v4919, %v5063
    %5065 = vdwg.mxu0
    %5066 = vmatprep.subr.mxu0 0.0
    %5067 = vmatpush1.msra.mxu0 0.0
    %5068 = vmatprep.subr.mxu0 0.0
    %5069 = vmatpush1.msra.mxu0 0.0
    %5070 = vmatprep.subr.mxu0 0.0
    %5071 = vmatpush1.msra.mxu0 0.0
    %5072 = vmatprep.subr.mxu0 0.0
    %5073 = vmatpush1.msra.mxu0 0.0
    %5074 = vmatprep.subr.mxu0 0.0
    %5075 = vmatpush1.msra.mxu0 0.0
    %5076 = vmatprep.subr.mxu0 0.0
    %5077 = vmatpush1.msra.mxu0 0.0
    %5078 = vmatprep.subr.mxu0 0.0
    %5079 = vmatpush1.msra.mxu0 0.0
    %5080 = vmatprep.subr.mxu0 0.0
    %5081 = vmatpush1.msra.mxu0 0.0
    %5082 = vmatprep.subr.mxu0 0.0
    %5083 = vmatpush1.msra.mxu0 0.0
    %5084 = vmatprep.subr.mxu0 0.0
    %5085 = vmatpush1.msra.mxu0 0.0
    %5086 = vmatprep.subr.mxu0 0.0
    %5087 = vmatpush1.msra.mxu0 0.0
    %5088 = vmatprep.subr.mxu0 0.0
    %5089 = vmatpush1.msra.mxu0 0.0
    %5090 = vmatprep.subr.mxu0 %v145
    %5091 = vmatpush1.msra.mxu0 %v144
    %5092 = vmatprep.subr.mxu0 %v141
    %5093 = vmatpush1.msra.mxu0 %v140
    %5094 = vmatprep.subr.mxu0 %v137
    %5095 = vmatpush1.msra.mxu0 %v136
    %5096 = vmatprep.subr.mxu0 %v133
    %5097 = vmatpush1.msra.mxu0 %v132
    %5098 = vmatprep.subr.mxu0 0.0
    %5099 = vmatpush2.msra.mxu0 0.0
    %5100 = vmatprep.subr.mxu0 0.0
    %5101 = vmatpush2.msra.mxu0 0.0
    %5102 = vmatprep.subr.mxu0 0.0
    %5103 = vmatpush2.msra.mxu0 0.0
    %5104 = vmatprep.subr.mxu0 0.0
    %5105 = vmatpush2.msra.mxu0 0.0
    %5106 = vmatprep.subr.mxu0 0.0
    %5107 = vmatpush2.msra.mxu0 0.0
    %5108 = vmatprep.subr.mxu0 0.0
    %5109 = vmatpush2.msra.mxu0 0.0
    %5110 = vmatprep.subr.mxu0 0.0
    %5111 = vmatpush2.msra.mxu0 0.0
    %5112 = vmatprep.subr.mxu0 0.0
    %5113 = vmatpush2.msra.mxu0 0.0
    %5114 = vmatprep.subr.mxu0 0.0
    %5115 = vmatpush2.msra.mxu0 0.0
    %5116 = vmatprep.subr.mxu0 0.0
    %5117 = vmatpush2.msra.mxu0 0.0
    %5118 = vmatprep.subr.mxu0 0.0
    %5119 = vmatpush2.msra.mxu0 0.0
    %5120 = vmatprep.subr.mxu0 0.0
    %5121 = vmatpush2.msra.mxu0 0.0
    %5122 = vmatprep.subr.mxu0 0.0
    %5123 = vmatpush2.msra.mxu0 0.0
    %5124 = vmatprep.subr.mxu0 0.0
    %5125 = vmatpush2.msra.mxu0 0.0
    %5126 = vmatprep.subr.mxu0 0.0
    %5127 = vmatpush2.msra.mxu0 0.0
    %5128 = vmatprep.subr.mxu0 0.0
    %5129 = vmatpush2.msra.mxu0 0.0
    %5130 = vmatprep.mubr.f32.mxu0 0.0
    %5131 = vmatmul.mubr.f32.gmra.mxu0 %v4993
    %v5132 = vpop.f32.mrf.mxu0
    %v5133 = vadd.f32 %v4988, %v5132
    %v5134 = vpop.f32.mrf.mxu0
    %v5135 = vadd.f32 %v4990, %v5134
    %5136 = vdwg.mxu0
    %v5137 = vadd.f32 %v5062, %v605
    %v5138 = vadd.f32 %v5064, %v609
    %v5139 = vadd.f32 %v5133, %v613
    %v5140 = vadd.f32 %v5135, %v617
    %v5141 = vmul.f32 %v5137, 0.5
    %v5142 = vtanh.pop %v5141
    %v5143 = vmul.f32 %v5142, 0.5
    %v5144 = vadd.f32 %v5143, 0.5
    %v5145 = vmul.f32 %v5138, 0.5
    %v5146 = vtanh.pop %v5145
    %v5147 = vmul.f32 %v5146, 0.5
    %v5148 = vadd.f32 %v5147, 0.5
    %v5149 = vtanh.pop %v5139
    %v5150 = vmul.f32 %v5140, 0.5
    %v5151 = vtanh.pop %v5150
    %v5152 = vmul.f32 %v5151, 0.5
    %v5153 = vadd.f32 %v5152, 0.5
    %v5154 = vmul.f32 %v5148, %v4518
    %v5155 = vmul.f32 %v5144, %v5149
    %v5156 = vadd.f32 %v5154, %v5155
    %v5157 = vtanh.pop %v5156
    %v5158 = vmul.f32 %v5153, %v5157
    %v5159 = vsel %vm4840, %v5158, %v4517
    %v5160 = vsel %vm4840, %v5156, %v4518
    %v5161 = vld [vmem:[#allocation9] sm:$0xff]
    %5162 = vmatprep.subr.mxu0 %v288
    %5163 = vmatpush1.msra.mxu0 %v287
    %5164 = vmatprep.subr.mxu0 %v284
    %5165 = vmatpush1.msra.mxu0 %v283
    %5166 = vmatprep.subr.mxu0 %v280
    %5167 = vmatpush1.msra.mxu0 %v279
    %5168 = vmatprep.subr.mxu0 %v276
    %5169 = vmatpush1.msra.mxu0 %v275
    %5170 = vmatprep.subr.mxu0 %v272
    %5171 = vmatpush1.msra.mxu0 %v271
    %5172 = vmatprep.subr.mxu0 %v268
    %5173 = vmatpush1.msra.mxu0 %v267
    %5174 = vmatprep.subr.mxu0 %v264
    %5175 = vmatpush1.msra.mxu0 %v263
    %5176 = vmatprep.subr.mxu0 %v260
    %5177 = vmatpush1.msra.mxu0 %v259
    %5178 = vmatprep.subr.mxu0 %v256
    %5179 = vmatpush1.msra.mxu0 %v255
    %5180 = vmatprep.subr.mxu0 %v252
    %5181 = vmatpush1.msra.mxu0 %v251
    %5182 = vmatprep.subr.mxu0 %v248
    %5183 = vmatpush1.msra.mxu0 %v247
    %5184 = vmatprep.subr.mxu0 %v244
    %5185 = vmatpush1.msra.mxu0 %v243
    %5186 = vmatprep.subr.mxu0 %v240
    %5187 = vmatpush1.msra.mxu0 %v239
    %5188 = vmatprep.subr.mxu0 %v236
    %5189 = vmatpush1.msra.mxu0 %v235
    %5190 = vmatprep.subr.mxu0 %v232
    %5191 = vmatpush1.msra.mxu0 %v231
    %5192 = vmatprep.subr.mxu0 %v228
    %5193 = vmatpush1.msra.mxu0 %v227
    %5194 = vmatprep.subr.mxu0 0.0
    %5195 = vmatpush2.msra.mxu0 0.0
    %5196 = vmatprep.subr.mxu0 0.0
    %5197 = vmatpush2.msra.mxu0 0.0
    %5198 = vmatprep.subr.mxu0 0.0
    %5199 = vmatpush2.msra.mxu0 0.0
    %5200 = vmatprep.subr.mxu0 0.0
    %5201 = vmatpush2.msra.mxu0 0.0
    %5202 = vmatprep.subr.mxu0 0.0
    %5203 = vmatpush2.msra.mxu0 0.0
    %5204 = vmatprep.subr.mxu0 0.0
    %5205 = vmatpush2.msra.mxu0 0.0
    %5206 = vmatprep.subr.mxu0 0.0
    %5207 = vmatpush2.msra.mxu0 0.0
    %5208 = vmatprep.subr.mxu0 0.0
    %5209 = vmatpush2.msra.mxu0 0.0
    %5210 = vmatprep.subr.mxu0 0.0
    %5211 = vmatpush2.msra.mxu0 0.0
    %5212 = vmatprep.subr.mxu0 0.0
    %5213 = vmatpush2.msra.mxu0 0.0
    %5214 = vmatprep.subr.mxu0 0.0
    %5215 = vmatpush2.msra.mxu0 0.0
    %5216 = vmatprep.subr.mxu0 0.0
    %5217 = vmatpush2.msra.mxu0 0.0
    %5218 = vmatprep.subr.mxu0 0.0
    %5219 = vmatpush2.msra.mxu0 0.0
    %5220 = vmatprep.subr.mxu0 0.0
    %5221 = vmatpush2.msra.mxu0 0.0
    %5222 = vmatprep.subr.mxu0 0.0
    %5223 = vmatpush2.msra.mxu0 0.0
    %5224 = vmatprep.subr.mxu0 0.0
    %5225 = vmatpush2.msra.mxu0 0.0
    %5226 = vmatprep.mubr.f32.mxu0 0.0
    %5227 = vmatmul.mubr.f32.gmra.mxu0 %v4830
    %v5228 = vpop.f32.mrf.mxu0
    %v5229 = vadd.f32 0.0, %v5228
    %v5230 = vpop.f32.mrf.mxu0
    %v5231 = vadd.f32 0.0, %v5230
    %5232 = vdwg.mxu0
    %5233 = vmatprep.subr.mxu0 %v290
    %5234 = vmatpush1.msra.mxu0 %v289
    %5235 = vmatprep.subr.mxu0 %v286
    %5236 = vmatpush1.msra.mxu0 %v285
    %5237 = vmatprep.subr.mxu0 %v282
    %5238 = vmatpush1.msra.mxu0 %v281
    %5239 = vmatprep.subr.mxu0 %v278
    %5240 = vmatpush1.msra.mxu0 %v277
    %5241 = vmatprep.subr.mxu0 %v274
    %5242 = vmatpush1.msra.mxu0 %v273
    %5243 = vmatprep.subr.mxu0 %v270
    %5244 = vmatpush1.msra.mxu0 %v269
    %5245 = vmatprep.subr.mxu0 %v266
    %5246 = vmatpush1.msra.mxu0 %v265
    %5247 = vmatprep.subr.mxu0 %v262
    %5248 = vmatpush1.msra.mxu0 %v261
    %5249 = vmatprep.subr.mxu0 %v258
    %5250 = vmatpush1.msra.mxu0 %v257
    %5251 = vmatprep.subr.mxu0 %v254
    %5252 = vmatpush1.msra.mxu0 %v253
    %5253 = vmatprep.subr.mxu0 %v250
    %5254 = vmatpush1.msra.mxu0 %v249
    %5255 = vmatprep.subr.mxu0 %v246
    %5256 = vmatpush1.msra.mxu0 %v245
    %5257 = vmatprep.subr.mxu0 %v242
    %5258 = vmatpush1.msra.mxu0 %v241
    %5259 = vmatprep.subr.mxu0 %v238
    %5260 = vmatpush1.msra.mxu0 %v237
    %5261 = vmatprep.subr.mxu0 %v234
    %5262 = vmatpush1.msra.mxu0 %v233
    %5263 = vmatprep.subr.mxu0 %v230
    %5264 = vmatpush1.msra.mxu0 %v229
    %5265 = vmatprep.subr.mxu0 0.0
    %5266 = vmatpush2.msra.mxu0 0.0
    %5267 = vmatprep.subr.mxu0 0.0
    %5268 = vmatpush2.msra.mxu0 0.0
    %5269 = vmatprep.subr.mxu0 0.0
    %5270 = vmatpush2.msra.mxu0 0.0
    %5271 = vmatprep.subr.mxu0 0.0
    %5272 = vmatpush2.msra.mxu0 0.0
    %5273 = vmatprep.subr.mxu0 0.0
    %5274 = vmatpush2.msra.mxu0 0.0
    %5275 = vmatprep.subr.mxu0 0.0
    %5276 = vmatpush2.msra.mxu0 0.0
    %5277 = vmatprep.subr.mxu0 0.0
    %5278 = vmatpush2.msra.mxu0 0.0
    %5279 = vmatprep.subr.mxu0 0.0
    %5280 = vmatpush2.msra.mxu0 0.0
    %5281 = vmatprep.subr.mxu0 0.0
    %5282 = vmatpush2.msra.mxu0 0.0
    %5283 = vmatprep.subr.mxu0 0.0
    %5284 = vmatpush2.msra.mxu0 0.0
    %5285 = vmatprep.subr.mxu0 0.0
    %5286 = vmatpush2.msra.mxu0 0.0
    %5287 = vmatprep.subr.mxu0 0.0
    %5288 = vmatpush2.msra.mxu0 0.0
    %5289 = vmatprep.subr.mxu0 0.0
    %5290 = vmatpush2.msra.mxu0 0.0
    %5291 = vmatprep.subr.mxu0 0.0
    %5292 = vmatpush2.msra.mxu0 0.0
    %5293 = vmatprep.subr.mxu0 0.0
    %5294 = vmatpush2.msra.mxu0 0.0
    %5295 = vmatprep.subr.mxu0 0.0
    %5296 = vmatpush2.msra.mxu0 0.0
    %5297 = vmatprep.mubr.f32.mxu0 0.0
    %5298 = vmatmul.mubr.f32.gmra.mxu0 %v4830
    %v5299 = vpop.f32.mrf.mxu0
    %v5300 = vadd.f32 0.0, %v5299
    %v5301 = vpop.f32.mrf.mxu0
    %v5302 = vadd.f32 0.0, %v5301
    %5303 = vdwg.mxu0
    %v5305 = vsel %vm455, %v5161, 0
    %5307 = vmatprep.subr.mxu0 0.0
    %5308 = vmatpush1.msra.mxu0 0.0
    %5309 = vmatprep.subr.mxu0 0.0
    %5310 = vmatpush1.msra.mxu0 0.0
    %5311 = vmatprep.subr.mxu0 0.0
    %5312 = vmatpush1.msra.mxu0 0.0
    %5313 = vmatprep.subr.mxu0 0.0
    %5314 = vmatpush1.msra.mxu0 0.0
    %5315 = vmatprep.subr.mxu0 0.0
    %5316 = vmatpush1.msra.mxu0 0.0
    %5317 = vmatprep.subr.mxu0 0.0
    %5318 = vmatpush1.msra.mxu0 0.0
    %5319 = vmatprep.subr.mxu0 0.0
    %5320 = vmatpush1.msra.mxu0 0.0
    %5321 = vmatprep.subr.mxu0 0.0
    %5322 = vmatpush1.msra.mxu0 0.0
    %5323 = vmatprep.subr.mxu0 0.0
    %5324 = vmatpush1.msra.mxu0 0.0
    %5325 = vmatprep.subr.mxu0 0.0
    %5326 = vmatpush1.msra.mxu0 0.0
    %5327 = vmatprep.subr.mxu0 0.0
    %5328 = vmatpush1.msra.mxu0 0.0
    %5329 = vmatprep.subr.mxu0 0.0
    %5330 = vmatpush1.msra.mxu0 0.0
    %5331 = vmatprep.subr.mxu0 %v224
    %5332 = vmatpush1.msra.mxu0 %v223
    %5333 = vmatprep.subr.mxu0 %v220
    %5334 = vmatpush1.msra.mxu0 %v219
    %5335 = vmatprep.subr.mxu0 %v216
    %5336 = vmatpush1.msra.mxu0 %v215
    %5337 = vmatprep.subr.mxu0 %v212
    %5338 = vmatpush1.msra.mxu0 %v211
    %5339 = vmatprep.subr.mxu0 0.0
    %5340 = vmatpush2.msra.mxu0 0.0
    %5341 = vmatprep.subr.mxu0 0.0
    %5342 = vmatpush2.msra.mxu0 0.0
    %5343 = vmatprep.subr.mxu0 0.0
    %5344 = vmatpush2.msra.mxu0 0.0
    %5345 = vmatprep.subr.mxu0 0.0
    %5346 = vmatpush2.msra.mxu0 0.0
    %5347 = vmatprep.subr.mxu0 0.0
    %5348 = vmatpush2.msra.mxu0 0.0
    %5349 = vmatprep.subr.mxu0 0.0
    %5350 = vmatpush2.msra.mxu0 0.0
    %5351 = vmatprep.subr.mxu0 0.0
    %5352 = vmatpush2.msra.mxu0 0.0
    %5353 = vmatprep.subr.mxu0 0.0
    %5354 = vmatpush2.msra.mxu0 0.0
    %5355 = vmatprep.subr.mxu0 0.0
    %5356 = vmatpush2.msra.mxu0 0.0
    %5357 = vmatprep.subr.mxu0 0.0
    %5358 = vmatpush2.msra.mxu0 0.0
    %5359 = vmatprep.subr.mxu0 0.0
    %5360 = vmatpush2.msra.mxu0 0.0
    %5361 = vmatprep.subr.mxu0 0.0
    %5362 = vmatpush2.msra.mxu0 0.0
    %5363 = vmatprep.subr.mxu0 0.0
    %5364 = vmatpush2.msra.mxu0 0.0
    %5365 = vmatprep.subr.mxu0 0.0
    %5366 = vmatpush2.msra.mxu0 0.0
    %5367 = vmatprep.subr.mxu0 0.0
    %5368 = vmatpush2.msra.mxu0 0.0
    %5369 = vmatprep.subr.mxu0 0.0
    %5370 = vmatpush2.msra.mxu0 0.0
    %5371 = vmatprep.mubr.f32.mxu0 0.0
    %5372 = vmatmul.mubr.f32.gmra.mxu0 %v5305
    %v5373 = vpop.f32.mrf.mxu0
    %v5374 = vadd.f32 %v5229, %v5373
    %v5375 = vpop.f32.mrf.mxu0
    %v5376 = vadd.f32 %v5231, %v5375
    %5377 = vdwg.mxu0
    %5378 = vmatprep.subr.mxu0 0.0
    %5379 = vmatpush1.msra.mxu0 0.0
    %5380 = vmatprep.subr.mxu0 0.0
    %5381 = vmatpush1.msra.mxu0 0.0
    %5382 = vmatprep.subr.mxu0 0.0
    %5383 = vmatpush1.msra.mxu0 0.0
    %5384 = vmatprep.subr.mxu0 0.0
    %5385 = vmatpush1.msra.mxu0 0.0
    %5386 = vmatprep.subr.mxu0 0.0
    %5387 = vmatpush1.msra.mxu0 0.0
    %5388 = vmatprep.subr.mxu0 0.0
    %5389 = vmatpush1.msra.mxu0 0.0
    %5390 = vmatprep.subr.mxu0 0.0
    %5391 = vmatpush1.msra.mxu0 0.0
    %5392 = vmatprep.subr.mxu0 0.0
    %5393 = vmatpush1.msra.mxu0 0.0
    %5394 = vmatprep.subr.mxu0 0.0
    %5395 = vmatpush1.msra.mxu0 0.0
    %5396 = vmatprep.subr.mxu0 0.0
    %5397 = vmatpush1.msra.mxu0 0.0
    %5398 = vmatprep.subr.mxu0 0.0
    %5399 = vmatpush1.msra.mxu0 0.0
    %5400 = vmatprep.subr.mxu0 0.0
    %5401 = vmatpush1.msra.mxu0 0.0
    %5402 = vmatprep.subr.mxu0 %v226
    %5403 = vmatpush1.msra.mxu0 %v225
    %5404 = vmatprep.subr.mxu0 %v222
    %5405 = vmatpush1.msra.mxu0 %v221
    %5406 = vmatprep.subr.mxu0 %v218
    %5407 = vmatpush1.msra.mxu0 %v217
    %5408 = vmatprep.subr.mxu0 %v214
    %5409 = vmatpush1.msra.mxu0 %v213
    %5410 = vmatprep.subr.mxu0 0.0
    %5411 = vmatpush2.msra.mxu0 0.0
    %5412 = vmatprep.subr.mxu0 0.0
    %5413 = vmatpush2.msra.mxu0 0.0
    %5414 = vmatprep.subr.mxu0 0.0
    %5415 = vmatpush2.msra.mxu0 0.0
    %5416 = vmatprep.subr.mxu0 0.0
    %5417 = vmatpush2.msra.mxu0 0.0
    %5418 = vmatprep.subr.mxu0 0.0
    %5419 = vmatpush2.msra.mxu0 0.0
    %5420 = vmatprep.subr.mxu0 0.0
    %5421 = vmatpush2.msra.mxu0 0.0
    %5422 = vmatprep.subr.mxu0 0.0
    %5423 = vmatpush2.msra.mxu0 0.0
    %5424 = vmatprep.subr.mxu0 0.0
    %5425 = vmatpush2.msra.mxu0 0.0
    %5426 = vmatprep.subr.mxu0 0.0
    %5427 = vmatpush2.msra.mxu0 0.0
    %5428 = vmatprep.subr.mxu0 0.0
    %5429 = vmatpush2.msra.mxu0 0.0
    %5430 = vmatprep.subr.mxu0 0.0
    %5431 = vmatpush2.msra.mxu0 0.0
    %5432 = vmatprep.subr.mxu0 0.0
    %5433 = vmatpush2.msra.mxu0 0.0
    %5434 = vmatprep.subr.mxu0 0.0
    %5435 = vmatpush2.msra.mxu0 0.0
    %5436 = vmatprep.subr.mxu0 0.0
    %5437 = vmatpush2.msra.mxu0 0.0
    %5438 = vmatprep.subr.mxu0 0.0
    %5439 = vmatpush2.msra.mxu0 0.0
    %5440 = vmatprep.subr.mxu0 0.0
    %5441 = vmatpush2.msra.mxu0 0.0
    %5442 = vmatprep.mubr.f32.mxu0 0.0
    %5443 = vmatmul.mubr.f32.gmra.mxu0 %v5305
    %v5444 = vpop.f32.mrf.mxu0
    %v5445 = vadd.f32 %v5300, %v5444
    %v5446 = vpop.f32.mrf.mxu0
    %v5447 = vadd.f32 %v5302, %v5446
    %5448 = vdwg.mxu0
    %v5449 = vadd.f32 %v5374, %v939
    %v5450 = vadd.f32 %v5376, %v943
    %v5451 = vadd.f32 %v5445, %v947
    %v5452 = vadd.f32 %v5447, %v951
    %v5453 = vmul.f32 %v5449, 0.5
    %v5454 = vtanh.pop %v5453
    %v5455 = vmul.f32 %v5454, 0.5
    %v5456 = vadd.f32 %v5455, 0.5
    %v5457 = vmul.f32 %v5450, 0.5
    %v5458 = vtanh.pop %v5457
    %v5459 = vmul.f32 %v5458, 0.5
    %v5460 = vadd.f32 %v5459, 0.5
    %v5461 = vtanh.pop %v5451
    %v5462 = vmul.f32 %v5452, 0.5
    %v5463 = vtanh.pop %v5462
    %v5464 = vmul.f32 %v5463, 0.5
    %v5465 = vadd.f32 %v5464, 0.5
    %v5466 = vmul.f32 %v5460, %v4831
    %v5467 = vmul.f32 %v5456, %v5461
    %v5468 = vadd.f32 %v5466, %v5467
    %v5469 = vtanh.pop %v5468
    %v5470 = vmul.f32 %v5465, %v5469
    %v5471 = vsel %vm4847, %v5470, %v4830
    %v5472 = vsel %vm4847, %v5468, %v4831
    %5473 = vst [vmem:[#allocation2] sm:$0xff] %v5159
    %5474 = vst [vmem:[#allocation3] sm:$0xff] %v5160
    %5475 = vst [vmem:[#allocation4] sm:$0xff] %v5471
    %5476 = vst [vmem:[#allocation5] sm:$0xff] %v5472
    // Predicated region
    $region66: #{tpu_custom_call.1} parent=1 // pred_check
      %p5477 = pneg %p121
    $region67: #{tpu_custom_call.1} parent=1 // pred_check_branch
      %5479 = sbr.rel (%p5477) target = $region69
    $region68: #{tpu_custom_call.1} parent=1 // pred_region
      %5480 = vst [vmem:[#allocation17] sm:$0xff] %v5159
      %5481 = vst [vmem:[#allocation17 + $0x8] sm:$0xff] %v5471
    $region69: #{tpu_custom_call.1} parent=1 // pred_fallthru
      _
    // Predicated region
    $region70: #{tpu_custom_call.1} parent=1 // pred_check
      _
    $region71: #{tpu_custom_call.1} parent=1 // pred_check_branch
      %5483 = sbr.rel (0) target = $region73
    $region72: #{tpu_custom_call.1} parent=1 // pred_region
      %s5485 = ssub.s32 256, 256
      %5486 = vsyncadd [#allocation8], %s5485
      %s5488 = sshll.u32 [#allocation17], 4
      %s5489 = int_to_ptr.vmem [resolvable:$true] %s5488
      %5491 = dma.vmem_to_hbm [thread:$0]  %s5489, 256, %s9, [#allocation8]
    $region73: #{tpu_custom_call.1} parent=1 // pred_fallthru
      _
    // Predicated region
    $region74: #{tpu_custom_call.1} parent=1 // pred_check
      _
    $region75: #{tpu_custom_call.1} parent=1 // pred_check_branch
      %5493 = sbr.rel (0) target = $region77
    $region76: #{tpu_custom_call.1} parent=1 // pred_region
      %5494 = dma.done [#allocation8], 256
    $region77: #{tpu_custom_call.1} parent=1 // pred_fallthru
      _
    %5495 = vsyncpa [#allocation7], 1
    %5496 = vsyncpa [#allocation10], 1
    %5497 = vsyncpa [#allocation13], 1
    %5498 = vsyncpa [#allocation16], 1
    %5499 = vsyncpa [#allocation8], 1

</llo_original>
